<compile_context>
chip_gen: v6e
topology: v6e:2x2x1
jax: 0.10.0
libtpu: 0.0.40
codegen_flags: <defaults>
</compile_context>

<pallas_src>
import jax
import jax.numpy as jnp
from jax.experimental import pallas as pl
from jax.experimental.pallas import tpu as pltpu

FEAT_C = 1408       # EfficientNet-B2 forward_features channel count (11 * 128)
VECTOR_SIZE = 512   # embedding size of self.fc
FEAT_H = 8          # small spatial size for the synthetic feature maps
FEAT_W = 8
BATCH = 2


def fused_pool_fc_kernel(x1_ref, x2_ref, w_ref, b_ref, o1_ref, o2_ref):
    # x1_ref/x2_ref: (B, C, H*W) f32 -- branch feature maps, free NCHW reshape (no copy)
    # w_ref:         (C, V)      bf16 -- fc weight * 1/(H*W) (= PyTorch fc.weight.T / HW)
    # b_ref:         (1, V)      f32  -- fc bias
    # o1_ref/o2_ref: (B, V)      f32  -- per-branch embeddings
    #
    # adaptive_avg_pool2d: spatial SUM via lane-reduce (1/HW is folded into w_ref).
    s1 = jnp.sum(x1_ref[...], axis=-1)            # (B, C) f32
    s2 = jnp.sum(x2_ref[...], axis=-1)            # (B, C) f32

    # MXU matmuls, bf16 inputs, f32 accumulation; lane-dense (512-wide) outputs.
    o1_ref[...] = (jnp.dot(s1.astype(jnp.bfloat16), w_ref[...],
                           preferred_element_type=jnp.float32)
                   + b_ref[...]).astype(o1_ref.dtype)
    o2_ref[...] = (jnp.dot(s2.astype(jnp.bfloat16), w_ref[...],
                           preferred_element_type=jnp.float32)
                   + b_ref[...]).astype(o2_ref.dtype)


def prepare_fc_params(w, b, hw):
    """One-time (offline) parameter prep for the fused head.

    w: (C, VECTOR_SIZE) f32 (= PyTorch fc.weight.T), b: (VECTOR_SIZE,) f32.
    Folds the 1/(H*W) adaptive-avg-pool scale into the weight and casts to bf16 once,
    so no per-call cast/scale traffic remains.
    """
    w_prepped = (w * (1.0 / hw)).astype(jnp.bfloat16)          # (C, V) bf16
    b_prepped = b.reshape(1, -1).astype(jnp.float32)           # (1, V) f32
    return w_prepped, b_prepped


@jax.jit
def siamese_forward(feat1, feat2, w_prepped, b_prepped):
    """Equivalent of SiameseNetwork.forward on the two branches' backbone features.

    feat1, feat2: (B, C, H, W) float32 NCHW feature maps (forward_features output).
    w_prepped: (C, VECTOR_SIZE) bf16 (fc.weight.T / (H*W)), b_prepped: (1, VECTOR_SIZE) f32.
    Returns (out1, out2), each (B, VECTOR_SIZE) float32.
    """
    B, C, H, W = feat1.shape
    assert feat2.shape == feat1.shape and C == FEAT_C
    hw = H * W
    V = w_prepped.shape[1]

    # Free reshapes (contiguous) — no transpose, no extra HBM copy.
    x1 = feat1.reshape(B, C, hw)
    x2 = feat2.reshape(B, C, hw)

    out1, out2 = pl.pallas_call(
        fused_pool_fc_kernel,
        out_shape=(jax.ShapeDtypeStruct((B, V), jnp.float32),
                   jax.ShapeDtypeStruct((B, V), jnp.float32)),
        grid_spec=pltpu.PrefetchScalarGridSpec(
            num_scalar_prefetch=0,
            grid=(1,),  # single step: weight + activations fetched exactly once
            in_specs=[
                pl.BlockSpec((B, C, hw), lambda i: (0, 0, 0)),
                pl.BlockSpec((B, C, hw), lambda i: (0, 0, 0)),
                pl.BlockSpec((C, V), lambda i: (0, 0)),
                pl.BlockSpec((1, V), lambda i: (0, 0)),
            ],
            out_specs=(
                pl.BlockSpec((B, V), lambda i: (0, 0)),
                pl.BlockSpec((B, V), lambda i: (0, 0)),
            ),
        ),
        compiler_params=pltpu.CompilerParams(
            dimension_semantics=("arbitrary",),
            vmem_limit_bytes=32 * 1024 * 1024),
    )(x1, x2, w_prepped, b_prepped)

    return out1, out2


if __name__ == "__main__":
    key = jax.random.PRNGKey(0)
    k_w, k_b, k_x1, k_x2 = jax.random.split(key, 4)

    # Deterministic fc parameters, mirroring nn.Linear(1408, 512) default init:
    # U(-1/sqrt(in_features), 1/sqrt(in_features)); stored as (C, V) = W^T.
    bound = 1.0 / (FEAT_C ** 0.5)
    w = jax.random.uniform(k_w, (FEAT_C, VECTOR_SIZE), jnp.float32, -bound, bound)
    b = jax.random.uniform(k_b, (VECTOR_SIZE,), jnp.float32, -bound, bound)

    # Synthetic backbone feature maps (stand-in for forward_features output), NCHW.
    feat1 = jax.random.normal(k_x1, (BATCH, FEAT_C, FEAT_H, FEAT_W), jnp.float32)
    feat2 = jax.random.normal(k_x2, (BATCH, FEAT_C, FEAT_H, FEAT_W), jnp.float32)

    # One-time parameter prep (offline, outside the per-call path).
    w_prepped, b_prepped = prepare_fc_params(w, b, FEAT_H * FEAT_W)

    out1, out2 = siamese_forward(feat1, feat2, w_prepped, b_prepped)
    out1, out2 = jax.block_until_ready((out1, out2))

    # Pure-JAX reference for the pool + fc path (bf16-weight / f32-accum recipe).
    w_bf16 = w.astype(jnp.bfloat16)

    def ref_one(x):
        pooled = jnp.mean(x, axis=(2, 3))                              # (B, C) f32
        return jnp.dot(pooled.astype(jnp.bfloat16), w_bf16,
                       preferred_element_type=jnp.float32) + b[None, :]

    ref1, ref2 = ref_one(feat1), ref_one(feat2)
    assert out1.shape == (BATCH, VECTOR_SIZE) and out2.shape == (BATCH, VECTOR_SIZE)
    assert jnp.allclose(out1, ref1, atol=1e-2, rtol=1e-2)
    assert jnp.allclose(out2, ref2, atol=1e-2, rtol=1e-2)

    print("KERNEL_OK")
</pallas_src>

<mosaic_0001>
module attributes {stable_mosaic.version = 11 : i64} {
  func.func @fused_pool_fc_kernel(%arg0: i32, %arg1: memref<2x1408x64xf32, #tpu.memory_space<vmem>>, %arg2: memref<2x1408x64xf32, #tpu.memory_space<vmem>>, %arg3: memref<1408x512xbf16, #tpu.memory_space<vmem>>, %arg4: memref<1x512xf32, #tpu.memory_space<vmem>>, %arg5: memref<2x512xf32, #tpu.memory_space<vmem>>, %arg6: memref<2x512xf32, #tpu.memory_space<vmem>>) attributes {dimension_semantics = [#tpu.dimension_semantics<arbitrary>], iteration_bounds = array<i64: 1>, scalar_prefetch = 0 : i64, scratch_operands = 0 : i64, tpu.core_type = #tpu.core_type<tc>, window_params = [{pipeline_mode = #tpu.pipeline_mode<synchronous>, transform_indices = @transform_0, window_bounds = array<i64: 2, 1408, 64>}, {pipeline_mode = #tpu.pipeline_mode<synchronous>, transform_indices = @transform_1, window_bounds = array<i64: 2, 1408, 64>}, {pipeline_mode = #tpu.pipeline_mode<synchronous>, transform_indices = @transform_2, window_bounds = array<i64: 1408, 512>}, {pipeline_mode = #tpu.pipeline_mode<synchronous>, transform_indices = @transform_3, window_bounds = array<i64: 1, 512>}, {pipeline_mode = #tpu.pipeline_mode<synchronous>, transform_indices = @transform_4, window_bounds = array<i64: 2, 512>}, {pipeline_mode = #tpu.pipeline_mode<synchronous>, transform_indices = @transform_5, window_bounds = array<i64: 2, 512>}]} {
    %c0 = arith.constant 0 : index
    %c0_0 = arith.constant 0 : index
    %c0_1 = arith.constant 0 : index
    %0 = vector.load %arg1[%c0, %c0_0, %c0_1] : memref<2x1408x64xf32, #tpu.memory_space<vmem>>, vector<2x1408x64xf32>
    %cst = arith.constant dense<0.000000e+00> : vector<2x1408xf32>
    %1 = vector.multi_reduction <add>, %0, %cst [2] : vector<2x1408x64xf32> to vector<2x1408xf32>
    %c0_2 = arith.constant 0 : index
    %c0_3 = arith.constant 0 : index
    %c0_4 = arith.constant 0 : index
    %2 = vector.load %arg2[%c0_2, %c0_3, %c0_4] : memref<2x1408x64xf32, #tpu.memory_space<vmem>>, vector<2x1408x64xf32>
    %cst_5 = arith.constant dense<0.000000e+00> : vector<2x1408xf32>
    %3 = vector.multi_reduction <add>, %2, %cst_5 [2] : vector<2x1408x64xf32> to vector<2x1408xf32>
    %4 = arith.truncf %1 : vector<2x1408xf32> to vector<2x1408xbf16>
    %c0_6 = arith.constant 0 : index
    %c0_7 = arith.constant 0 : index
    %5 = vector.load %arg3[%c0_6, %c0_7] : memref<1408x512xbf16, #tpu.memory_space<vmem>>, vector<1408x512xbf16>
    %cst_8 = arith.constant dense<0.000000e+00> : vector<2x512xf32>
    %6 = tpu.matmul %4, %5, %cst_8 {dimension_numbers = #tpu.dot_dimension_numbers<[1], [0], [0], [1], [0, 0, 1, 1], [], []>} : vector<2x1408xbf16>, vector<1408x512xbf16>, vector<2x512xf32> -> vector<2x512xf32>
    %c0_9 = arith.constant 0 : index
    %c0_10 = arith.constant 0 : index
    %7 = vector.load %arg4[%c0_9, %c0_10] : memref<1x512xf32, #tpu.memory_space<vmem>>, vector<1x512xf32>
    %8 = vector.broadcast %7 : vector<1x512xf32> to vector<2x512xf32>
    %9 = arith.addf %6, %8 : vector<2x512xf32>
    %c0_11 = arith.constant 0 : index
    %c0_12 = arith.constant 0 : index
    %10 = vector.load %arg5[%c0_11, %c0_12] : memref<2x512xf32, #tpu.memory_space<vmem>>, vector<2x512xf32>
    tpu.vector_store %arg5[%c0_11, %c0_12], %9 {strides = array<i32>} : memref<2x512xf32, #tpu.memory_space<vmem>>, vector<2x512xf32>,
    %11 = arith.truncf %3 : vector<2x1408xf32> to vector<2x1408xbf16>
    %c0_13 = arith.constant 0 : index
    %c0_14 = arith.constant 0 : index
    %12 = vector.load %arg3[%c0_13, %c0_14] : memref<1408x512xbf16, #tpu.memory_space<vmem>>, vector<1408x512xbf16>
    %cst_15 = arith.constant dense<0.000000e+00> : vector<2x512xf32>
    %13 = tpu.matmul %11, %12, %cst_15 {dimension_numbers = #tpu.dot_dimension_numbers<[1], [0], [0], [1], [0, 0, 1, 1], [], []>} : vector<2x1408xbf16>, vector<1408x512xbf16>, vector<2x512xf32> -> vector<2x512xf32>
    %c0_16 = arith.constant 0 : index
    %c0_17 = arith.constant 0 : index
    %14 = vector.load %arg4[%c0_16, %c0_17] : memref<1x512xf32, #tpu.memory_space<vmem>>, vector<1x512xf32>
    %15 = vector.broadcast %14 : vector<1x512xf32> to vector<2x512xf32>
    %16 = arith.addf %13, %15 : vector<2x512xf32>
    %c0_18 = arith.constant 0 : index
    %c0_19 = arith.constant 0 : index
    %17 = vector.load %arg6[%c0_18, %c0_19] : memref<2x512xf32, #tpu.memory_space<vmem>>, vector<2x512xf32>
    tpu.vector_store %arg6[%c0_18, %c0_19], %16 {strides = array<i32>} : memref<2x512xf32, #tpu.memory_space<vmem>>, vector<2x512xf32>,
    return
  }
  func.func @transform_0(%arg0: i32) -> (i32, i32, i32) {
    %c0_i32 = arith.constant 0 : i32
    %c0_i32_0 = arith.constant 0 : i32
    %c0_i32_1 = arith.constant 0 : i32
    %c0_i32_2 = arith.constant 0 : i32
    return %c0_i32, %c0_i32_0, %c0_i32_1 : i32, i32, i32
  }
  func.func @transform_1(%arg0: i32) -> (i32, i32, i32) {
    %c0_i32 = arith.constant 0 : i32
    %c0_i32_0 = arith.constant 0 : i32
    %c0_i32_1 = arith.constant 0 : i32
    %c0_i32_2 = arith.constant 0 : i32
    return %c0_i32, %c0_i32_0, %c0_i32_1 : i32, i32, i32
  }
  func.func @transform_2(%arg0: i32) -> (i32, i32) {
    %c0_i32 = arith.constant 0 : i32
    %c0_i32_0 = arith.constant 0 : i32
    %c0_i32_1 = arith.constant 0 : i32
    return %c0_i32, %c0_i32_0 : i32, i32
  }
  func.func @transform_3(%arg0: i32) -> (i32, i32) {
    %c0_i32 = arith.constant 0 : i32
    %c0_i32_0 = arith.constant 0 : i32
    %c0_i32_1 = arith.constant 0 : i32
    return %c0_i32, %c0_i32_0 : i32, i32
  }
  func.func @transform_4(%arg0: i32) -> (i32, i32) {
    %c0_i32 = arith.constant 0 : i32
    %c0_i32_0 = arith.constant 0 : i32
    %c0_i32_1 = arith.constant 0 : i32
    return %c0_i32, %c0_i32_0 : i32, i32
  }
  func.func @transform_5(%arg0: i32) -> (i32, i32) {
    %c0_i32 = arith.constant 0 : i32
    %c0_i32_0 = arith.constant 0 : i32
    %c0_i32_1 = arith.constant 0 : i32
    return %c0_i32, %c0_i32_0 : i32, i32
  }
}

</mosaic_0001>

<llo_original>
// kernel: siamese_forward.1
$region0: #{siamese_forward.1}
  #allocation0 [shape = 'u32[]', space=smem, size = 0x4, offset = 0x4, fixed_abs, tag = 'smem constant byte address 0x4 - core index']
  #allocation1 [shape = 'u32[144,128]{1,0:T(1,128)}', space=vmem, size = 0x12000, scoped, tag = 'internal scratch']
  %s0 = inlined_call_operand.vmem [shape: f32[2,1408,64], index: 0, kind: input, shape index: {}]
  %s1 = inlined_call_operand.vmem [shape: f32[2,1408,64], index: 1, kind: input, shape index: {}]
  %s2 = inlined_call_operand.vmem [shape: bf16[1408,512], index: 2, kind: input, shape index: {}]
  %s3 = inlined_call_operand.vmem [shape: f32[1,512], index: 3, kind: input, shape index: {}]
  %s4 = inlined_call_operand.hbm [shape: f32[2,512], index: 4, kind: output, shape index: {0}]
  %s5 = inlined_call_operand.hbm [shape: f32[2,512], index: 5, kind: output, shape index: {1}]
  %6 = xla_tuple %s4, %s5
  %s7 = sld [smem:[#allocation0]]
  $region34: #{siamese_forward.1} parent=0
    _
  %s9 = ssub.s32 1, %s7
  %s10 = scalar_select 0, %s9, %s7
  $region1: #{siamese_forward.1} parent=0
    #allocation2 [shape = 'u8[4096]{0}', space=vmem, size = 0x1000, scoped, tag = 'output window, operand 0, single buffered']
    #allocation3 [shape = 's32[1]{0}', space=sflag, size = 0x4, scoped, tag = 'scoped memory for siamese_forward.1']
    #allocation4 [shape = 'u8[4096]{0}', space=vmem, size = 0x1000, scoped, tag = 'output window, operand 1, single buffered']
    #allocation5 [shape = 's32[1]{0}', space=sflag, size = 0x4, scoped, tag = 'scoped memory for siamese_forward.1']
    %11 = vsyncpa [#allocation3], 0
    %12 = vsyncpa [#allocation5], 0
    // Predicated region
    $region2: #{siamese_forward.1} parent=1 // pred_check
      _
    $region3: #{siamese_forward.1} parent=1 // pred_check_branch
      %14 = sbr.rel (0) target = $region5
    $region4: #{siamese_forward.1} parent=1 // pred_region
      _
    $region5: #{siamese_forward.1} parent=1 // pred_fallthru
      _
    // Predicated region
    $region6: #{siamese_forward.1} parent=1 // pred_check
      _
    $region7: #{siamese_forward.1} parent=1 // pred_check_branch
      %16 = sbr.rel (0) target = $region9
    $region8: #{siamese_forward.1} parent=1 // pred_region
      _
    $region9: #{siamese_forward.1} parent=1 // pred_fallthru
      _
    // Predicated region
    $region10: #{siamese_forward.1} parent=1 // pred_check
      _
    $region11: #{siamese_forward.1} parent=1 // pred_check_branch
      %18 = sbr.rel (0) target = $region13
    $region12: #{siamese_forward.1} parent=1 // pred_region
      _
    $region13: #{siamese_forward.1} parent=1 // pred_fallthru
      _
    // Predicated region
    $region14: #{siamese_forward.1} parent=1 // pred_check
      _
    $region15: #{siamese_forward.1} parent=1 // pred_check_branch
      %20 = sbr.rel (0) target = $region17
    $region16: #{siamese_forward.1} parent=1 // pred_region
      _
    $region17: #{siamese_forward.1} parent=1 // pred_fallthru
      _
    %v22 = vld [vmem:[%s0] sm:$0xff]
    %v23 = vld [vmem:[%s0 + $0x8] sm:$0xff]
    %v24 = vld [vmem:[%s0 + $0x10] sm:$0xff]
    %v25 = vld [vmem:[%s0 + $0x18] sm:$0xff]
    %v26 = vld [vmem:[%s0 + $0x20] sm:$0xff]
    %v27 = vld [vmem:[%s0 + $0x28] sm:$0xff]
    %v28 = vld [vmem:[%s0 + $0x30] sm:$0xff]
    %v29 = vld [vmem:[%s0 + $0x38] sm:$0xff]
    %v30 = vld [vmem:[%s0 + $0x40] sm:$0xff]
    %v31 = vld [vmem:[%s0 + $0x48] sm:$0xff]
    %v32 = vld [vmem:[%s0 + $0x50] sm:$0xff]
    %v33 = vld [vmem:[%s0 + $0x58] sm:$0xff]
    %v34 = vld [vmem:[%s0 + $0x60] sm:$0xff]
    %v35 = vld [vmem:[%s0 + $0x68] sm:$0xff]
    %v36 = vld [vmem:[%s0 + $0x70] sm:$0xff]
    %v37 = vld [vmem:[%s0 + $0x78] sm:$0xff]
    %v38 = vld [vmem:[%s0 + $0x80] sm:$0xff]
    %v39 = vld [vmem:[%s0 + $0x88] sm:$0xff]
    %v40 = vld [vmem:[%s0 + $0x90] sm:$0xff]
    %v41 = vld [vmem:[%s0 + $0x98] sm:$0xff]
    %v42 = vld [vmem:[%s0 + $0xa0] sm:$0xff]
    %v43 = vld [vmem:[%s0 + $0xa8] sm:$0xff]
    %v44 = vld [vmem:[%s0 + $0xb0] sm:$0xff]
    %v45 = vld [vmem:[%s0 + $0xb8] sm:$0xff]
    %v46 = vld [vmem:[%s0 + $0xc0] sm:$0xff]
    %v47 = vld [vmem:[%s0 + $0xc8] sm:$0xff]
    %v48 = vld [vmem:[%s0 + $0xd0] sm:$0xff]
    %v49 = vld [vmem:[%s0 + $0xd8] sm:$0xff]
    %v50 = vld [vmem:[%s0 + $0xe0] sm:$0xff]
    %v51 = vld [vmem:[%s0 + $0xe8] sm:$0xff]
    %v52 = vld [vmem:[%s0 + $0xf0] sm:$0xff]
    %v53 = vld [vmem:[%s0 + $0xf8] sm:$0xff]
    %v54 = vld [vmem:[%s0 + $0x100] sm:$0xff]
    %v55 = vld [vmem:[%s0 + $0x108] sm:$0xff]
    %v56 = vld [vmem:[%s0 + $0x110] sm:$0xff]
    %v57 = vld [vmem:[%s0 + $0x118] sm:$0xff]
    %v58 = vld [vmem:[%s0 + $0x120] sm:$0xff]
    %v59 = vld [vmem:[%s0 + $0x128] sm:$0xff]
    %v60 = vld [vmem:[%s0 + $0x130] sm:$0xff]
    %v61 = vld [vmem:[%s0 + $0x138] sm:$0xff]
    %v62 = vld [vmem:[%s0 + $0x140] sm:$0xff]
    %v63 = vld [vmem:[%s0 + $0x148] sm:$0xff]
    %v64 = vld [vmem:[%s0 + $0x150] sm:$0xff]
    %v65 = vld [vmem:[%s0 + $0x158] sm:$0xff]
    %v66 = vld [vmem:[%s0 + $0x160] sm:$0xff]
    %v67 = vld [vmem:[%s0 + $0x168] sm:$0xff]
    %v68 = vld [vmem:[%s0 + $0x170] sm:$0xff]
    %v69 = vld [vmem:[%s0 + $0x178] sm:$0xff]
    %v70 = vld [vmem:[%s0 + $0x180] sm:$0xff]
    %v71 = vld [vmem:[%s0 + $0x188] sm:$0xff]
    %v72 = vld [vmem:[%s0 + $0x190] sm:$0xff]
    %v73 = vld [vmem:[%s0 + $0x198] sm:$0xff]
    %v74 = vld [vmem:[%s0 + $0x1a0] sm:$0xff]
    %v75 = vld [vmem:[%s0 + $0x1a8] sm:$0xff]
    %v76 = vld [vmem:[%s0 + $0x1b0] sm:$0xff]
    %v77 = vld [vmem:[%s0 + $0x1b8] sm:$0xff]
    %v78 = vld [vmem:[%s0 + $0x1c0] sm:$0xff]
    %v79 = vld [vmem:[%s0 + $0x1c8] sm:$0xff]
    %v80 = vld [vmem:[%s0 + $0x1d0] sm:$0xff]
    %v81 = vld [vmem:[%s0 + $0x1d8] sm:$0xff]
    %v82 = vld [vmem:[%s0 + $0x1e0] sm:$0xff]
    %v83 = vld [vmem:[%s0 + $0x1e8] sm:$0xff]
    %v84 = vld [vmem:[%s0 + $0x1f0] sm:$0xff]
    %v85 = vld [vmem:[%s0 + $0x1f8] sm:$0xff]
    %v86 = vld [vmem:[%s0 + $0x200] sm:$0xff]
    %v87 = vld [vmem:[%s0 + $0x208] sm:$0xff]
    %v88 = vld [vmem:[%s0 + $0x210] sm:$0xff]
    %v89 = vld [vmem:[%s0 + $0x218] sm:$0xff]
    %v90 = vld [vmem:[%s0 + $0x220] sm:$0xff]
    %v91 = vld [vmem:[%s0 + $0x228] sm:$0xff]
    %v92 = vld [vmem:[%s0 + $0x230] sm:$0xff]
    %v93 = vld [vmem:[%s0 + $0x238] sm:$0xff]
    %v94 = vld [vmem:[%s0 + $0x240] sm:$0xff]
    %v95 = vld [vmem:[%s0 + $0x248] sm:$0xff]
    %v96 = vld [vmem:[%s0 + $0x250] sm:$0xff]
    %v97 = vld [vmem:[%s0 + $0x258] sm:$0xff]
    %v98 = vld [vmem:[%s0 + $0x260] sm:$0xff]
    %v99 = vld [vmem:[%s0 + $0x268] sm:$0xff]
    %v100 = vld [vmem:[%s0 + $0x270] sm:$0xff]
    %v101 = vld [vmem:[%s0 + $0x278] sm:$0xff]
    %v102 = vld [vmem:[%s0 + $0x280] sm:$0xff]
    %v103 = vld [vmem:[%s0 + $0x288] sm:$0xff]
    %v104 = vld [vmem:[%s0 + $0x290] sm:$0xff]
    %v105 = vld [vmem:[%s0 + $0x298] sm:$0xff]
    %v106 = vld [vmem:[%s0 + $0x2a0] sm:$0xff]
    %v107 = vld [vmem:[%s0 + $0x2a8] sm:$0xff]
    %v108 = vld [vmem:[%s0 + $0x2b0] sm:$0xff]
    %v109 = vld [vmem:[%s0 + $0x2b8] sm:$0xff]
    %v110 = vld [vmem:[%s0 + $0x2c0] sm:$0xff]
    %v111 = vld [vmem:[%s0 + $0x2c8] sm:$0xff]
    %v112 = vld [vmem:[%s0 + $0x2d0] sm:$0xff]
    %v113 = vld [vmem:[%s0 + $0x2d8] sm:$0xff]
    %v114 = vld [vmem:[%s0 + $0x2e0] sm:$0xff]
    %v115 = vld [vmem:[%s0 + $0x2e8] sm:$0xff]
    %v116 = vld [vmem:[%s0 + $0x2f0] sm:$0xff]
    %v117 = vld [vmem:[%s0 + $0x2f8] sm:$0xff]
    %v118 = vld [vmem:[%s0 + $0x300] sm:$0xff]
    %v119 = vld [vmem:[%s0 + $0x308] sm:$0xff]
    %v120 = vld [vmem:[%s0 + $0x310] sm:$0xff]
    %v121 = vld [vmem:[%s0 + $0x318] sm:$0xff]
    %v122 = vld [vmem:[%s0 + $0x320] sm:$0xff]
    %v123 = vld [vmem:[%s0 + $0x328] sm:$0xff]
    %v124 = vld [vmem:[%s0 + $0x330] sm:$0xff]
    %v125 = vld [vmem:[%s0 + $0x338] sm:$0xff]
    %v126 = vld [vmem:[%s0 + $0x340] sm:$0xff]
    %v127 = vld [vmem:[%s0 + $0x348] sm:$0xff]
    %v128 = vld [vmem:[%s0 + $0x350] sm:$0xff]
    %v129 = vld [vmem:[%s0 + $0x358] sm:$0xff]
    %v130 = vld [vmem:[%s0 + $0x360] sm:$0xff]
    %v131 = vld [vmem:[%s0 + $0x368] sm:$0xff]
    %v132 = vld [vmem:[%s0 + $0x370] sm:$0xff]
    %v133 = vld [vmem:[%s0 + $0x378] sm:$0xff]
    %v134 = vld [vmem:[%s0 + $0x380] sm:$0xff]
    %v135 = vld [vmem:[%s0 + $0x388] sm:$0xff]
    %v136 = vld [vmem:[%s0 + $0x390] sm:$0xff]
    %v137 = vld [vmem:[%s0 + $0x398] sm:$0xff]
    %v138 = vld [vmem:[%s0 + $0x3a0] sm:$0xff]
    %v139 = vld [vmem:[%s0 + $0x3a8] sm:$0xff]
    %v140 = vld [vmem:[%s0 + $0x3b0] sm:$0xff]
    %v141 = vld [vmem:[%s0 + $0x3b8] sm:$0xff]
    %v142 = vld [vmem:[%s0 + $0x3c0] sm:$0xff]
    %v143 = vld [vmem:[%s0 + $0x3c8] sm:$0xff]
    %v144 = vld [vmem:[%s0 + $0x3d0] sm:$0xff]
    %v145 = vld [vmem:[%s0 + $0x3d8] sm:$0xff]
    %v146 = vld [vmem:[%s0 + $0x3e0] sm:$0xff]
    %v147 = vld [vmem:[%s0 + $0x3e8] sm:$0xff]
    %v148 = vld [vmem:[%s0 + $0x3f0] sm:$0xff]
    %v149 = vld [vmem:[%s0 + $0x3f8] sm:$0xff]
    %v150 = vld [vmem:[%s0 + $0x400] sm:$0xff]
    %v151 = vld [vmem:[%s0 + $0x408] sm:$0xff]
    %v152 = vld [vmem:[%s0 + $0x410] sm:$0xff]
    %v153 = vld [vmem:[%s0 + $0x418] sm:$0xff]
    %v154 = vld [vmem:[%s0 + $0x420] sm:$0xff]
    %v155 = vld [vmem:[%s0 + $0x428] sm:$0xff]
    %v156 = vld [vmem:[%s0 + $0x430] sm:$0xff]
    %v157 = vld [vmem:[%s0 + $0x438] sm:$0xff]
    %v158 = vld [vmem:[%s0 + $0x440] sm:$0xff]
    %v159 = vld [vmem:[%s0 + $0x448] sm:$0xff]
    %v160 = vld [vmem:[%s0 + $0x450] sm:$0xff]
    %v161 = vld [vmem:[%s0 + $0x458] sm:$0xff]
    %v162 = vld [vmem:[%s0 + $0x460] sm:$0xff]
    %v163 = vld [vmem:[%s0 + $0x468] sm:$0xff]
    %v164 = vld [vmem:[%s0 + $0x470] sm:$0xff]
    %v165 = vld [vmem:[%s0 + $0x478] sm:$0xff]
    %v166 = vld [vmem:[%s0 + $0x480] sm:$0xff]
    %v167 = vld [vmem:[%s0 + $0x488] sm:$0xff]
    %v168 = vld [vmem:[%s0 + $0x490] sm:$0xff]
    %v169 = vld [vmem:[%s0 + $0x498] sm:$0xff]
    %v170 = vld [vmem:[%s0 + $0x4a0] sm:$0xff]
    %v171 = vld [vmem:[%s0 + $0x4a8] sm:$0xff]
    %v172 = vld [vmem:[%s0 + $0x4b0] sm:$0xff]
    %v173 = vld [vmem:[%s0 + $0x4b8] sm:$0xff]
    %v174 = vld [vmem:[%s0 + $0x4c0] sm:$0xff]
    %v175 = vld [vmem:[%s0 + $0x4c8] sm:$0xff]
    %v176 = vld [vmem:[%s0 + $0x4d0] sm:$0xff]
    %v177 = vld [vmem:[%s0 + $0x4d8] sm:$0xff]
    %v178 = vld [vmem:[%s0 + $0x4e0] sm:$0xff]
    %v179 = vld [vmem:[%s0 + $0x4e8] sm:$0xff]
    %v180 = vld [vmem:[%s0 + $0x4f0] sm:$0xff]
    %v181 = vld [vmem:[%s0 + $0x4f8] sm:$0xff]
    %v182 = vld [vmem:[%s0 + $0x500] sm:$0xff]
    %v183 = vld [vmem:[%s0 + $0x508] sm:$0xff]
    %v184 = vld [vmem:[%s0 + $0x510] sm:$0xff]
    %v185 = vld [vmem:[%s0 + $0x518] sm:$0xff]
    %v186 = vld [vmem:[%s0 + $0x520] sm:$0xff]
    %v187 = vld [vmem:[%s0 + $0x528] sm:$0xff]
    %v188 = vld [vmem:[%s0 + $0x530] sm:$0xff]
    %v189 = vld [vmem:[%s0 + $0x538] sm:$0xff]
    %v190 = vld [vmem:[%s0 + $0x540] sm:$0xff]
    %v191 = vld [vmem:[%s0 + $0x548] sm:$0xff]
    %v192 = vld [vmem:[%s0 + $0x550] sm:$0xff]
    %v193 = vld [vmem:[%s0 + $0x558] sm:$0xff]
    %v194 = vld [vmem:[%s0 + $0x560] sm:$0xff]
    %v195 = vld [vmem:[%s0 + $0x568] sm:$0xff]
    %v196 = vld [vmem:[%s0 + $0x570] sm:$0xff]
    %v197 = vld [vmem:[%s0 + $0x578] sm:$0xff]
    %v198 = vld [vmem:[%s0 + $0x580] sm:$0xff]
    %v199 = vld [vmem:[%s0 + $0x588] sm:$0xff]
    %v200 = vld [vmem:[%s0 + $0x590] sm:$0xff]
    %v201 = vld [vmem:[%s0 + $0x598] sm:$0xff]
    %v202 = vld [vmem:[%s0 + $0x5a0] sm:$0xff]
    %v203 = vld [vmem:[%s0 + $0x5a8] sm:$0xff]
    %v204 = vld [vmem:[%s0 + $0x5b0] sm:$0xff]
    %v205 = vld [vmem:[%s0 + $0x5b8] sm:$0xff]
    %v206 = vld [vmem:[%s0 + $0x5c0] sm:$0xff]
    %v207 = vld [vmem:[%s0 + $0x5c8] sm:$0xff]
    %v208 = vld [vmem:[%s0 + $0x5d0] sm:$0xff]
    %v209 = vld [vmem:[%s0 + $0x5d8] sm:$0xff]
    %v210 = vld [vmem:[%s0 + $0x5e0] sm:$0xff]
    %v211 = vld [vmem:[%s0 + $0x5e8] sm:$0xff]
    %v212 = vld [vmem:[%s0 + $0x5f0] sm:$0xff]
    %v213 = vld [vmem:[%s0 + $0x5f8] sm:$0xff]
    %v214 = vld [vmem:[%s0 + $0x600] sm:$0xff]
    %v215 = vld [vmem:[%s0 + $0x608] sm:$0xff]
    %v216 = vld [vmem:[%s0 + $0x610] sm:$0xff]
    %v217 = vld [vmem:[%s0 + $0x618] sm:$0xff]
    %v218 = vld [vmem:[%s0 + $0x620] sm:$0xff]
    %v219 = vld [vmem:[%s0 + $0x628] sm:$0xff]
    %v220 = vld [vmem:[%s0 + $0x630] sm:$0xff]
    %v221 = vld [vmem:[%s0 + $0x638] sm:$0xff]
    %v222 = vld [vmem:[%s0 + $0x640] sm:$0xff]
    %v223 = vld [vmem:[%s0 + $0x648] sm:$0xff]
    %v224 = vld [vmem:[%s0 + $0x650] sm:$0xff]
    %v225 = vld [vmem:[%s0 + $0x658] sm:$0xff]
    %v226 = vld [vmem:[%s0 + $0x660] sm:$0xff]
    %v227 = vld [vmem:[%s0 + $0x668] sm:$0xff]
    %v228 = vld [vmem:[%s0 + $0x670] sm:$0xff]
    %v229 = vld [vmem:[%s0 + $0x678] sm:$0xff]
    %v230 = vld [vmem:[%s0 + $0x680] sm:$0xff]
    %v231 = vld [vmem:[%s0 + $0x688] sm:$0xff]
    %v232 = vld [vmem:[%s0 + $0x690] sm:$0xff]
    %v233 = vld [vmem:[%s0 + $0x698] sm:$0xff]
    %v234 = vld [vmem:[%s0 + $0x6a0] sm:$0xff]
    %v235 = vld [vmem:[%s0 + $0x6a8] sm:$0xff]
    %v236 = vld [vmem:[%s0 + $0x6b0] sm:$0xff]
    %v237 = vld [vmem:[%s0 + $0x6b8] sm:$0xff]
    %v238 = vld [vmem:[%s0 + $0x6c0] sm:$0xff]
    %v239 = vld [vmem:[%s0 + $0x6c8] sm:$0xff]
    %v240 = vld [vmem:[%s0 + $0x6d0] sm:$0xff]
    %v241 = vld [vmem:[%s0 + $0x6d8] sm:$0xff]
    %v242 = vld [vmem:[%s0 + $0x6e0] sm:$0xff]
    %v243 = vld [vmem:[%s0 + $0x6e8] sm:$0xff]
    %v244 = vld [vmem:[%s0 + $0x6f0] sm:$0xff]
    %v245 = vld [vmem:[%s0 + $0x6f8] sm:$0xff]
    %v246 = vld [vmem:[%s0 + $0x700] sm:$0xff]
    %v247 = vld [vmem:[%s0 + $0x708] sm:$0xff]
    %v248 = vld [vmem:[%s0 + $0x710] sm:$0xff]
    %v249 = vld [vmem:[%s0 + $0x718] sm:$0xff]
    %v250 = vld [vmem:[%s0 + $0x720] sm:$0xff]
    %v251 = vld [vmem:[%s0 + $0x728] sm:$0xff]
    %v252 = vld [vmem:[%s0 + $0x730] sm:$0xff]
    %v253 = vld [vmem:[%s0 + $0x738] sm:$0xff]
    %v254 = vld [vmem:[%s0 + $0x740] sm:$0xff]
    %v255 = vld [vmem:[%s0 + $0x748] sm:$0xff]
    %v256 = vld [vmem:[%s0 + $0x750] sm:$0xff]
    %v257 = vld [vmem:[%s0 + $0x758] sm:$0xff]
    %v258 = vld [vmem:[%s0 + $0x760] sm:$0xff]
    %v259 = vld [vmem:[%s0 + $0x768] sm:$0xff]
    %v260 = vld [vmem:[%s0 + $0x770] sm:$0xff]
    %v261 = vld [vmem:[%s0 + $0x778] sm:$0xff]
    %v262 = vld [vmem:[%s0 + $0x780] sm:$0xff]
    %v263 = vld [vmem:[%s0 + $0x788] sm:$0xff]
    %v264 = vld [vmem:[%s0 + $0x790] sm:$0xff]
    %v265 = vld [vmem:[%s0 + $0x798] sm:$0xff]
    %v266 = vld [vmem:[%s0 + $0x7a0] sm:$0xff]
    %v267 = vld [vmem:[%s0 + $0x7a8] sm:$0xff]
    %v268 = vld [vmem:[%s0 + $0x7b0] sm:$0xff]
    %v269 = vld [vmem:[%s0 + $0x7b8] sm:$0xff]
    %v270 = vld [vmem:[%s0 + $0x7c0] sm:$0xff]
    %v271 = vld [vmem:[%s0 + $0x7c8] sm:$0xff]
    %v272 = vld [vmem:[%s0 + $0x7d0] sm:$0xff]
    %v273 = vld [vmem:[%s0 + $0x7d8] sm:$0xff]
    %v274 = vld [vmem:[%s0 + $0x7e0] sm:$0xff]
    %v275 = vld [vmem:[%s0 + $0x7e8] sm:$0xff]
    %v276 = vld [vmem:[%s0 + $0x7f0] sm:$0xff]
    %v277 = vld [vmem:[%s0 + $0x7f8] sm:$0xff]
    %v278 = vld [vmem:[%s0 + $0x800] sm:$0xff]
    %v279 = vld [vmem:[%s0 + $0x808] sm:$0xff]
    %v280 = vld [vmem:[%s0 + $0x810] sm:$0xff]
    %v281 = vld [vmem:[%s0 + $0x818] sm:$0xff]
    %v282 = vld [vmem:[%s0 + $0x820] sm:$0xff]
    %v283 = vld [vmem:[%s0 + $0x828] sm:$0xff]
    %v284 = vld [vmem:[%s0 + $0x830] sm:$0xff]
    %v285 = vld [vmem:[%s0 + $0x838] sm:$0xff]
    %v286 = vld [vmem:[%s0 + $0x840] sm:$0xff]
    %v287 = vld [vmem:[%s0 + $0x848] sm:$0xff]
    %v288 = vld [vmem:[%s0 + $0x850] sm:$0xff]
    %v289 = vld [vmem:[%s0 + $0x858] sm:$0xff]
    %v290 = vld [vmem:[%s0 + $0x860] sm:$0xff]
    %v291 = vld [vmem:[%s0 + $0x868] sm:$0xff]
    %v292 = vld [vmem:[%s0 + $0x870] sm:$0xff]
    %v293 = vld [vmem:[%s0 + $0x878] sm:$0xff]
    %v294 = vld [vmem:[%s0 + $0x880] sm:$0xff]
    %v295 = vld [vmem:[%s0 + $0x888] sm:$0xff]
    %v296 = vld [vmem:[%s0 + $0x890] sm:$0xff]
    %v297 = vld [vmem:[%s0 + $0x898] sm:$0xff]
    %v298 = vld [vmem:[%s0 + $0x8a0] sm:$0xff]
    %v299 = vld [vmem:[%s0 + $0x8a8] sm:$0xff]
    %v300 = vld [vmem:[%s0 + $0x8b0] sm:$0xff]
    %v301 = vld [vmem:[%s0 + $0x8b8] sm:$0xff]
    %v302 = vld [vmem:[%s0 + $0x8c0] sm:$0xff]
    %v303 = vld [vmem:[%s0 + $0x8c8] sm:$0xff]
    %v304 = vld [vmem:[%s0 + $0x8d0] sm:$0xff]
    %v305 = vld [vmem:[%s0 + $0x8d8] sm:$0xff]
    %v306 = vld [vmem:[%s0 + $0x8e0] sm:$0xff]
    %v307 = vld [vmem:[%s0 + $0x8e8] sm:$0xff]
    %v308 = vld [vmem:[%s0 + $0x8f0] sm:$0xff]
    %v309 = vld [vmem:[%s0 + $0x8f8] sm:$0xff]
    %v310 = vld [vmem:[%s0 + $0x900] sm:$0xff]
    %v311 = vld [vmem:[%s0 + $0x908] sm:$0xff]
    %v312 = vld [vmem:[%s0 + $0x910] sm:$0xff]
    %v313 = vld [vmem:[%s0 + $0x918] sm:$0xff]
    %v314 = vld [vmem:[%s0 + $0x920] sm:$0xff]
    %v315 = vld [vmem:[%s0 + $0x928] sm:$0xff]
    %v316 = vld [vmem:[%s0 + $0x930] sm:$0xff]
    %v317 = vld [vmem:[%s0 + $0x938] sm:$0xff]
    %v318 = vld [vmem:[%s0 + $0x940] sm:$0xff]
    %v319 = vld [vmem:[%s0 + $0x948] sm:$0xff]
    %v320 = vld [vmem:[%s0 + $0x950] sm:$0xff]
    %v321 = vld [vmem:[%s0 + $0x958] sm:$0xff]
    %v322 = vld [vmem:[%s0 + $0x960] sm:$0xff]
    %v323 = vld [vmem:[%s0 + $0x968] sm:$0xff]
    %v324 = vld [vmem:[%s0 + $0x970] sm:$0xff]
    %v325 = vld [vmem:[%s0 + $0x978] sm:$0xff]
    %v326 = vld [vmem:[%s0 + $0x980] sm:$0xff]
    %v327 = vld [vmem:[%s0 + $0x988] sm:$0xff]
    %v328 = vld [vmem:[%s0 + $0x990] sm:$0xff]
    %v329 = vld [vmem:[%s0 + $0x998] sm:$0xff]
    %v330 = vld [vmem:[%s0 + $0x9a0] sm:$0xff]
    %v331 = vld [vmem:[%s0 + $0x9a8] sm:$0xff]
    %v332 = vld [vmem:[%s0 + $0x9b0] sm:$0xff]
    %v333 = vld [vmem:[%s0 + $0x9b8] sm:$0xff]
    %v334 = vld [vmem:[%s0 + $0x9c0] sm:$0xff]
    %v335 = vld [vmem:[%s0 + $0x9c8] sm:$0xff]
    %v336 = vld [vmem:[%s0 + $0x9d0] sm:$0xff]
    %v337 = vld [vmem:[%s0 + $0x9d8] sm:$0xff]
    %v338 = vld [vmem:[%s0 + $0x9e0] sm:$0xff]
    %v339 = vld [vmem:[%s0 + $0x9e8] sm:$0xff]
    %v340 = vld [vmem:[%s0 + $0x9f0] sm:$0xff]
    %v341 = vld [vmem:[%s0 + $0x9f8] sm:$0xff]
    %v342 = vld [vmem:[%s0 + $0xa00] sm:$0xff]
    %v343 = vld [vmem:[%s0 + $0xa08] sm:$0xff]
    %v344 = vld [vmem:[%s0 + $0xa10] sm:$0xff]
    %v345 = vld [vmem:[%s0 + $0xa18] sm:$0xff]
    %v346 = vld [vmem:[%s0 + $0xa20] sm:$0xff]
    %v347 = vld [vmem:[%s0 + $0xa28] sm:$0xff]
    %v348 = vld [vmem:[%s0 + $0xa30] sm:$0xff]
    %v349 = vld [vmem:[%s0 + $0xa38] sm:$0xff]
    %v350 = vld [vmem:[%s0 + $0xa40] sm:$0xff]
    %v351 = vld [vmem:[%s0 + $0xa48] sm:$0xff]
    %v352 = vld [vmem:[%s0 + $0xa50] sm:$0xff]
    %v353 = vld [vmem:[%s0 + $0xa58] sm:$0xff]
    %v354 = vld [vmem:[%s0 + $0xa60] sm:$0xff]
    %v355 = vld [vmem:[%s0 + $0xa68] sm:$0xff]
    %v356 = vld [vmem:[%s0 + $0xa70] sm:$0xff]
    %v357 = vld [vmem:[%s0 + $0xa78] sm:$0xff]
    %v358 = vld [vmem:[%s0 + $0xa80] sm:$0xff]
    %v359 = vld [vmem:[%s0 + $0xa88] sm:$0xff]
    %v360 = vld [vmem:[%s0 + $0xa90] sm:$0xff]
    %v361 = vld [vmem:[%s0 + $0xa98] sm:$0xff]
    %v362 = vld [vmem:[%s0 + $0xaa0] sm:$0xff]
    %v363 = vld [vmem:[%s0 + $0xaa8] sm:$0xff]
    %v364 = vld [vmem:[%s0 + $0xab0] sm:$0xff]
    %v365 = vld [vmem:[%s0 + $0xab8] sm:$0xff]
    %v366 = vld [vmem:[%s0 + $0xac0] sm:$0xff]
    %v367 = vld [vmem:[%s0 + $0xac8] sm:$0xff]
    %v368 = vld [vmem:[%s0 + $0xad0] sm:$0xff]
    %v369 = vld [vmem:[%s0 + $0xad8] sm:$0xff]
    %v370 = vld [vmem:[%s0 + $0xae0] sm:$0xff]
    %v371 = vld [vmem:[%s0 + $0xae8] sm:$0xff]
    %v372 = vld [vmem:[%s0 + $0xaf0] sm:$0xff]
    %v373 = vld [vmem:[%s0 + $0xaf8] sm:$0xff]
    %vm374 = vcmask 523264
    %v375 = vsel %vm374, %v22, 0.0
    %376 = vadd.xlane.f32.xlu0 %v375
    %v377 = vpop.xlane.xlu0 %376
    %v378 = vsel %vm374, %v23, 0.0
    %379 = vadd.xlane.f32.xlu0 %v378
    %v380 = vpop.xlane.xlu0 %379
    %v381 = vsel %vm374, %v24, 0.0
    %382 = vadd.xlane.f32.xlu0 %v381
    %v383 = vpop.xlane.xlu0 %382
    %v384 = vsel %vm374, %v25, 0.0
    %385 = vadd.xlane.f32.xlu0 %v384
    %v386 = vpop.xlane.xlu0 %385
    %v387 = vsel %vm374, %v26, 0.0
    %388 = vadd.xlane.f32.xlu0 %v387
    %v389 = vpop.xlane.xlu0 %388
    %v390 = vsel %vm374, %v27, 0.0
    %391 = vadd.xlane.f32.xlu0 %v390
    %v392 = vpop.xlane.xlu0 %391
    %v393 = vsel %vm374, %v28, 0.0
    %394 = vadd.xlane.f32.xlu0 %v393
    %v395 = vpop.xlane.xlu0 %394
    %v396 = vsel %vm374, %v29, 0.0
    %397 = vadd.xlane.f32.xlu0 %v396
    %v398 = vpop.xlane.xlu0 %397
    %v399 = vsel %vm374, %v30, 0.0
    %400 = vadd.xlane.f32.xlu0 %v399
    %v401 = vpop.xlane.xlu0 %400
    %v402 = vsel %vm374, %v31, 0.0
    %403 = vadd.xlane.f32.xlu0 %v402
    %v404 = vpop.xlane.xlu0 %403
    %v405 = vsel %vm374, %v32, 0.0
    %406 = vadd.xlane.f32.xlu0 %v405
    %v407 = vpop.xlane.xlu0 %406
    %v408 = vsel %vm374, %v33, 0.0
    %409 = vadd.xlane.f32.xlu0 %v408
    %v410 = vpop.xlane.xlu0 %409
    %v411 = vsel %vm374, %v34, 0.0
    %412 = vadd.xlane.f32.xlu0 %v411
    %v413 = vpop.xlane.xlu0 %412
    %v414 = vsel %vm374, %v35, 0.0
    %415 = vadd.xlane.f32.xlu0 %v414
    %v416 = vpop.xlane.xlu0 %415
    %v417 = vsel %vm374, %v36, 0.0
    %418 = vadd.xlane.f32.xlu0 %v417
    %v419 = vpop.xlane.xlu0 %418
    %v420 = vsel %vm374, %v37, 0.0
    %421 = vadd.xlane.f32.xlu0 %v420
    %v422 = vpop.xlane.xlu0 %421
    %v423 = vsel %vm374, %v38, 0.0
    %424 = vadd.xlane.f32.xlu0 %v423
    %v425 = vpop.xlane.xlu0 %424
    %v426 = vsel %vm374, %v39, 0.0
    %427 = vadd.xlane.f32.xlu0 %v426
    %v428 = vpop.xlane.xlu0 %427
    %v429 = vsel %vm374, %v40, 0.0
    %430 = vadd.xlane.f32.xlu0 %v429
    %v431 = vpop.xlane.xlu0 %430
    %v432 = vsel %vm374, %v41, 0.0
    %433 = vadd.xlane.f32.xlu0 %v432
    %v434 = vpop.xlane.xlu0 %433
    %v435 = vsel %vm374, %v42, 0.0
    %436 = vadd.xlane.f32.xlu0 %v435
    %v437 = vpop.xlane.xlu0 %436
    %v438 = vsel %vm374, %v43, 0.0
    %439 = vadd.xlane.f32.xlu0 %v438
    %v440 = vpop.xlane.xlu0 %439
    %v441 = vsel %vm374, %v44, 0.0
    %442 = vadd.xlane.f32.xlu0 %v441
    %v443 = vpop.xlane.xlu0 %442
    %v444 = vsel %vm374, %v45, 0.0
    %445 = vadd.xlane.f32.xlu0 %v444
    %v446 = vpop.xlane.xlu0 %445
    %v447 = vsel %vm374, %v46, 0.0
    %448 = vadd.xlane.f32.xlu0 %v447
    %v449 = vpop.xlane.xlu0 %448
    %v450 = vsel %vm374, %v47, 0.0
    %451 = vadd.xlane.f32.xlu0 %v450
    %v452 = vpop.xlane.xlu0 %451
    %v453 = vsel %vm374, %v48, 0.0
    %454 = vadd.xlane.f32.xlu0 %v453
    %v455 = vpop.xlane.xlu0 %454
    %v456 = vsel %vm374, %v49, 0.0
    %457 = vadd.xlane.f32.xlu0 %v456
    %v458 = vpop.xlane.xlu0 %457
    %v459 = vsel %vm374, %v50, 0.0
    %460 = vadd.xlane.f32.xlu0 %v459
    %v461 = vpop.xlane.xlu0 %460
    %v462 = vsel %vm374, %v51, 0.0
    %463 = vadd.xlane.f32.xlu0 %v462
    %v464 = vpop.xlane.xlu0 %463
    %v465 = vsel %vm374, %v52, 0.0
    %466 = vadd.xlane.f32.xlu0 %v465
    %v467 = vpop.xlane.xlu0 %466
    %v468 = vsel %vm374, %v53, 0.0
    %469 = vadd.xlane.f32.xlu0 %v468
    %v470 = vpop.xlane.xlu0 %469
    %v471 = vsel %vm374, %v54, 0.0
    %472 = vadd.xlane.f32.xlu0 %v471
    %v473 = vpop.xlane.xlu0 %472
    %v474 = vsel %vm374, %v55, 0.0
    %475 = vadd.xlane.f32.xlu0 %v474
    %v476 = vpop.xlane.xlu0 %475
    %v477 = vsel %vm374, %v56, 0.0
    %478 = vadd.xlane.f32.xlu0 %v477
    %v479 = vpop.xlane.xlu0 %478
    %v480 = vsel %vm374, %v57, 0.0
    %481 = vadd.xlane.f32.xlu0 %v480
    %v482 = vpop.xlane.xlu0 %481
    %v483 = vsel %vm374, %v58, 0.0
    %484 = vadd.xlane.f32.xlu0 %v483
    %v485 = vpop.xlane.xlu0 %484
    %v486 = vsel %vm374, %v59, 0.0
    %487 = vadd.xlane.f32.xlu0 %v486
    %v488 = vpop.xlane.xlu0 %487
    %v489 = vsel %vm374, %v60, 0.0
    %490 = vadd.xlane.f32.xlu0 %v489
    %v491 = vpop.xlane.xlu0 %490
    %v492 = vsel %vm374, %v61, 0.0
    %493 = vadd.xlane.f32.xlu0 %v492
    %v494 = vpop.xlane.xlu0 %493
    %v495 = vsel %vm374, %v62, 0.0
    %496 = vadd.xlane.f32.xlu0 %v495
    %v497 = vpop.xlane.xlu0 %496
    %v498 = vsel %vm374, %v63, 0.0
    %499 = vadd.xlane.f32.xlu0 %v498
    %v500 = vpop.xlane.xlu0 %499
    %v501 = vsel %vm374, %v64, 0.0
    %502 = vadd.xlane.f32.xlu0 %v501
    %v503 = vpop.xlane.xlu0 %502
    %v504 = vsel %vm374, %v65, 0.0
    %505 = vadd.xlane.f32.xlu0 %v504
    %v506 = vpop.xlane.xlu0 %505
    %v507 = vsel %vm374, %v66, 0.0
    %508 = vadd.xlane.f32.xlu0 %v507
    %v509 = vpop.xlane.xlu0 %508
    %v510 = vsel %vm374, %v67, 0.0
    %511 = vadd.xlane.f32.xlu0 %v510
    %v512 = vpop.xlane.xlu0 %511
    %v513 = vsel %vm374, %v68, 0.0
    %514 = vadd.xlane.f32.xlu0 %v513
    %v515 = vpop.xlane.xlu0 %514
    %v516 = vsel %vm374, %v69, 0.0
    %517 = vadd.xlane.f32.xlu0 %v516
    %v518 = vpop.xlane.xlu0 %517
    %v519 = vsel %vm374, %v70, 0.0
    %520 = vadd.xlane.f32.xlu0 %v519
    %v521 = vpop.xlane.xlu0 %520
    %v522 = vsel %vm374, %v71, 0.0
    %523 = vadd.xlane.f32.xlu0 %v522
    %v524 = vpop.xlane.xlu0 %523
    %v525 = vsel %vm374, %v72, 0.0
    %526 = vadd.xlane.f32.xlu0 %v525
    %v527 = vpop.xlane.xlu0 %526
    %v528 = vsel %vm374, %v73, 0.0
    %529 = vadd.xlane.f32.xlu0 %v528
    %v530 = vpop.xlane.xlu0 %529
    %v531 = vsel %vm374, %v74, 0.0
    %532 = vadd.xlane.f32.xlu0 %v531
    %v533 = vpop.xlane.xlu0 %532
    %v534 = vsel %vm374, %v75, 0.0
    %535 = vadd.xlane.f32.xlu0 %v534
    %v536 = vpop.xlane.xlu0 %535
    %v537 = vsel %vm374, %v76, 0.0
    %538 = vadd.xlane.f32.xlu0 %v537
    %v539 = vpop.xlane.xlu0 %538
    %v540 = vsel %vm374, %v77, 0.0
    %541 = vadd.xlane.f32.xlu0 %v540
    %v542 = vpop.xlane.xlu0 %541
    %v543 = vsel %vm374, %v78, 0.0
    %544 = vadd.xlane.f32.xlu0 %v543
    %v545 = vpop.xlane.xlu0 %544
    %v546 = vsel %vm374, %v79, 0.0
    %547 = vadd.xlane.f32.xlu0 %v546
    %v548 = vpop.xlane.xlu0 %547
    %v549 = vsel %vm374, %v80, 0.0
    %550 = vadd.xlane.f32.xlu0 %v549
    %v551 = vpop.xlane.xlu0 %550
    %v552 = vsel %vm374, %v81, 0.0
    %553 = vadd.xlane.f32.xlu0 %v552
    %v554 = vpop.xlane.xlu0 %553
    %v555 = vsel %vm374, %v82, 0.0
    %556 = vadd.xlane.f32.xlu0 %v555
    %v557 = vpop.xlane.xlu0 %556
    %v558 = vsel %vm374, %v83, 0.0
    %559 = vadd.xlane.f32.xlu0 %v558
    %v560 = vpop.xlane.xlu0 %559
    %v561 = vsel %vm374, %v84, 0.0
    %562 = vadd.xlane.f32.xlu0 %v561
    %v563 = vpop.xlane.xlu0 %562
    %v564 = vsel %vm374, %v85, 0.0
    %565 = vadd.xlane.f32.xlu0 %v564
    %v566 = vpop.xlane.xlu0 %565
    %v567 = vsel %vm374, %v86, 0.0
    %568 = vadd.xlane.f32.xlu0 %v567
    %v569 = vpop.xlane.xlu0 %568
    %v570 = vsel %vm374, %v87, 0.0
    %571 = vadd.xlane.f32.xlu0 %v570
    %v572 = vpop.xlane.xlu0 %571
    %v573 = vsel %vm374, %v88, 0.0
    %574 = vadd.xlane.f32.xlu0 %v573
    %v575 = vpop.xlane.xlu0 %574
    %v576 = vsel %vm374, %v89, 0.0
    %577 = vadd.xlane.f32.xlu0 %v576
    %v578 = vpop.xlane.xlu0 %577
    %v579 = vsel %vm374, %v90, 0.0
    %580 = vadd.xlane.f32.xlu0 %v579
    %v581 = vpop.xlane.xlu0 %580
    %v582 = vsel %vm374, %v91, 0.0
    %583 = vadd.xlane.f32.xlu0 %v582
    %v584 = vpop.xlane.xlu0 %583
    %v585 = vsel %vm374, %v92, 0.0
    %586 = vadd.xlane.f32.xlu0 %v585
    %v587 = vpop.xlane.xlu0 %586
    %v588 = vsel %vm374, %v93, 0.0
    %589 = vadd.xlane.f32.xlu0 %v588
    %v590 = vpop.xlane.xlu0 %589
    %v591 = vsel %vm374, %v94, 0.0
    %592 = vadd.xlane.f32.xlu0 %v591
    %v593 = vpop.xlane.xlu0 %592
    %v594 = vsel %vm374, %v95, 0.0
    %595 = vadd.xlane.f32.xlu0 %v594
    %v596 = vpop.xlane.xlu0 %595
    %v597 = vsel %vm374, %v96, 0.0
    %598 = vadd.xlane.f32.xlu0 %v597
    %v599 = vpop.xlane.xlu0 %598
    %v600 = vsel %vm374, %v97, 0.0
    %601 = vadd.xlane.f32.xlu0 %v600
    %v602 = vpop.xlane.xlu0 %601
    %v603 = vsel %vm374, %v98, 0.0
    %604 = vadd.xlane.f32.xlu0 %v603
    %v605 = vpop.xlane.xlu0 %604
    %v606 = vsel %vm374, %v99, 0.0
    %607 = vadd.xlane.f32.xlu0 %v606
    %v608 = vpop.xlane.xlu0 %607
    %v609 = vsel %vm374, %v100, 0.0
    %610 = vadd.xlane.f32.xlu0 %v609
    %v611 = vpop.xlane.xlu0 %610
    %v612 = vsel %vm374, %v101, 0.0
    %613 = vadd.xlane.f32.xlu0 %v612
    %v614 = vpop.xlane.xlu0 %613
    %v615 = vsel %vm374, %v102, 0.0
    %616 = vadd.xlane.f32.xlu0 %v615
    %v617 = vpop.xlane.xlu0 %616
    %v618 = vsel %vm374, %v103, 0.0
    %619 = vadd.xlane.f32.xlu0 %v618
    %v620 = vpop.xlane.xlu0 %619
    %v621 = vsel %vm374, %v104, 0.0
    %622 = vadd.xlane.f32.xlu0 %v621
    %v623 = vpop.xlane.xlu0 %622
    %v624 = vsel %vm374, %v105, 0.0
    %625 = vadd.xlane.f32.xlu0 %v624
    %v626 = vpop.xlane.xlu0 %625
    %v627 = vsel %vm374, %v106, 0.0
    %628 = vadd.xlane.f32.xlu0 %v627
    %v629 = vpop.xlane.xlu0 %628
    %v630 = vsel %vm374, %v107, 0.0
    %631 = vadd.xlane.f32.xlu0 %v630
    %v632 = vpop.xlane.xlu0 %631
    %v633 = vsel %vm374, %v108, 0.0
    %634 = vadd.xlane.f32.xlu0 %v633
    %v635 = vpop.xlane.xlu0 %634
    %v636 = vsel %vm374, %v109, 0.0
    %637 = vadd.xlane.f32.xlu0 %v636
    %v638 = vpop.xlane.xlu0 %637
    %v639 = vsel %vm374, %v110, 0.0
    %640 = vadd.xlane.f32.xlu0 %v639
    %v641 = vpop.xlane.xlu0 %640
    %v642 = vsel %vm374, %v111, 0.0
    %643 = vadd.xlane.f32.xlu0 %v642
    %v644 = vpop.xlane.xlu0 %643
    %v645 = vsel %vm374, %v112, 0.0
    %646 = vadd.xlane.f32.xlu0 %v645
    %v647 = vpop.xlane.xlu0 %646
    %v648 = vsel %vm374, %v113, 0.0
    %649 = vadd.xlane.f32.xlu0 %v648
    %v650 = vpop.xlane.xlu0 %649
    %v651 = vsel %vm374, %v114, 0.0
    %652 = vadd.xlane.f32.xlu0 %v651
    %v653 = vpop.xlane.xlu0 %652
    %v654 = vsel %vm374, %v115, 0.0
    %655 = vadd.xlane.f32.xlu0 %v654
    %v656 = vpop.xlane.xlu0 %655
    %v657 = vsel %vm374, %v116, 0.0
    %658 = vadd.xlane.f32.xlu0 %v657
    %v659 = vpop.xlane.xlu0 %658
    %v660 = vsel %vm374, %v117, 0.0
    %661 = vadd.xlane.f32.xlu0 %v660
    %v662 = vpop.xlane.xlu0 %661
    %v663 = vsel %vm374, %v118, 0.0
    %664 = vadd.xlane.f32.xlu0 %v663
    %v665 = vpop.xlane.xlu0 %664
    %v666 = vsel %vm374, %v119, 0.0
    %667 = vadd.xlane.f32.xlu0 %v666
    %v668 = vpop.xlane.xlu0 %667
    %v669 = vsel %vm374, %v120, 0.0
    %670 = vadd.xlane.f32.xlu0 %v669
    %v671 = vpop.xlane.xlu0 %670
    %v672 = vsel %vm374, %v121, 0.0
    %673 = vadd.xlane.f32.xlu0 %v672
    %v674 = vpop.xlane.xlu0 %673
    %v675 = vsel %vm374, %v122, 0.0
    %676 = vadd.xlane.f32.xlu0 %v675
    %v677 = vpop.xlane.xlu0 %676
    %v678 = vsel %vm374, %v123, 0.0
    %679 = vadd.xlane.f32.xlu0 %v678
    %v680 = vpop.xlane.xlu0 %679
    %v681 = vsel %vm374, %v124, 0.0
    %682 = vadd.xlane.f32.xlu0 %v681
    %v683 = vpop.xlane.xlu0 %682
    %v684 = vsel %vm374, %v125, 0.0
    %685 = vadd.xlane.f32.xlu0 %v684
    %v686 = vpop.xlane.xlu0 %685
    %v687 = vsel %vm374, %v126, 0.0
    %688 = vadd.xlane.f32.xlu0 %v687
    %v689 = vpop.xlane.xlu0 %688
    %v690 = vsel %vm374, %v127, 0.0
    %691 = vadd.xlane.f32.xlu0 %v690
    %v692 = vpop.xlane.xlu0 %691
    %v693 = vsel %vm374, %v128, 0.0
    %694 = vadd.xlane.f32.xlu0 %v693
    %v695 = vpop.xlane.xlu0 %694
    %v696 = vsel %vm374, %v129, 0.0
    %697 = vadd.xlane.f32.xlu0 %v696
    %v698 = vpop.xlane.xlu0 %697
    %v699 = vsel %vm374, %v130, 0.0
    %700 = vadd.xlane.f32.xlu0 %v699
    %v701 = vpop.xlane.xlu0 %700
    %v702 = vsel %vm374, %v131, 0.0
    %703 = vadd.xlane.f32.xlu0 %v702
    %v704 = vpop.xlane.xlu0 %703
    %v705 = vsel %vm374, %v132, 0.0
    %706 = vadd.xlane.f32.xlu0 %v705
    %v707 = vpop.xlane.xlu0 %706
    %v708 = vsel %vm374, %v133, 0.0
    %709 = vadd.xlane.f32.xlu0 %v708
    %v710 = vpop.xlane.xlu0 %709
    %v711 = vsel %vm374, %v134, 0.0
    %712 = vadd.xlane.f32.xlu0 %v711
    %v713 = vpop.xlane.xlu0 %712
    %v714 = vsel %vm374, %v135, 0.0
    %715 = vadd.xlane.f32.xlu0 %v714
    %v716 = vpop.xlane.xlu0 %715
    %v717 = vsel %vm374, %v136, 0.0
    %718 = vadd.xlane.f32.xlu0 %v717
    %v719 = vpop.xlane.xlu0 %718
    %v720 = vsel %vm374, %v137, 0.0
    %721 = vadd.xlane.f32.xlu0 %v720
    %v722 = vpop.xlane.xlu0 %721
    %v723 = vsel %vm374, %v138, 0.0
    %724 = vadd.xlane.f32.xlu0 %v723
    %v725 = vpop.xlane.xlu0 %724
    %v726 = vsel %vm374, %v139, 0.0
    %727 = vadd.xlane.f32.xlu0 %v726
    %v728 = vpop.xlane.xlu0 %727
    %v729 = vsel %vm374, %v140, 0.0
    %730 = vadd.xlane.f32.xlu0 %v729
    %v731 = vpop.xlane.xlu0 %730
    %v732 = vsel %vm374, %v141, 0.0
    %733 = vadd.xlane.f32.xlu0 %v732
    %v734 = vpop.xlane.xlu0 %733
    %v735 = vsel %vm374, %v142, 0.0
    %736 = vadd.xlane.f32.xlu0 %v735
    %v737 = vpop.xlane.xlu0 %736
    %v738 = vsel %vm374, %v143, 0.0
    %739 = vadd.xlane.f32.xlu0 %v738
    %v740 = vpop.xlane.xlu0 %739
    %v741 = vsel %vm374, %v144, 0.0
    %742 = vadd.xlane.f32.xlu0 %v741
    %v743 = vpop.xlane.xlu0 %742
    %v744 = vsel %vm374, %v145, 0.0
    %745 = vadd.xlane.f32.xlu0 %v744
    %v746 = vpop.xlane.xlu0 %745
    %v747 = vsel %vm374, %v146, 0.0
    %748 = vadd.xlane.f32.xlu0 %v747
    %v749 = vpop.xlane.xlu0 %748
    %v750 = vsel %vm374, %v147, 0.0
    %751 = vadd.xlane.f32.xlu0 %v750
    %v752 = vpop.xlane.xlu0 %751
    %v753 = vsel %vm374, %v148, 0.0
    %754 = vadd.xlane.f32.xlu0 %v753
    %v755 = vpop.xlane.xlu0 %754
    %v756 = vsel %vm374, %v149, 0.0
    %757 = vadd.xlane.f32.xlu0 %v756
    %v758 = vpop.xlane.xlu0 %757
    %v759 = vsel %vm374, %v150, 0.0
    %760 = vadd.xlane.f32.xlu0 %v759
    %v761 = vpop.xlane.xlu0 %760
    %v762 = vsel %vm374, %v151, 0.0
    %763 = vadd.xlane.f32.xlu0 %v762
    %v764 = vpop.xlane.xlu0 %763
    %v765 = vsel %vm374, %v152, 0.0
    %766 = vadd.xlane.f32.xlu0 %v765
    %v767 = vpop.xlane.xlu0 %766
    %v768 = vsel %vm374, %v153, 0.0
    %769 = vadd.xlane.f32.xlu0 %v768
    %v770 = vpop.xlane.xlu0 %769
    %v771 = vsel %vm374, %v154, 0.0
    %772 = vadd.xlane.f32.xlu0 %v771
    %v773 = vpop.xlane.xlu0 %772
    %v774 = vsel %vm374, %v155, 0.0
    %775 = vadd.xlane.f32.xlu0 %v774
    %v776 = vpop.xlane.xlu0 %775
    %v777 = vsel %vm374, %v156, 0.0
    %778 = vadd.xlane.f32.xlu0 %v777
    %v779 = vpop.xlane.xlu0 %778
    %v780 = vsel %vm374, %v157, 0.0
    %781 = vadd.xlane.f32.xlu0 %v780
    %v782 = vpop.xlane.xlu0 %781
    %v783 = vsel %vm374, %v158, 0.0
    %784 = vadd.xlane.f32.xlu0 %v783
    %v785 = vpop.xlane.xlu0 %784
    %v786 = vsel %vm374, %v159, 0.0
    %787 = vadd.xlane.f32.xlu0 %v786
    %v788 = vpop.xlane.xlu0 %787
    %v789 = vsel %vm374, %v160, 0.0
    %790 = vadd.xlane.f32.xlu0 %v789
    %v791 = vpop.xlane.xlu0 %790
    %v792 = vsel %vm374, %v161, 0.0
    %793 = vadd.xlane.f32.xlu0 %v792
    %v794 = vpop.xlane.xlu0 %793
    %v795 = vsel %vm374, %v162, 0.0
    %796 = vadd.xlane.f32.xlu0 %v795
    %v797 = vpop.xlane.xlu0 %796
    %v798 = vsel %vm374, %v163, 0.0
    %799 = vadd.xlane.f32.xlu0 %v798
    %v800 = vpop.xlane.xlu0 %799
    %v801 = vsel %vm374, %v164, 0.0
    %802 = vadd.xlane.f32.xlu0 %v801
    %v803 = vpop.xlane.xlu0 %802
    %v804 = vsel %vm374, %v165, 0.0
    %805 = vadd.xlane.f32.xlu0 %v804
    %v806 = vpop.xlane.xlu0 %805
    %v807 = vsel %vm374, %v166, 0.0
    %808 = vadd.xlane.f32.xlu0 %v807
    %v809 = vpop.xlane.xlu0 %808
    %v810 = vsel %vm374, %v167, 0.0
    %811 = vadd.xlane.f32.xlu0 %v810
    %v812 = vpop.xlane.xlu0 %811
    %v813 = vsel %vm374, %v168, 0.0
    %814 = vadd.xlane.f32.xlu0 %v813
    %v815 = vpop.xlane.xlu0 %814
    %v816 = vsel %vm374, %v169, 0.0
    %817 = vadd.xlane.f32.xlu0 %v816
    %v818 = vpop.xlane.xlu0 %817
    %v819 = vsel %vm374, %v170, 0.0
    %820 = vadd.xlane.f32.xlu0 %v819
    %v821 = vpop.xlane.xlu0 %820
    %v822 = vsel %vm374, %v171, 0.0
    %823 = vadd.xlane.f32.xlu0 %v822
    %v824 = vpop.xlane.xlu0 %823
    %v825 = vsel %vm374, %v172, 0.0
    %826 = vadd.xlane.f32.xlu0 %v825
    %v827 = vpop.xlane.xlu0 %826
    %v828 = vsel %vm374, %v173, 0.0
    %829 = vadd.xlane.f32.xlu0 %v828
    %v830 = vpop.xlane.xlu0 %829
    %v831 = vsel %vm374, %v174, 0.0
    %832 = vadd.xlane.f32.xlu0 %v831
    %v833 = vpop.xlane.xlu0 %832
    %v834 = vsel %vm374, %v175, 0.0
    %835 = vadd.xlane.f32.xlu0 %v834
    %v836 = vpop.xlane.xlu0 %835
    %v837 = vsel %vm374, %v176, 0.0
    %838 = vadd.xlane.f32.xlu0 %v837
    %v839 = vpop.xlane.xlu0 %838
    %v840 = vsel %vm374, %v177, 0.0
    %841 = vadd.xlane.f32.xlu0 %v840
    %v842 = vpop.xlane.xlu0 %841
    %v843 = vsel %vm374, %v178, 0.0
    %844 = vadd.xlane.f32.xlu0 %v843
    %v845 = vpop.xlane.xlu0 %844
    %v846 = vsel %vm374, %v179, 0.0
    %847 = vadd.xlane.f32.xlu0 %v846
    %v848 = vpop.xlane.xlu0 %847
    %v849 = vsel %vm374, %v180, 0.0
    %850 = vadd.xlane.f32.xlu0 %v849
    %v851 = vpop.xlane.xlu0 %850
    %v852 = vsel %vm374, %v181, 0.0
    %853 = vadd.xlane.f32.xlu0 %v852
    %v854 = vpop.xlane.xlu0 %853
    %v855 = vsel %vm374, %v182, 0.0
    %856 = vadd.xlane.f32.xlu0 %v855
    %v857 = vpop.xlane.xlu0 %856
    %v858 = vsel %vm374, %v183, 0.0
    %859 = vadd.xlane.f32.xlu0 %v858
    %v860 = vpop.xlane.xlu0 %859
    %v861 = vsel %vm374, %v184, 0.0
    %862 = vadd.xlane.f32.xlu0 %v861
    %v863 = vpop.xlane.xlu0 %862
    %v864 = vsel %vm374, %v185, 0.0
    %865 = vadd.xlane.f32.xlu0 %v864
    %v866 = vpop.xlane.xlu0 %865
    %v867 = vsel %vm374, %v186, 0.0
    %868 = vadd.xlane.f32.xlu0 %v867
    %v869 = vpop.xlane.xlu0 %868
    %v870 = vsel %vm374, %v187, 0.0
    %871 = vadd.xlane.f32.xlu0 %v870
    %v872 = vpop.xlane.xlu0 %871
    %v873 = vsel %vm374, %v188, 0.0
    %874 = vadd.xlane.f32.xlu0 %v873
    %v875 = vpop.xlane.xlu0 %874
    %v876 = vsel %vm374, %v189, 0.0
    %877 = vadd.xlane.f32.xlu0 %v876
    %v878 = vpop.xlane.xlu0 %877
    %v879 = vsel %vm374, %v190, 0.0
    %880 = vadd.xlane.f32.xlu0 %v879
    %v881 = vpop.xlane.xlu0 %880
    %v882 = vsel %vm374, %v191, 0.0
    %883 = vadd.xlane.f32.xlu0 %v882
    %v884 = vpop.xlane.xlu0 %883
    %v885 = vsel %vm374, %v192, 0.0
    %886 = vadd.xlane.f32.xlu0 %v885
    %v887 = vpop.xlane.xlu0 %886
    %v888 = vsel %vm374, %v193, 0.0
    %889 = vadd.xlane.f32.xlu0 %v888
    %v890 = vpop.xlane.xlu0 %889
    %v891 = vsel %vm374, %v194, 0.0
    %892 = vadd.xlane.f32.xlu0 %v891
    %v893 = vpop.xlane.xlu0 %892
    %v894 = vsel %vm374, %v195, 0.0
    %895 = vadd.xlane.f32.xlu0 %v894
    %v896 = vpop.xlane.xlu0 %895
    %v897 = vsel %vm374, %v196, 0.0
    %898 = vadd.xlane.f32.xlu0 %v897
    %v899 = vpop.xlane.xlu0 %898
    %v900 = vsel %vm374, %v197, 0.0
    %901 = vadd.xlane.f32.xlu0 %v900
    %v902 = vpop.xlane.xlu0 %901
    %v903 = vsel %vm374, %v198, 0.0
    %904 = vadd.xlane.f32.xlu0 %v903
    %v905 = vpop.xlane.xlu0 %904
    %v906 = vsel %vm374, %v199, 0.0
    %907 = vadd.xlane.f32.xlu0 %v906
    %v908 = vpop.xlane.xlu0 %907
    %v909 = vsel %vm374, %v200, 0.0
    %910 = vadd.xlane.f32.xlu0 %v909
    %v911 = vpop.xlane.xlu0 %910
    %v912 = vsel %vm374, %v201, 0.0
    %913 = vadd.xlane.f32.xlu0 %v912
    %v914 = vpop.xlane.xlu0 %913
    %v915 = vsel %vm374, %v202, 0.0
    %916 = vadd.xlane.f32.xlu0 %v915
    %v917 = vpop.xlane.xlu0 %916
    %v918 = vsel %vm374, %v203, 0.0
    %919 = vadd.xlane.f32.xlu0 %v918
    %v920 = vpop.xlane.xlu0 %919
    %v921 = vsel %vm374, %v204, 0.0
    %922 = vadd.xlane.f32.xlu0 %v921
    %v923 = vpop.xlane.xlu0 %922
    %v924 = vsel %vm374, %v205, 0.0
    %925 = vadd.xlane.f32.xlu0 %v924
    %v926 = vpop.xlane.xlu0 %925
    %v927 = vsel %vm374, %v206, 0.0
    %928 = vadd.xlane.f32.xlu0 %v927
    %v929 = vpop.xlane.xlu0 %928
    %v930 = vsel %vm374, %v207, 0.0
    %931 = vadd.xlane.f32.xlu0 %v930
    %v932 = vpop.xlane.xlu0 %931
    %v933 = vsel %vm374, %v208, 0.0
    %934 = vadd.xlane.f32.xlu0 %v933
    %v935 = vpop.xlane.xlu0 %934
    %v936 = vsel %vm374, %v209, 0.0
    %937 = vadd.xlane.f32.xlu0 %v936
    %v938 = vpop.xlane.xlu0 %937
    %v939 = vsel %vm374, %v210, 0.0
    %940 = vadd.xlane.f32.xlu0 %v939
    %v941 = vpop.xlane.xlu0 %940
    %v942 = vsel %vm374, %v211, 0.0
    %943 = vadd.xlane.f32.xlu0 %v942
    %v944 = vpop.xlane.xlu0 %943
    %v945 = vsel %vm374, %v212, 0.0
    %946 = vadd.xlane.f32.xlu0 %v945
    %v947 = vpop.xlane.xlu0 %946
    %v948 = vsel %vm374, %v213, 0.0
    %949 = vadd.xlane.f32.xlu0 %v948
    %v950 = vpop.xlane.xlu0 %949
    %v951 = vsel %vm374, %v214, 0.0
    %952 = vadd.xlane.f32.xlu0 %v951
    %v953 = vpop.xlane.xlu0 %952
    %v954 = vsel %vm374, %v215, 0.0
    %955 = vadd.xlane.f32.xlu0 %v954
    %v956 = vpop.xlane.xlu0 %955
    %v957 = vsel %vm374, %v216, 0.0
    %958 = vadd.xlane.f32.xlu0 %v957
    %v959 = vpop.xlane.xlu0 %958
    %v960 = vsel %vm374, %v217, 0.0
    %961 = vadd.xlane.f32.xlu0 %v960
    %v962 = vpop.xlane.xlu0 %961
    %v963 = vsel %vm374, %v218, 0.0
    %964 = vadd.xlane.f32.xlu0 %v963
    %v965 = vpop.xlane.xlu0 %964
    %v966 = vsel %vm374, %v219, 0.0
    %967 = vadd.xlane.f32.xlu0 %v966
    %v968 = vpop.xlane.xlu0 %967
    %v969 = vsel %vm374, %v220, 0.0
    %970 = vadd.xlane.f32.xlu0 %v969
    %v971 = vpop.xlane.xlu0 %970
    %v972 = vsel %vm374, %v221, 0.0
    %973 = vadd.xlane.f32.xlu0 %v972
    %v974 = vpop.xlane.xlu0 %973
    %v975 = vsel %vm374, %v222, 0.0
    %976 = vadd.xlane.f32.xlu0 %v975
    %v977 = vpop.xlane.xlu0 %976
    %v978 = vsel %vm374, %v223, 0.0
    %979 = vadd.xlane.f32.xlu0 %v978
    %v980 = vpop.xlane.xlu0 %979
    %v981 = vsel %vm374, %v224, 0.0
    %982 = vadd.xlane.f32.xlu0 %v981
    %v983 = vpop.xlane.xlu0 %982
    %v984 = vsel %vm374, %v225, 0.0
    %985 = vadd.xlane.f32.xlu0 %v984
    %v986 = vpop.xlane.xlu0 %985
    %v987 = vsel %vm374, %v226, 0.0
    %988 = vadd.xlane.f32.xlu0 %v987
    %v989 = vpop.xlane.xlu0 %988
    %v990 = vsel %vm374, %v227, 0.0
    %991 = vadd.xlane.f32.xlu0 %v990
    %v992 = vpop.xlane.xlu0 %991
    %v993 = vsel %vm374, %v228, 0.0
    %994 = vadd.xlane.f32.xlu0 %v993
    %v995 = vpop.xlane.xlu0 %994
    %v996 = vsel %vm374, %v229, 0.0
    %997 = vadd.xlane.f32.xlu0 %v996
    %v998 = vpop.xlane.xlu0 %997
    %v999 = vsel %vm374, %v230, 0.0
    %1000 = vadd.xlane.f32.xlu0 %v999
    %v1001 = vpop.xlane.xlu0 %1000
    %v1002 = vsel %vm374, %v231, 0.0
    %1003 = vadd.xlane.f32.xlu0 %v1002
    %v1004 = vpop.xlane.xlu0 %1003
    %v1005 = vsel %vm374, %v232, 0.0
    %1006 = vadd.xlane.f32.xlu0 %v1005
    %v1007 = vpop.xlane.xlu0 %1006
    %v1008 = vsel %vm374, %v233, 0.0
    %1009 = vadd.xlane.f32.xlu0 %v1008
    %v1010 = vpop.xlane.xlu0 %1009
    %v1011 = vsel %vm374, %v234, 0.0
    %1012 = vadd.xlane.f32.xlu0 %v1011
    %v1013 = vpop.xlane.xlu0 %1012
    %v1014 = vsel %vm374, %v235, 0.0
    %1015 = vadd.xlane.f32.xlu0 %v1014
    %v1016 = vpop.xlane.xlu0 %1015
    %v1017 = vsel %vm374, %v236, 0.0
    %1018 = vadd.xlane.f32.xlu0 %v1017
    %v1019 = vpop.xlane.xlu0 %1018
    %v1020 = vsel %vm374, %v237, 0.0
    %1021 = vadd.xlane.f32.xlu0 %v1020
    %v1022 = vpop.xlane.xlu0 %1021
    %v1023 = vsel %vm374, %v238, 0.0
    %1024 = vadd.xlane.f32.xlu0 %v1023
    %v1025 = vpop.xlane.xlu0 %1024
    %v1026 = vsel %vm374, %v239, 0.0
    %1027 = vadd.xlane.f32.xlu0 %v1026
    %v1028 = vpop.xlane.xlu0 %1027
    %v1029 = vsel %vm374, %v240, 0.0
    %1030 = vadd.xlane.f32.xlu0 %v1029
    %v1031 = vpop.xlane.xlu0 %1030
    %v1032 = vsel %vm374, %v241, 0.0
    %1033 = vadd.xlane.f32.xlu0 %v1032
    %v1034 = vpop.xlane.xlu0 %1033
    %v1035 = vsel %vm374, %v242, 0.0
    %1036 = vadd.xlane.f32.xlu0 %v1035
    %v1037 = vpop.xlane.xlu0 %1036
    %v1038 = vsel %vm374, %v243, 0.0
    %1039 = vadd.xlane.f32.xlu0 %v1038
    %v1040 = vpop.xlane.xlu0 %1039
    %v1041 = vsel %vm374, %v244, 0.0
    %1042 = vadd.xlane.f32.xlu0 %v1041
    %v1043 = vpop.xlane.xlu0 %1042
    %v1044 = vsel %vm374, %v245, 0.0
    %1045 = vadd.xlane.f32.xlu0 %v1044
    %v1046 = vpop.xlane.xlu0 %1045
    %v1047 = vsel %vm374, %v246, 0.0
    %1048 = vadd.xlane.f32.xlu0 %v1047
    %v1049 = vpop.xlane.xlu0 %1048
    %v1050 = vsel %vm374, %v247, 0.0
    %1051 = vadd.xlane.f32.xlu0 %v1050
    %v1052 = vpop.xlane.xlu0 %1051
    %v1053 = vsel %vm374, %v248, 0.0
    %1054 = vadd.xlane.f32.xlu0 %v1053
    %v1055 = vpop.xlane.xlu0 %1054
    %v1056 = vsel %vm374, %v249, 0.0
    %1057 = vadd.xlane.f32.xlu0 %v1056
    %v1058 = vpop.xlane.xlu0 %1057
    %v1059 = vsel %vm374, %v250, 0.0
    %1060 = vadd.xlane.f32.xlu0 %v1059
    %v1061 = vpop.xlane.xlu0 %1060
    %v1062 = vsel %vm374, %v251, 0.0
    %1063 = vadd.xlane.f32.xlu0 %v1062
    %v1064 = vpop.xlane.xlu0 %1063
    %v1065 = vsel %vm374, %v252, 0.0
    %1066 = vadd.xlane.f32.xlu0 %v1065
    %v1067 = vpop.xlane.xlu0 %1066
    %v1068 = vsel %vm374, %v253, 0.0
    %1069 = vadd.xlane.f32.xlu0 %v1068
    %v1070 = vpop.xlane.xlu0 %1069
    %v1071 = vsel %vm374, %v254, 0.0
    %1072 = vadd.xlane.f32.xlu0 %v1071
    %v1073 = vpop.xlane.xlu0 %1072
    %v1074 = vsel %vm374, %v255, 0.0
    %1075 = vadd.xlane.f32.xlu0 %v1074
    %v1076 = vpop.xlane.xlu0 %1075
    %v1077 = vsel %vm374, %v256, 0.0
    %1078 = vadd.xlane.f32.xlu0 %v1077
    %v1079 = vpop.xlane.xlu0 %1078
    %v1080 = vsel %vm374, %v257, 0.0
    %1081 = vadd.xlane.f32.xlu0 %v1080
    %v1082 = vpop.xlane.xlu0 %1081
    %v1083 = vsel %vm374, %v258, 0.0
    %1084 = vadd.xlane.f32.xlu0 %v1083
    %v1085 = vpop.xlane.xlu0 %1084
    %v1086 = vsel %vm374, %v259, 0.0
    %1087 = vadd.xlane.f32.xlu0 %v1086
    %v1088 = vpop.xlane.xlu0 %1087
    %v1089 = vsel %vm374, %v260, 0.0
    %1090 = vadd.xlane.f32.xlu0 %v1089
    %v1091 = vpop.xlane.xlu0 %1090
    %v1092 = vsel %vm374, %v261, 0.0
    %1093 = vadd.xlane.f32.xlu0 %v1092
    %v1094 = vpop.xlane.xlu0 %1093
    %v1095 = vsel %vm374, %v262, 0.0
    %1096 = vadd.xlane.f32.xlu0 %v1095
    %v1097 = vpop.xlane.xlu0 %1096
    %v1098 = vsel %vm374, %v263, 0.0
    %1099 = vadd.xlane.f32.xlu0 %v1098
    %v1100 = vpop.xlane.xlu0 %1099
    %v1101 = vsel %vm374, %v264, 0.0
    %1102 = vadd.xlane.f32.xlu0 %v1101
    %v1103 = vpop.xlane.xlu0 %1102
    %v1104 = vsel %vm374, %v265, 0.0
    %1105 = vadd.xlane.f32.xlu0 %v1104
    %v1106 = vpop.xlane.xlu0 %1105
    %v1107 = vsel %vm374, %v266, 0.0
    %1108 = vadd.xlane.f32.xlu0 %v1107
    %v1109 = vpop.xlane.xlu0 %1108
    %v1110 = vsel %vm374, %v267, 0.0
    %1111 = vadd.xlane.f32.xlu0 %v1110
    %v1112 = vpop.xlane.xlu0 %1111
    %v1113 = vsel %vm374, %v268, 0.0
    %1114 = vadd.xlane.f32.xlu0 %v1113
    %v1115 = vpop.xlane.xlu0 %1114
    %v1116 = vsel %vm374, %v269, 0.0
    %1117 = vadd.xlane.f32.xlu0 %v1116
    %v1118 = vpop.xlane.xlu0 %1117
    %v1119 = vsel %vm374, %v270, 0.0
    %1120 = vadd.xlane.f32.xlu0 %v1119
    %v1121 = vpop.xlane.xlu0 %1120
    %v1122 = vsel %vm374, %v271, 0.0
    %1123 = vadd.xlane.f32.xlu0 %v1122
    %v1124 = vpop.xlane.xlu0 %1123
    %v1125 = vsel %vm374, %v272, 0.0
    %1126 = vadd.xlane.f32.xlu0 %v1125
    %v1127 = vpop.xlane.xlu0 %1126
    %v1128 = vsel %vm374, %v273, 0.0
    %1129 = vadd.xlane.f32.xlu0 %v1128
    %v1130 = vpop.xlane.xlu0 %1129
    %v1131 = vsel %vm374, %v274, 0.0
    %1132 = vadd.xlane.f32.xlu0 %v1131
    %v1133 = vpop.xlane.xlu0 %1132
    %v1134 = vsel %vm374, %v275, 0.0
    %1135 = vadd.xlane.f32.xlu0 %v1134
    %v1136 = vpop.xlane.xlu0 %1135
    %v1137 = vsel %vm374, %v276, 0.0
    %1138 = vadd.xlane.f32.xlu0 %v1137
    %v1139 = vpop.xlane.xlu0 %1138
    %v1140 = vsel %vm374, %v277, 0.0
    %1141 = vadd.xlane.f32.xlu0 %v1140
    %v1142 = vpop.xlane.xlu0 %1141
    %v1143 = vsel %vm374, %v278, 0.0
    %1144 = vadd.xlane.f32.xlu0 %v1143
    %v1145 = vpop.xlane.xlu0 %1144
    %v1146 = vsel %vm374, %v279, 0.0
    %1147 = vadd.xlane.f32.xlu0 %v1146
    %v1148 = vpop.xlane.xlu0 %1147
    %v1149 = vsel %vm374, %v280, 0.0
    %1150 = vadd.xlane.f32.xlu0 %v1149
    %v1151 = vpop.xlane.xlu0 %1150
    %v1152 = vsel %vm374, %v281, 0.0
    %1153 = vadd.xlane.f32.xlu0 %v1152
    %v1154 = vpop.xlane.xlu0 %1153
    %v1155 = vsel %vm374, %v282, 0.0
    %1156 = vadd.xlane.f32.xlu0 %v1155
    %v1157 = vpop.xlane.xlu0 %1156
    %v1158 = vsel %vm374, %v283, 0.0
    %1159 = vadd.xlane.f32.xlu0 %v1158
    %v1160 = vpop.xlane.xlu0 %1159
    %v1161 = vsel %vm374, %v284, 0.0
    %1162 = vadd.xlane.f32.xlu0 %v1161
    %v1163 = vpop.xlane.xlu0 %1162
    %v1164 = vsel %vm374, %v285, 0.0
    %1165 = vadd.xlane.f32.xlu0 %v1164
    %v1166 = vpop.xlane.xlu0 %1165
    %v1167 = vsel %vm374, %v286, 0.0
    %1168 = vadd.xlane.f32.xlu0 %v1167
    %v1169 = vpop.xlane.xlu0 %1168
    %v1170 = vsel %vm374, %v287, 0.0
    %1171 = vadd.xlane.f32.xlu0 %v1170
    %v1172 = vpop.xlane.xlu0 %1171
    %v1173 = vsel %vm374, %v288, 0.0
    %1174 = vadd.xlane.f32.xlu0 %v1173
    %v1175 = vpop.xlane.xlu0 %1174
    %v1176 = vsel %vm374, %v289, 0.0
    %1177 = vadd.xlane.f32.xlu0 %v1176
    %v1178 = vpop.xlane.xlu0 %1177
    %v1179 = vsel %vm374, %v290, 0.0
    %1180 = vadd.xlane.f32.xlu0 %v1179
    %v1181 = vpop.xlane.xlu0 %1180
    %v1182 = vsel %vm374, %v291, 0.0
    %1183 = vadd.xlane.f32.xlu0 %v1182
    %v1184 = vpop.xlane.xlu0 %1183
    %v1185 = vsel %vm374, %v292, 0.0
    %1186 = vadd.xlane.f32.xlu0 %v1185
    %v1187 = vpop.xlane.xlu0 %1186
    %v1188 = vsel %vm374, %v293, 0.0
    %1189 = vadd.xlane.f32.xlu0 %v1188
    %v1190 = vpop.xlane.xlu0 %1189
    %v1191 = vsel %vm374, %v294, 0.0
    %1192 = vadd.xlane.f32.xlu0 %v1191
    %v1193 = vpop.xlane.xlu0 %1192
    %v1194 = vsel %vm374, %v295, 0.0
    %1195 = vadd.xlane.f32.xlu0 %v1194
    %v1196 = vpop.xlane.xlu0 %1195
    %v1197 = vsel %vm374, %v296, 0.0
    %1198 = vadd.xlane.f32.xlu0 %v1197
    %v1199 = vpop.xlane.xlu0 %1198
    %v1200 = vsel %vm374, %v297, 0.0
    %1201 = vadd.xlane.f32.xlu0 %v1200
    %v1202 = vpop.xlane.xlu0 %1201
    %v1203 = vsel %vm374, %v298, 0.0
    %1204 = vadd.xlane.f32.xlu0 %v1203
    %v1205 = vpop.xlane.xlu0 %1204
    %v1206 = vsel %vm374, %v299, 0.0
    %1207 = vadd.xlane.f32.xlu0 %v1206
    %v1208 = vpop.xlane.xlu0 %1207
    %v1209 = vsel %vm374, %v300, 0.0
    %1210 = vadd.xlane.f32.xlu0 %v1209
    %v1211 = vpop.xlane.xlu0 %1210
    %v1212 = vsel %vm374, %v301, 0.0
    %1213 = vadd.xlane.f32.xlu0 %v1212
    %v1214 = vpop.xlane.xlu0 %1213
    %v1215 = vsel %vm374, %v302, 0.0
    %1216 = vadd.xlane.f32.xlu0 %v1215
    %v1217 = vpop.xlane.xlu0 %1216
    %v1218 = vsel %vm374, %v303, 0.0
    %1219 = vadd.xlane.f32.xlu0 %v1218
    %v1220 = vpop.xlane.xlu0 %1219
    %v1221 = vsel %vm374, %v304, 0.0
    %1222 = vadd.xlane.f32.xlu0 %v1221
    %v1223 = vpop.xlane.xlu0 %1222
    %v1224 = vsel %vm374, %v305, 0.0
    %1225 = vadd.xlane.f32.xlu0 %v1224
    %v1226 = vpop.xlane.xlu0 %1225
    %v1227 = vsel %vm374, %v306, 0.0
    %1228 = vadd.xlane.f32.xlu0 %v1227
    %v1229 = vpop.xlane.xlu0 %1228
    %v1230 = vsel %vm374, %v307, 0.0
    %1231 = vadd.xlane.f32.xlu0 %v1230
    %v1232 = vpop.xlane.xlu0 %1231
    %v1233 = vsel %vm374, %v308, 0.0
    %1234 = vadd.xlane.f32.xlu0 %v1233
    %v1235 = vpop.xlane.xlu0 %1234
    %v1236 = vsel %vm374, %v309, 0.0
    %1237 = vadd.xlane.f32.xlu0 %v1236
    %v1238 = vpop.xlane.xlu0 %1237
    %v1239 = vsel %vm374, %v310, 0.0
    %1240 = vadd.xlane.f32.xlu0 %v1239
    %v1241 = vpop.xlane.xlu0 %1240
    %v1242 = vsel %vm374, %v311, 0.0
    %1243 = vadd.xlane.f32.xlu0 %v1242
    %v1244 = vpop.xlane.xlu0 %1243
    %v1245 = vsel %vm374, %v312, 0.0
    %1246 = vadd.xlane.f32.xlu0 %v1245
    %v1247 = vpop.xlane.xlu0 %1246
    %v1248 = vsel %vm374, %v313, 0.0
    %1249 = vadd.xlane.f32.xlu0 %v1248
    %v1250 = vpop.xlane.xlu0 %1249
    %v1251 = vsel %vm374, %v314, 0.0
    %1252 = vadd.xlane.f32.xlu0 %v1251
    %v1253 = vpop.xlane.xlu0 %1252
    %v1254 = vsel %vm374, %v315, 0.0
    %1255 = vadd.xlane.f32.xlu0 %v1254
    %v1256 = vpop.xlane.xlu0 %1255
    %v1257 = vsel %vm374, %v316, 0.0
    %1258 = vadd.xlane.f32.xlu0 %v1257
    %v1259 = vpop.xlane.xlu0 %1258
    %v1260 = vsel %vm374, %v317, 0.0
    %1261 = vadd.xlane.f32.xlu0 %v1260
    %v1262 = vpop.xlane.xlu0 %1261
    %v1263 = vsel %vm374, %v318, 0.0
    %1264 = vadd.xlane.f32.xlu0 %v1263
    %v1265 = vpop.xlane.xlu0 %1264
    %v1266 = vsel %vm374, %v319, 0.0
    %1267 = vadd.xlane.f32.xlu0 %v1266
    %v1268 = vpop.xlane.xlu0 %1267
    %v1269 = vsel %vm374, %v320, 0.0
    %1270 = vadd.xlane.f32.xlu0 %v1269
    %v1271 = vpop.xlane.xlu0 %1270
    %v1272 = vsel %vm374, %v321, 0.0
    %1273 = vadd.xlane.f32.xlu0 %v1272
    %v1274 = vpop.xlane.xlu0 %1273
    %v1275 = vsel %vm374, %v322, 0.0
    %1276 = vadd.xlane.f32.xlu0 %v1275
    %v1277 = vpop.xlane.xlu0 %1276
    %v1278 = vsel %vm374, %v323, 0.0
    %1279 = vadd.xlane.f32.xlu0 %v1278
    %v1280 = vpop.xlane.xlu0 %1279
    %v1281 = vsel %vm374, %v324, 0.0
    %1282 = vadd.xlane.f32.xlu0 %v1281
    %v1283 = vpop.xlane.xlu0 %1282
    %v1284 = vsel %vm374, %v325, 0.0
    %1285 = vadd.xlane.f32.xlu0 %v1284
    %v1286 = vpop.xlane.xlu0 %1285
    %v1287 = vsel %vm374, %v326, 0.0
    %1288 = vadd.xlane.f32.xlu0 %v1287
    %v1289 = vpop.xlane.xlu0 %1288
    %v1290 = vsel %vm374, %v327, 0.0
    %1291 = vadd.xlane.f32.xlu0 %v1290
    %v1292 = vpop.xlane.xlu0 %1291
    %v1293 = vsel %vm374, %v328, 0.0
    %1294 = vadd.xlane.f32.xlu0 %v1293
    %v1295 = vpop.xlane.xlu0 %1294
    %v1296 = vsel %vm374, %v329, 0.0
    %1297 = vadd.xlane.f32.xlu0 %v1296
    %v1298 = vpop.xlane.xlu0 %1297
    %v1299 = vsel %vm374, %v330, 0.0
    %1300 = vadd.xlane.f32.xlu0 %v1299
    %v1301 = vpop.xlane.xlu0 %1300
    %v1302 = vsel %vm374, %v331, 0.0
    %1303 = vadd.xlane.f32.xlu0 %v1302
    %v1304 = vpop.xlane.xlu0 %1303
    %v1305 = vsel %vm374, %v332, 0.0
    %1306 = vadd.xlane.f32.xlu0 %v1305
    %v1307 = vpop.xlane.xlu0 %1306
    %v1308 = vsel %vm374, %v333, 0.0
    %1309 = vadd.xlane.f32.xlu0 %v1308
    %v1310 = vpop.xlane.xlu0 %1309
    %v1311 = vsel %vm374, %v334, 0.0
    %1312 = vadd.xlane.f32.xlu0 %v1311
    %v1313 = vpop.xlane.xlu0 %1312
    %v1314 = vsel %vm374, %v335, 0.0
    %1315 = vadd.xlane.f32.xlu0 %v1314
    %v1316 = vpop.xlane.xlu0 %1315
    %v1317 = vsel %vm374, %v336, 0.0
    %1318 = vadd.xlane.f32.xlu0 %v1317
    %v1319 = vpop.xlane.xlu0 %1318
    %v1320 = vsel %vm374, %v337, 0.0
    %1321 = vadd.xlane.f32.xlu0 %v1320
    %v1322 = vpop.xlane.xlu0 %1321
    %v1323 = vsel %vm374, %v338, 0.0
    %1324 = vadd.xlane.f32.xlu0 %v1323
    %v1325 = vpop.xlane.xlu0 %1324
    %v1326 = vsel %vm374, %v339, 0.0
    %1327 = vadd.xlane.f32.xlu0 %v1326
    %v1328 = vpop.xlane.xlu0 %1327
    %v1329 = vsel %vm374, %v340, 0.0
    %1330 = vadd.xlane.f32.xlu0 %v1329
    %v1331 = vpop.xlane.xlu0 %1330
    %v1332 = vsel %vm374, %v341, 0.0
    %1333 = vadd.xlane.f32.xlu0 %v1332
    %v1334 = vpop.xlane.xlu0 %1333
    %v1335 = vsel %vm374, %v342, 0.0
    %1336 = vadd.xlane.f32.xlu0 %v1335
    %v1337 = vpop.xlane.xlu0 %1336
    %v1338 = vsel %vm374, %v343, 0.0
    %1339 = vadd.xlane.f32.xlu0 %v1338
    %v1340 = vpop.xlane.xlu0 %1339
    %v1341 = vsel %vm374, %v344, 0.0
    %1342 = vadd.xlane.f32.xlu0 %v1341
    %v1343 = vpop.xlane.xlu0 %1342
    %v1344 = vsel %vm374, %v345, 0.0
    %1345 = vadd.xlane.f32.xlu0 %v1344
    %v1346 = vpop.xlane.xlu0 %1345
    %v1347 = vsel %vm374, %v346, 0.0
    %1348 = vadd.xlane.f32.xlu0 %v1347
    %v1349 = vpop.xlane.xlu0 %1348
    %v1350 = vsel %vm374, %v347, 0.0
    %1351 = vadd.xlane.f32.xlu0 %v1350
    %v1352 = vpop.xlane.xlu0 %1351
    %v1353 = vsel %vm374, %v348, 0.0
    %1354 = vadd.xlane.f32.xlu0 %v1353
    %v1355 = vpop.xlane.xlu0 %1354
    %v1356 = vsel %vm374, %v349, 0.0
    %1357 = vadd.xlane.f32.xlu0 %v1356
    %v1358 = vpop.xlane.xlu0 %1357
    %v1359 = vsel %vm374, %v350, 0.0
    %1360 = vadd.xlane.f32.xlu0 %v1359
    %v1361 = vpop.xlane.xlu0 %1360
    %v1362 = vsel %vm374, %v351, 0.0
    %1363 = vadd.xlane.f32.xlu0 %v1362
    %v1364 = vpop.xlane.xlu0 %1363
    %v1365 = vsel %vm374, %v352, 0.0
    %1366 = vadd.xlane.f32.xlu0 %v1365
    %v1367 = vpop.xlane.xlu0 %1366
    %v1368 = vsel %vm374, %v353, 0.0
    %1369 = vadd.xlane.f32.xlu0 %v1368
    %v1370 = vpop.xlane.xlu0 %1369
    %v1371 = vsel %vm374, %v354, 0.0
    %1372 = vadd.xlane.f32.xlu0 %v1371
    %v1373 = vpop.xlane.xlu0 %1372
    %v1374 = vsel %vm374, %v355, 0.0
    %1375 = vadd.xlane.f32.xlu0 %v1374
    %v1376 = vpop.xlane.xlu0 %1375
    %v1377 = vsel %vm374, %v356, 0.0
    %1378 = vadd.xlane.f32.xlu0 %v1377
    %v1379 = vpop.xlane.xlu0 %1378
    %v1380 = vsel %vm374, %v357, 0.0
    %1381 = vadd.xlane.f32.xlu0 %v1380
    %v1382 = vpop.xlane.xlu0 %1381
    %v1383 = vsel %vm374, %v358, 0.0
    %1384 = vadd.xlane.f32.xlu0 %v1383
    %v1385 = vpop.xlane.xlu0 %1384
    %v1386 = vsel %vm374, %v359, 0.0
    %1387 = vadd.xlane.f32.xlu0 %v1386
    %v1388 = vpop.xlane.xlu0 %1387
    %v1389 = vsel %vm374, %v360, 0.0
    %1390 = vadd.xlane.f32.xlu0 %v1389
    %v1391 = vpop.xlane.xlu0 %1390
    %v1392 = vsel %vm374, %v361, 0.0
    %1393 = vadd.xlane.f32.xlu0 %v1392
    %v1394 = vpop.xlane.xlu0 %1393
    %v1395 = vsel %vm374, %v362, 0.0
    %1396 = vadd.xlane.f32.xlu0 %v1395
    %v1397 = vpop.xlane.xlu0 %1396
    %v1398 = vsel %vm374, %v363, 0.0
    %1399 = vadd.xlane.f32.xlu0 %v1398
    %v1400 = vpop.xlane.xlu0 %1399
    %v1401 = vsel %vm374, %v364, 0.0
    %1402 = vadd.xlane.f32.xlu0 %v1401
    %v1403 = vpop.xlane.xlu0 %1402
    %v1404 = vsel %vm374, %v365, 0.0
    %1405 = vadd.xlane.f32.xlu0 %v1404
    %v1406 = vpop.xlane.xlu0 %1405
    %v1407 = vsel %vm374, %v366, 0.0
    %1408 = vadd.xlane.f32.xlu0 %v1407
    %v1409 = vpop.xlane.xlu0 %1408
    %v1410 = vsel %vm374, %v367, 0.0
    %1411 = vadd.xlane.f32.xlu0 %v1410
    %v1412 = vpop.xlane.xlu0 %1411
    %v1413 = vsel %vm374, %v368, 0.0
    %1414 = vadd.xlane.f32.xlu0 %v1413
    %v1415 = vpop.xlane.xlu0 %1414
    %v1416 = vsel %vm374, %v369, 0.0
    %1417 = vadd.xlane.f32.xlu0 %v1416
    %v1418 = vpop.xlane.xlu0 %1417
    %v1419 = vsel %vm374, %v370, 0.0
    %1420 = vadd.xlane.f32.xlu0 %v1419
    %v1421 = vpop.xlane.xlu0 %1420
    %v1422 = vsel %vm374, %v371, 0.0
    %1423 = vadd.xlane.f32.xlu0 %v1422
    %v1424 = vpop.xlane.xlu0 %1423
    %v1425 = vsel %vm374, %v372, 0.0
    %1426 = vadd.xlane.f32.xlu0 %v1425
    %v1427 = vpop.xlane.xlu0 %1426
    %v1428 = vsel %vm374, %v373, 0.0
    %1429 = vadd.xlane.f32.xlu0 %v1428
    %v1430 = vpop.xlane.xlu0 %1429
    %v1431 = vld [vmem:[%s1] sm:$0xff]
    %v1432 = vld [vmem:[%s1 + $0x8] sm:$0xff]
    %v1433 = vld [vmem:[%s1 + $0x10] sm:$0xff]
    %v1434 = vld [vmem:[%s1 + $0x18] sm:$0xff]
    %v1435 = vld [vmem:[%s1 + $0x20] sm:$0xff]
    %v1436 = vld [vmem:[%s1 + $0x28] sm:$0xff]
    %v1437 = vld [vmem:[%s1 + $0x30] sm:$0xff]
    %v1438 = vld [vmem:[%s1 + $0x38] sm:$0xff]
    %v1439 = vld [vmem:[%s1 + $0x40] sm:$0xff]
    %v1440 = vld [vmem:[%s1 + $0x48] sm:$0xff]
    %v1441 = vld [vmem:[%s1 + $0x50] sm:$0xff]
    %v1442 = vld [vmem:[%s1 + $0x58] sm:$0xff]
    %v1443 = vld [vmem:[%s1 + $0x60] sm:$0xff]
    %v1444 = vld [vmem:[%s1 + $0x68] sm:$0xff]
    %v1445 = vld [vmem:[%s1 + $0x70] sm:$0xff]
    %v1446 = vld [vmem:[%s1 + $0x78] sm:$0xff]
    %v1447 = vld [vmem:[%s1 + $0x80] sm:$0xff]
    %v1448 = vld [vmem:[%s1 + $0x88] sm:$0xff]
    %v1449 = vld [vmem:[%s1 + $0x90] sm:$0xff]
    %v1450 = vld [vmem:[%s1 + $0x98] sm:$0xff]
    %v1451 = vld [vmem:[%s1 + $0xa0] sm:$0xff]
    %v1452 = vld [vmem:[%s1 + $0xa8] sm:$0xff]
    %v1453 = vld [vmem:[%s1 + $0xb0] sm:$0xff]
    %v1454 = vld [vmem:[%s1 + $0xb8] sm:$0xff]
    %v1455 = vld [vmem:[%s1 + $0xc0] sm:$0xff]
    %v1456 = vld [vmem:[%s1 + $0xc8] sm:$0xff]
    %v1457 = vld [vmem:[%s1 + $0xd0] sm:$0xff]
    %v1458 = vld [vmem:[%s1 + $0xd8] sm:$0xff]
    %v1459 = vld [vmem:[%s1 + $0xe0] sm:$0xff]
    %v1460 = vld [vmem:[%s1 + $0xe8] sm:$0xff]
    %v1461 = vld [vmem:[%s1 + $0xf0] sm:$0xff]
    %v1462 = vld [vmem:[%s1 + $0xf8] sm:$0xff]
    %v1463 = vld [vmem:[%s1 + $0x100] sm:$0xff]
    %v1464 = vld [vmem:[%s1 + $0x108] sm:$0xff]
    %v1465 = vld [vmem:[%s1 + $0x110] sm:$0xff]
    %v1466 = vld [vmem:[%s1 + $0x118] sm:$0xff]
    %v1467 = vld [vmem:[%s1 + $0x120] sm:$0xff]
    %v1468 = vld [vmem:[%s1 + $0x128] sm:$0xff]
    %v1469 = vld [vmem:[%s1 + $0x130] sm:$0xff]
    %v1470 = vld [vmem:[%s1 + $0x138] sm:$0xff]
    %v1471 = vld [vmem:[%s1 + $0x140] sm:$0xff]
    %v1472 = vld [vmem:[%s1 + $0x148] sm:$0xff]
    %v1473 = vld [vmem:[%s1 + $0x150] sm:$0xff]
    %v1474 = vld [vmem:[%s1 + $0x158] sm:$0xff]
    %v1475 = vld [vmem:[%s1 + $0x160] sm:$0xff]
    %v1476 = vld [vmem:[%s1 + $0x168] sm:$0xff]
    %v1477 = vld [vmem:[%s1 + $0x170] sm:$0xff]
    %v1478 = vld [vmem:[%s1 + $0x178] sm:$0xff]
    %v1479 = vld [vmem:[%s1 + $0x180] sm:$0xff]
    %v1480 = vld [vmem:[%s1 + $0x188] sm:$0xff]
    %v1481 = vld [vmem:[%s1 + $0x190] sm:$0xff]
    %v1482 = vld [vmem:[%s1 + $0x198] sm:$0xff]
    %v1483 = vld [vmem:[%s1 + $0x1a0] sm:$0xff]
    %v1484 = vld [vmem:[%s1 + $0x1a8] sm:$0xff]
    %v1485 = vld [vmem:[%s1 + $0x1b0] sm:$0xff]
    %v1486 = vld [vmem:[%s1 + $0x1b8] sm:$0xff]
    %v1487 = vld [vmem:[%s1 + $0x1c0] sm:$0xff]
    %v1488 = vld [vmem:[%s1 + $0x1c8] sm:$0xff]
    %v1489 = vld [vmem:[%s1 + $0x1d0] sm:$0xff]
    %v1490 = vld [vmem:[%s1 + $0x1d8] sm:$0xff]
    %v1491 = vld [vmem:[%s1 + $0x1e0] sm:$0xff]
    %v1492 = vld [vmem:[%s1 + $0x1e8] sm:$0xff]
    %v1493 = vld [vmem:[%s1 + $0x1f0] sm:$0xff]
    %v1494 = vld [vmem:[%s1 + $0x1f8] sm:$0xff]
    %v1495 = vld [vmem:[%s1 + $0x200] sm:$0xff]
    %v1496 = vld [vmem:[%s1 + $0x208] sm:$0xff]
    %v1497 = vld [vmem:[%s1 + $0x210] sm:$0xff]
    %v1498 = vld [vmem:[%s1 + $0x218] sm:$0xff]
    %v1499 = vld [vmem:[%s1 + $0x220] sm:$0xff]
    %v1500 = vld [vmem:[%s1 + $0x228] sm:$0xff]
    %v1501 = vld [vmem:[%s1 + $0x230] sm:$0xff]
    %v1502 = vld [vmem:[%s1 + $0x238] sm:$0xff]
    %v1503 = vld [vmem:[%s1 + $0x240] sm:$0xff]
    %v1504 = vld [vmem:[%s1 + $0x248] sm:$0xff]
    %v1505 = vld [vmem:[%s1 + $0x250] sm:$0xff]
    %v1506 = vld [vmem:[%s1 + $0x258] sm:$0xff]
    %v1507 = vld [vmem:[%s1 + $0x260] sm:$0xff]
    %v1508 = vld [vmem:[%s1 + $0x268] sm:$0xff]
    %v1509 = vld [vmem:[%s1 + $0x270] sm:$0xff]
    %v1510 = vld [vmem:[%s1 + $0x278] sm:$0xff]
    %v1511 = vld [vmem:[%s1 + $0x280] sm:$0xff]
    %v1512 = vld [vmem:[%s1 + $0x288] sm:$0xff]
    %v1513 = vld [vmem:[%s1 + $0x290] sm:$0xff]
    %v1514 = vld [vmem:[%s1 + $0x298] sm:$0xff]
    %v1515 = vld [vmem:[%s1 + $0x2a0] sm:$0xff]
    %v1516 = vld [vmem:[%s1 + $0x2a8] sm:$0xff]
    %v1517 = vld [vmem:[%s1 + $0x2b0] sm:$0xff]
    %v1518 = vld [vmem:[%s1 + $0x2b8] sm:$0xff]
    %v1519 = vld [vmem:[%s1 + $0x2c0] sm:$0xff]
    %v1520 = vld [vmem:[%s1 + $0x2c8] sm:$0xff]
    %v1521 = vld [vmem:[%s1 + $0x2d0] sm:$0xff]
    %v1522 = vld [vmem:[%s1 + $0x2d8] sm:$0xff]
    %v1523 = vld [vmem:[%s1 + $0x2e0] sm:$0xff]
    %v1524 = vld [vmem:[%s1 + $0x2e8] sm:$0xff]
    %v1525 = vld [vmem:[%s1 + $0x2f0] sm:$0xff]
    %v1526 = vld [vmem:[%s1 + $0x2f8] sm:$0xff]
    %v1527 = vld [vmem:[%s1 + $0x300] sm:$0xff]
    %v1528 = vld [vmem:[%s1 + $0x308] sm:$0xff]
    %v1529 = vld [vmem:[%s1 + $0x310] sm:$0xff]
    %v1530 = vld [vmem:[%s1 + $0x318] sm:$0xff]
    %v1531 = vld [vmem:[%s1 + $0x320] sm:$0xff]
    %v1532 = vld [vmem:[%s1 + $0x328] sm:$0xff]
    %v1533 = vld [vmem:[%s1 + $0x330] sm:$0xff]
    %v1534 = vld [vmem:[%s1 + $0x338] sm:$0xff]
    %v1535 = vld [vmem:[%s1 + $0x340] sm:$0xff]
    %v1536 = vld [vmem:[%s1 + $0x348] sm:$0xff]
    %v1537 = vld [vmem:[%s1 + $0x350] sm:$0xff]
    %v1538 = vld [vmem:[%s1 + $0x358] sm:$0xff]
    %v1539 = vld [vmem:[%s1 + $0x360] sm:$0xff]
    %v1540 = vld [vmem:[%s1 + $0x368] sm:$0xff]
    %v1541 = vld [vmem:[%s1 + $0x370] sm:$0xff]
    %v1542 = vld [vmem:[%s1 + $0x378] sm:$0xff]
    %v1543 = vld [vmem:[%s1 + $0x380] sm:$0xff]
    %v1544 = vld [vmem:[%s1 + $0x388] sm:$0xff]
    %v1545 = vld [vmem:[%s1 + $0x390] sm:$0xff]
    %v1546 = vld [vmem:[%s1 + $0x398] sm:$0xff]
    %v1547 = vld [vmem:[%s1 + $0x3a0] sm:$0xff]
    %v1548 = vld [vmem:[%s1 + $0x3a8] sm:$0xff]
    %v1549 = vld [vmem:[%s1 + $0x3b0] sm:$0xff]
    %v1550 = vld [vmem:[%s1 + $0x3b8] sm:$0xff]
    %v1551 = vld [vmem:[%s1 + $0x3c0] sm:$0xff]
    %v1552 = vld [vmem:[%s1 + $0x3c8] sm:$0xff]
    %v1553 = vld [vmem:[%s1 + $0x3d0] sm:$0xff]
    %v1554 = vld [vmem:[%s1 + $0x3d8] sm:$0xff]
    %v1555 = vld [vmem:[%s1 + $0x3e0] sm:$0xff]
    %v1556 = vld [vmem:[%s1 + $0x3e8] sm:$0xff]
    %v1557 = vld [vmem:[%s1 + $0x3f0] sm:$0xff]
    %v1558 = vld [vmem:[%s1 + $0x3f8] sm:$0xff]
    %v1559 = vld [vmem:[%s1 + $0x400] sm:$0xff]
    %v1560 = vld [vmem:[%s1 + $0x408] sm:$0xff]
    %v1561 = vld [vmem:[%s1 + $0x410] sm:$0xff]
    %v1562 = vld [vmem:[%s1 + $0x418] sm:$0xff]
    %v1563 = vld [vmem:[%s1 + $0x420] sm:$0xff]
    %v1564 = vld [vmem:[%s1 + $0x428] sm:$0xff]
    %v1565 = vld [vmem:[%s1 + $0x430] sm:$0xff]
    %v1566 = vld [vmem:[%s1 + $0x438] sm:$0xff]
    %v1567 = vld [vmem:[%s1 + $0x440] sm:$0xff]
    %v1568 = vld [vmem:[%s1 + $0x448] sm:$0xff]
    %v1569 = vld [vmem:[%s1 + $0x450] sm:$0xff]
    %v1570 = vld [vmem:[%s1 + $0x458] sm:$0xff]
    %v1571 = vld [vmem:[%s1 + $0x460] sm:$0xff]
    %v1572 = vld [vmem:[%s1 + $0x468] sm:$0xff]
    %v1573 = vld [vmem:[%s1 + $0x470] sm:$0xff]
    %v1574 = vld [vmem:[%s1 + $0x478] sm:$0xff]
    %v1575 = vld [vmem:[%s1 + $0x480] sm:$0xff]
    %v1576 = vld [vmem:[%s1 + $0x488] sm:$0xff]
    %v1577 = vld [vmem:[%s1 + $0x490] sm:$0xff]
    %v1578 = vld [vmem:[%s1 + $0x498] sm:$0xff]
    %v1579 = vld [vmem:[%s1 + $0x4a0] sm:$0xff]
    %v1580 = vld [vmem:[%s1 + $0x4a8] sm:$0xff]
    %v1581 = vld [vmem:[%s1 + $0x4b0] sm:$0xff]
    %v1582 = vld [vmem:[%s1 + $0x4b8] sm:$0xff]
    %v1583 = vld [vmem:[%s1 + $0x4c0] sm:$0xff]
    %v1584 = vld [vmem:[%s1 + $0x4c8] sm:$0xff]
    %v1585 = vld [vmem:[%s1 + $0x4d0] sm:$0xff]
    %v1586 = vld [vmem:[%s1 + $0x4d8] sm:$0xff]
    %v1587 = vld [vmem:[%s1 + $0x4e0] sm:$0xff]
    %v1588 = vld [vmem:[%s1 + $0x4e8] sm:$0xff]
    %v1589 = vld [vmem:[%s1 + $0x4f0] sm:$0xff]
    %v1590 = vld [vmem:[%s1 + $0x4f8] sm:$0xff]
    %v1591 = vld [vmem:[%s1 + $0x500] sm:$0xff]
    %v1592 = vld [vmem:[%s1 + $0x508] sm:$0xff]
    %v1593 = vld [vmem:[%s1 + $0x510] sm:$0xff]
    %v1594 = vld [vmem:[%s1 + $0x518] sm:$0xff]
    %v1595 = vld [vmem:[%s1 + $0x520] sm:$0xff]
    %v1596 = vld [vmem:[%s1 + $0x528] sm:$0xff]
    %v1597 = vld [vmem:[%s1 + $0x530] sm:$0xff]
    %v1598 = vld [vmem:[%s1 + $0x538] sm:$0xff]
    %v1599 = vld [vmem:[%s1 + $0x540] sm:$0xff]
    %v1600 = vld [vmem:[%s1 + $0x548] sm:$0xff]
    %v1601 = vld [vmem:[%s1 + $0x550] sm:$0xff]
    %v1602 = vld [vmem:[%s1 + $0x558] sm:$0xff]
    %v1603 = vld [vmem:[%s1 + $0x560] sm:$0xff]
    %v1604 = vld [vmem:[%s1 + $0x568] sm:$0xff]
    %v1605 = vld [vmem:[%s1 + $0x570] sm:$0xff]
    %v1606 = vld [vmem:[%s1 + $0x578] sm:$0xff]
    %v1607 = vld [vmem:[%s1 + $0x580] sm:$0xff]
    %v1608 = vld [vmem:[%s1 + $0x588] sm:$0xff]
    %v1609 = vld [vmem:[%s1 + $0x590] sm:$0xff]
    %v1610 = vld [vmem:[%s1 + $0x598] sm:$0xff]
    %v1611 = vld [vmem:[%s1 + $0x5a0] sm:$0xff]
    %v1612 = vld [vmem:[%s1 + $0x5a8] sm:$0xff]
    %v1613 = vld [vmem:[%s1 + $0x5b0] sm:$0xff]
    %v1614 = vld [vmem:[%s1 + $0x5b8] sm:$0xff]
    %v1615 = vld [vmem:[%s1 + $0x5c0] sm:$0xff]
    %v1616 = vld [vmem:[%s1 + $0x5c8] sm:$0xff]
    %v1617 = vld [vmem:[%s1 + $0x5d0] sm:$0xff]
    %v1618 = vld [vmem:[%s1 + $0x5d8] sm:$0xff]
    %v1619 = vld [vmem:[%s1 + $0x5e0] sm:$0xff]
    %v1620 = vld [vmem:[%s1 + $0x5e8] sm:$0xff]
    %v1621 = vld [vmem:[%s1 + $0x5f0] sm:$0xff]
    %v1622 = vld [vmem:[%s1 + $0x5f8] sm:$0xff]
    %v1623 = vld [vmem:[%s1 + $0x600] sm:$0xff]
    %v1624 = vld [vmem:[%s1 + $0x608] sm:$0xff]
    %v1625 = vld [vmem:[%s1 + $0x610] sm:$0xff]
    %v1626 = vld [vmem:[%s1 + $0x618] sm:$0xff]
    %v1627 = vld [vmem:[%s1 + $0x620] sm:$0xff]
    %v1628 = vld [vmem:[%s1 + $0x628] sm:$0xff]
    %v1629 = vld [vmem:[%s1 + $0x630] sm:$0xff]
    %v1630 = vld [vmem:[%s1 + $0x638] sm:$0xff]
    %v1631 = vld [vmem:[%s1 + $0x640] sm:$0xff]
    %v1632 = vld [vmem:[%s1 + $0x648] sm:$0xff]
    %v1633 = vld [vmem:[%s1 + $0x650] sm:$0xff]
    %v1634 = vld [vmem:[%s1 + $0x658] sm:$0xff]
    %v1635 = vld [vmem:[%s1 + $0x660] sm:$0xff]
    %v1636 = vld [vmem:[%s1 + $0x668] sm:$0xff]
    %v1637 = vld [vmem:[%s1 + $0x670] sm:$0xff]
    %v1638 = vld [vmem:[%s1 + $0x678] sm:$0xff]
    %v1639 = vld [vmem:[%s1 + $0x680] sm:$0xff]
    %v1640 = vld [vmem:[%s1 + $0x688] sm:$0xff]
    %v1641 = vld [vmem:[%s1 + $0x690] sm:$0xff]
    %v1642 = vld [vmem:[%s1 + $0x698] sm:$0xff]
    %v1643 = vld [vmem:[%s1 + $0x6a0] sm:$0xff]
    %v1644 = vld [vmem:[%s1 + $0x6a8] sm:$0xff]
    %v1645 = vld [vmem:[%s1 + $0x6b0] sm:$0xff]
    %v1646 = vld [vmem:[%s1 + $0x6b8] sm:$0xff]
    %v1647 = vld [vmem:[%s1 + $0x6c0] sm:$0xff]
    %v1648 = vld [vmem:[%s1 + $0x6c8] sm:$0xff]
    %v1649 = vld [vmem:[%s1 + $0x6d0] sm:$0xff]
    %v1650 = vld [vmem:[%s1 + $0x6d8] sm:$0xff]
    %v1651 = vld [vmem:[%s1 + $0x6e0] sm:$0xff]
    %v1652 = vld [vmem:[%s1 + $0x6e8] sm:$0xff]
    %v1653 = vld [vmem:[%s1 + $0x6f0] sm:$0xff]
    %v1654 = vld [vmem:[%s1 + $0x6f8] sm:$0xff]
    %v1655 = vld [vmem:[%s1 + $0x700] sm:$0xff]
    %v1656 = vld [vmem:[%s1 + $0x708] sm:$0xff]
    %v1657 = vld [vmem:[%s1 + $0x710] sm:$0xff]
    %v1658 = vld [vmem:[%s1 + $0x718] sm:$0xff]
    %v1659 = vld [vmem:[%s1 + $0x720] sm:$0xff]
    %v1660 = vld [vmem:[%s1 + $0x728] sm:$0xff]
    %v1661 = vld [vmem:[%s1 + $0x730] sm:$0xff]
    %v1662 = vld [vmem:[%s1 + $0x738] sm:$0xff]
    %v1663 = vld [vmem:[%s1 + $0x740] sm:$0xff]
    %v1664 = vld [vmem:[%s1 + $0x748] sm:$0xff]
    %v1665 = vld [vmem:[%s1 + $0x750] sm:$0xff]
    %v1666 = vld [vmem:[%s1 + $0x758] sm:$0xff]
    %v1667 = vld [vmem:[%s1 + $0x760] sm:$0xff]
    %v1668 = vld [vmem:[%s1 + $0x768] sm:$0xff]
    %v1669 = vld [vmem:[%s1 + $0x770] sm:$0xff]
    %v1670 = vld [vmem:[%s1 + $0x778] sm:$0xff]
    %v1671 = vld [vmem:[%s1 + $0x780] sm:$0xff]
    %v1672 = vld [vmem:[%s1 + $0x788] sm:$0xff]
    %v1673 = vld [vmem:[%s1 + $0x790] sm:$0xff]
    %v1674 = vld [vmem:[%s1 + $0x798] sm:$0xff]
    %v1675 = vld [vmem:[%s1 + $0x7a0] sm:$0xff]
    %v1676 = vld [vmem:[%s1 + $0x7a8] sm:$0xff]
    %v1677 = vld [vmem:[%s1 + $0x7b0] sm:$0xff]
    %v1678 = vld [vmem:[%s1 + $0x7b8] sm:$0xff]
    %v1679 = vld [vmem:[%s1 + $0x7c0] sm:$0xff]
    %v1680 = vld [vmem:[%s1 + $0x7c8] sm:$0xff]
    %v1681 = vld [vmem:[%s1 + $0x7d0] sm:$0xff]
    %v1682 = vld [vmem:[%s1 + $0x7d8] sm:$0xff]
    %v1683 = vld [vmem:[%s1 + $0x7e0] sm:$0xff]
    %v1684 = vld [vmem:[%s1 + $0x7e8] sm:$0xff]
    %v1685 = vld [vmem:[%s1 + $0x7f0] sm:$0xff]
    %v1686 = vld [vmem:[%s1 + $0x7f8] sm:$0xff]
    %v1687 = vld [vmem:[%s1 + $0x800] sm:$0xff]
    %v1688 = vld [vmem:[%s1 + $0x808] sm:$0xff]
    %v1689 = vld [vmem:[%s1 + $0x810] sm:$0xff]
    %v1690 = vld [vmem:[%s1 + $0x818] sm:$0xff]
    %v1691 = vld [vmem:[%s1 + $0x820] sm:$0xff]
    %v1692 = vld [vmem:[%s1 + $0x828] sm:$0xff]
    %v1693 = vld [vmem:[%s1 + $0x830] sm:$0xff]
    %v1694 = vld [vmem:[%s1 + $0x838] sm:$0xff]
    %v1695 = vld [vmem:[%s1 + $0x840] sm:$0xff]
    %v1696 = vld [vmem:[%s1 + $0x848] sm:$0xff]
    %v1697 = vld [vmem:[%s1 + $0x850] sm:$0xff]
    %v1698 = vld [vmem:[%s1 + $0x858] sm:$0xff]
    %v1699 = vld [vmem:[%s1 + $0x860] sm:$0xff]
    %v1700 = vld [vmem:[%s1 + $0x868] sm:$0xff]
    %v1701 = vld [vmem:[%s1 + $0x870] sm:$0xff]
    %v1702 = vld [vmem:[%s1 + $0x878] sm:$0xff]
    %v1703 = vld [vmem:[%s1 + $0x880] sm:$0xff]
    %v1704 = vld [vmem:[%s1 + $0x888] sm:$0xff]
    %v1705 = vld [vmem:[%s1 + $0x890] sm:$0xff]
    %v1706 = vld [vmem:[%s1 + $0x898] sm:$0xff]
    %v1707 = vld [vmem:[%s1 + $0x8a0] sm:$0xff]
    %v1708 = vld [vmem:[%s1 + $0x8a8] sm:$0xff]
    %v1709 = vld [vmem:[%s1 + $0x8b0] sm:$0xff]
    %v1710 = vld [vmem:[%s1 + $0x8b8] sm:$0xff]
    %v1711 = vld [vmem:[%s1 + $0x8c0] sm:$0xff]
    %v1712 = vld [vmem:[%s1 + $0x8c8] sm:$0xff]
    %v1713 = vld [vmem:[%s1 + $0x8d0] sm:$0xff]
    %v1714 = vld [vmem:[%s1 + $0x8d8] sm:$0xff]
    %v1715 = vld [vmem:[%s1 + $0x8e0] sm:$0xff]
    %v1716 = vld [vmem:[%s1 + $0x8e8] sm:$0xff]
    %v1717 = vld [vmem:[%s1 + $0x8f0] sm:$0xff]
    %v1718 = vld [vmem:[%s1 + $0x8f8] sm:$0xff]
    %v1719 = vld [vmem:[%s1 + $0x900] sm:$0xff]
    %v1720 = vld [vmem:[%s1 + $0x908] sm:$0xff]
    %v1721 = vld [vmem:[%s1 + $0x910] sm:$0xff]
    %v1722 = vld [vmem:[%s1 + $0x918] sm:$0xff]
    %v1723 = vld [vmem:[%s1 + $0x920] sm:$0xff]
    %v1724 = vld [vmem:[%s1 + $0x928] sm:$0xff]
    %v1725 = vld [vmem:[%s1 + $0x930] sm:$0xff]
    %v1726 = vld [vmem:[%s1 + $0x938] sm:$0xff]
    %v1727 = vld [vmem:[%s1 + $0x940] sm:$0xff]
    %v1728 = vld [vmem:[%s1 + $0x948] sm:$0xff]
    %v1729 = vld [vmem:[%s1 + $0x950] sm:$0xff]
    %v1730 = vld [vmem:[%s1 + $0x958] sm:$0xff]
    %v1731 = vld [vmem:[%s1 + $0x960] sm:$0xff]
    %v1732 = vld [vmem:[%s1 + $0x968] sm:$0xff]
    %v1733 = vld [vmem:[%s1 + $0x970] sm:$0xff]
    %v1734 = vld [vmem:[%s1 + $0x978] sm:$0xff]
    %v1735 = vld [vmem:[%s1 + $0x980] sm:$0xff]
    %v1736 = vld [vmem:[%s1 + $0x988] sm:$0xff]
    %v1737 = vld [vmem:[%s1 + $0x990] sm:$0xff]
    %v1738 = vld [vmem:[%s1 + $0x998] sm:$0xff]
    %v1739 = vld [vmem:[%s1 + $0x9a0] sm:$0xff]
    %v1740 = vld [vmem:[%s1 + $0x9a8] sm:$0xff]
    %v1741 = vld [vmem:[%s1 + $0x9b0] sm:$0xff]
    %v1742 = vld [vmem:[%s1 + $0x9b8] sm:$0xff]
    %v1743 = vld [vmem:[%s1 + $0x9c0] sm:$0xff]
    %v1744 = vld [vmem:[%s1 + $0x9c8] sm:$0xff]
    %v1745 = vld [vmem:[%s1 + $0x9d0] sm:$0xff]
    %v1746 = vld [vmem:[%s1 + $0x9d8] sm:$0xff]
    %v1747 = vld [vmem:[%s1 + $0x9e0] sm:$0xff]
    %v1748 = vld [vmem:[%s1 + $0x9e8] sm:$0xff]
    %v1749 = vld [vmem:[%s1 + $0x9f0] sm:$0xff]
    %v1750 = vld [vmem:[%s1 + $0x9f8] sm:$0xff]
    %v1751 = vld [vmem:[%s1 + $0xa00] sm:$0xff]
    %v1752 = vld [vmem:[%s1 + $0xa08] sm:$0xff]
    %v1753 = vld [vmem:[%s1 + $0xa10] sm:$0xff]
    %v1754 = vld [vmem:[%s1 + $0xa18] sm:$0xff]
    %v1755 = vld [vmem:[%s1 + $0xa20] sm:$0xff]
    %v1756 = vld [vmem:[%s1 + $0xa28] sm:$0xff]
    %v1757 = vld [vmem:[%s1 + $0xa30] sm:$0xff]
    %v1758 = vld [vmem:[%s1 + $0xa38] sm:$0xff]
    %v1759 = vld [vmem:[%s1 + $0xa40] sm:$0xff]
    %v1760 = vld [vmem:[%s1 + $0xa48] sm:$0xff]
    %v1761 = vld [vmem:[%s1 + $0xa50] sm:$0xff]
    %v1762 = vld [vmem:[%s1 + $0xa58] sm:$0xff]
    %v1763 = vld [vmem:[%s1 + $0xa60] sm:$0xff]
    %v1764 = vld [vmem:[%s1 + $0xa68] sm:$0xff]
    %v1765 = vld [vmem:[%s1 + $0xa70] sm:$0xff]
    %v1766 = vld [vmem:[%s1 + $0xa78] sm:$0xff]
    %v1767 = vld [vmem:[%s1 + $0xa80] sm:$0xff]
    %v1768 = vld [vmem:[%s1 + $0xa88] sm:$0xff]
    %v1769 = vld [vmem:[%s1 + $0xa90] sm:$0xff]
    %v1770 = vld [vmem:[%s1 + $0xa98] sm:$0xff]
    %v1771 = vld [vmem:[%s1 + $0xaa0] sm:$0xff]
    %v1772 = vld [vmem:[%s1 + $0xaa8] sm:$0xff]
    %v1773 = vld [vmem:[%s1 + $0xab0] sm:$0xff]
    %v1774 = vld [vmem:[%s1 + $0xab8] sm:$0xff]
    %v1775 = vld [vmem:[%s1 + $0xac0] sm:$0xff]
    %v1776 = vld [vmem:[%s1 + $0xac8] sm:$0xff]
    %v1777 = vld [vmem:[%s1 + $0xad0] sm:$0xff]
    %v1778 = vld [vmem:[%s1 + $0xad8] sm:$0xff]
    %v1779 = vld [vmem:[%s1 + $0xae0] sm:$0xff]
    %v1780 = vld [vmem:[%s1 + $0xae8] sm:$0xff]
    %v1781 = vld [vmem:[%s1 + $0xaf0] sm:$0xff]
    %v1782 = vld [vmem:[%s1 + $0xaf8] sm:$0xff]
    %v1783 = vsel %vm374, %v1431, 0.0
    %1784 = vadd.xlane.f32.xlu0 %v1783
    %v1785 = vpop.xlane.xlu0 %1784
    %v1786 = vsel %vm374, %v1432, 0.0
    %1787 = vadd.xlane.f32.xlu0 %v1786
    %v1788 = vpop.xlane.xlu0 %1787
    %v1789 = vsel %vm374, %v1433, 0.0
    %1790 = vadd.xlane.f32.xlu0 %v1789
    %v1791 = vpop.xlane.xlu0 %1790
    %v1792 = vsel %vm374, %v1434, 0.0
    %1793 = vadd.xlane.f32.xlu0 %v1792
    %v1794 = vpop.xlane.xlu0 %1793
    %v1795 = vsel %vm374, %v1435, 0.0
    %1796 = vadd.xlane.f32.xlu0 %v1795
    %v1797 = vpop.xlane.xlu0 %1796
    %v1798 = vsel %vm374, %v1436, 0.0
    %1799 = vadd.xlane.f32.xlu0 %v1798
    %v1800 = vpop.xlane.xlu0 %1799
    %v1801 = vsel %vm374, %v1437, 0.0
    %1802 = vadd.xlane.f32.xlu0 %v1801
    %v1803 = vpop.xlane.xlu0 %1802
    %v1804 = vsel %vm374, %v1438, 0.0
    %1805 = vadd.xlane.f32.xlu0 %v1804
    %v1806 = vpop.xlane.xlu0 %1805
    %v1807 = vsel %vm374, %v1439, 0.0
    %1808 = vadd.xlane.f32.xlu0 %v1807
    %v1809 = vpop.xlane.xlu0 %1808
    %v1810 = vsel %vm374, %v1440, 0.0
    %1811 = vadd.xlane.f32.xlu0 %v1810
    %v1812 = vpop.xlane.xlu0 %1811
    %v1813 = vsel %vm374, %v1441, 0.0
    %1814 = vadd.xlane.f32.xlu0 %v1813
    %v1815 = vpop.xlane.xlu0 %1814
    %v1816 = vsel %vm374, %v1442, 0.0
    %1817 = vadd.xlane.f32.xlu0 %v1816
    %v1818 = vpop.xlane.xlu0 %1817
    %v1819 = vsel %vm374, %v1443, 0.0
    %1820 = vadd.xlane.f32.xlu0 %v1819
    %v1821 = vpop.xlane.xlu0 %1820
    %v1822 = vsel %vm374, %v1444, 0.0
    %1823 = vadd.xlane.f32.xlu0 %v1822
    %v1824 = vpop.xlane.xlu0 %1823
    %v1825 = vsel %vm374, %v1445, 0.0
    %1826 = vadd.xlane.f32.xlu0 %v1825
    %v1827 = vpop.xlane.xlu0 %1826
    %v1828 = vsel %vm374, %v1446, 0.0
    %1829 = vadd.xlane.f32.xlu0 %v1828
    %v1830 = vpop.xlane.xlu0 %1829
    %v1831 = vsel %vm374, %v1447, 0.0
    %1832 = vadd.xlane.f32.xlu0 %v1831
    %v1833 = vpop.xlane.xlu0 %1832
    %v1834 = vsel %vm374, %v1448, 0.0
    %1835 = vadd.xlane.f32.xlu0 %v1834
    %v1836 = vpop.xlane.xlu0 %1835
    %v1837 = vsel %vm374, %v1449, 0.0
    %1838 = vadd.xlane.f32.xlu0 %v1837
    %v1839 = vpop.xlane.xlu0 %1838
    %v1840 = vsel %vm374, %v1450, 0.0
    %1841 = vadd.xlane.f32.xlu0 %v1840
    %v1842 = vpop.xlane.xlu0 %1841
    %v1843 = vsel %vm374, %v1451, 0.0
    %1844 = vadd.xlane.f32.xlu0 %v1843
    %v1845 = vpop.xlane.xlu0 %1844
    %v1846 = vsel %vm374, %v1452, 0.0
    %1847 = vadd.xlane.f32.xlu0 %v1846
    %v1848 = vpop.xlane.xlu0 %1847
    %v1849 = vsel %vm374, %v1453, 0.0
    %1850 = vadd.xlane.f32.xlu0 %v1849
    %v1851 = vpop.xlane.xlu0 %1850
    %v1852 = vsel %vm374, %v1454, 0.0
    %1853 = vadd.xlane.f32.xlu0 %v1852
    %v1854 = vpop.xlane.xlu0 %1853
    %v1855 = vsel %vm374, %v1455, 0.0
    %1856 = vadd.xlane.f32.xlu0 %v1855
    %v1857 = vpop.xlane.xlu0 %1856
    %v1858 = vsel %vm374, %v1456, 0.0
    %1859 = vadd.xlane.f32.xlu0 %v1858
    %v1860 = vpop.xlane.xlu0 %1859
    %v1861 = vsel %vm374, %v1457, 0.0
    %1862 = vadd.xlane.f32.xlu0 %v1861
    %v1863 = vpop.xlane.xlu0 %1862
    %v1864 = vsel %vm374, %v1458, 0.0
    %1865 = vadd.xlane.f32.xlu0 %v1864
    %v1866 = vpop.xlane.xlu0 %1865
    %v1867 = vsel %vm374, %v1459, 0.0
    %1868 = vadd.xlane.f32.xlu0 %v1867
    %v1869 = vpop.xlane.xlu0 %1868
    %v1870 = vsel %vm374, %v1460, 0.0
    %1871 = vadd.xlane.f32.xlu0 %v1870
    %v1872 = vpop.xlane.xlu0 %1871
    %v1873 = vsel %vm374, %v1461, 0.0
    %1874 = vadd.xlane.f32.xlu0 %v1873
    %v1875 = vpop.xlane.xlu0 %1874
    %v1876 = vsel %vm374, %v1462, 0.0
    %1877 = vadd.xlane.f32.xlu0 %v1876
    %v1878 = vpop.xlane.xlu0 %1877
    %v1879 = vsel %vm374, %v1463, 0.0
    %1880 = vadd.xlane.f32.xlu0 %v1879
    %v1881 = vpop.xlane.xlu0 %1880
    %v1882 = vsel %vm374, %v1464, 0.0
    %1883 = vadd.xlane.f32.xlu0 %v1882
    %v1884 = vpop.xlane.xlu0 %1883
    %v1885 = vsel %vm374, %v1465, 0.0
    %1886 = vadd.xlane.f32.xlu0 %v1885
    %v1887 = vpop.xlane.xlu0 %1886
    %v1888 = vsel %vm374, %v1466, 0.0
    %1889 = vadd.xlane.f32.xlu0 %v1888
    %v1890 = vpop.xlane.xlu0 %1889
    %v1891 = vsel %vm374, %v1467, 0.0
    %1892 = vadd.xlane.f32.xlu0 %v1891
    %v1893 = vpop.xlane.xlu0 %1892
    %v1894 = vsel %vm374, %v1468, 0.0
    %1895 = vadd.xlane.f32.xlu0 %v1894
    %v1896 = vpop.xlane.xlu0 %1895
    %v1897 = vsel %vm374, %v1469, 0.0
    %1898 = vadd.xlane.f32.xlu0 %v1897
    %v1899 = vpop.xlane.xlu0 %1898
    %v1900 = vsel %vm374, %v1470, 0.0
    %1901 = vadd.xlane.f32.xlu0 %v1900
    %v1902 = vpop.xlane.xlu0 %1901
    %v1903 = vsel %vm374, %v1471, 0.0
    %1904 = vadd.xlane.f32.xlu0 %v1903
    %v1905 = vpop.xlane.xlu0 %1904
    %v1906 = vsel %vm374, %v1472, 0.0
    %1907 = vadd.xlane.f32.xlu0 %v1906
    %v1908 = vpop.xlane.xlu0 %1907
    %v1909 = vsel %vm374, %v1473, 0.0
    %1910 = vadd.xlane.f32.xlu0 %v1909
    %v1911 = vpop.xlane.xlu0 %1910
    %v1912 = vsel %vm374, %v1474, 0.0
    %1913 = vadd.xlane.f32.xlu0 %v1912
    %v1914 = vpop.xlane.xlu0 %1913
    %v1915 = vsel %vm374, %v1475, 0.0
    %1916 = vadd.xlane.f32.xlu0 %v1915
    %v1917 = vpop.xlane.xlu0 %1916
    %v1918 = vsel %vm374, %v1476, 0.0
    %1919 = vadd.xlane.f32.xlu0 %v1918
    %v1920 = vpop.xlane.xlu0 %1919
    %v1921 = vsel %vm374, %v1477, 0.0
    %1922 = vadd.xlane.f32.xlu0 %v1921
    %v1923 = vpop.xlane.xlu0 %1922
    %v1924 = vsel %vm374, %v1478, 0.0
    %1925 = vadd.xlane.f32.xlu0 %v1924
    %v1926 = vpop.xlane.xlu0 %1925
    %v1927 = vsel %vm374, %v1479, 0.0
    %1928 = vadd.xlane.f32.xlu0 %v1927
    %v1929 = vpop.xlane.xlu0 %1928
    %v1930 = vsel %vm374, %v1480, 0.0
    %1931 = vadd.xlane.f32.xlu0 %v1930
    %v1932 = vpop.xlane.xlu0 %1931
    %v1933 = vsel %vm374, %v1481, 0.0
    %1934 = vadd.xlane.f32.xlu0 %v1933
    %v1935 = vpop.xlane.xlu0 %1934
    %v1936 = vsel %vm374, %v1482, 0.0
    %1937 = vadd.xlane.f32.xlu0 %v1936
    %v1938 = vpop.xlane.xlu0 %1937
    %v1939 = vsel %vm374, %v1483, 0.0
    %1940 = vadd.xlane.f32.xlu0 %v1939
    %v1941 = vpop.xlane.xlu0 %1940
    %v1942 = vsel %vm374, %v1484, 0.0
    %1943 = vadd.xlane.f32.xlu0 %v1942
    %v1944 = vpop.xlane.xlu0 %1943
    %v1945 = vsel %vm374, %v1485, 0.0
    %1946 = vadd.xlane.f32.xlu0 %v1945
    %v1947 = vpop.xlane.xlu0 %1946
    %v1948 = vsel %vm374, %v1486, 0.0
    %1949 = vadd.xlane.f32.xlu0 %v1948
    %v1950 = vpop.xlane.xlu0 %1949
    %v1951 = vsel %vm374, %v1487, 0.0
    %1952 = vadd.xlane.f32.xlu0 %v1951
    %v1953 = vpop.xlane.xlu0 %1952
    %v1954 = vsel %vm374, %v1488, 0.0
    %1955 = vadd.xlane.f32.xlu0 %v1954
    %v1956 = vpop.xlane.xlu0 %1955
    %v1957 = vsel %vm374, %v1489, 0.0
    %1958 = vadd.xlane.f32.xlu0 %v1957
    %v1959 = vpop.xlane.xlu0 %1958
    %v1960 = vsel %vm374, %v1490, 0.0
    %1961 = vadd.xlane.f32.xlu0 %v1960
    %v1962 = vpop.xlane.xlu0 %1961
    %v1963 = vsel %vm374, %v1491, 0.0
    %1964 = vadd.xlane.f32.xlu0 %v1963
    %v1965 = vpop.xlane.xlu0 %1964
    %v1966 = vsel %vm374, %v1492, 0.0
    %1967 = vadd.xlane.f32.xlu0 %v1966
    %v1968 = vpop.xlane.xlu0 %1967
    %v1969 = vsel %vm374, %v1493, 0.0
    %1970 = vadd.xlane.f32.xlu0 %v1969
    %v1971 = vpop.xlane.xlu0 %1970
    %v1972 = vsel %vm374, %v1494, 0.0
    %1973 = vadd.xlane.f32.xlu0 %v1972
    %v1974 = vpop.xlane.xlu0 %1973
    %v1975 = vsel %vm374, %v1495, 0.0
    %1976 = vadd.xlane.f32.xlu0 %v1975
    %v1977 = vpop.xlane.xlu0 %1976
    %v1978 = vsel %vm374, %v1496, 0.0
    %1979 = vadd.xlane.f32.xlu0 %v1978
    %v1980 = vpop.xlane.xlu0 %1979
    %v1981 = vsel %vm374, %v1497, 0.0
    %1982 = vadd.xlane.f32.xlu0 %v1981
    %v1983 = vpop.xlane.xlu0 %1982
    %v1984 = vsel %vm374, %v1498, 0.0
    %1985 = vadd.xlane.f32.xlu0 %v1984
    %v1986 = vpop.xlane.xlu0 %1985
    %v1987 = vsel %vm374, %v1499, 0.0
    %1988 = vadd.xlane.f32.xlu0 %v1987
    %v1989 = vpop.xlane.xlu0 %1988
    %v1990 = vsel %vm374, %v1500, 0.0
    %1991 = vadd.xlane.f32.xlu0 %v1990
    %v1992 = vpop.xlane.xlu0 %1991
    %v1993 = vsel %vm374, %v1501, 0.0
    %1994 = vadd.xlane.f32.xlu0 %v1993
    %v1995 = vpop.xlane.xlu0 %1994
    %v1996 = vsel %vm374, %v1502, 0.0
    %1997 = vadd.xlane.f32.xlu0 %v1996
    %v1998 = vpop.xlane.xlu0 %1997
    %v1999 = vsel %vm374, %v1503, 0.0
    %2000 = vadd.xlane.f32.xlu0 %v1999
    %v2001 = vpop.xlane.xlu0 %2000
    %v2002 = vsel %vm374, %v1504, 0.0
    %2003 = vadd.xlane.f32.xlu0 %v2002
    %v2004 = vpop.xlane.xlu0 %2003
    %v2005 = vsel %vm374, %v1505, 0.0
    %2006 = vadd.xlane.f32.xlu0 %v2005
    %v2007 = vpop.xlane.xlu0 %2006
    %v2008 = vsel %vm374, %v1506, 0.0
    %2009 = vadd.xlane.f32.xlu0 %v2008
    %v2010 = vpop.xlane.xlu0 %2009
    %v2011 = vsel %vm374, %v1507, 0.0
    %2012 = vadd.xlane.f32.xlu0 %v2011
    %v2013 = vpop.xlane.xlu0 %2012
    %v2014 = vsel %vm374, %v1508, 0.0
    %2015 = vadd.xlane.f32.xlu0 %v2014
    %v2016 = vpop.xlane.xlu0 %2015
    %v2017 = vsel %vm374, %v1509, 0.0
    %2018 = vadd.xlane.f32.xlu0 %v2017
    %v2019 = vpop.xlane.xlu0 %2018
    %v2020 = vsel %vm374, %v1510, 0.0
    %2021 = vadd.xlane.f32.xlu0 %v2020
    %v2022 = vpop.xlane.xlu0 %2021
    %v2023 = vsel %vm374, %v1511, 0.0
    %2024 = vadd.xlane.f32.xlu0 %v2023
    %v2025 = vpop.xlane.xlu0 %2024
    %v2026 = vsel %vm374, %v1512, 0.0
    %2027 = vadd.xlane.f32.xlu0 %v2026
    %v2028 = vpop.xlane.xlu0 %2027
    %v2029 = vsel %vm374, %v1513, 0.0
    %2030 = vadd.xlane.f32.xlu0 %v2029
    %v2031 = vpop.xlane.xlu0 %2030
    %v2032 = vsel %vm374, %v1514, 0.0
    %2033 = vadd.xlane.f32.xlu0 %v2032
    %v2034 = vpop.xlane.xlu0 %2033
    %v2035 = vsel %vm374, %v1515, 0.0
    %2036 = vadd.xlane.f32.xlu0 %v2035
    %v2037 = vpop.xlane.xlu0 %2036
    %v2038 = vsel %vm374, %v1516, 0.0
    %2039 = vadd.xlane.f32.xlu0 %v2038
    %v2040 = vpop.xlane.xlu0 %2039
    %v2041 = vsel %vm374, %v1517, 0.0
    %2042 = vadd.xlane.f32.xlu0 %v2041
    %v2043 = vpop.xlane.xlu0 %2042
    %v2044 = vsel %vm374, %v1518, 0.0
    %2045 = vadd.xlane.f32.xlu0 %v2044
    %v2046 = vpop.xlane.xlu0 %2045
    %v2047 = vsel %vm374, %v1519, 0.0
    %2048 = vadd.xlane.f32.xlu0 %v2047
    %v2049 = vpop.xlane.xlu0 %2048
    %v2050 = vsel %vm374, %v1520, 0.0
    %2051 = vadd.xlane.f32.xlu0 %v2050
    %v2052 = vpop.xlane.xlu0 %2051
    %v2053 = vsel %vm374, %v1521, 0.0
    %2054 = vadd.xlane.f32.xlu0 %v2053
    %v2055 = vpop.xlane.xlu0 %2054
    %v2056 = vsel %vm374, %v1522, 0.0
    %2057 = vadd.xlane.f32.xlu0 %v2056
    %v2058 = vpop.xlane.xlu0 %2057
    %v2059 = vsel %vm374, %v1523, 0.0
    %2060 = vadd.xlane.f32.xlu0 %v2059
    %v2061 = vpop.xlane.xlu0 %2060
    %v2062 = vsel %vm374, %v1524, 0.0
    %2063 = vadd.xlane.f32.xlu0 %v2062
    %v2064 = vpop.xlane.xlu0 %2063
    %v2065 = vsel %vm374, %v1525, 0.0
    %2066 = vadd.xlane.f32.xlu0 %v2065
    %v2067 = vpop.xlane.xlu0 %2066
    %v2068 = vsel %vm374, %v1526, 0.0
    %2069 = vadd.xlane.f32.xlu0 %v2068
    %v2070 = vpop.xlane.xlu0 %2069
    %v2071 = vsel %vm374, %v1527, 0.0
    %2072 = vadd.xlane.f32.xlu0 %v2071
    %v2073 = vpop.xlane.xlu0 %2072
    %v2074 = vsel %vm374, %v1528, 0.0
    %2075 = vadd.xlane.f32.xlu0 %v2074
    %v2076 = vpop.xlane.xlu0 %2075
    %v2077 = vsel %vm374, %v1529, 0.0
    %2078 = vadd.xlane.f32.xlu0 %v2077
    %v2079 = vpop.xlane.xlu0 %2078
    %v2080 = vsel %vm374, %v1530, 0.0
    %2081 = vadd.xlane.f32.xlu0 %v2080
    %v2082 = vpop.xlane.xlu0 %2081
    %v2083 = vsel %vm374, %v1531, 0.0
    %2084 = vadd.xlane.f32.xlu0 %v2083
    %v2085 = vpop.xlane.xlu0 %2084
    %v2086 = vsel %vm374, %v1532, 0.0
    %2087 = vadd.xlane.f32.xlu0 %v2086
    %v2088 = vpop.xlane.xlu0 %2087
    %v2089 = vsel %vm374, %v1533, 0.0
    %2090 = vadd.xlane.f32.xlu0 %v2089
    %v2091 = vpop.xlane.xlu0 %2090
    %v2092 = vsel %vm374, %v1534, 0.0
    %2093 = vadd.xlane.f32.xlu0 %v2092
    %v2094 = vpop.xlane.xlu0 %2093
    %v2095 = vsel %vm374, %v1535, 0.0
    %2096 = vadd.xlane.f32.xlu0 %v2095
    %v2097 = vpop.xlane.xlu0 %2096
    %v2098 = vsel %vm374, %v1536, 0.0
    %2099 = vadd.xlane.f32.xlu0 %v2098
    %v2100 = vpop.xlane.xlu0 %2099
    %v2101 = vsel %vm374, %v1537, 0.0
    %2102 = vadd.xlane.f32.xlu0 %v2101
    %v2103 = vpop.xlane.xlu0 %2102
    %v2104 = vsel %vm374, %v1538, 0.0
    %2105 = vadd.xlane.f32.xlu0 %v2104
    %v2106 = vpop.xlane.xlu0 %2105
    %v2107 = vsel %vm374, %v1539, 0.0
    %2108 = vadd.xlane.f32.xlu0 %v2107
    %v2109 = vpop.xlane.xlu0 %2108
    %v2110 = vsel %vm374, %v1540, 0.0
    %2111 = vadd.xlane.f32.xlu0 %v2110
    %v2112 = vpop.xlane.xlu0 %2111
    %v2113 = vsel %vm374, %v1541, 0.0
    %2114 = vadd.xlane.f32.xlu0 %v2113
    %v2115 = vpop.xlane.xlu0 %2114
    %v2116 = vsel %vm374, %v1542, 0.0
    %2117 = vadd.xlane.f32.xlu0 %v2116
    %v2118 = vpop.xlane.xlu0 %2117
    %v2119 = vsel %vm374, %v1543, 0.0
    %2120 = vadd.xlane.f32.xlu0 %v2119
    %v2121 = vpop.xlane.xlu0 %2120
    %v2122 = vsel %vm374, %v1544, 0.0
    %2123 = vadd.xlane.f32.xlu0 %v2122
    %v2124 = vpop.xlane.xlu0 %2123
    %v2125 = vsel %vm374, %v1545, 0.0
    %2126 = vadd.xlane.f32.xlu0 %v2125
    %v2127 = vpop.xlane.xlu0 %2126
    %v2128 = vsel %vm374, %v1546, 0.0
    %2129 = vadd.xlane.f32.xlu0 %v2128
    %v2130 = vpop.xlane.xlu0 %2129
    %v2131 = vsel %vm374, %v1547, 0.0
    %2132 = vadd.xlane.f32.xlu0 %v2131
    %v2133 = vpop.xlane.xlu0 %2132
    %v2134 = vsel %vm374, %v1548, 0.0
    %2135 = vadd.xlane.f32.xlu0 %v2134
    %v2136 = vpop.xlane.xlu0 %2135
    %v2137 = vsel %vm374, %v1549, 0.0
    %2138 = vadd.xlane.f32.xlu0 %v2137
    %v2139 = vpop.xlane.xlu0 %2138
    %v2140 = vsel %vm374, %v1550, 0.0
    %2141 = vadd.xlane.f32.xlu0 %v2140
    %v2142 = vpop.xlane.xlu0 %2141
    %v2143 = vsel %vm374, %v1551, 0.0
    %2144 = vadd.xlane.f32.xlu0 %v2143
    %v2145 = vpop.xlane.xlu0 %2144
    %v2146 = vsel %vm374, %v1552, 0.0
    %2147 = vadd.xlane.f32.xlu0 %v2146
    %v2148 = vpop.xlane.xlu0 %2147
    %v2149 = vsel %vm374, %v1553, 0.0
    %2150 = vadd.xlane.f32.xlu0 %v2149
    %v2151 = vpop.xlane.xlu0 %2150
    %v2152 = vsel %vm374, %v1554, 0.0
    %2153 = vadd.xlane.f32.xlu0 %v2152
    %v2154 = vpop.xlane.xlu0 %2153
    %v2155 = vsel %vm374, %v1555, 0.0
    %2156 = vadd.xlane.f32.xlu0 %v2155
    %v2157 = vpop.xlane.xlu0 %2156
    %v2158 = vsel %vm374, %v1556, 0.0
    %2159 = vadd.xlane.f32.xlu0 %v2158
    %v2160 = vpop.xlane.xlu0 %2159
    %v2161 = vsel %vm374, %v1557, 0.0
    %2162 = vadd.xlane.f32.xlu0 %v2161
    %v2163 = vpop.xlane.xlu0 %2162
    %v2164 = vsel %vm374, %v1558, 0.0
    %2165 = vadd.xlane.f32.xlu0 %v2164
    %v2166 = vpop.xlane.xlu0 %2165
    %v2167 = vsel %vm374, %v1559, 0.0
    %2168 = vadd.xlane.f32.xlu0 %v2167
    %v2169 = vpop.xlane.xlu0 %2168
    %v2170 = vsel %vm374, %v1560, 0.0
    %2171 = vadd.xlane.f32.xlu0 %v2170
    %v2172 = vpop.xlane.xlu0 %2171
    %v2173 = vsel %vm374, %v1561, 0.0
    %2174 = vadd.xlane.f32.xlu0 %v2173
    %v2175 = vpop.xlane.xlu0 %2174
    %v2176 = vsel %vm374, %v1562, 0.0
    %2177 = vadd.xlane.f32.xlu0 %v2176
    %v2178 = vpop.xlane.xlu0 %2177
    %v2179 = vsel %vm374, %v1563, 0.0
    %2180 = vadd.xlane.f32.xlu0 %v2179
    %v2181 = vpop.xlane.xlu0 %2180
    %v2182 = vsel %vm374, %v1564, 0.0
    %2183 = vadd.xlane.f32.xlu0 %v2182
    %v2184 = vpop.xlane.xlu0 %2183
    %v2185 = vsel %vm374, %v1565, 0.0
    %2186 = vadd.xlane.f32.xlu0 %v2185
    %v2187 = vpop.xlane.xlu0 %2186
    %v2188 = vsel %vm374, %v1566, 0.0
    %2189 = vadd.xlane.f32.xlu0 %v2188
    %v2190 = vpop.xlane.xlu0 %2189
    %v2191 = vsel %vm374, %v1567, 0.0
    %2192 = vadd.xlane.f32.xlu0 %v2191
    %v2193 = vpop.xlane.xlu0 %2192
    %v2194 = vsel %vm374, %v1568, 0.0
    %2195 = vadd.xlane.f32.xlu0 %v2194
    %v2196 = vpop.xlane.xlu0 %2195
    %v2197 = vsel %vm374, %v1569, 0.0
    %2198 = vadd.xlane.f32.xlu0 %v2197
    %v2199 = vpop.xlane.xlu0 %2198
    %v2200 = vsel %vm374, %v1570, 0.0
    %2201 = vadd.xlane.f32.xlu0 %v2200
    %v2202 = vpop.xlane.xlu0 %2201
    %v2203 = vsel %vm374, %v1571, 0.0
    %2204 = vadd.xlane.f32.xlu0 %v2203
    %v2205 = vpop.xlane.xlu0 %2204
    %v2206 = vsel %vm374, %v1572, 0.0
    %2207 = vadd.xlane.f32.xlu0 %v2206
    %v2208 = vpop.xlane.xlu0 %2207
    %v2209 = vsel %vm374, %v1573, 0.0
    %2210 = vadd.xlane.f32.xlu0 %v2209
    %v2211 = vpop.xlane.xlu0 %2210
    %v2212 = vsel %vm374, %v1574, 0.0
    %2213 = vadd.xlane.f32.xlu0 %v2212
    %v2214 = vpop.xlane.xlu0 %2213
    %v2215 = vsel %vm374, %v1575, 0.0
    %2216 = vadd.xlane.f32.xlu0 %v2215
    %v2217 = vpop.xlane.xlu0 %2216
    %v2218 = vsel %vm374, %v1576, 0.0
    %2219 = vadd.xlane.f32.xlu0 %v2218
    %v2220 = vpop.xlane.xlu0 %2219
    %v2221 = vsel %vm374, %v1577, 0.0
    %2222 = vadd.xlane.f32.xlu0 %v2221
    %v2223 = vpop.xlane.xlu0 %2222
    %v2224 = vsel %vm374, %v1578, 0.0
    %2225 = vadd.xlane.f32.xlu0 %v2224
    %v2226 = vpop.xlane.xlu0 %2225
    %v2227 = vsel %vm374, %v1579, 0.0
    %2228 = vadd.xlane.f32.xlu0 %v2227
    %v2229 = vpop.xlane.xlu0 %2228
    %v2230 = vsel %vm374, %v1580, 0.0
    %2231 = vadd.xlane.f32.xlu0 %v2230
    %v2232 = vpop.xlane.xlu0 %2231
    %v2233 = vsel %vm374, %v1581, 0.0
    %2234 = vadd.xlane.f32.xlu0 %v2233
    %v2235 = vpop.xlane.xlu0 %2234
    %v2236 = vsel %vm374, %v1582, 0.0
    %2237 = vadd.xlane.f32.xlu0 %v2236
    %v2238 = vpop.xlane.xlu0 %2237
    %v2239 = vsel %vm374, %v1583, 0.0
    %2240 = vadd.xlane.f32.xlu0 %v2239
    %v2241 = vpop.xlane.xlu0 %2240
    %v2242 = vsel %vm374, %v1584, 0.0
    %2243 = vadd.xlane.f32.xlu0 %v2242
    %v2244 = vpop.xlane.xlu0 %2243
    %v2245 = vsel %vm374, %v1585, 0.0
    %2246 = vadd.xlane.f32.xlu0 %v2245
    %v2247 = vpop.xlane.xlu0 %2246
    %v2248 = vsel %vm374, %v1586, 0.0
    %2249 = vadd.xlane.f32.xlu0 %v2248
    %v2250 = vpop.xlane.xlu0 %2249
    %v2251 = vsel %vm374, %v1587, 0.0
    %2252 = vadd.xlane.f32.xlu0 %v2251
    %v2253 = vpop.xlane.xlu0 %2252
    %v2254 = vsel %vm374, %v1588, 0.0
    %2255 = vadd.xlane.f32.xlu0 %v2254
    %v2256 = vpop.xlane.xlu0 %2255
    %v2257 = vsel %vm374, %v1589, 0.0
    %2258 = vadd.xlane.f32.xlu0 %v2257
    %v2259 = vpop.xlane.xlu0 %2258
    %v2260 = vsel %vm374, %v1590, 0.0
    %2261 = vadd.xlane.f32.xlu0 %v2260
    %v2262 = vpop.xlane.xlu0 %2261
    %v2263 = vsel %vm374, %v1591, 0.0
    %2264 = vadd.xlane.f32.xlu0 %v2263
    %v2265 = vpop.xlane.xlu0 %2264
    %v2266 = vsel %vm374, %v1592, 0.0
    %2267 = vadd.xlane.f32.xlu0 %v2266
    %v2268 = vpop.xlane.xlu0 %2267
    %v2269 = vsel %vm374, %v1593, 0.0
    %2270 = vadd.xlane.f32.xlu0 %v2269
    %v2271 = vpop.xlane.xlu0 %2270
    %v2272 = vsel %vm374, %v1594, 0.0
    %2273 = vadd.xlane.f32.xlu0 %v2272
    %v2274 = vpop.xlane.xlu0 %2273
    %v2275 = vsel %vm374, %v1595, 0.0
    %2276 = vadd.xlane.f32.xlu0 %v2275
    %v2277 = vpop.xlane.xlu0 %2276
    %v2278 = vsel %vm374, %v1596, 0.0
    %2279 = vadd.xlane.f32.xlu0 %v2278
    %v2280 = vpop.xlane.xlu0 %2279
    %v2281 = vsel %vm374, %v1597, 0.0
    %2282 = vadd.xlane.f32.xlu0 %v2281
    %v2283 = vpop.xlane.xlu0 %2282
    %v2284 = vsel %vm374, %v1598, 0.0
    %2285 = vadd.xlane.f32.xlu0 %v2284
    %v2286 = vpop.xlane.xlu0 %2285
    %v2287 = vsel %vm374, %v1599, 0.0
    %2288 = vadd.xlane.f32.xlu0 %v2287
    %v2289 = vpop.xlane.xlu0 %2288
    %v2290 = vsel %vm374, %v1600, 0.0
    %2291 = vadd.xlane.f32.xlu0 %v2290
    %v2292 = vpop.xlane.xlu0 %2291
    %v2293 = vsel %vm374, %v1601, 0.0
    %2294 = vadd.xlane.f32.xlu0 %v2293
    %v2295 = vpop.xlane.xlu0 %2294
    %v2296 = vsel %vm374, %v1602, 0.0
    %2297 = vadd.xlane.f32.xlu0 %v2296
    %v2298 = vpop.xlane.xlu0 %2297
    %v2299 = vsel %vm374, %v1603, 0.0
    %2300 = vadd.xlane.f32.xlu0 %v2299
    %v2301 = vpop.xlane.xlu0 %2300
    %v2302 = vsel %vm374, %v1604, 0.0
    %2303 = vadd.xlane.f32.xlu0 %v2302
    %v2304 = vpop.xlane.xlu0 %2303
    %v2305 = vsel %vm374, %v1605, 0.0
    %2306 = vadd.xlane.f32.xlu0 %v2305
    %v2307 = vpop.xlane.xlu0 %2306
    %v2308 = vsel %vm374, %v1606, 0.0
    %2309 = vadd.xlane.f32.xlu0 %v2308
    %v2310 = vpop.xlane.xlu0 %2309
    %v2311 = vsel %vm374, %v1607, 0.0
    %2312 = vadd.xlane.f32.xlu0 %v2311
    %v2313 = vpop.xlane.xlu0 %2312
    %v2314 = vsel %vm374, %v1608, 0.0
    %2315 = vadd.xlane.f32.xlu0 %v2314
    %v2316 = vpop.xlane.xlu0 %2315
    %v2317 = vsel %vm374, %v1609, 0.0
    %2318 = vadd.xlane.f32.xlu0 %v2317
    %v2319 = vpop.xlane.xlu0 %2318
    %v2320 = vsel %vm374, %v1610, 0.0
    %2321 = vadd.xlane.f32.xlu0 %v2320
    %v2322 = vpop.xlane.xlu0 %2321
    %v2323 = vsel %vm374, %v1611, 0.0
    %2324 = vadd.xlane.f32.xlu0 %v2323
    %v2325 = vpop.xlane.xlu0 %2324
    %v2326 = vsel %vm374, %v1612, 0.0
    %2327 = vadd.xlane.f32.xlu0 %v2326
    %v2328 = vpop.xlane.xlu0 %2327
    %v2329 = vsel %vm374, %v1613, 0.0
    %2330 = vadd.xlane.f32.xlu0 %v2329
    %v2331 = vpop.xlane.xlu0 %2330
    %v2332 = vsel %vm374, %v1614, 0.0
    %2333 = vadd.xlane.f32.xlu0 %v2332
    %v2334 = vpop.xlane.xlu0 %2333
    %v2335 = vsel %vm374, %v1615, 0.0
    %2336 = vadd.xlane.f32.xlu0 %v2335
    %v2337 = vpop.xlane.xlu0 %2336
    %v2338 = vsel %vm374, %v1616, 0.0
    %2339 = vadd.xlane.f32.xlu0 %v2338
    %v2340 = vpop.xlane.xlu0 %2339
    %v2341 = vsel %vm374, %v1617, 0.0
    %2342 = vadd.xlane.f32.xlu0 %v2341
    %v2343 = vpop.xlane.xlu0 %2342
    %v2344 = vsel %vm374, %v1618, 0.0
    %2345 = vadd.xlane.f32.xlu0 %v2344
    %v2346 = vpop.xlane.xlu0 %2345
    %v2347 = vsel %vm374, %v1619, 0.0
    %2348 = vadd.xlane.f32.xlu0 %v2347
    %v2349 = vpop.xlane.xlu0 %2348
    %v2350 = vsel %vm374, %v1620, 0.0
    %2351 = vadd.xlane.f32.xlu0 %v2350
    %v2352 = vpop.xlane.xlu0 %2351
    %v2353 = vsel %vm374, %v1621, 0.0
    %2354 = vadd.xlane.f32.xlu0 %v2353
    %v2355 = vpop.xlane.xlu0 %2354
    %v2356 = vsel %vm374, %v1622, 0.0
    %2357 = vadd.xlane.f32.xlu0 %v2356
    %v2358 = vpop.xlane.xlu0 %2357
    %v2359 = vsel %vm374, %v1623, 0.0
    %2360 = vadd.xlane.f32.xlu0 %v2359
    %v2361 = vpop.xlane.xlu0 %2360
    %v2362 = vsel %vm374, %v1624, 0.0
    %2363 = vadd.xlane.f32.xlu0 %v2362
    %v2364 = vpop.xlane.xlu0 %2363
    %v2365 = vsel %vm374, %v1625, 0.0
    %2366 = vadd.xlane.f32.xlu0 %v2365
    %v2367 = vpop.xlane.xlu0 %2366
    %v2368 = vsel %vm374, %v1626, 0.0
    %2369 = vadd.xlane.f32.xlu0 %v2368
    %v2370 = vpop.xlane.xlu0 %2369
    %v2371 = vsel %vm374, %v1627, 0.0
    %2372 = vadd.xlane.f32.xlu0 %v2371
    %v2373 = vpop.xlane.xlu0 %2372
    %v2374 = vsel %vm374, %v1628, 0.0
    %2375 = vadd.xlane.f32.xlu0 %v2374
    %v2376 = vpop.xlane.xlu0 %2375
    %v2377 = vsel %vm374, %v1629, 0.0
    %2378 = vadd.xlane.f32.xlu0 %v2377
    %v2379 = vpop.xlane.xlu0 %2378
    %v2380 = vsel %vm374, %v1630, 0.0
    %2381 = vadd.xlane.f32.xlu0 %v2380
    %v2382 = vpop.xlane.xlu0 %2381
    %v2383 = vsel %vm374, %v1631, 0.0
    %2384 = vadd.xlane.f32.xlu0 %v2383
    %v2385 = vpop.xlane.xlu0 %2384
    %v2386 = vsel %vm374, %v1632, 0.0
    %2387 = vadd.xlane.f32.xlu0 %v2386
    %v2388 = vpop.xlane.xlu0 %2387
    %v2389 = vsel %vm374, %v1633, 0.0
    %2390 = vadd.xlane.f32.xlu0 %v2389
    %v2391 = vpop.xlane.xlu0 %2390
    %v2392 = vsel %vm374, %v1634, 0.0
    %2393 = vadd.xlane.f32.xlu0 %v2392
    %v2394 = vpop.xlane.xlu0 %2393
    %v2395 = vsel %vm374, %v1635, 0.0
    %2396 = vadd.xlane.f32.xlu0 %v2395
    %v2397 = vpop.xlane.xlu0 %2396
    %v2398 = vsel %vm374, %v1636, 0.0
    %2399 = vadd.xlane.f32.xlu0 %v2398
    %v2400 = vpop.xlane.xlu0 %2399
    %v2401 = vsel %vm374, %v1637, 0.0
    %2402 = vadd.xlane.f32.xlu0 %v2401
    %v2403 = vpop.xlane.xlu0 %2402
    %v2404 = vsel %vm374, %v1638, 0.0
    %2405 = vadd.xlane.f32.xlu0 %v2404
    %v2406 = vpop.xlane.xlu0 %2405
    %v2407 = vsel %vm374, %v1639, 0.0
    %2408 = vadd.xlane.f32.xlu0 %v2407
    %v2409 = vpop.xlane.xlu0 %2408
    %v2410 = vsel %vm374, %v1640, 0.0
    %2411 = vadd.xlane.f32.xlu0 %v2410
    %v2412 = vpop.xlane.xlu0 %2411
    %v2413 = vsel %vm374, %v1641, 0.0
    %2414 = vadd.xlane.f32.xlu0 %v2413
    %v2415 = vpop.xlane.xlu0 %2414
    %v2416 = vsel %vm374, %v1642, 0.0
    %2417 = vadd.xlane.f32.xlu0 %v2416
    %v2418 = vpop.xlane.xlu0 %2417
    %v2419 = vsel %vm374, %v1643, 0.0
    %2420 = vadd.xlane.f32.xlu0 %v2419
    %v2421 = vpop.xlane.xlu0 %2420
    %v2422 = vsel %vm374, %v1644, 0.0
    %2423 = vadd.xlane.f32.xlu0 %v2422
    %v2424 = vpop.xlane.xlu0 %2423
    %v2425 = vsel %vm374, %v1645, 0.0
    %2426 = vadd.xlane.f32.xlu0 %v2425
    %v2427 = vpop.xlane.xlu0 %2426
    %v2428 = vsel %vm374, %v1646, 0.0
    %2429 = vadd.xlane.f32.xlu0 %v2428
    %v2430 = vpop.xlane.xlu0 %2429
    %v2431 = vsel %vm374, %v1647, 0.0
    %2432 = vadd.xlane.f32.xlu0 %v2431
    %v2433 = vpop.xlane.xlu0 %2432
    %v2434 = vsel %vm374, %v1648, 0.0
    %2435 = vadd.xlane.f32.xlu0 %v2434
    %v2436 = vpop.xlane.xlu0 %2435
    %v2437 = vsel %vm374, %v1649, 0.0
    %2438 = vadd.xlane.f32.xlu0 %v2437
    %v2439 = vpop.xlane.xlu0 %2438
    %v2440 = vsel %vm374, %v1650, 0.0
    %2441 = vadd.xlane.f32.xlu0 %v2440
    %v2442 = vpop.xlane.xlu0 %2441
    %v2443 = vsel %vm374, %v1651, 0.0
    %2444 = vadd.xlane.f32.xlu0 %v2443
    %v2445 = vpop.xlane.xlu0 %2444
    %v2446 = vsel %vm374, %v1652, 0.0
    %2447 = vadd.xlane.f32.xlu0 %v2446
    %v2448 = vpop.xlane.xlu0 %2447
    %v2449 = vsel %vm374, %v1653, 0.0
    %2450 = vadd.xlane.f32.xlu0 %v2449
    %v2451 = vpop.xlane.xlu0 %2450
    %v2452 = vsel %vm374, %v1654, 0.0
    %2453 = vadd.xlane.f32.xlu0 %v2452
    %v2454 = vpop.xlane.xlu0 %2453
    %v2455 = vsel %vm374, %v1655, 0.0
    %2456 = vadd.xlane.f32.xlu0 %v2455
    %v2457 = vpop.xlane.xlu0 %2456
    %v2458 = vsel %vm374, %v1656, 0.0
    %2459 = vadd.xlane.f32.xlu0 %v2458
    %v2460 = vpop.xlane.xlu0 %2459
    %v2461 = vsel %vm374, %v1657, 0.0
    %2462 = vadd.xlane.f32.xlu0 %v2461
    %v2463 = vpop.xlane.xlu0 %2462
    %v2464 = vsel %vm374, %v1658, 0.0
    %2465 = vadd.xlane.f32.xlu0 %v2464
    %v2466 = vpop.xlane.xlu0 %2465
    %v2467 = vsel %vm374, %v1659, 0.0
    %2468 = vadd.xlane.f32.xlu0 %v2467
    %v2469 = vpop.xlane.xlu0 %2468
    %v2470 = vsel %vm374, %v1660, 0.0
    %2471 = vadd.xlane.f32.xlu0 %v2470
    %v2472 = vpop.xlane.xlu0 %2471
    %v2473 = vsel %vm374, %v1661, 0.0
    %2474 = vadd.xlane.f32.xlu0 %v2473
    %v2475 = vpop.xlane.xlu0 %2474
    %v2476 = vsel %vm374, %v1662, 0.0
    %2477 = vadd.xlane.f32.xlu0 %v2476
    %v2478 = vpop.xlane.xlu0 %2477
    %v2479 = vsel %vm374, %v1663, 0.0
    %2480 = vadd.xlane.f32.xlu0 %v2479
    %v2481 = vpop.xlane.xlu0 %2480
    %v2482 = vsel %vm374, %v1664, 0.0
    %2483 = vadd.xlane.f32.xlu0 %v2482
    %v2484 = vpop.xlane.xlu0 %2483
    %v2485 = vsel %vm374, %v1665, 0.0
    %2486 = vadd.xlane.f32.xlu0 %v2485
    %v2487 = vpop.xlane.xlu0 %2486
    %v2488 = vsel %vm374, %v1666, 0.0
    %2489 = vadd.xlane.f32.xlu0 %v2488
    %v2490 = vpop.xlane.xlu0 %2489
    %v2491 = vsel %vm374, %v1667, 0.0
    %2492 = vadd.xlane.f32.xlu0 %v2491
    %v2493 = vpop.xlane.xlu0 %2492
    %v2494 = vsel %vm374, %v1668, 0.0
    %2495 = vadd.xlane.f32.xlu0 %v2494
    %v2496 = vpop.xlane.xlu0 %2495
    %v2497 = vsel %vm374, %v1669, 0.0
    %2498 = vadd.xlane.f32.xlu0 %v2497
    %v2499 = vpop.xlane.xlu0 %2498
    %v2500 = vsel %vm374, %v1670, 0.0
    %2501 = vadd.xlane.f32.xlu0 %v2500
    %v2502 = vpop.xlane.xlu0 %2501
    %v2503 = vsel %vm374, %v1671, 0.0
    %2504 = vadd.xlane.f32.xlu0 %v2503
    %v2505 = vpop.xlane.xlu0 %2504
    %v2506 = vsel %vm374, %v1672, 0.0
    %2507 = vadd.xlane.f32.xlu0 %v2506
    %v2508 = vpop.xlane.xlu0 %2507
    %v2509 = vsel %vm374, %v1673, 0.0
    %2510 = vadd.xlane.f32.xlu0 %v2509
    %v2511 = vpop.xlane.xlu0 %2510
    %v2512 = vsel %vm374, %v1674, 0.0
    %2513 = vadd.xlane.f32.xlu0 %v2512
    %v2514 = vpop.xlane.xlu0 %2513
    %v2515 = vsel %vm374, %v1675, 0.0
    %2516 = vadd.xlane.f32.xlu0 %v2515
    %v2517 = vpop.xlane.xlu0 %2516
    %v2518 = vsel %vm374, %v1676, 0.0
    %2519 = vadd.xlane.f32.xlu0 %v2518
    %v2520 = vpop.xlane.xlu0 %2519
    %v2521 = vsel %vm374, %v1677, 0.0
    %2522 = vadd.xlane.f32.xlu0 %v2521
    %v2523 = vpop.xlane.xlu0 %2522
    %v2524 = vsel %vm374, %v1678, 0.0
    %2525 = vadd.xlane.f32.xlu0 %v2524
    %v2526 = vpop.xlane.xlu0 %2525
    %v2527 = vsel %vm374, %v1679, 0.0
    %2528 = vadd.xlane.f32.xlu0 %v2527
    %v2529 = vpop.xlane.xlu0 %2528
    %v2530 = vsel %vm374, %v1680, 0.0
    %2531 = vadd.xlane.f32.xlu0 %v2530
    %v2532 = vpop.xlane.xlu0 %2531
    %v2533 = vsel %vm374, %v1681, 0.0
    %2534 = vadd.xlane.f32.xlu0 %v2533
    %v2535 = vpop.xlane.xlu0 %2534
    %v2536 = vsel %vm374, %v1682, 0.0
    %2537 = vadd.xlane.f32.xlu0 %v2536
    %v2538 = vpop.xlane.xlu0 %2537
    %v2539 = vsel %vm374, %v1683, 0.0
    %2540 = vadd.xlane.f32.xlu0 %v2539
    %v2541 = vpop.xlane.xlu0 %2540
    %v2542 = vsel %vm374, %v1684, 0.0
    %2543 = vadd.xlane.f32.xlu0 %v2542
    %v2544 = vpop.xlane.xlu0 %2543
    %v2545 = vsel %vm374, %v1685, 0.0
    %2546 = vadd.xlane.f32.xlu0 %v2545
    %v2547 = vpop.xlane.xlu0 %2546
    %v2548 = vsel %vm374, %v1686, 0.0
    %2549 = vadd.xlane.f32.xlu0 %v2548
    %v2550 = vpop.xlane.xlu0 %2549
    %v2551 = vsel %vm374, %v1687, 0.0
    %2552 = vadd.xlane.f32.xlu0 %v2551
    %v2553 = vpop.xlane.xlu0 %2552
    %v2554 = vsel %vm374, %v1688, 0.0
    %2555 = vadd.xlane.f32.xlu0 %v2554
    %v2556 = vpop.xlane.xlu0 %2555
    %v2557 = vsel %vm374, %v1689, 0.0
    %2558 = vadd.xlane.f32.xlu0 %v2557
    %v2559 = vpop.xlane.xlu0 %2558
    %v2560 = vsel %vm374, %v1690, 0.0
    %2561 = vadd.xlane.f32.xlu0 %v2560
    %v2562 = vpop.xlane.xlu0 %2561
    %v2563 = vsel %vm374, %v1691, 0.0
    %2564 = vadd.xlane.f32.xlu0 %v2563
    %v2565 = vpop.xlane.xlu0 %2564
    %v2566 = vsel %vm374, %v1692, 0.0
    %2567 = vadd.xlane.f32.xlu0 %v2566
    %v2568 = vpop.xlane.xlu0 %2567
    %v2569 = vsel %vm374, %v1693, 0.0
    %2570 = vadd.xlane.f32.xlu0 %v2569
    %v2571 = vpop.xlane.xlu0 %2570
    %v2572 = vsel %vm374, %v1694, 0.0
    %2573 = vadd.xlane.f32.xlu0 %v2572
    %v2574 = vpop.xlane.xlu0 %2573
    %v2575 = vsel %vm374, %v1695, 0.0
    %2576 = vadd.xlane.f32.xlu0 %v2575
    %v2577 = vpop.xlane.xlu0 %2576
    %v2578 = vsel %vm374, %v1696, 0.0
    %2579 = vadd.xlane.f32.xlu0 %v2578
    %v2580 = vpop.xlane.xlu0 %2579
    %v2581 = vsel %vm374, %v1697, 0.0
    %2582 = vadd.xlane.f32.xlu0 %v2581
    %v2583 = vpop.xlane.xlu0 %2582
    %v2584 = vsel %vm374, %v1698, 0.0
    %2585 = vadd.xlane.f32.xlu0 %v2584
    %v2586 = vpop.xlane.xlu0 %2585
    %v2587 = vsel %vm374, %v1699, 0.0
    %2588 = vadd.xlane.f32.xlu0 %v2587
    %v2589 = vpop.xlane.xlu0 %2588
    %v2590 = vsel %vm374, %v1700, 0.0
    %2591 = vadd.xlane.f32.xlu0 %v2590
    %v2592 = vpop.xlane.xlu0 %2591
    %v2593 = vsel %vm374, %v1701, 0.0
    %2594 = vadd.xlane.f32.xlu0 %v2593
    %v2595 = vpop.xlane.xlu0 %2594
    %v2596 = vsel %vm374, %v1702, 0.0
    %2597 = vadd.xlane.f32.xlu0 %v2596
    %v2598 = vpop.xlane.xlu0 %2597
    %v2599 = vsel %vm374, %v1703, 0.0
    %2600 = vadd.xlane.f32.xlu0 %v2599
    %v2601 = vpop.xlane.xlu0 %2600
    %v2602 = vsel %vm374, %v1704, 0.0
    %2603 = vadd.xlane.f32.xlu0 %v2602
    %v2604 = vpop.xlane.xlu0 %2603
    %v2605 = vsel %vm374, %v1705, 0.0
    %2606 = vadd.xlane.f32.xlu0 %v2605
    %v2607 = vpop.xlane.xlu0 %2606
    %v2608 = vsel %vm374, %v1706, 0.0
    %2609 = vadd.xlane.f32.xlu0 %v2608
    %v2610 = vpop.xlane.xlu0 %2609
    %v2611 = vsel %vm374, %v1707, 0.0
    %2612 = vadd.xlane.f32.xlu0 %v2611
    %v2613 = vpop.xlane.xlu0 %2612
    %v2614 = vsel %vm374, %v1708, 0.0
    %2615 = vadd.xlane.f32.xlu0 %v2614
    %v2616 = vpop.xlane.xlu0 %2615
    %v2617 = vsel %vm374, %v1709, 0.0
    %2618 = vadd.xlane.f32.xlu0 %v2617
    %v2619 = vpop.xlane.xlu0 %2618
    %v2620 = vsel %vm374, %v1710, 0.0
    %2621 = vadd.xlane.f32.xlu0 %v2620
    %v2622 = vpop.xlane.xlu0 %2621
    %v2623 = vsel %vm374, %v1711, 0.0
    %2624 = vadd.xlane.f32.xlu0 %v2623
    %v2625 = vpop.xlane.xlu0 %2624
    %v2626 = vsel %vm374, %v1712, 0.0
    %2627 = vadd.xlane.f32.xlu0 %v2626
    %v2628 = vpop.xlane.xlu0 %2627
    %v2629 = vsel %vm374, %v1713, 0.0
    %2630 = vadd.xlane.f32.xlu0 %v2629
    %v2631 = vpop.xlane.xlu0 %2630
    %v2632 = vsel %vm374, %v1714, 0.0
    %2633 = vadd.xlane.f32.xlu0 %v2632
    %v2634 = vpop.xlane.xlu0 %2633
    %v2635 = vsel %vm374, %v1715, 0.0
    %2636 = vadd.xlane.f32.xlu0 %v2635
    %v2637 = vpop.xlane.xlu0 %2636
    %v2638 = vsel %vm374, %v1716, 0.0
    %2639 = vadd.xlane.f32.xlu0 %v2638
    %v2640 = vpop.xlane.xlu0 %2639
    %v2641 = vsel %vm374, %v1717, 0.0
    %2642 = vadd.xlane.f32.xlu0 %v2641
    %v2643 = vpop.xlane.xlu0 %2642
    %v2644 = vsel %vm374, %v1718, 0.0
    %2645 = vadd.xlane.f32.xlu0 %v2644
    %v2646 = vpop.xlane.xlu0 %2645
    %v2647 = vsel %vm374, %v1719, 0.0
    %2648 = vadd.xlane.f32.xlu0 %v2647
    %v2649 = vpop.xlane.xlu0 %2648
    %v2650 = vsel %vm374, %v1720, 0.0
    %2651 = vadd.xlane.f32.xlu0 %v2650
    %v2652 = vpop.xlane.xlu0 %2651
    %v2653 = vsel %vm374, %v1721, 0.0
    %2654 = vadd.xlane.f32.xlu0 %v2653
    %v2655 = vpop.xlane.xlu0 %2654
    %v2656 = vsel %vm374, %v1722, 0.0
    %2657 = vadd.xlane.f32.xlu0 %v2656
    %v2658 = vpop.xlane.xlu0 %2657
    %v2659 = vsel %vm374, %v1723, 0.0
    %2660 = vadd.xlane.f32.xlu0 %v2659
    %v2661 = vpop.xlane.xlu0 %2660
    %v2662 = vsel %vm374, %v1724, 0.0
    %2663 = vadd.xlane.f32.xlu0 %v2662
    %v2664 = vpop.xlane.xlu0 %2663
    %v2665 = vsel %vm374, %v1725, 0.0
    %2666 = vadd.xlane.f32.xlu0 %v2665
    %v2667 = vpop.xlane.xlu0 %2666
    %v2668 = vsel %vm374, %v1726, 0.0
    %2669 = vadd.xlane.f32.xlu0 %v2668
    %v2670 = vpop.xlane.xlu0 %2669
    %v2671 = vsel %vm374, %v1727, 0.0
    %2672 = vadd.xlane.f32.xlu0 %v2671
    %v2673 = vpop.xlane.xlu0 %2672
    %v2674 = vsel %vm374, %v1728, 0.0
    %2675 = vadd.xlane.f32.xlu0 %v2674
    %v2676 = vpop.xlane.xlu0 %2675
    %v2677 = vsel %vm374, %v1729, 0.0
    %2678 = vadd.xlane.f32.xlu0 %v2677
    %v2679 = vpop.xlane.xlu0 %2678
    %v2680 = vsel %vm374, %v1730, 0.0
    %2681 = vadd.xlane.f32.xlu0 %v2680
    %v2682 = vpop.xlane.xlu0 %2681
    %v2683 = vsel %vm374, %v1731, 0.0
    %2684 = vadd.xlane.f32.xlu0 %v2683
    %v2685 = vpop.xlane.xlu0 %2684
    %v2686 = vsel %vm374, %v1732, 0.0
    %2687 = vadd.xlane.f32.xlu0 %v2686
    %v2688 = vpop.xlane.xlu0 %2687
    %v2689 = vsel %vm374, %v1733, 0.0
    %2690 = vadd.xlane.f32.xlu0 %v2689
    %v2691 = vpop.xlane.xlu0 %2690
    %v2692 = vsel %vm374, %v1734, 0.0
    %2693 = vadd.xlane.f32.xlu0 %v2692
    %v2694 = vpop.xlane.xlu0 %2693
    %v2695 = vsel %vm374, %v1735, 0.0
    %2696 = vadd.xlane.f32.xlu0 %v2695
    %v2697 = vpop.xlane.xlu0 %2696
    %v2698 = vsel %vm374, %v1736, 0.0
    %2699 = vadd.xlane.f32.xlu0 %v2698
    %v2700 = vpop.xlane.xlu0 %2699
    %v2701 = vsel %vm374, %v1737, 0.0
    %2702 = vadd.xlane.f32.xlu0 %v2701
    %v2703 = vpop.xlane.xlu0 %2702
    %v2704 = vsel %vm374, %v1738, 0.0
    %2705 = vadd.xlane.f32.xlu0 %v2704
    %v2706 = vpop.xlane.xlu0 %2705
    %v2707 = vsel %vm374, %v1739, 0.0
    %2708 = vadd.xlane.f32.xlu0 %v2707
    %v2709 = vpop.xlane.xlu0 %2708
    %v2710 = vsel %vm374, %v1740, 0.0
    %2711 = vadd.xlane.f32.xlu0 %v2710
    %v2712 = vpop.xlane.xlu0 %2711
    %v2713 = vsel %vm374, %v1741, 0.0
    %2714 = vadd.xlane.f32.xlu0 %v2713
    %v2715 = vpop.xlane.xlu0 %2714
    %v2716 = vsel %vm374, %v1742, 0.0
    %2717 = vadd.xlane.f32.xlu0 %v2716
    %v2718 = vpop.xlane.xlu0 %2717
    %v2719 = vsel %vm374, %v1743, 0.0
    %2720 = vadd.xlane.f32.xlu0 %v2719
    %v2721 = vpop.xlane.xlu0 %2720
    %v2722 = vsel %vm374, %v1744, 0.0
    %2723 = vadd.xlane.f32.xlu0 %v2722
    %v2724 = vpop.xlane.xlu0 %2723
    %v2725 = vsel %vm374, %v1745, 0.0
    %2726 = vadd.xlane.f32.xlu0 %v2725
    %v2727 = vpop.xlane.xlu0 %2726
    %v2728 = vsel %vm374, %v1746, 0.0
    %2729 = vadd.xlane.f32.xlu0 %v2728
    %v2730 = vpop.xlane.xlu0 %2729
    %v2731 = vsel %vm374, %v1747, 0.0
    %2732 = vadd.xlane.f32.xlu0 %v2731
    %v2733 = vpop.xlane.xlu0 %2732
    %v2734 = vsel %vm374, %v1748, 0.0
    %2735 = vadd.xlane.f32.xlu0 %v2734
    %v2736 = vpop.xlane.xlu0 %2735
    %v2737 = vsel %vm374, %v1749, 0.0
    %2738 = vadd.xlane.f32.xlu0 %v2737
    %v2739 = vpop.xlane.xlu0 %2738
    %v2740 = vsel %vm374, %v1750, 0.0
    %2741 = vadd.xlane.f32.xlu0 %v2740
    %v2742 = vpop.xlane.xlu0 %2741
    %v2743 = vsel %vm374, %v1751, 0.0
    %2744 = vadd.xlane.f32.xlu0 %v2743
    %v2745 = vpop.xlane.xlu0 %2744
    %v2746 = vsel %vm374, %v1752, 0.0
    %2747 = vadd.xlane.f32.xlu0 %v2746
    %v2748 = vpop.xlane.xlu0 %2747
    %v2749 = vsel %vm374, %v1753, 0.0
    %2750 = vadd.xlane.f32.xlu0 %v2749
    %v2751 = vpop.xlane.xlu0 %2750
    %v2752 = vsel %vm374, %v1754, 0.0
    %2753 = vadd.xlane.f32.xlu0 %v2752
    %v2754 = vpop.xlane.xlu0 %2753
    %v2755 = vsel %vm374, %v1755, 0.0
    %2756 = vadd.xlane.f32.xlu0 %v2755
    %v2757 = vpop.xlane.xlu0 %2756
    %v2758 = vsel %vm374, %v1756, 0.0
    %2759 = vadd.xlane.f32.xlu0 %v2758
    %v2760 = vpop.xlane.xlu0 %2759
    %v2761 = vsel %vm374, %v1757, 0.0
    %2762 = vadd.xlane.f32.xlu0 %v2761
    %v2763 = vpop.xlane.xlu0 %2762
    %v2764 = vsel %vm374, %v1758, 0.0
    %2765 = vadd.xlane.f32.xlu0 %v2764
    %v2766 = vpop.xlane.xlu0 %2765
    %v2767 = vsel %vm374, %v1759, 0.0
    %2768 = vadd.xlane.f32.xlu0 %v2767
    %v2769 = vpop.xlane.xlu0 %2768
    %v2770 = vsel %vm374, %v1760, 0.0
    %2771 = vadd.xlane.f32.xlu0 %v2770
    %v2772 = vpop.xlane.xlu0 %2771
    %v2773 = vsel %vm374, %v1761, 0.0
    %2774 = vadd.xlane.f32.xlu0 %v2773
    %v2775 = vpop.xlane.xlu0 %2774
    %v2776 = vsel %vm374, %v1762, 0.0
    %2777 = vadd.xlane.f32.xlu0 %v2776
    %v2778 = vpop.xlane.xlu0 %2777
    %v2779 = vsel %vm374, %v1763, 0.0
    %2780 = vadd.xlane.f32.xlu0 %v2779
    %v2781 = vpop.xlane.xlu0 %2780
    %v2782 = vsel %vm374, %v1764, 0.0
    %2783 = vadd.xlane.f32.xlu0 %v2782
    %v2784 = vpop.xlane.xlu0 %2783
    %v2785 = vsel %vm374, %v1765, 0.0
    %2786 = vadd.xlane.f32.xlu0 %v2785
    %v2787 = vpop.xlane.xlu0 %2786
    %v2788 = vsel %vm374, %v1766, 0.0
    %2789 = vadd.xlane.f32.xlu0 %v2788
    %v2790 = vpop.xlane.xlu0 %2789
    %v2791 = vsel %vm374, %v1767, 0.0
    %2792 = vadd.xlane.f32.xlu0 %v2791
    %v2793 = vpop.xlane.xlu0 %2792
    %v2794 = vsel %vm374, %v1768, 0.0
    %2795 = vadd.xlane.f32.xlu0 %v2794
    %v2796 = vpop.xlane.xlu0 %2795
    %v2797 = vsel %vm374, %v1769, 0.0
    %2798 = vadd.xlane.f32.xlu0 %v2797
    %v2799 = vpop.xlane.xlu0 %2798
    %v2800 = vsel %vm374, %v1770, 0.0
    %2801 = vadd.xlane.f32.xlu0 %v2800
    %v2802 = vpop.xlane.xlu0 %2801
    %v2803 = vsel %vm374, %v1771, 0.0
    %2804 = vadd.xlane.f32.xlu0 %v2803
    %v2805 = vpop.xlane.xlu0 %2804
    %v2806 = vsel %vm374, %v1772, 0.0
    %2807 = vadd.xlane.f32.xlu0 %v2806
    %v2808 = vpop.xlane.xlu0 %2807
    %v2809 = vsel %vm374, %v1773, 0.0
    %2810 = vadd.xlane.f32.xlu0 %v2809
    %v2811 = vpop.xlane.xlu0 %2810
    %v2812 = vsel %vm374, %v1774, 0.0
    %2813 = vadd.xlane.f32.xlu0 %v2812
    %v2814 = vpop.xlane.xlu0 %2813
    %v2815 = vsel %vm374, %v1775, 0.0
    %2816 = vadd.xlane.f32.xlu0 %v2815
    %v2817 = vpop.xlane.xlu0 %2816
    %v2818 = vsel %vm374, %v1776, 0.0
    %2819 = vadd.xlane.f32.xlu0 %v2818
    %v2820 = vpop.xlane.xlu0 %2819
    %v2821 = vsel %vm374, %v1777, 0.0
    %2822 = vadd.xlane.f32.xlu0 %v2821
    %v2823 = vpop.xlane.xlu0 %2822
    %v2824 = vsel %vm374, %v1778, 0.0
    %2825 = vadd.xlane.f32.xlu0 %v2824
    %v2826 = vpop.xlane.xlu0 %2825
    %v2827 = vsel %vm374, %v1779, 0.0
    %2828 = vadd.xlane.f32.xlu0 %v2827
    %v2829 = vpop.xlane.xlu0 %2828
    %v2830 = vsel %vm374, %v1780, 0.0
    %2831 = vadd.xlane.f32.xlu0 %v2830
    %v2832 = vpop.xlane.xlu0 %2831
    %v2833 = vsel %vm374, %v1781, 0.0
    %2834 = vadd.xlane.f32.xlu0 %v2833
    %v2835 = vpop.xlane.xlu0 %2834
    %v2836 = vsel %vm374, %v1782, 0.0
    %2837 = vadd.xlane.f32.xlu0 %v2836
    %v2838 = vpop.xlane.xlu0 %2837
    %v2839 = vpack.c.bf16 %v380, %v377
    %v2840 = vpack.c.bf16 %v386, %v383
    %v2841 = vpack.c.bf16 %v392, %v389
    %v2842 = vpack.c.bf16 %v398, %v395
    %v2843 = vpack.c.bf16 %v404, %v401
    %v2844 = vpack.c.bf16 %v410, %v407
    %v2845 = vpack.c.bf16 %v416, %v413
    %v2846 = vpack.c.bf16 %v422, %v419
    %v2847 = vpack.c.bf16 %v428, %v425
    %v2848 = vpack.c.bf16 %v434, %v431
    %v2849 = vpack.c.bf16 %v440, %v437
    %v2850 = vpack.c.bf16 %v446, %v443
    %v2851 = vpack.c.bf16 %v452, %v449
    %v2852 = vpack.c.bf16 %v458, %v455
    %v2853 = vpack.c.bf16 %v464, %v461
    %v2854 = vpack.c.bf16 %v470, %v467
    %v2855 = vpack.c.bf16 %v476, %v473
    %v2856 = vpack.c.bf16 %v482, %v479
    %v2857 = vpack.c.bf16 %v488, %v485
    %v2858 = vpack.c.bf16 %v494, %v491
    %v2859 = vpack.c.bf16 %v500, %v497
    %v2860 = vpack.c.bf16 %v506, %v503
    %v2861 = vpack.c.bf16 %v512, %v509
    %v2862 = vpack.c.bf16 %v518, %v515
    %v2863 = vpack.c.bf16 %v524, %v521
    %v2864 = vpack.c.bf16 %v530, %v527
    %v2865 = vpack.c.bf16 %v536, %v533
    %v2866 = vpack.c.bf16 %v542, %v539
    %v2867 = vpack.c.bf16 %v548, %v545
    %v2868 = vpack.c.bf16 %v554, %v551
    %v2869 = vpack.c.bf16 %v560, %v557
    %v2870 = vpack.c.bf16 %v566, %v563
    %v2871 = vpack.c.bf16 %v572, %v569
    %v2872 = vpack.c.bf16 %v578, %v575
    %v2873 = vpack.c.bf16 %v584, %v581
    %v2874 = vpack.c.bf16 %v590, %v587
    %v2875 = vpack.c.bf16 %v596, %v593
    %v2876 = vpack.c.bf16 %v602, %v599
    %v2877 = vpack.c.bf16 %v608, %v605
    %v2878 = vpack.c.bf16 %v614, %v611
    %v2879 = vpack.c.bf16 %v620, %v617
    %v2880 = vpack.c.bf16 %v626, %v623
    %v2881 = vpack.c.bf16 %v632, %v629
    %v2882 = vpack.c.bf16 %v638, %v635
    %v2883 = vpack.c.bf16 %v644, %v641
    %v2884 = vpack.c.bf16 %v650, %v647
    %v2885 = vpack.c.bf16 %v656, %v653
    %v2886 = vpack.c.bf16 %v662, %v659
    %v2887 = vpack.c.bf16 %v668, %v665
    %v2888 = vpack.c.bf16 %v674, %v671
    %v2889 = vpack.c.bf16 %v680, %v677
    %v2890 = vpack.c.bf16 %v686, %v683
    %v2891 = vpack.c.bf16 %v692, %v689
    %v2892 = vpack.c.bf16 %v698, %v695
    %v2893 = vpack.c.bf16 %v704, %v701
    %v2894 = vpack.c.bf16 %v710, %v707
    %v2895 = vpack.c.bf16 %v716, %v713
    %v2896 = vpack.c.bf16 %v722, %v719
    %v2897 = vpack.c.bf16 %v728, %v725
    %v2898 = vpack.c.bf16 %v734, %v731
    %v2899 = vpack.c.bf16 %v740, %v737
    %v2900 = vpack.c.bf16 %v746, %v743
    %v2901 = vpack.c.bf16 %v752, %v749
    %v2902 = vpack.c.bf16 %v758, %v755
    %v2903 = vpack.c.bf16 %v764, %v761
    %v2904 = vpack.c.bf16 %v770, %v767
    %v2905 = vpack.c.bf16 %v776, %v773
    %v2906 = vpack.c.bf16 %v782, %v779
    %v2907 = vpack.c.bf16 %v788, %v785
    %v2908 = vpack.c.bf16 %v794, %v791
    %v2909 = vpack.c.bf16 %v800, %v797
    %v2910 = vpack.c.bf16 %v806, %v803
    %v2911 = vpack.c.bf16 %v812, %v809
    %v2912 = vpack.c.bf16 %v818, %v815
    %v2913 = vpack.c.bf16 %v824, %v821
    %v2914 = vpack.c.bf16 %v830, %v827
    %v2915 = vpack.c.bf16 %v836, %v833
    %v2916 = vpack.c.bf16 %v842, %v839
    %v2917 = vpack.c.bf16 %v848, %v845
    %v2918 = vpack.c.bf16 %v854, %v851
    %v2919 = vpack.c.bf16 %v860, %v857
    %v2920 = vpack.c.bf16 %v866, %v863
    %v2921 = vpack.c.bf16 %v872, %v869
    %v2922 = vpack.c.bf16 %v878, %v875
    %v2923 = vpack.c.bf16 %v884, %v881
    %v2924 = vpack.c.bf16 %v890, %v887
    %v2925 = vpack.c.bf16 %v896, %v893
    %v2926 = vpack.c.bf16 %v902, %v899
    %v2927 = vpack.c.bf16 %v908, %v905
    %v2928 = vpack.c.bf16 %v914, %v911
    %v2929 = vpack.c.bf16 %v920, %v917
    %v2930 = vpack.c.bf16 %v926, %v923
    %v2931 = vpack.c.bf16 %v932, %v929
    %v2932 = vpack.c.bf16 %v938, %v935
    %v2933 = vpack.c.bf16 %v944, %v941
    %v2934 = vpack.c.bf16 %v950, %v947
    %v2935 = vpack.c.bf16 %v956, %v953
    %v2936 = vpack.c.bf16 %v962, %v959
    %v2937 = vpack.c.bf16 %v968, %v965
    %v2938 = vpack.c.bf16 %v974, %v971
    %v2939 = vpack.c.bf16 %v980, %v977
    %v2940 = vpack.c.bf16 %v986, %v983
    %v2941 = vpack.c.bf16 %v992, %v989
    %v2942 = vpack.c.bf16 %v998, %v995
    %v2943 = vpack.c.bf16 %v1004, %v1001
    %v2944 = vpack.c.bf16 %v1010, %v1007
    %v2945 = vpack.c.bf16 %v1016, %v1013
    %v2946 = vpack.c.bf16 %v1022, %v1019
    %v2947 = vpack.c.bf16 %v1028, %v1025
    %v2948 = vpack.c.bf16 %v1034, %v1031
    %v2949 = vpack.c.bf16 %v1040, %v1037
    %v2950 = vpack.c.bf16 %v1046, %v1043
    %v2951 = vpack.c.bf16 %v1052, %v1049
    %v2952 = vpack.c.bf16 %v1058, %v1055
    %v2953 = vpack.c.bf16 %v1064, %v1061
    %v2954 = vpack.c.bf16 %v1070, %v1067
    %v2955 = vpack.c.bf16 %v1076, %v1073
    %v2956 = vpack.c.bf16 %v1082, %v1079
    %v2957 = vpack.c.bf16 %v1088, %v1085
    %v2958 = vpack.c.bf16 %v1094, %v1091
    %v2959 = vpack.c.bf16 %v1100, %v1097
    %v2960 = vpack.c.bf16 %v1106, %v1103
    %v2961 = vpack.c.bf16 %v1112, %v1109
    %v2962 = vpack.c.bf16 %v1118, %v1115
    %v2963 = vpack.c.bf16 %v1124, %v1121
    %v2964 = vpack.c.bf16 %v1130, %v1127
    %v2965 = vpack.c.bf16 %v1136, %v1133
    %v2966 = vpack.c.bf16 %v1142, %v1139
    %v2967 = vpack.c.bf16 %v1148, %v1145
    %v2968 = vpack.c.bf16 %v1154, %v1151
    %v2969 = vpack.c.bf16 %v1160, %v1157
    %v2970 = vpack.c.bf16 %v1166, %v1163
    %v2971 = vpack.c.bf16 %v1172, %v1169
    %v2972 = vpack.c.bf16 %v1178, %v1175
    %v2973 = vpack.c.bf16 %v1184, %v1181
    %v2974 = vpack.c.bf16 %v1190, %v1187
    %v2975 = vpack.c.bf16 %v1196, %v1193
    %v2976 = vpack.c.bf16 %v1202, %v1199
    %v2977 = vpack.c.bf16 %v1208, %v1205
    %v2978 = vpack.c.bf16 %v1214, %v1211
    %v2979 = vpack.c.bf16 %v1220, %v1217
    %v2980 = vpack.c.bf16 %v1226, %v1223
    %v2981 = vpack.c.bf16 %v1232, %v1229
    %v2982 = vpack.c.bf16 %v1238, %v1235
    %v2983 = vpack.c.bf16 %v1244, %v1241
    %v2984 = vpack.c.bf16 %v1250, %v1247
    %v2985 = vpack.c.bf16 %v1256, %v1253
    %v2986 = vpack.c.bf16 %v1262, %v1259
    %v2987 = vpack.c.bf16 %v1268, %v1265
    %v2988 = vpack.c.bf16 %v1274, %v1271
    %v2989 = vpack.c.bf16 %v1280, %v1277
    %v2990 = vpack.c.bf16 %v1286, %v1283
    %v2991 = vpack.c.bf16 %v1292, %v1289
    %v2992 = vpack.c.bf16 %v1298, %v1295
    %v2993 = vpack.c.bf16 %v1304, %v1301
    %v2994 = vpack.c.bf16 %v1310, %v1307
    %v2995 = vpack.c.bf16 %v1316, %v1313
    %v2996 = vpack.c.bf16 %v1322, %v1319
    %v2997 = vpack.c.bf16 %v1328, %v1325
    %v2998 = vpack.c.bf16 %v1334, %v1331
    %v2999 = vpack.c.bf16 %v1340, %v1337
    %v3000 = vpack.c.bf16 %v1346, %v1343
    %v3001 = vpack.c.bf16 %v1352, %v1349
    %v3002 = vpack.c.bf16 %v1358, %v1355
    %v3003 = vpack.c.bf16 %v1364, %v1361
    %v3004 = vpack.c.bf16 %v1370, %v1367
    %v3005 = vpack.c.bf16 %v1376, %v1373
    %v3006 = vpack.c.bf16 %v1382, %v1379
    %v3007 = vpack.c.bf16 %v1388, %v1385
    %v3008 = vpack.c.bf16 %v1394, %v1391
    %v3009 = vpack.c.bf16 %v1400, %v1397
    %v3010 = vpack.c.bf16 %v1406, %v1403
    %v3011 = vpack.c.bf16 %v1412, %v1409
    %v3012 = vpack.c.bf16 %v1418, %v1415
    %v3013 = vpack.c.bf16 %v1424, %v1421
    %v3014 = vpack.c.bf16 %v1430, %v1427
    %v3015 = vld [vmem:[%s2] sm:$0xff]
    %v3016 = vld [vmem:[%s2 + $0x8] sm:$0xff]
    %v3017 = vld [vmem:[%s2 + $0x10] sm:$0xff]
    %v3018 = vld [vmem:[%s2 + $0x18] sm:$0xff]
    %v3019 = vld [vmem:[%s2 + $0x20] sm:$0xff]
    %v3020 = vld [vmem:[%s2 + $0x28] sm:$0xff]
    %v3021 = vld [vmem:[%s2 + $0x30] sm:$0xff]
    %v3022 = vld [vmem:[%s2 + $0x38] sm:$0xff]
    %v3023 = vld [vmem:[%s2 + $0x40] sm:$0xff]
    %v3024 = vld [vmem:[%s2 + $0x48] sm:$0xff]
    %v3025 = vld [vmem:[%s2 + $0x50] sm:$0xff]
    %v3026 = vld [vmem:[%s2 + $0x58] sm:$0xff]
    %v3027 = vld [vmem:[%s2 + $0x60] sm:$0xff]
    %v3028 = vld [vmem:[%s2 + $0x68] sm:$0xff]
    %v3029 = vld [vmem:[%s2 + $0x70] sm:$0xff]
    %v3030 = vld [vmem:[%s2 + $0x78] sm:$0xff]
    %v3031 = vld [vmem:[%s2 + $0x80] sm:$0xff]
    %v3032 = vld [vmem:[%s2 + $0x88] sm:$0xff]
    %v3033 = vld [vmem:[%s2 + $0x90] sm:$0xff]
    %v3034 = vld [vmem:[%s2 + $0x98] sm:$0xff]
    %v3035 = vld [vmem:[%s2 + $0xa0] sm:$0xff]
    %v3036 = vld [vmem:[%s2 + $0xa8] sm:$0xff]
    %v3037 = vld [vmem:[%s2 + $0xb0] sm:$0xff]
    %v3038 = vld [vmem:[%s2 + $0xb8] sm:$0xff]
    %v3039 = vld [vmem:[%s2 + $0xc0] sm:$0xff]
    %v3040 = vld [vmem:[%s2 + $0xc8] sm:$0xff]
    %v3041 = vld [vmem:[%s2 + $0xd0] sm:$0xff]
    %v3042 = vld [vmem:[%s2 + $0xd8] sm:$0xff]
    %v3043 = vld [vmem:[%s2 + $0xe0] sm:$0xff]
    %v3044 = vld [vmem:[%s2 + $0xe8] sm:$0xff]
    %v3045 = vld [vmem:[%s2 + $0xf0] sm:$0xff]
    %v3046 = vld [vmem:[%s2 + $0xf8] sm:$0xff]
    %v3047 = vld [vmem:[%s2 + $0x100] sm:$0xff]
    %v3048 = vld [vmem:[%s2 + $0x108] sm:$0xff]
    %v3049 = vld [vmem:[%s2 + $0x110] sm:$0xff]
    %v3050 = vld [vmem:[%s2 + $0x118] sm:$0xff]
    %v3051 = vld [vmem:[%s2 + $0x120] sm:$0xff]
    %v3052 = vld [vmem:[%s2 + $0x128] sm:$0xff]
    %v3053 = vld [vmem:[%s2 + $0x130] sm:$0xff]
    %v3054 = vld [vmem:[%s2 + $0x138] sm:$0xff]
    %v3055 = vld [vmem:[%s2 + $0x140] sm:$0xff]
    %v3056 = vld [vmem:[%s2 + $0x148] sm:$0xff]
    %v3057 = vld [vmem:[%s2 + $0x150] sm:$0xff]
    %v3058 = vld [vmem:[%s2 + $0x158] sm:$0xff]
    %v3059 = vld [vmem:[%s2 + $0x160] sm:$0xff]
    %v3060 = vld [vmem:[%s2 + $0x168] sm:$0xff]
    %v3061 = vld [vmem:[%s2 + $0x170] sm:$0xff]
    %v3062 = vld [vmem:[%s2 + $0x178] sm:$0xff]
    %v3063 = vld [vmem:[%s2 + $0x180] sm:$0xff]
    %v3064 = vld [vmem:[%s2 + $0x188] sm:$0xff]
    %v3065 = vld [vmem:[%s2 + $0x190] sm:$0xff]
    %v3066 = vld [vmem:[%s2 + $0x198] sm:$0xff]
    %v3067 = vld [vmem:[%s2 + $0x1a0] sm:$0xff]
    %v3068 = vld [vmem:[%s2 + $0x1a8] sm:$0xff]
    %v3069 = vld [vmem:[%s2 + $0x1b0] sm:$0xff]
    %v3070 = vld [vmem:[%s2 + $0x1b8] sm:$0xff]
    %v3071 = vld [vmem:[%s2 + $0x1c0] sm:$0xff]
    %v3072 = vld [vmem:[%s2 + $0x1c8] sm:$0xff]
    %v3073 = vld [vmem:[%s2 + $0x1d0] sm:$0xff]
    %v3074 = vld [vmem:[%s2 + $0x1d8] sm:$0xff]
    %v3075 = vld [vmem:[%s2 + $0x1e0] sm:$0xff]
    %v3076 = vld [vmem:[%s2 + $0x1e8] sm:$0xff]
    %v3077 = vld [vmem:[%s2 + $0x1f0] sm:$0xff]
    %v3078 = vld [vmem:[%s2 + $0x1f8] sm:$0xff]
    %v3079 = vld [vmem:[%s2 + $0x200] sm:$0xff]
    %v3080 = vld [vmem:[%s2 + $0x208] sm:$0xff]
    %v3081 = vld [vmem:[%s2 + $0x210] sm:$0xff]
    %v3082 = vld [vmem:[%s2 + $0x218] sm:$0xff]
    %v3083 = vld [vmem:[%s2 + $0x220] sm:$0xff]
    %v3084 = vld [vmem:[%s2 + $0x228] sm:$0xff]
    %v3085 = vld [vmem:[%s2 + $0x230] sm:$0xff]
    %v3086 = vld [vmem:[%s2 + $0x238] sm:$0xff]
    %v3087 = vld [vmem:[%s2 + $0x240] sm:$0xff]
    %v3088 = vld [vmem:[%s2 + $0x248] sm:$0xff]
    %v3089 = vld [vmem:[%s2 + $0x250] sm:$0xff]
    %v3090 = vld [vmem:[%s2 + $0x258] sm:$0xff]
    %v3091 = vld [vmem:[%s2 + $0x260] sm:$0xff]
    %v3092 = vld [vmem:[%s2 + $0x268] sm:$0xff]
    %v3093 = vld [vmem:[%s2 + $0x270] sm:$0xff]
    %v3094 = vld [vmem:[%s2 + $0x278] sm:$0xff]
    %v3095 = vld [vmem:[%s2 + $0x280] sm:$0xff]
    %v3096 = vld [vmem:[%s2 + $0x288] sm:$0xff]
    %v3097 = vld [vmem:[%s2 + $0x290] sm:$0xff]
    %v3098 = vld [vmem:[%s2 + $0x298] sm:$0xff]
    %v3099 = vld [vmem:[%s2 + $0x2a0] sm:$0xff]
    %v3100 = vld [vmem:[%s2 + $0x2a8] sm:$0xff]
    %v3101 = vld [vmem:[%s2 + $0x2b0] sm:$0xff]
    %v3102 = vld [vmem:[%s2 + $0x2b8] sm:$0xff]
    %v3103 = vld [vmem:[%s2 + $0x2c0] sm:$0xff]
    %v3104 = vld [vmem:[%s2 + $0x2c8] sm:$0xff]
    %v3105 = vld [vmem:[%s2 + $0x2d0] sm:$0xff]
    %v3106 = vld [vmem:[%s2 + $0x2d8] sm:$0xff]
    %v3107 = vld [vmem:[%s2 + $0x2e0] sm:$0xff]
    %v3108 = vld [vmem:[%s2 + $0x2e8] sm:$0xff]
    %v3109 = vld [vmem:[%s2 + $0x2f0] sm:$0xff]
    %v3110 = vld [vmem:[%s2 + $0x2f8] sm:$0xff]
    %v3111 = vld [vmem:[%s2 + $0x300] sm:$0xff]
    %v3112 = vld [vmem:[%s2 + $0x308] sm:$0xff]
    %v3113 = vld [vmem:[%s2 + $0x310] sm:$0xff]
    %v3114 = vld [vmem:[%s2 + $0x318] sm:$0xff]
    %v3115 = vld [vmem:[%s2 + $0x320] sm:$0xff]
    %v3116 = vld [vmem:[%s2 + $0x328] sm:$0xff]
    %v3117 = vld [vmem:[%s2 + $0x330] sm:$0xff]
    %v3118 = vld [vmem:[%s2 + $0x338] sm:$0xff]
    %v3119 = vld [vmem:[%s2 + $0x340] sm:$0xff]
    %v3120 = vld [vmem:[%s2 + $0x348] sm:$0xff]
    %v3121 = vld [vmem:[%s2 + $0x350] sm:$0xff]
    %v3122 = vld [vmem:[%s2 + $0x358] sm:$0xff]
    %v3123 = vld [vmem:[%s2 + $0x360] sm:$0xff]
    %v3124 = vld [vmem:[%s2 + $0x368] sm:$0xff]
    %v3125 = vld [vmem:[%s2 + $0x370] sm:$0xff]
    %v3126 = vld [vmem:[%s2 + $0x378] sm:$0xff]
    %v3127 = vld [vmem:[%s2 + $0x380] sm:$0xff]
    %v3128 = vld [vmem:[%s2 + $0x388] sm:$0xff]
    %v3129 = vld [vmem:[%s2 + $0x390] sm:$0xff]
    %v3130 = vld [vmem:[%s2 + $0x398] sm:$0xff]
    %v3131 = vld [vmem:[%s2 + $0x3a0] sm:$0xff]
    %v3132 = vld [vmem:[%s2 + $0x3a8] sm:$0xff]
    %v3133 = vld [vmem:[%s2 + $0x3b0] sm:$0xff]
    %v3134 = vld [vmem:[%s2 + $0x3b8] sm:$0xff]
    %v3135 = vld [vmem:[%s2 + $0x3c0] sm:$0xff]
    %v3136 = vld [vmem:[%s2 + $0x3c8] sm:$0xff]
    %v3137 = vld [vmem:[%s2 + $0x3d0] sm:$0xff]
    %v3138 = vld [vmem:[%s2 + $0x3d8] sm:$0xff]
    %v3139 = vld [vmem:[%s2 + $0x3e0] sm:$0xff]
    %v3140 = vld [vmem:[%s2 + $0x3e8] sm:$0xff]
    %v3141 = vld [vmem:[%s2 + $0x3f0] sm:$0xff]
    %v3142 = vld [vmem:[%s2 + $0x3f8] sm:$0xff]
    %v3143 = vld [vmem:[%s2 + $0x400] sm:$0xff]
    %v3144 = vld [vmem:[%s2 + $0x408] sm:$0xff]
    %v3145 = vld [vmem:[%s2 + $0x410] sm:$0xff]
    %v3146 = vld [vmem:[%s2 + $0x418] sm:$0xff]
    %v3147 = vld [vmem:[%s2 + $0x420] sm:$0xff]
    %v3148 = vld [vmem:[%s2 + $0x428] sm:$0xff]
    %v3149 = vld [vmem:[%s2 + $0x430] sm:$0xff]
    %v3150 = vld [vmem:[%s2 + $0x438] sm:$0xff]
    %v3151 = vld [vmem:[%s2 + $0x440] sm:$0xff]
    %v3152 = vld [vmem:[%s2 + $0x448] sm:$0xff]
    %v3153 = vld [vmem:[%s2 + $0x450] sm:$0xff]
    %v3154 = vld [vmem:[%s2 + $0x458] sm:$0xff]
    %v3155 = vld [vmem:[%s2 + $0x460] sm:$0xff]
    %v3156 = vld [vmem:[%s2 + $0x468] sm:$0xff]
    %v3157 = vld [vmem:[%s2 + $0x470] sm:$0xff]
    %v3158 = vld [vmem:[%s2 + $0x478] sm:$0xff]
    %v3159 = vld [vmem:[%s2 + $0x480] sm:$0xff]
    %v3160 = vld [vmem:[%s2 + $0x488] sm:$0xff]
    %v3161 = vld [vmem:[%s2 + $0x490] sm:$0xff]
    %v3162 = vld [vmem:[%s2 + $0x498] sm:$0xff]
    %v3163 = vld [vmem:[%s2 + $0x4a0] sm:$0xff]
    %v3164 = vld [vmem:[%s2 + $0x4a8] sm:$0xff]
    %v3165 = vld [vmem:[%s2 + $0x4b0] sm:$0xff]
    %v3166 = vld [vmem:[%s2 + $0x4b8] sm:$0xff]
    %v3167 = vld [vmem:[%s2 + $0x4c0] sm:$0xff]
    %v3168 = vld [vmem:[%s2 + $0x4c8] sm:$0xff]
    %v3169 = vld [vmem:[%s2 + $0x4d0] sm:$0xff]
    %v3170 = vld [vmem:[%s2 + $0x4d8] sm:$0xff]
    %v3171 = vld [vmem:[%s2 + $0x4e0] sm:$0xff]
    %v3172 = vld [vmem:[%s2 + $0x4e8] sm:$0xff]
    %v3173 = vld [vmem:[%s2 + $0x4f0] sm:$0xff]
    %v3174 = vld [vmem:[%s2 + $0x4f8] sm:$0xff]
    %v3175 = vld [vmem:[%s2 + $0x500] sm:$0xff]
    %v3176 = vld [vmem:[%s2 + $0x508] sm:$0xff]
    %v3177 = vld [vmem:[%s2 + $0x510] sm:$0xff]
    %v3178 = vld [vmem:[%s2 + $0x518] sm:$0xff]
    %v3179 = vld [vmem:[%s2 + $0x520] sm:$0xff]
    %v3180 = vld [vmem:[%s2 + $0x528] sm:$0xff]
    %v3181 = vld [vmem:[%s2 + $0x530] sm:$0xff]
    %v3182 = vld [vmem:[%s2 + $0x538] sm:$0xff]
    %v3183 = vld [vmem:[%s2 + $0x540] sm:$0xff]
    %v3184 = vld [vmem:[%s2 + $0x548] sm:$0xff]
    %v3185 = vld [vmem:[%s2 + $0x550] sm:$0xff]
    %v3186 = vld [vmem:[%s2 + $0x558] sm:$0xff]
    %v3187 = vld [vmem:[%s2 + $0x560] sm:$0xff]
    %v3188 = vld [vmem:[%s2 + $0x568] sm:$0xff]
    %v3189 = vld [vmem:[%s2 + $0x570] sm:$0xff]
    %v3190 = vld [vmem:[%s2 + $0x578] sm:$0xff]
    %v3191 = vld [vmem:[%s2 + $0x580] sm:$0xff]
    %v3192 = vld [vmem:[%s2 + $0x588] sm:$0xff]
    %v3193 = vld [vmem:[%s2 + $0x590] sm:$0xff]
    %v3194 = vld [vmem:[%s2 + $0x598] sm:$0xff]
    %v3195 = vld [vmem:[%s2 + $0x5a0] sm:$0xff]
    %v3196 = vld [vmem:[%s2 + $0x5a8] sm:$0xff]
    %v3197 = vld [vmem:[%s2 + $0x5b0] sm:$0xff]
    %v3198 = vld [vmem:[%s2 + $0x5b8] sm:$0xff]
    %v3199 = vld [vmem:[%s2 + $0x5c0] sm:$0xff]
    %v3200 = vld [vmem:[%s2 + $0x5c8] sm:$0xff]
    %v3201 = vld [vmem:[%s2 + $0x5d0] sm:$0xff]
    %v3202 = vld [vmem:[%s2 + $0x5d8] sm:$0xff]
    %v3203 = vld [vmem:[%s2 + $0x5e0] sm:$0xff]
    %v3204 = vld [vmem:[%s2 + $0x5e8] sm:$0xff]
    %v3205 = vld [vmem:[%s2 + $0x5f0] sm:$0xff]
    %v3206 = vld [vmem:[%s2 + $0x5f8] sm:$0xff]
    %v3207 = vld [vmem:[%s2 + $0x600] sm:$0xff]
    %v3208 = vld [vmem:[%s2 + $0x608] sm:$0xff]
    %v3209 = vld [vmem:[%s2 + $0x610] sm:$0xff]
    %v3210 = vld [vmem:[%s2 + $0x618] sm:$0xff]
    %v3211 = vld [vmem:[%s2 + $0x620] sm:$0xff]
    %v3212 = vld [vmem:[%s2 + $0x628] sm:$0xff]
    %v3213 = vld [vmem:[%s2 + $0x630] sm:$0xff]
    %v3214 = vld [vmem:[%s2 + $0x638] sm:$0xff]
    %v3215 = vld [vmem:[%s2 + $0x640] sm:$0xff]
    %v3216 = vld [vmem:[%s2 + $0x648] sm:$0xff]
    %v3217 = vld [vmem:[%s2 + $0x650] sm:$0xff]
    %v3218 = vld [vmem:[%s2 + $0x658] sm:$0xff]
    %v3219 = vld [vmem:[%s2 + $0x660] sm:$0xff]
    %v3220 = vld [vmem:[%s2 + $0x668] sm:$0xff]
    %v3221 = vld [vmem:[%s2 + $0x670] sm:$0xff]
    %v3222 = vld [vmem:[%s2 + $0x678] sm:$0xff]
    %v3223 = vld [vmem:[%s2 + $0x680] sm:$0xff]
    %v3224 = vld [vmem:[%s2 + $0x688] sm:$0xff]
    %v3225 = vld [vmem:[%s2 + $0x690] sm:$0xff]
    %v3226 = vld [vmem:[%s2 + $0x698] sm:$0xff]
    %v3227 = vld [vmem:[%s2 + $0x6a0] sm:$0xff]
    %v3228 = vld [vmem:[%s2 + $0x6a8] sm:$0xff]
    %v3229 = vld [vmem:[%s2 + $0x6b0] sm:$0xff]
    %v3230 = vld [vmem:[%s2 + $0x6b8] sm:$0xff]
    %v3231 = vld [vmem:[%s2 + $0x6c0] sm:$0xff]
    %v3232 = vld [vmem:[%s2 + $0x6c8] sm:$0xff]
    %v3233 = vld [vmem:[%s2 + $0x6d0] sm:$0xff]
    %v3234 = vld [vmem:[%s2 + $0x6d8] sm:$0xff]
    %v3235 = vld [vmem:[%s2 + $0x6e0] sm:$0xff]
    %v3236 = vld [vmem:[%s2 + $0x6e8] sm:$0xff]
    %v3237 = vld [vmem:[%s2 + $0x6f0] sm:$0xff]
    %v3238 = vld [vmem:[%s2 + $0x6f8] sm:$0xff]
    %v3239 = vld [vmem:[%s2 + $0x700] sm:$0xff]
    %v3240 = vld [vmem:[%s2 + $0x708] sm:$0xff]
    %v3241 = vld [vmem:[%s2 + $0x710] sm:$0xff]
    %v3242 = vld [vmem:[%s2 + $0x718] sm:$0xff]
    %v3243 = vld [vmem:[%s2 + $0x720] sm:$0xff]
    %v3244 = vld [vmem:[%s2 + $0x728] sm:$0xff]
    %v3245 = vld [vmem:[%s2 + $0x730] sm:$0xff]
    %v3246 = vld [vmem:[%s2 + $0x738] sm:$0xff]
    %v3247 = vld [vmem:[%s2 + $0x740] sm:$0xff]
    %v3248 = vld [vmem:[%s2 + $0x748] sm:$0xff]
    %v3249 = vld [vmem:[%s2 + $0x750] sm:$0xff]
    %v3250 = vld [vmem:[%s2 + $0x758] sm:$0xff]
    %v3251 = vld [vmem:[%s2 + $0x760] sm:$0xff]
    %v3252 = vld [vmem:[%s2 + $0x768] sm:$0xff]
    %v3253 = vld [vmem:[%s2 + $0x770] sm:$0xff]
    %v3254 = vld [vmem:[%s2 + $0x778] sm:$0xff]
    %v3255 = vld [vmem:[%s2 + $0x780] sm:$0xff]
    %v3256 = vld [vmem:[%s2 + $0x788] sm:$0xff]
    %v3257 = vld [vmem:[%s2 + $0x790] sm:$0xff]
    %v3258 = vld [vmem:[%s2 + $0x798] sm:$0xff]
    %v3259 = vld [vmem:[%s2 + $0x7a0] sm:$0xff]
    %v3260 = vld [vmem:[%s2 + $0x7a8] sm:$0xff]
    %v3261 = vld [vmem:[%s2 + $0x7b0] sm:$0xff]
    %v3262 = vld [vmem:[%s2 + $0x7b8] sm:$0xff]
    %v3263 = vld [vmem:[%s2 + $0x7c0] sm:$0xff]
    %v3264 = vld [vmem:[%s2 + $0x7c8] sm:$0xff]
    %v3265 = vld [vmem:[%s2 + $0x7d0] sm:$0xff]
    %v3266 = vld [vmem:[%s2 + $0x7d8] sm:$0xff]
    %v3267 = vld [vmem:[%s2 + $0x7e0] sm:$0xff]
    %v3268 = vld [vmem:[%s2 + $0x7e8] sm:$0xff]
    %v3269 = vld [vmem:[%s2 + $0x7f0] sm:$0xff]
    %v3270 = vld [vmem:[%s2 + $0x7f8] sm:$0xff]
    %v3271 = vld [vmem:[%s2 + $0x800] sm:$0xff]
    %v3272 = vld [vmem:[%s2 + $0x808] sm:$0xff]
    %v3273 = vld [vmem:[%s2 + $0x810] sm:$0xff]
    %v3274 = vld [vmem:[%s2 + $0x818] sm:$0xff]
    %v3275 = vld [vmem:[%s2 + $0x820] sm:$0xff]
    %v3276 = vld [vmem:[%s2 + $0x828] sm:$0xff]
    %v3277 = vld [vmem:[%s2 + $0x830] sm:$0xff]
    %v3278 = vld [vmem:[%s2 + $0x838] sm:$0xff]
    %v3279 = vld [vmem:[%s2 + $0x840] sm:$0xff]
    %v3280 = vld [vmem:[%s2 + $0x848] sm:$0xff]
    %v3281 = vld [vmem:[%s2 + $0x850] sm:$0xff]
    %v3282 = vld [vmem:[%s2 + $0x858] sm:$0xff]
    %v3283 = vld [vmem:[%s2 + $0x860] sm:$0xff]
    %v3284 = vld [vmem:[%s2 + $0x868] sm:$0xff]
    %v3285 = vld [vmem:[%s2 + $0x870] sm:$0xff]
    %v3286 = vld [vmem:[%s2 + $0x878] sm:$0xff]
    %v3287 = vld [vmem:[%s2 + $0x880] sm:$0xff]
    %v3288 = vld [vmem:[%s2 + $0x888] sm:$0xff]
    %v3289 = vld [vmem:[%s2 + $0x890] sm:$0xff]
    %v3290 = vld [vmem:[%s2 + $0x898] sm:$0xff]
    %v3291 = vld [vmem:[%s2 + $0x8a0] sm:$0xff]
    %v3292 = vld [vmem:[%s2 + $0x8a8] sm:$0xff]
    %v3293 = vld [vmem:[%s2 + $0x8b0] sm:$0xff]
    %v3294 = vld [vmem:[%s2 + $0x8b8] sm:$0xff]
    %v3295 = vld [vmem:[%s2 + $0x8c0] sm:$0xff]
    %v3296 = vld [vmem:[%s2 + $0x8c8] sm:$0xff]
    %v3297 = vld [vmem:[%s2 + $0x8d0] sm:$0xff]
    %v3298 = vld [vmem:[%s2 + $0x8d8] sm:$0xff]
    %v3299 = vld [vmem:[%s2 + $0x8e0] sm:$0xff]
    %v3300 = vld [vmem:[%s2 + $0x8e8] sm:$0xff]
    %v3301 = vld [vmem:[%s2 + $0x8f0] sm:$0xff]
    %v3302 = vld [vmem:[%s2 + $0x8f8] sm:$0xff]
    %v3303 = vld [vmem:[%s2 + $0x900] sm:$0xff]
    %v3304 = vld [vmem:[%s2 + $0x908] sm:$0xff]
    %v3305 = vld [vmem:[%s2 + $0x910] sm:$0xff]
    %v3306 = vld [vmem:[%s2 + $0x918] sm:$0xff]
    %v3307 = vld [vmem:[%s2 + $0x920] sm:$0xff]
    %v3308 = vld [vmem:[%s2 + $0x928] sm:$0xff]
    %v3309 = vld [vmem:[%s2 + $0x930] sm:$0xff]
    %v3310 = vld [vmem:[%s2 + $0x938] sm:$0xff]
    %v3311 = vld [vmem:[%s2 + $0x940] sm:$0xff]
    %v3312 = vld [vmem:[%s2 + $0x948] sm:$0xff]
    %v3313 = vld [vmem:[%s2 + $0x950] sm:$0xff]
    %v3314 = vld [vmem:[%s2 + $0x958] sm:$0xff]
    %v3315 = vld [vmem:[%s2 + $0x960] sm:$0xff]
    %v3316 = vld [vmem:[%s2 + $0x968] sm:$0xff]
    %v3317 = vld [vmem:[%s2 + $0x970] sm:$0xff]
    %v3318 = vld [vmem:[%s2 + $0x978] sm:$0xff]
    %v3319 = vld [vmem:[%s2 + $0x980] sm:$0xff]
    %v3320 = vld [vmem:[%s2 + $0x988] sm:$0xff]
    %v3321 = vld [vmem:[%s2 + $0x990] sm:$0xff]
    %v3322 = vld [vmem:[%s2 + $0x998] sm:$0xff]
    %v3323 = vld [vmem:[%s2 + $0x9a0] sm:$0xff]
    %v3324 = vld [vmem:[%s2 + $0x9a8] sm:$0xff]
    %v3325 = vld [vmem:[%s2 + $0x9b0] sm:$0xff]
    %v3326 = vld [vmem:[%s2 + $0x9b8] sm:$0xff]
    %v3327 = vld [vmem:[%s2 + $0x9c0] sm:$0xff]
    %v3328 = vld [vmem:[%s2 + $0x9c8] sm:$0xff]
    %v3329 = vld [vmem:[%s2 + $0x9d0] sm:$0xff]
    %v3330 = vld [vmem:[%s2 + $0x9d8] sm:$0xff]
    %v3331 = vld [vmem:[%s2 + $0x9e0] sm:$0xff]
    %v3332 = vld [vmem:[%s2 + $0x9e8] sm:$0xff]
    %v3333 = vld [vmem:[%s2 + $0x9f0] sm:$0xff]
    %v3334 = vld [vmem:[%s2 + $0x9f8] sm:$0xff]
    %v3335 = vld [vmem:[%s2 + $0xa00] sm:$0xff]
    %v3336 = vld [vmem:[%s2 + $0xa08] sm:$0xff]
    %v3337 = vld [vmem:[%s2 + $0xa10] sm:$0xff]
    %v3338 = vld [vmem:[%s2 + $0xa18] sm:$0xff]
    %v3339 = vld [vmem:[%s2 + $0xa20] sm:$0xff]
    %v3340 = vld [vmem:[%s2 + $0xa28] sm:$0xff]
    %v3341 = vld [vmem:[%s2 + $0xa30] sm:$0xff]
    %v3342 = vld [vmem:[%s2 + $0xa38] sm:$0xff]
    %v3343 = vld [vmem:[%s2 + $0xa40] sm:$0xff]
    %v3344 = vld [vmem:[%s2 + $0xa48] sm:$0xff]
    %v3345 = vld [vmem:[%s2 + $0xa50] sm:$0xff]
    %v3346 = vld [vmem:[%s2 + $0xa58] sm:$0xff]
    %v3347 = vld [vmem:[%s2 + $0xa60] sm:$0xff]
    %v3348 = vld [vmem:[%s2 + $0xa68] sm:$0xff]
    %v3349 = vld [vmem:[%s2 + $0xa70] sm:$0xff]
    %v3350 = vld [vmem:[%s2 + $0xa78] sm:$0xff]
    %v3351 = vld [vmem:[%s2 + $0xa80] sm:$0xff]
    %v3352 = vld [vmem:[%s2 + $0xa88] sm:$0xff]
    %v3353 = vld [vmem:[%s2 + $0xa90] sm:$0xff]
    %v3354 = vld [vmem:[%s2 + $0xa98] sm:$0xff]
    %v3355 = vld [vmem:[%s2 + $0xaa0] sm:$0xff]
    %v3356 = vld [vmem:[%s2 + $0xaa8] sm:$0xff]
    %v3357 = vld [vmem:[%s2 + $0xab0] sm:$0xff]
    %v3358 = vld [vmem:[%s2 + $0xab8] sm:$0xff]
    %v3359 = vld [vmem:[%s2 + $0xac0] sm:$0xff]
    %v3360 = vld [vmem:[%s2 + $0xac8] sm:$0xff]
    %v3361 = vld [vmem:[%s2 + $0xad0] sm:$0xff]
    %v3362 = vld [vmem:[%s2 + $0xad8] sm:$0xff]
    %v3363 = vld [vmem:[%s2 + $0xae0] sm:$0xff]
    %v3364 = vld [vmem:[%s2 + $0xae8] sm:$0xff]
    %v3365 = vld [vmem:[%s2 + $0xaf0] sm:$0xff]
    %v3366 = vld [vmem:[%s2 + $0xaf8] sm:$0xff]
    %v3367 = vld [vmem:[%s3] sm:$0xf]
    %v3369 = vlaneseq
    %v3370 = vshrl.u32 %v3369, 7
    %v3371 = vsub.s32 0, %v3370
    %v3372 = vrot.slane %v3367, %v3371
    %v3373 = vlaneseq
    %v3374 = vshrl.u32 %v3373, 7
    %v3375 = vsub.s32 1, %v3374
    %v3376 = vrot.slane %v3367, %v3375
    %v3377 = vlaneseq
    %v3378 = vshrl.u32 %v3377, 7
    %v3379 = vsub.s32 2, %v3378
    %v3380 = vrot.slane %v3367, %v3379
    %v3381 = vlaneseq
    %v3382 = vshrl.u32 %v3381, 7
    %v3383 = vsub.s32 3, %v3382
    %v3384 = vrot.slane %v3367, %v3383
    %v3565 = vunpack.c.l.b16 %v2839
    %v3566 = vunpack.c.h.b16 %v2839
    %v3567 = vunpack.c.l.b16 %v2840
    %v3568 = vunpack.c.h.b16 %v2840
    %v3569 = vunpack.c.l.b16 %v2841
    %v3570 = vunpack.c.h.b16 %v2841
    %v3571 = vunpack.c.l.b16 %v2842
    %v3572 = vunpack.c.h.b16 %v2842
    %v3573 = vunpack.c.l.b16 %v2843
    %v3574 = vunpack.c.h.b16 %v2843
    %v3575 = vunpack.c.l.b16 %v2844
    %v3576 = vunpack.c.h.b16 %v2844
    %v3577 = vunpack.c.l.b16 %v2845
    %v3578 = vunpack.c.h.b16 %v2845
    %v3579 = vunpack.c.l.b16 %v2846
    %v3580 = vunpack.c.h.b16 %v2846
    %v3581 = vunpack.c.l.b16 %v2847
    %v3582 = vunpack.c.h.b16 %v2847
    %v3583 = vunpack.c.l.b16 %v2848
    %v3584 = vunpack.c.h.b16 %v2848
    %v3585 = vunpack.c.l.b16 %v2849
    %v3586 = vunpack.c.h.b16 %v2849
    %v3587 = vunpack.c.l.b16 %v2850
    %v3588 = vunpack.c.h.b16 %v2850
    %v3589 = vunpack.c.l.b16 %v2851
    %v3590 = vunpack.c.h.b16 %v2851
    %v3591 = vunpack.c.l.b16 %v2852
    %v3592 = vunpack.c.h.b16 %v2852
    %v3593 = vunpack.c.l.b16 %v2853
    %v3594 = vunpack.c.h.b16 %v2853
    %v3595 = vunpack.c.l.b16 %v2854
    %v3596 = vunpack.c.h.b16 %v2854
    %v3597 = vunpack.c.l.b16 %v2855
    %v3598 = vunpack.c.h.b16 %v2855
    %v3599 = vunpack.c.l.b16 %v2856
    %v3600 = vunpack.c.h.b16 %v2856
    %v3601 = vunpack.c.l.b16 %v2857
    %v3602 = vunpack.c.h.b16 %v2857
    %v3603 = vunpack.c.l.b16 %v2858
    %v3604 = vunpack.c.h.b16 %v2858
    %v3605 = vunpack.c.l.b16 %v2859
    %v3606 = vunpack.c.h.b16 %v2859
    %v3607 = vunpack.c.l.b16 %v2860
    %v3608 = vunpack.c.h.b16 %v2860
    %v3609 = vunpack.c.l.b16 %v2861
    %v3610 = vunpack.c.h.b16 %v2861
    %v3611 = vunpack.c.l.b16 %v2862
    %v3612 = vunpack.c.h.b16 %v2862
    %v3613 = vunpack.c.l.b16 %v2863
    %v3614 = vunpack.c.h.b16 %v2863
    %v3615 = vunpack.c.l.b16 %v2864
    %v3616 = vunpack.c.h.b16 %v2864
    %v3617 = vunpack.c.l.b16 %v2865
    %v3618 = vunpack.c.h.b16 %v2865
    %v3619 = vunpack.c.l.b16 %v2866
    %v3620 = vunpack.c.h.b16 %v2866
    %v3621 = vunpack.c.l.b16 %v2867
    %v3622 = vunpack.c.h.b16 %v2867
    %v3623 = vunpack.c.l.b16 %v2868
    %v3624 = vunpack.c.h.b16 %v2868
    %v3625 = vunpack.c.l.b16 %v2869
    %v3626 = vunpack.c.h.b16 %v2869
    %v3627 = vunpack.c.l.b16 %v2870
    %v3628 = vunpack.c.h.b16 %v2870
    %v3629 = vunpack.c.l.b16 %v2871
    %v3630 = vunpack.c.h.b16 %v2871
    %v3631 = vunpack.c.l.b16 %v2872
    %v3632 = vunpack.c.h.b16 %v2872
    %v3633 = vunpack.c.l.b16 %v2873
    %v3634 = vunpack.c.h.b16 %v2873
    %v3635 = vunpack.c.l.b16 %v2874
    %v3636 = vunpack.c.h.b16 %v2874
    %v3637 = vunpack.c.l.b16 %v2875
    %v3638 = vunpack.c.h.b16 %v2875
    %v3639 = vunpack.c.l.b16 %v2876
    %v3640 = vunpack.c.h.b16 %v2876
    %v3641 = vunpack.c.l.b16 %v2877
    %v3642 = vunpack.c.h.b16 %v2877
    %v3643 = vunpack.c.l.b16 %v2878
    %v3644 = vunpack.c.h.b16 %v2878
    %v3645 = vunpack.c.l.b16 %v2879
    %v3646 = vunpack.c.h.b16 %v2879
    %v3647 = vunpack.c.l.b16 %v2880
    %v3648 = vunpack.c.h.b16 %v2880
    %v3649 = vunpack.c.l.b16 %v2881
    %v3650 = vunpack.c.h.b16 %v2881
    %v3651 = vunpack.c.l.b16 %v2882
    %v3652 = vunpack.c.h.b16 %v2882
    %v3653 = vunpack.c.l.b16 %v2883
    %v3654 = vunpack.c.h.b16 %v2883
    %v3655 = vunpack.c.l.b16 %v2884
    %v3656 = vunpack.c.h.b16 %v2884
    %v3657 = vunpack.c.l.b16 %v2885
    %v3658 = vunpack.c.h.b16 %v2885
    %v3659 = vunpack.c.l.b16 %v2886
    %v3660 = vunpack.c.h.b16 %v2886
    %v3661 = vunpack.c.l.b16 %v2887
    %v3662 = vunpack.c.h.b16 %v2887
    %v3663 = vunpack.c.l.b16 %v2888
    %v3664 = vunpack.c.h.b16 %v2888
    %v3665 = vunpack.c.l.b16 %v2889
    %v3666 = vunpack.c.h.b16 %v2889
    %v3667 = vunpack.c.l.b16 %v2890
    %v3668 = vunpack.c.h.b16 %v2890
    %v3669 = vunpack.c.l.b16 %v2891
    %v3670 = vunpack.c.h.b16 %v2891
    %v3671 = vunpack.c.l.b16 %v2892
    %v3672 = vunpack.c.h.b16 %v2892
    %v3673 = vunpack.c.l.b16 %v2893
    %v3674 = vunpack.c.h.b16 %v2893
    %v3675 = vunpack.c.l.b16 %v2894
    %v3676 = vunpack.c.h.b16 %v2894
    %v3677 = vunpack.c.l.b16 %v2895
    %v3678 = vunpack.c.h.b16 %v2895
    %v3679 = vunpack.c.l.b16 %v2896
    %v3680 = vunpack.c.h.b16 %v2896
    %v3681 = vunpack.c.l.b16 %v2897
    %v3682 = vunpack.c.h.b16 %v2897
    %v3683 = vunpack.c.l.b16 %v2898
    %v3684 = vunpack.c.h.b16 %v2898
    %v3685 = vunpack.c.l.b16 %v2899
    %v3686 = vunpack.c.h.b16 %v2899
    %v3687 = vunpack.c.l.b16 %v2900
    %v3688 = vunpack.c.h.b16 %v2900
    %v3689 = vunpack.c.l.b16 %v2901
    %v3690 = vunpack.c.h.b16 %v2901
    %v3691 = vunpack.c.l.b16 %v2902
    %v3692 = vunpack.c.h.b16 %v2902
    %v3693 = vunpack.c.l.b16 %v2903
    %v3694 = vunpack.c.h.b16 %v2903
    %v3695 = vunpack.c.l.b16 %v2904
    %v3696 = vunpack.c.h.b16 %v2904
    %v3697 = vunpack.c.l.b16 %v2905
    %v3698 = vunpack.c.h.b16 %v2905
    %v3699 = vunpack.c.l.b16 %v2906
    %v3700 = vunpack.c.h.b16 %v2906
    %v3701 = vunpack.c.l.b16 %v2907
    %v3702 = vunpack.c.h.b16 %v2907
    %v3703 = vunpack.c.l.b16 %v2908
    %v3704 = vunpack.c.h.b16 %v2908
    %v3705 = vunpack.c.l.b16 %v2909
    %v3706 = vunpack.c.h.b16 %v2909
    %v3707 = vunpack.c.l.b16 %v2910
    %v3708 = vunpack.c.h.b16 %v2910
    %v3709 = vunpack.c.l.b16 %v2911
    %v3710 = vunpack.c.h.b16 %v2911
    %v3711 = vunpack.c.l.b16 %v2912
    %v3712 = vunpack.c.h.b16 %v2912
    %v3713 = vunpack.c.l.b16 %v2913
    %v3714 = vunpack.c.h.b16 %v2913
    %v3715 = vunpack.c.l.b16 %v2914
    %v3716 = vunpack.c.h.b16 %v2914
    %v3717 = vunpack.c.l.b16 %v2915
    %v3718 = vunpack.c.h.b16 %v2915
    %v3719 = vunpack.c.l.b16 %v2916
    %v3720 = vunpack.c.h.b16 %v2916
    %v3721 = vunpack.c.l.b16 %v2917
    %v3722 = vunpack.c.h.b16 %v2917
    %v3723 = vunpack.c.l.b16 %v2918
    %v3724 = vunpack.c.h.b16 %v2918
    %v3725 = vunpack.c.l.b16 %v2919
    %v3726 = vunpack.c.h.b16 %v2919
    %v3727 = vunpack.c.l.b16 %v2920
    %v3728 = vunpack.c.h.b16 %v2920
    %v3729 = vunpack.c.l.b16 %v2921
    %v3730 = vunpack.c.h.b16 %v2921
    %v3731 = vunpack.c.l.b16 %v2922
    %v3732 = vunpack.c.h.b16 %v2922
    %v3733 = vunpack.c.l.b16 %v2923
    %v3734 = vunpack.c.h.b16 %v2923
    %v3735 = vunpack.c.l.b16 %v2924
    %v3736 = vunpack.c.h.b16 %v2924
    %v3737 = vunpack.c.l.b16 %v2925
    %v3738 = vunpack.c.h.b16 %v2925
    %v3739 = vunpack.c.l.b16 %v2926
    %v3740 = vunpack.c.h.b16 %v2926
    %v3741 = vunpack.c.l.b16 %v2927
    %v3742 = vunpack.c.h.b16 %v2927
    %v3743 = vunpack.c.l.b16 %v2928
    %v3744 = vunpack.c.h.b16 %v2928
    %v3745 = vunpack.c.l.b16 %v2929
    %v3746 = vunpack.c.h.b16 %v2929
    %v3747 = vunpack.c.l.b16 %v2930
    %v3748 = vunpack.c.h.b16 %v2930
    %v3749 = vunpack.c.l.b16 %v2931
    %v3750 = vunpack.c.h.b16 %v2931
    %v3751 = vunpack.c.l.b16 %v2932
    %v3752 = vunpack.c.h.b16 %v2932
    %v3753 = vunpack.c.l.b16 %v2933
    %v3754 = vunpack.c.h.b16 %v2933
    %v3755 = vunpack.c.l.b16 %v2934
    %v3756 = vunpack.c.h.b16 %v2934
    %v3757 = vunpack.c.l.b16 %v2935
    %v3758 = vunpack.c.h.b16 %v2935
    %v3759 = vunpack.c.l.b16 %v2936
    %v3760 = vunpack.c.h.b16 %v2936
    %v3761 = vunpack.c.l.b16 %v2937
    %v3762 = vunpack.c.h.b16 %v2937
    %v3763 = vunpack.c.l.b16 %v2938
    %v3764 = vunpack.c.h.b16 %v2938
    %v3765 = vunpack.c.l.b16 %v2939
    %v3766 = vunpack.c.h.b16 %v2939
    %v3767 = vunpack.c.l.b16 %v2940
    %v3768 = vunpack.c.h.b16 %v2940
    %v3769 = vunpack.c.l.b16 %v2941
    %v3770 = vunpack.c.h.b16 %v2941
    %v3771 = vunpack.c.l.b16 %v2942
    %v3772 = vunpack.c.h.b16 %v2942
    %v3773 = vunpack.c.l.b16 %v2943
    %v3774 = vunpack.c.h.b16 %v2943
    %v3775 = vunpack.c.l.b16 %v2944
    %v3776 = vunpack.c.h.b16 %v2944
    %v3777 = vunpack.c.l.b16 %v2945
    %v3778 = vunpack.c.h.b16 %v2945
    %v3779 = vunpack.c.l.b16 %v2946
    %v3780 = vunpack.c.h.b16 %v2946
    %v3781 = vunpack.c.l.b16 %v2947
    %v3782 = vunpack.c.h.b16 %v2947
    %v3783 = vunpack.c.l.b16 %v2948
    %v3784 = vunpack.c.h.b16 %v2948
    %v3785 = vunpack.c.l.b16 %v2949
    %v3786 = vunpack.c.h.b16 %v2949
    %v3787 = vunpack.c.l.b16 %v2950
    %v3788 = vunpack.c.h.b16 %v2950
    %v3789 = vunpack.c.l.b16 %v2951
    %v3790 = vunpack.c.h.b16 %v2951
    %v3791 = vunpack.c.l.b16 %v2952
    %v3792 = vunpack.c.h.b16 %v2952
    %v3793 = vunpack.c.l.b16 %v2953
    %v3794 = vunpack.c.h.b16 %v2953
    %v3795 = vunpack.c.l.b16 %v2954
    %v3796 = vunpack.c.h.b16 %v2954
    %v3797 = vunpack.c.l.b16 %v2955
    %v3798 = vunpack.c.h.b16 %v2955
    %v3799 = vunpack.c.l.b16 %v2956
    %v3800 = vunpack.c.h.b16 %v2956
    %v3801 = vunpack.c.l.b16 %v2957
    %v3802 = vunpack.c.h.b16 %v2957
    %v3803 = vunpack.c.l.b16 %v2958
    %v3804 = vunpack.c.h.b16 %v2958
    %v3805 = vunpack.c.l.b16 %v2959
    %v3806 = vunpack.c.h.b16 %v2959
    %v3807 = vunpack.c.l.b16 %v2960
    %v3808 = vunpack.c.h.b16 %v2960
    %v3809 = vunpack.c.l.b16 %v2961
    %v3810 = vunpack.c.h.b16 %v2961
    %v3811 = vunpack.c.l.b16 %v2962
    %v3812 = vunpack.c.h.b16 %v2962
    %v3813 = vunpack.c.l.b16 %v2963
    %v3814 = vunpack.c.h.b16 %v2963
    %v3815 = vunpack.c.l.b16 %v2964
    %v3816 = vunpack.c.h.b16 %v2964
    %v3817 = vunpack.c.l.b16 %v2965
    %v3818 = vunpack.c.h.b16 %v2965
    %v3819 = vunpack.c.l.b16 %v2966
    %v3820 = vunpack.c.h.b16 %v2966
    %v3821 = vunpack.c.l.b16 %v2967
    %v3822 = vunpack.c.h.b16 %v2967
    %v3823 = vunpack.c.l.b16 %v2968
    %v3824 = vunpack.c.h.b16 %v2968
    %v3825 = vunpack.c.l.b16 %v2969
    %v3826 = vunpack.c.h.b16 %v2969
    %v3827 = vunpack.c.l.b16 %v2970
    %v3828 = vunpack.c.h.b16 %v2970
    %v3829 = vunpack.c.l.b16 %v2971
    %v3830 = vunpack.c.h.b16 %v2971
    %v3831 = vunpack.c.l.b16 %v2972
    %v3832 = vunpack.c.h.b16 %v2972
    %v3833 = vunpack.c.l.b16 %v2973
    %v3834 = vunpack.c.h.b16 %v2973
    %v3835 = vunpack.c.l.b16 %v2974
    %v3836 = vunpack.c.h.b16 %v2974
    %v3837 = vunpack.c.l.b16 %v2975
    %v3838 = vunpack.c.h.b16 %v2975
    %v3839 = vunpack.c.l.b16 %v2976
    %v3840 = vunpack.c.h.b16 %v2976
    %v3841 = vunpack.c.l.b16 %v2977
    %v3842 = vunpack.c.h.b16 %v2977
    %v3843 = vunpack.c.l.b16 %v2978
    %v3844 = vunpack.c.h.b16 %v2978
    %v3845 = vunpack.c.l.b16 %v2979
    %v3846 = vunpack.c.h.b16 %v2979
    %v3847 = vunpack.c.l.b16 %v2980
    %v3848 = vunpack.c.h.b16 %v2980
    %v3849 = vunpack.c.l.b16 %v2981
    %v3850 = vunpack.c.h.b16 %v2981
    %v3851 = vunpack.c.l.b16 %v2982
    %v3852 = vunpack.c.h.b16 %v2982
    %v3853 = vunpack.c.l.b16 %v2983
    %v3854 = vunpack.c.h.b16 %v2983
    %v3855 = vunpack.c.l.b16 %v2984
    %v3856 = vunpack.c.h.b16 %v2984
    %v3857 = vunpack.c.l.b16 %v2985
    %v3858 = vunpack.c.h.b16 %v2985
    %v3859 = vunpack.c.l.b16 %v2986
    %v3860 = vunpack.c.h.b16 %v2986
    %v3861 = vunpack.c.l.b16 %v2987
    %v3862 = vunpack.c.h.b16 %v2987
    %v3863 = vunpack.c.l.b16 %v2988
    %v3864 = vunpack.c.h.b16 %v2988
    %v3865 = vunpack.c.l.b16 %v2989
    %v3866 = vunpack.c.h.b16 %v2989
    %v3867 = vunpack.c.l.b16 %v2990
    %v3868 = vunpack.c.h.b16 %v2990
    %v3869 = vunpack.c.l.b16 %v2991
    %v3870 = vunpack.c.h.b16 %v2991
    %v3871 = vunpack.c.l.b16 %v2992
    %v3872 = vunpack.c.h.b16 %v2992
    %v3873 = vunpack.c.l.b16 %v2993
    %v3874 = vunpack.c.h.b16 %v2993
    %v3875 = vunpack.c.l.b16 %v2994
    %v3876 = vunpack.c.h.b16 %v2994
    %v3877 = vunpack.c.l.b16 %v2995
    %v3878 = vunpack.c.h.b16 %v2995
    %v3879 = vunpack.c.l.b16 %v2996
    %v3880 = vunpack.c.h.b16 %v2996
    %v3881 = vunpack.c.l.b16 %v2997
    %v3882 = vunpack.c.h.b16 %v2997
    %v3883 = vunpack.c.l.b16 %v2998
    %v3884 = vunpack.c.h.b16 %v2998
    %v3885 = vunpack.c.l.b16 %v2999
    %v3886 = vunpack.c.h.b16 %v2999
    %v3887 = vunpack.c.l.b16 %v3000
    %v3888 = vunpack.c.h.b16 %v3000
    %v3889 = vunpack.c.l.b16 %v3001
    %v3890 = vunpack.c.h.b16 %v3001
    %v3891 = vunpack.c.l.b16 %v3002
    %v3892 = vunpack.c.h.b16 %v3002
    %v3893 = vunpack.c.l.b16 %v3003
    %v3894 = vunpack.c.h.b16 %v3003
    %v3895 = vunpack.c.l.b16 %v3004
    %v3896 = vunpack.c.h.b16 %v3004
    %v3897 = vunpack.c.l.b16 %v3005
    %v3898 = vunpack.c.h.b16 %v3005
    %v3899 = vunpack.c.l.b16 %v3006
    %v3900 = vunpack.c.h.b16 %v3006
    %v3901 = vunpack.c.l.b16 %v3007
    %v3902 = vunpack.c.h.b16 %v3007
    %v3903 = vunpack.c.l.b16 %v3008
    %v3904 = vunpack.c.h.b16 %v3008
    %v3905 = vunpack.c.l.b16 %v3009
    %v3906 = vunpack.c.h.b16 %v3009
    %v3907 = vunpack.c.l.b16 %v3010
    %v3908 = vunpack.c.h.b16 %v3010
    %v3909 = vunpack.c.l.b16 %v3011
    %v3910 = vunpack.c.h.b16 %v3011
    %v3911 = vunpack.c.l.b16 %v3012
    %v3912 = vunpack.c.h.b16 %v3012
    %v3913 = vunpack.c.l.b16 %v3013
    %v3914 = vunpack.c.h.b16 %v3013
    %v3915 = vunpack.c.l.b16 %v3014
    %v3916 = vunpack.c.h.b16 %v3014
    %v3917 = vlaneseq
    %v3918 = vand.u32 %v3917, 127
    %v3919 = vlaneseq
    %v3920 = vshrl.u32 %v3919, 7
    %v3921 = vsub.s32 %v3918, %v3920
    %v3922 = vrot.slane %v3565, %v3921
    %v3923 = vadd.s32 %v3918, 4294967288
    %v3924 = vlaneseq
    %v3925 = vshrl.u32 %v3924, 7
    %v3926 = vsub.s32 %v3923, %v3925
    %v3927 = vrot.slane %v3566, %v3926
    %vm3928 = vcmask 130112
    %v3929 = vsel %vm3928, %v3927, %v3922
    %v3930 = vadd.s32 %v3918, 4294967280
    %v3931 = vlaneseq
    %v3932 = vshrl.u32 %v3931, 7
    %v3933 = vsub.s32 %v3930, %v3932
    %v3934 = vrot.slane %v3567, %v3933
    %vm3935 = vcmask 195712
    %v3936 = vsel %vm3935, %v3934, %v3929
    %v3937 = vadd.s32 %v3918, 4294967272
    %v3938 = vlaneseq
    %v3939 = vshrl.u32 %v3938, 7
    %v3940 = vsub.s32 %v3937, %v3939
    %v3941 = vrot.slane %v3568, %v3940
    %vm3942 = vcmask 261312
    %v3943 = vsel %vm3942, %v3941, %v3936
    %v3944 = vadd.s32 %v3918, 4294967264
    %v3945 = vlaneseq
    %v3946 = vshrl.u32 %v3945, 7
    %v3947 = vsub.s32 %v3944, %v3946
    %v3948 = vrot.slane %v3569, %v3947
    %vm3949 = vcmask 326912
    %v3950 = vsel %vm3949, %v3948, %v3943
    %v3951 = vadd.s32 %v3918, 4294967256
    %v3952 = vlaneseq
    %v3953 = vshrl.u32 %v3952, 7
    %v3954 = vsub.s32 %v3951, %v3953
    %v3955 = vrot.slane %v3570, %v3954
    %vm3956 = vcmask 392512
    %v3957 = vsel %vm3956, %v3955, %v3950
    %v3958 = vadd.s32 %v3918, 4294967248
    %v3959 = vlaneseq
    %v3960 = vshrl.u32 %v3959, 7
    %v3961 = vsub.s32 %v3958, %v3960
    %v3962 = vrot.slane %v3571, %v3961
    %vm3963 = vcmask 458112
    %v3964 = vsel %vm3963, %v3962, %v3957
    %v3965 = vadd.s32 %v3918, 4294967240
    %v3966 = vlaneseq
    %v3967 = vshrl.u32 %v3966, 7
    %v3968 = vsub.s32 %v3965, %v3967
    %v3969 = vrot.slane %v3572, %v3968
    %vm3970 = vcmask 523712
    %v3971 = vsel %vm3970, %v3969, %v3964
    %v3972 = vadd.s32 %v3918, 4294967232
    %v3973 = vlaneseq
    %v3974 = vshrl.u32 %v3973, 7
    %v3975 = vsub.s32 %v3972, %v3974
    %v3976 = vrot.slane %v3573, %v3975
    %vm3977 = vcmask 589312
    %v3978 = vsel %vm3977, %v3976, %v3971
    %v3979 = vadd.s32 %v3918, 4294967224
    %v3980 = vlaneseq
    %v3981 = vshrl.u32 %v3980, 7
    %v3982 = vsub.s32 %v3979, %v3981
    %v3983 = vrot.slane %v3574, %v3982
    %vm3984 = vcmask 654912
    %v3985 = vsel %vm3984, %v3983, %v3978
    %v3986 = vadd.s32 %v3918, 4294967216
    %v3987 = vlaneseq
    %v3988 = vshrl.u32 %v3987, 7
    %v3989 = vsub.s32 %v3986, %v3988
    %v3990 = vrot.slane %v3575, %v3989
    %vm3991 = vcmask 720512
    %v3992 = vsel %vm3991, %v3990, %v3985
    %v3993 = vadd.s32 %v3918, 4294967208
    %v3994 = vlaneseq
    %v3995 = vshrl.u32 %v3994, 7
    %v3996 = vsub.s32 %v3993, %v3995
    %v3997 = vrot.slane %v3576, %v3996
    %vm3998 = vcmask 786112
    %v3999 = vsel %vm3998, %v3997, %v3992
    %v4000 = vadd.s32 %v3918, 4294967200
    %v4001 = vlaneseq
    %v4002 = vshrl.u32 %v4001, 7
    %v4003 = vsub.s32 %v4000, %v4002
    %v4004 = vrot.slane %v3577, %v4003
    %vm4005 = vcmask 851712
    %v4006 = vsel %vm4005, %v4004, %v3999
    %v4007 = vadd.s32 %v3918, 4294967192
    %v4008 = vlaneseq
    %v4009 = vshrl.u32 %v4008, 7
    %v4010 = vsub.s32 %v4007, %v4009
    %v4011 = vrot.slane %v3578, %v4010
    %vm4012 = vcmask 917312
    %v4013 = vsel %vm4012, %v4011, %v4006
    %v4014 = vadd.s32 %v3918, 4294967184
    %v4015 = vlaneseq
    %v4016 = vshrl.u32 %v4015, 7
    %v4017 = vsub.s32 %v4014, %v4016
    %v4018 = vrot.slane %v3579, %v4017
    %vm4019 = vcmask 982912
    %v4020 = vsel %vm4019, %v4018, %v4013
    %v4021 = vadd.s32 %v3918, 4294967176
    %v4022 = vlaneseq
    %v4023 = vshrl.u32 %v4022, 7
    %v4024 = vsub.s32 %v4021, %v4023
    %v4025 = vrot.slane %v3580, %v4024
    %vm4026 = vcmask 1048512
    %v4027 = vsel %vm4026, %v4025, %v4020
    %v4028 = vlaneseq
    %v4029 = vshrl.u32 %v4028, 7
    %v4030 = vsub.s32 %v3918, %v4029
    %v4031 = vrot.slane %v3581, %v4030
    %v4032 = vlaneseq
    %v4033 = vshrl.u32 %v4032, 7
    %v4034 = vsub.s32 %v3923, %v4033
    %v4035 = vrot.slane %v3582, %v4034
    %v4036 = vsel %vm3928, %v4035, %v4031
    %v4037 = vlaneseq
    %v4038 = vshrl.u32 %v4037, 7
    %v4039 = vsub.s32 %v3930, %v4038
    %v4040 = vrot.slane %v3583, %v4039
    %v4041 = vsel %vm3935, %v4040, %v4036
    %v4042 = vlaneseq
    %v4043 = vshrl.u32 %v4042, 7
    %v4044 = vsub.s32 %v3937, %v4043
    %v4045 = vrot.slane %v3584, %v4044
    %v4046 = vsel %vm3942, %v4045, %v4041
    %v4047 = vlaneseq
    %v4048 = vshrl.u32 %v4047, 7
    %v4049 = vsub.s32 %v3944, %v4048
    %v4050 = vrot.slane %v3585, %v4049
    %v4051 = vsel %vm3949, %v4050, %v4046
    %v4052 = vlaneseq
    %v4053 = vshrl.u32 %v4052, 7
    %v4054 = vsub.s32 %v3951, %v4053
    %v4055 = vrot.slane %v3586, %v4054
    %v4056 = vsel %vm3956, %v4055, %v4051
    %v4057 = vlaneseq
    %v4058 = vshrl.u32 %v4057, 7
    %v4059 = vsub.s32 %v3958, %v4058
    %v4060 = vrot.slane %v3587, %v4059
    %v4061 = vsel %vm3963, %v4060, %v4056
    %v4062 = vlaneseq
    %v4063 = vshrl.u32 %v4062, 7
    %v4064 = vsub.s32 %v3965, %v4063
    %v4065 = vrot.slane %v3588, %v4064
    %v4066 = vsel %vm3970, %v4065, %v4061
    %v4067 = vlaneseq
    %v4068 = vshrl.u32 %v4067, 7
    %v4069 = vsub.s32 %v3972, %v4068
    %v4070 = vrot.slane %v3589, %v4069
    %v4071 = vsel %vm3977, %v4070, %v4066
    %v4072 = vlaneseq
    %v4073 = vshrl.u32 %v4072, 7
    %v4074 = vsub.s32 %v3979, %v4073
    %v4075 = vrot.slane %v3590, %v4074
    %v4076 = vsel %vm3984, %v4075, %v4071
    %v4077 = vlaneseq
    %v4078 = vshrl.u32 %v4077, 7
    %v4079 = vsub.s32 %v3986, %v4078
    %v4080 = vrot.slane %v3591, %v4079
    %v4081 = vsel %vm3991, %v4080, %v4076
    %v4082 = vlaneseq
    %v4083 = vshrl.u32 %v4082, 7
    %v4084 = vsub.s32 %v3993, %v4083
    %v4085 = vrot.slane %v3592, %v4084
    %v4086 = vsel %vm3998, %v4085, %v4081
    %v4087 = vlaneseq
    %v4088 = vshrl.u32 %v4087, 7
    %v4089 = vsub.s32 %v4000, %v4088
    %v4090 = vrot.slane %v3593, %v4089
    %v4091 = vsel %vm4005, %v4090, %v4086
    %v4092 = vlaneseq
    %v4093 = vshrl.u32 %v4092, 7
    %v4094 = vsub.s32 %v4007, %v4093
    %v4095 = vrot.slane %v3594, %v4094
    %v4096 = vsel %vm4012, %v4095, %v4091
    %v4097 = vlaneseq
    %v4098 = vshrl.u32 %v4097, 7
    %v4099 = vsub.s32 %v4014, %v4098
    %v4100 = vrot.slane %v3595, %v4099
    %v4101 = vsel %vm4019, %v4100, %v4096
    %v4102 = vlaneseq
    %v4103 = vshrl.u32 %v4102, 7
    %v4104 = vsub.s32 %v4021, %v4103
    %v4105 = vrot.slane %v3596, %v4104
    %v4106 = vsel %vm4026, %v4105, %v4101
    %v4107 = vlaneseq
    %v4108 = vshrl.u32 %v4107, 7
    %v4109 = vsub.s32 %v3918, %v4108
    %v4110 = vrot.slane %v3597, %v4109
    %v4111 = vlaneseq
    %v4112 = vshrl.u32 %v4111, 7
    %v4113 = vsub.s32 %v3923, %v4112
    %v4114 = vrot.slane %v3598, %v4113
    %v4115 = vsel %vm3928, %v4114, %v4110
    %v4116 = vlaneseq
    %v4117 = vshrl.u32 %v4116, 7
    %v4118 = vsub.s32 %v3930, %v4117
    %v4119 = vrot.slane %v3599, %v4118
    %v4120 = vsel %vm3935, %v4119, %v4115
    %v4121 = vlaneseq
    %v4122 = vshrl.u32 %v4121, 7
    %v4123 = vsub.s32 %v3937, %v4122
    %v4124 = vrot.slane %v3600, %v4123
    %v4125 = vsel %vm3942, %v4124, %v4120
    %v4126 = vlaneseq
    %v4127 = vshrl.u32 %v4126, 7
    %v4128 = vsub.s32 %v3944, %v4127
    %v4129 = vrot.slane %v3601, %v4128
    %v4130 = vsel %vm3949, %v4129, %v4125
    %v4131 = vlaneseq
    %v4132 = vshrl.u32 %v4131, 7
    %v4133 = vsub.s32 %v3951, %v4132
    %v4134 = vrot.slane %v3602, %v4133
    %v4135 = vsel %vm3956, %v4134, %v4130
    %v4136 = vlaneseq
    %v4137 = vshrl.u32 %v4136, 7
    %v4138 = vsub.s32 %v3958, %v4137
    %v4139 = vrot.slane %v3603, %v4138
    %v4140 = vsel %vm3963, %v4139, %v4135
    %v4141 = vlaneseq
    %v4142 = vshrl.u32 %v4141, 7
    %v4143 = vsub.s32 %v3965, %v4142
    %v4144 = vrot.slane %v3604, %v4143
    %v4145 = vsel %vm3970, %v4144, %v4140
    %v4146 = vlaneseq
    %v4147 = vshrl.u32 %v4146, 7
    %v4148 = vsub.s32 %v3972, %v4147
    %v4149 = vrot.slane %v3605, %v4148
    %v4150 = vsel %vm3977, %v4149, %v4145
    %v4151 = vlaneseq
    %v4152 = vshrl.u32 %v4151, 7
    %v4153 = vsub.s32 %v3979, %v4152
    %v4154 = vrot.slane %v3606, %v4153
    %v4155 = vsel %vm3984, %v4154, %v4150
    %v4156 = vlaneseq
    %v4157 = vshrl.u32 %v4156, 7
    %v4158 = vsub.s32 %v3986, %v4157
    %v4159 = vrot.slane %v3607, %v4158
    %v4160 = vsel %vm3991, %v4159, %v4155
    %v4161 = vlaneseq
    %v4162 = vshrl.u32 %v4161, 7
    %v4163 = vsub.s32 %v3993, %v4162
    %v4164 = vrot.slane %v3608, %v4163
    %v4165 = vsel %vm3998, %v4164, %v4160
    %v4166 = vlaneseq
    %v4167 = vshrl.u32 %v4166, 7
    %v4168 = vsub.s32 %v4000, %v4167
    %v4169 = vrot.slane %v3609, %v4168
    %v4170 = vsel %vm4005, %v4169, %v4165
    %v4171 = vlaneseq
    %v4172 = vshrl.u32 %v4171, 7
    %v4173 = vsub.s32 %v4007, %v4172
    %v4174 = vrot.slane %v3610, %v4173
    %v4175 = vsel %vm4012, %v4174, %v4170
    %v4176 = vlaneseq
    %v4177 = vshrl.u32 %v4176, 7
    %v4178 = vsub.s32 %v4014, %v4177
    %v4179 = vrot.slane %v3611, %v4178
    %v4180 = vsel %vm4019, %v4179, %v4175
    %v4181 = vlaneseq
    %v4182 = vshrl.u32 %v4181, 7
    %v4183 = vsub.s32 %v4021, %v4182
    %v4184 = vrot.slane %v3612, %v4183
    %v4185 = vsel %vm4026, %v4184, %v4180
    %v4186 = vlaneseq
    %v4187 = vshrl.u32 %v4186, 7
    %v4188 = vsub.s32 %v3918, %v4187
    %v4189 = vrot.slane %v3613, %v4188
    %v4190 = vlaneseq
    %v4191 = vshrl.u32 %v4190, 7
    %v4192 = vsub.s32 %v3923, %v4191
    %v4193 = vrot.slane %v3614, %v4192
    %v4194 = vsel %vm3928, %v4193, %v4189
    %v4195 = vlaneseq
    %v4196 = vshrl.u32 %v4195, 7
    %v4197 = vsub.s32 %v3930, %v4196
    %v4198 = vrot.slane %v3615, %v4197
    %v4199 = vsel %vm3935, %v4198, %v4194
    %v4200 = vlaneseq
    %v4201 = vshrl.u32 %v4200, 7
    %v4202 = vsub.s32 %v3937, %v4201
    %v4203 = vrot.slane %v3616, %v4202
    %v4204 = vsel %vm3942, %v4203, %v4199
    %v4205 = vlaneseq
    %v4206 = vshrl.u32 %v4205, 7
    %v4207 = vsub.s32 %v3944, %v4206
    %v4208 = vrot.slane %v3617, %v4207
    %v4209 = vsel %vm3949, %v4208, %v4204
    %v4210 = vlaneseq
    %v4211 = vshrl.u32 %v4210, 7
    %v4212 = vsub.s32 %v3951, %v4211
    %v4213 = vrot.slane %v3618, %v4212
    %v4214 = vsel %vm3956, %v4213, %v4209
    %v4215 = vlaneseq
    %v4216 = vshrl.u32 %v4215, 7
    %v4217 = vsub.s32 %v3958, %v4216
    %v4218 = vrot.slane %v3619, %v4217
    %v4219 = vsel %vm3963, %v4218, %v4214
    %v4220 = vlaneseq
    %v4221 = vshrl.u32 %v4220, 7
    %v4222 = vsub.s32 %v3965, %v4221
    %v4223 = vrot.slane %v3620, %v4222
    %v4224 = vsel %vm3970, %v4223, %v4219
    %v4225 = vlaneseq
    %v4226 = vshrl.u32 %v4225, 7
    %v4227 = vsub.s32 %v3972, %v4226
    %v4228 = vrot.slane %v3621, %v4227
    %v4229 = vsel %vm3977, %v4228, %v4224
    %v4230 = vlaneseq
    %v4231 = vshrl.u32 %v4230, 7
    %v4232 = vsub.s32 %v3979, %v4231
    %v4233 = vrot.slane %v3622, %v4232
    %v4234 = vsel %vm3984, %v4233, %v4229
    %v4235 = vlaneseq
    %v4236 = vshrl.u32 %v4235, 7
    %v4237 = vsub.s32 %v3986, %v4236
    %v4238 = vrot.slane %v3623, %v4237
    %v4239 = vsel %vm3991, %v4238, %v4234
    %v4240 = vlaneseq
    %v4241 = vshrl.u32 %v4240, 7
    %v4242 = vsub.s32 %v3993, %v4241
    %v4243 = vrot.slane %v3624, %v4242
    %v4244 = vsel %vm3998, %v4243, %v4239
    %v4245 = vlaneseq
    %v4246 = vshrl.u32 %v4245, 7
    %v4247 = vsub.s32 %v4000, %v4246
    %v4248 = vrot.slane %v3625, %v4247
    %v4249 = vsel %vm4005, %v4248, %v4244
    %v4250 = vlaneseq
    %v4251 = vshrl.u32 %v4250, 7
    %v4252 = vsub.s32 %v4007, %v4251
    %v4253 = vrot.slane %v3626, %v4252
    %v4254 = vsel %vm4012, %v4253, %v4249
    %v4255 = vlaneseq
    %v4256 = vshrl.u32 %v4255, 7
    %v4257 = vsub.s32 %v4014, %v4256
    %v4258 = vrot.slane %v3627, %v4257
    %v4259 = vsel %vm4019, %v4258, %v4254
    %v4260 = vlaneseq
    %v4261 = vshrl.u32 %v4260, 7
    %v4262 = vsub.s32 %v4021, %v4261
    %v4263 = vrot.slane %v3628, %v4262
    %v4264 = vsel %vm4026, %v4263, %v4259
    %v4265 = vlaneseq
    %v4266 = vshrl.u32 %v4265, 7
    %v4267 = vsub.s32 %v3918, %v4266
    %v4268 = vrot.slane %v3629, %v4267
    %v4269 = vlaneseq
    %v4270 = vshrl.u32 %v4269, 7
    %v4271 = vsub.s32 %v3923, %v4270
    %v4272 = vrot.slane %v3630, %v4271
    %v4273 = vsel %vm3928, %v4272, %v4268
    %v4274 = vlaneseq
    %v4275 = vshrl.u32 %v4274, 7
    %v4276 = vsub.s32 %v3930, %v4275
    %v4277 = vrot.slane %v3631, %v4276
    %v4278 = vsel %vm3935, %v4277, %v4273
    %v4279 = vlaneseq
    %v4280 = vshrl.u32 %v4279, 7
    %v4281 = vsub.s32 %v3937, %v4280
    %v4282 = vrot.slane %v3632, %v4281
    %v4283 = vsel %vm3942, %v4282, %v4278
    %v4284 = vlaneseq
    %v4285 = vshrl.u32 %v4284, 7
    %v4286 = vsub.s32 %v3944, %v4285
    %v4287 = vrot.slane %v3633, %v4286
    %v4288 = vsel %vm3949, %v4287, %v4283
    %v4289 = vlaneseq
    %v4290 = vshrl.u32 %v4289, 7
    %v4291 = vsub.s32 %v3951, %v4290
    %v4292 = vrot.slane %v3634, %v4291
    %v4293 = vsel %vm3956, %v4292, %v4288
    %v4294 = vlaneseq
    %v4295 = vshrl.u32 %v4294, 7
    %v4296 = vsub.s32 %v3958, %v4295
    %v4297 = vrot.slane %v3635, %v4296
    %v4298 = vsel %vm3963, %v4297, %v4293
    %v4299 = vlaneseq
    %v4300 = vshrl.u32 %v4299, 7
    %v4301 = vsub.s32 %v3965, %v4300
    %v4302 = vrot.slane %v3636, %v4301
    %v4303 = vsel %vm3970, %v4302, %v4298
    %v4304 = vlaneseq
    %v4305 = vshrl.u32 %v4304, 7
    %v4306 = vsub.s32 %v3972, %v4305
    %v4307 = vrot.slane %v3637, %v4306
    %v4308 = vsel %vm3977, %v4307, %v4303
    %v4309 = vlaneseq
    %v4310 = vshrl.u32 %v4309, 7
    %v4311 = vsub.s32 %v3979, %v4310
    %v4312 = vrot.slane %v3638, %v4311
    %v4313 = vsel %vm3984, %v4312, %v4308
    %v4314 = vlaneseq
    %v4315 = vshrl.u32 %v4314, 7
    %v4316 = vsub.s32 %v3986, %v4315
    %v4317 = vrot.slane %v3639, %v4316
    %v4318 = vsel %vm3991, %v4317, %v4313
    %v4319 = vlaneseq
    %v4320 = vshrl.u32 %v4319, 7
    %v4321 = vsub.s32 %v3993, %v4320
    %v4322 = vrot.slane %v3640, %v4321
    %v4323 = vsel %vm3998, %v4322, %v4318
    %v4324 = vlaneseq
    %v4325 = vshrl.u32 %v4324, 7
    %v4326 = vsub.s32 %v4000, %v4325
    %v4327 = vrot.slane %v3641, %v4326
    %v4328 = vsel %vm4005, %v4327, %v4323
    %v4329 = vlaneseq
    %v4330 = vshrl.u32 %v4329, 7
    %v4331 = vsub.s32 %v4007, %v4330
    %v4332 = vrot.slane %v3642, %v4331
    %v4333 = vsel %vm4012, %v4332, %v4328
    %v4334 = vlaneseq
    %v4335 = vshrl.u32 %v4334, 7
    %v4336 = vsub.s32 %v4014, %v4335
    %v4337 = vrot.slane %v3643, %v4336
    %v4338 = vsel %vm4019, %v4337, %v4333
    %v4339 = vlaneseq
    %v4340 = vshrl.u32 %v4339, 7
    %v4341 = vsub.s32 %v4021, %v4340
    %v4342 = vrot.slane %v3644, %v4341
    %v4343 = vsel %vm4026, %v4342, %v4338
    %v4344 = vlaneseq
    %v4345 = vshrl.u32 %v4344, 7
    %v4346 = vsub.s32 %v3918, %v4345
    %v4347 = vrot.slane %v3645, %v4346
    %v4348 = vlaneseq
    %v4349 = vshrl.u32 %v4348, 7
    %v4350 = vsub.s32 %v3923, %v4349
    %v4351 = vrot.slane %v3646, %v4350
    %v4352 = vsel %vm3928, %v4351, %v4347
    %v4353 = vlaneseq
    %v4354 = vshrl.u32 %v4353, 7
    %v4355 = vsub.s32 %v3930, %v4354
    %v4356 = vrot.slane %v3647, %v4355
    %v4357 = vsel %vm3935, %v4356, %v4352
    %v4358 = vlaneseq
    %v4359 = vshrl.u32 %v4358, 7
    %v4360 = vsub.s32 %v3937, %v4359
    %v4361 = vrot.slane %v3648, %v4360
    %v4362 = vsel %vm3942, %v4361, %v4357
    %v4363 = vlaneseq
    %v4364 = vshrl.u32 %v4363, 7
    %v4365 = vsub.s32 %v3944, %v4364
    %v4366 = vrot.slane %v3649, %v4365
    %v4367 = vsel %vm3949, %v4366, %v4362
    %v4368 = vlaneseq
    %v4369 = vshrl.u32 %v4368, 7
    %v4370 = vsub.s32 %v3951, %v4369
    %v4371 = vrot.slane %v3650, %v4370
    %v4372 = vsel %vm3956, %v4371, %v4367
    %v4373 = vlaneseq
    %v4374 = vshrl.u32 %v4373, 7
    %v4375 = vsub.s32 %v3958, %v4374
    %v4376 = vrot.slane %v3651, %v4375
    %v4377 = vsel %vm3963, %v4376, %v4372
    %v4378 = vlaneseq
    %v4379 = vshrl.u32 %v4378, 7
    %v4380 = vsub.s32 %v3965, %v4379
    %v4381 = vrot.slane %v3652, %v4380
    %v4382 = vsel %vm3970, %v4381, %v4377
    %v4383 = vlaneseq
    %v4384 = vshrl.u32 %v4383, 7
    %v4385 = vsub.s32 %v3972, %v4384
    %v4386 = vrot.slane %v3653, %v4385
    %v4387 = vsel %vm3977, %v4386, %v4382
    %v4388 = vlaneseq
    %v4389 = vshrl.u32 %v4388, 7
    %v4390 = vsub.s32 %v3979, %v4389
    %v4391 = vrot.slane %v3654, %v4390
    %v4392 = vsel %vm3984, %v4391, %v4387
    %v4393 = vlaneseq
    %v4394 = vshrl.u32 %v4393, 7
    %v4395 = vsub.s32 %v3986, %v4394
    %v4396 = vrot.slane %v3655, %v4395
    %v4397 = vsel %vm3991, %v4396, %v4392
    %v4398 = vlaneseq
    %v4399 = vshrl.u32 %v4398, 7
    %v4400 = vsub.s32 %v3993, %v4399
    %v4401 = vrot.slane %v3656, %v4400
    %v4402 = vsel %vm3998, %v4401, %v4397
    %v4403 = vlaneseq
    %v4404 = vshrl.u32 %v4403, 7
    %v4405 = vsub.s32 %v4000, %v4404
    %v4406 = vrot.slane %v3657, %v4405
    %v4407 = vsel %vm4005, %v4406, %v4402
    %v4408 = vlaneseq
    %v4409 = vshrl.u32 %v4408, 7
    %v4410 = vsub.s32 %v4007, %v4409
    %v4411 = vrot.slane %v3658, %v4410
    %v4412 = vsel %vm4012, %v4411, %v4407
    %v4413 = vlaneseq
    %v4414 = vshrl.u32 %v4413, 7
    %v4415 = vsub.s32 %v4014, %v4414
    %v4416 = vrot.slane %v3659, %v4415
    %v4417 = vsel %vm4019, %v4416, %v4412
    %v4418 = vlaneseq
    %v4419 = vshrl.u32 %v4418, 7
    %v4420 = vsub.s32 %v4021, %v4419
    %v4421 = vrot.slane %v3660, %v4420
    %v4422 = vsel %vm4026, %v4421, %v4417
    %v4423 = vlaneseq
    %v4424 = vshrl.u32 %v4423, 7
    %v4425 = vsub.s32 %v3918, %v4424
    %v4426 = vrot.slane %v3661, %v4425
    %v4427 = vlaneseq
    %v4428 = vshrl.u32 %v4427, 7
    %v4429 = vsub.s32 %v3923, %v4428
    %v4430 = vrot.slane %v3662, %v4429
    %v4431 = vsel %vm3928, %v4430, %v4426
    %v4432 = vlaneseq
    %v4433 = vshrl.u32 %v4432, 7
    %v4434 = vsub.s32 %v3930, %v4433
    %v4435 = vrot.slane %v3663, %v4434
    %v4436 = vsel %vm3935, %v4435, %v4431
    %v4437 = vlaneseq
    %v4438 = vshrl.u32 %v4437, 7
    %v4439 = vsub.s32 %v3937, %v4438
    %v4440 = vrot.slane %v3664, %v4439
    %v4441 = vsel %vm3942, %v4440, %v4436
    %v4442 = vlaneseq
    %v4443 = vshrl.u32 %v4442, 7
    %v4444 = vsub.s32 %v3944, %v4443
    %v4445 = vrot.slane %v3665, %v4444
    %v4446 = vsel %vm3949, %v4445, %v4441
    %v4447 = vlaneseq
    %v4448 = vshrl.u32 %v4447, 7
    %v4449 = vsub.s32 %v3951, %v4448
    %v4450 = vrot.slane %v3666, %v4449
    %v4451 = vsel %vm3956, %v4450, %v4446
    %v4452 = vlaneseq
    %v4453 = vshrl.u32 %v4452, 7
    %v4454 = vsub.s32 %v3958, %v4453
    %v4455 = vrot.slane %v3667, %v4454
    %v4456 = vsel %vm3963, %v4455, %v4451
    %v4457 = vlaneseq
    %v4458 = vshrl.u32 %v4457, 7
    %v4459 = vsub.s32 %v3965, %v4458
    %v4460 = vrot.slane %v3668, %v4459
    %v4461 = vsel %vm3970, %v4460, %v4456
    %v4462 = vlaneseq
    %v4463 = vshrl.u32 %v4462, 7
    %v4464 = vsub.s32 %v3972, %v4463
    %v4465 = vrot.slane %v3669, %v4464
    %v4466 = vsel %vm3977, %v4465, %v4461
    %v4467 = vlaneseq
    %v4468 = vshrl.u32 %v4467, 7
    %v4469 = vsub.s32 %v3979, %v4468
    %v4470 = vrot.slane %v3670, %v4469
    %v4471 = vsel %vm3984, %v4470, %v4466
    %v4472 = vlaneseq
    %v4473 = vshrl.u32 %v4472, 7
    %v4474 = vsub.s32 %v3986, %v4473
    %v4475 = vrot.slane %v3671, %v4474
    %v4476 = vsel %vm3991, %v4475, %v4471
    %v4477 = vlaneseq
    %v4478 = vshrl.u32 %v4477, 7
    %v4479 = vsub.s32 %v3993, %v4478
    %v4480 = vrot.slane %v3672, %v4479
    %v4481 = vsel %vm3998, %v4480, %v4476
    %v4482 = vlaneseq
    %v4483 = vshrl.u32 %v4482, 7
    %v4484 = vsub.s32 %v4000, %v4483
    %v4485 = vrot.slane %v3673, %v4484
    %v4486 = vsel %vm4005, %v4485, %v4481
    %v4487 = vlaneseq
    %v4488 = vshrl.u32 %v4487, 7
    %v4489 = vsub.s32 %v4007, %v4488
    %v4490 = vrot.slane %v3674, %v4489
    %v4491 = vsel %vm4012, %v4490, %v4486
    %v4492 = vlaneseq
    %v4493 = vshrl.u32 %v4492, 7
    %v4494 = vsub.s32 %v4014, %v4493
    %v4495 = vrot.slane %v3675, %v4494
    %v4496 = vsel %vm4019, %v4495, %v4491
    %v4497 = vlaneseq
    %v4498 = vshrl.u32 %v4497, 7
    %v4499 = vsub.s32 %v4021, %v4498
    %v4500 = vrot.slane %v3676, %v4499
    %v4501 = vsel %vm4026, %v4500, %v4496
    %v4502 = vlaneseq
    %v4503 = vshrl.u32 %v4502, 7
    %v4504 = vsub.s32 %v3918, %v4503
    %v4505 = vrot.slane %v3677, %v4504
    %v4506 = vlaneseq
    %v4507 = vshrl.u32 %v4506, 7
    %v4508 = vsub.s32 %v3923, %v4507
    %v4509 = vrot.slane %v3678, %v4508
    %v4510 = vsel %vm3928, %v4509, %v4505
    %v4511 = vlaneseq
    %v4512 = vshrl.u32 %v4511, 7
    %v4513 = vsub.s32 %v3930, %v4512
    %v4514 = vrot.slane %v3679, %v4513
    %v4515 = vsel %vm3935, %v4514, %v4510
    %v4516 = vlaneseq
    %v4517 = vshrl.u32 %v4516, 7
    %v4518 = vsub.s32 %v3937, %v4517
    %v4519 = vrot.slane %v3680, %v4518
    %v4520 = vsel %vm3942, %v4519, %v4515
    %v4521 = vlaneseq
    %v4522 = vshrl.u32 %v4521, 7
    %v4523 = vsub.s32 %v3944, %v4522
    %v4524 = vrot.slane %v3681, %v4523
    %v4525 = vsel %vm3949, %v4524, %v4520
    %v4526 = vlaneseq
    %v4527 = vshrl.u32 %v4526, 7
    %v4528 = vsub.s32 %v3951, %v4527
    %v4529 = vrot.slane %v3682, %v4528
    %v4530 = vsel %vm3956, %v4529, %v4525
    %v4531 = vlaneseq
    %v4532 = vshrl.u32 %v4531, 7
    %v4533 = vsub.s32 %v3958, %v4532
    %v4534 = vrot.slane %v3683, %v4533
    %v4535 = vsel %vm3963, %v4534, %v4530
    %v4536 = vlaneseq
    %v4537 = vshrl.u32 %v4536, 7
    %v4538 = vsub.s32 %v3965, %v4537
    %v4539 = vrot.slane %v3684, %v4538
    %v4540 = vsel %vm3970, %v4539, %v4535
    %v4541 = vlaneseq
    %v4542 = vshrl.u32 %v4541, 7
    %v4543 = vsub.s32 %v3972, %v4542
    %v4544 = vrot.slane %v3685, %v4543
    %v4545 = vsel %vm3977, %v4544, %v4540
    %v4546 = vlaneseq
    %v4547 = vshrl.u32 %v4546, 7
    %v4548 = vsub.s32 %v3979, %v4547
    %v4549 = vrot.slane %v3686, %v4548
    %v4550 = vsel %vm3984, %v4549, %v4545
    %v4551 = vlaneseq
    %v4552 = vshrl.u32 %v4551, 7
    %v4553 = vsub.s32 %v3986, %v4552
    %v4554 = vrot.slane %v3687, %v4553
    %v4555 = vsel %vm3991, %v4554, %v4550
    %v4556 = vlaneseq
    %v4557 = vshrl.u32 %v4556, 7
    %v4558 = vsub.s32 %v3993, %v4557
    %v4559 = vrot.slane %v3688, %v4558
    %v4560 = vsel %vm3998, %v4559, %v4555
    %v4561 = vlaneseq
    %v4562 = vshrl.u32 %v4561, 7
    %v4563 = vsub.s32 %v4000, %v4562
    %v4564 = vrot.slane %v3689, %v4563
    %v4565 = vsel %vm4005, %v4564, %v4560
    %v4566 = vlaneseq
    %v4567 = vshrl.u32 %v4566, 7
    %v4568 = vsub.s32 %v4007, %v4567
    %v4569 = vrot.slane %v3690, %v4568
    %v4570 = vsel %vm4012, %v4569, %v4565
    %v4571 = vlaneseq
    %v4572 = vshrl.u32 %v4571, 7
    %v4573 = vsub.s32 %v4014, %v4572
    %v4574 = vrot.slane %v3691, %v4573
    %v4575 = vsel %vm4019, %v4574, %v4570
    %v4576 = vlaneseq
    %v4577 = vshrl.u32 %v4576, 7
    %v4578 = vsub.s32 %v4021, %v4577
    %v4579 = vrot.slane %v3692, %v4578
    %v4580 = vsel %vm4026, %v4579, %v4575
    %v4581 = vlaneseq
    %v4582 = vshrl.u32 %v4581, 7
    %v4583 = vsub.s32 %v3918, %v4582
    %v4584 = vrot.slane %v3693, %v4583
    %v4585 = vlaneseq
    %v4586 = vshrl.u32 %v4585, 7
    %v4587 = vsub.s32 %v3923, %v4586
    %v4588 = vrot.slane %v3694, %v4587
    %v4589 = vsel %vm3928, %v4588, %v4584
    %v4590 = vlaneseq
    %v4591 = vshrl.u32 %v4590, 7
    %v4592 = vsub.s32 %v3930, %v4591
    %v4593 = vrot.slane %v3695, %v4592
    %v4594 = vsel %vm3935, %v4593, %v4589
    %v4595 = vlaneseq
    %v4596 = vshrl.u32 %v4595, 7
    %v4597 = vsub.s32 %v3937, %v4596
    %v4598 = vrot.slane %v3696, %v4597
    %v4599 = vsel %vm3942, %v4598, %v4594
    %v4600 = vlaneseq
    %v4601 = vshrl.u32 %v4600, 7
    %v4602 = vsub.s32 %v3944, %v4601
    %v4603 = vrot.slane %v3697, %v4602
    %v4604 = vsel %vm3949, %v4603, %v4599
    %v4605 = vlaneseq
    %v4606 = vshrl.u32 %v4605, 7
    %v4607 = vsub.s32 %v3951, %v4606
    %v4608 = vrot.slane %v3698, %v4607
    %v4609 = vsel %vm3956, %v4608, %v4604
    %v4610 = vlaneseq
    %v4611 = vshrl.u32 %v4610, 7
    %v4612 = vsub.s32 %v3958, %v4611
    %v4613 = vrot.slane %v3699, %v4612
    %v4614 = vsel %vm3963, %v4613, %v4609
    %v4615 = vlaneseq
    %v4616 = vshrl.u32 %v4615, 7
    %v4617 = vsub.s32 %v3965, %v4616
    %v4618 = vrot.slane %v3700, %v4617
    %v4619 = vsel %vm3970, %v4618, %v4614
    %v4620 = vlaneseq
    %v4621 = vshrl.u32 %v4620, 7
    %v4622 = vsub.s32 %v3972, %v4621
    %v4623 = vrot.slane %v3701, %v4622
    %v4624 = vsel %vm3977, %v4623, %v4619
    %v4625 = vlaneseq
    %v4626 = vshrl.u32 %v4625, 7
    %v4627 = vsub.s32 %v3979, %v4626
    %v4628 = vrot.slane %v3702, %v4627
    %v4629 = vsel %vm3984, %v4628, %v4624
    %v4630 = vlaneseq
    %v4631 = vshrl.u32 %v4630, 7
    %v4632 = vsub.s32 %v3986, %v4631
    %v4633 = vrot.slane %v3703, %v4632
    %v4634 = vsel %vm3991, %v4633, %v4629
    %v4635 = vlaneseq
    %v4636 = vshrl.u32 %v4635, 7
    %v4637 = vsub.s32 %v3993, %v4636
    %v4638 = vrot.slane %v3704, %v4637
    %v4639 = vsel %vm3998, %v4638, %v4634
    %v4640 = vlaneseq
    %v4641 = vshrl.u32 %v4640, 7
    %v4642 = vsub.s32 %v4000, %v4641
    %v4643 = vrot.slane %v3705, %v4642
    %v4644 = vsel %vm4005, %v4643, %v4639
    %v4645 = vlaneseq
    %v4646 = vshrl.u32 %v4645, 7
    %v4647 = vsub.s32 %v4007, %v4646
    %v4648 = vrot.slane %v3706, %v4647
    %v4649 = vsel %vm4012, %v4648, %v4644
    %v4650 = vlaneseq
    %v4651 = vshrl.u32 %v4650, 7
    %v4652 = vsub.s32 %v4014, %v4651
    %v4653 = vrot.slane %v3707, %v4652
    %v4654 = vsel %vm4019, %v4653, %v4649
    %v4655 = vlaneseq
    %v4656 = vshrl.u32 %v4655, 7
    %v4657 = vsub.s32 %v4021, %v4656
    %v4658 = vrot.slane %v3708, %v4657
    %v4659 = vsel %vm4026, %v4658, %v4654
    %v4660 = vlaneseq
    %v4661 = vshrl.u32 %v4660, 7
    %v4662 = vsub.s32 %v3918, %v4661
    %v4663 = vrot.slane %v3709, %v4662
    %v4664 = vlaneseq
    %v4665 = vshrl.u32 %v4664, 7
    %v4666 = vsub.s32 %v3923, %v4665
    %v4667 = vrot.slane %v3710, %v4666
    %v4668 = vsel %vm3928, %v4667, %v4663
    %v4669 = vlaneseq
    %v4670 = vshrl.u32 %v4669, 7
    %v4671 = vsub.s32 %v3930, %v4670
    %v4672 = vrot.slane %v3711, %v4671
    %v4673 = vsel %vm3935, %v4672, %v4668
    %v4674 = vlaneseq
    %v4675 = vshrl.u32 %v4674, 7
    %v4676 = vsub.s32 %v3937, %v4675
    %v4677 = vrot.slane %v3712, %v4676
    %v4678 = vsel %vm3942, %v4677, %v4673
    %v4679 = vlaneseq
    %v4680 = vshrl.u32 %v4679, 7
    %v4681 = vsub.s32 %v3944, %v4680
    %v4682 = vrot.slane %v3713, %v4681
    %v4683 = vsel %vm3949, %v4682, %v4678
    %v4684 = vlaneseq
    %v4685 = vshrl.u32 %v4684, 7
    %v4686 = vsub.s32 %v3951, %v4685
    %v4687 = vrot.slane %v3714, %v4686
    %v4688 = vsel %vm3956, %v4687, %v4683
    %v4689 = vlaneseq
    %v4690 = vshrl.u32 %v4689, 7
    %v4691 = vsub.s32 %v3958, %v4690
    %v4692 = vrot.slane %v3715, %v4691
    %v4693 = vsel %vm3963, %v4692, %v4688
    %v4694 = vlaneseq
    %v4695 = vshrl.u32 %v4694, 7
    %v4696 = vsub.s32 %v3965, %v4695
    %v4697 = vrot.slane %v3716, %v4696
    %v4698 = vsel %vm3970, %v4697, %v4693
    %v4699 = vlaneseq
    %v4700 = vshrl.u32 %v4699, 7
    %v4701 = vsub.s32 %v3972, %v4700
    %v4702 = vrot.slane %v3717, %v4701
    %v4703 = vsel %vm3977, %v4702, %v4698
    %v4704 = vlaneseq
    %v4705 = vshrl.u32 %v4704, 7
    %v4706 = vsub.s32 %v3979, %v4705
    %v4707 = vrot.slane %v3718, %v4706
    %v4708 = vsel %vm3984, %v4707, %v4703
    %v4709 = vlaneseq
    %v4710 = vshrl.u32 %v4709, 7
    %v4711 = vsub.s32 %v3986, %v4710
    %v4712 = vrot.slane %v3719, %v4711
    %v4713 = vsel %vm3991, %v4712, %v4708
    %v4714 = vlaneseq
    %v4715 = vshrl.u32 %v4714, 7
    %v4716 = vsub.s32 %v3993, %v4715
    %v4717 = vrot.slane %v3720, %v4716
    %v4718 = vsel %vm3998, %v4717, %v4713
    %v4719 = vlaneseq
    %v4720 = vshrl.u32 %v4719, 7
    %v4721 = vsub.s32 %v4000, %v4720
    %v4722 = vrot.slane %v3721, %v4721
    %v4723 = vsel %vm4005, %v4722, %v4718
    %v4724 = vlaneseq
    %v4725 = vshrl.u32 %v4724, 7
    %v4726 = vsub.s32 %v4007, %v4725
    %v4727 = vrot.slane %v3722, %v4726
    %v4728 = vsel %vm4012, %v4727, %v4723
    %v4729 = vlaneseq
    %v4730 = vshrl.u32 %v4729, 7
    %v4731 = vsub.s32 %v4014, %v4730
    %v4732 = vrot.slane %v3723, %v4731
    %v4733 = vsel %vm4019, %v4732, %v4728
    %v4734 = vlaneseq
    %v4735 = vshrl.u32 %v4734, 7
    %v4736 = vsub.s32 %v4021, %v4735
    %v4737 = vrot.slane %v3724, %v4736
    %v4738 = vsel %vm4026, %v4737, %v4733
    %v4739 = vlaneseq
    %v4740 = vshrl.u32 %v4739, 7
    %v4741 = vsub.s32 %v3918, %v4740
    %v4742 = vrot.slane %v3725, %v4741
    %v4743 = vlaneseq
    %v4744 = vshrl.u32 %v4743, 7
    %v4745 = vsub.s32 %v3923, %v4744
    %v4746 = vrot.slane %v3726, %v4745
    %v4747 = vsel %vm3928, %v4746, %v4742
    %v4748 = vlaneseq
    %v4749 = vshrl.u32 %v4748, 7
    %v4750 = vsub.s32 %v3930, %v4749
    %v4751 = vrot.slane %v3727, %v4750
    %v4752 = vsel %vm3935, %v4751, %v4747
    %v4753 = vlaneseq
    %v4754 = vshrl.u32 %v4753, 7
    %v4755 = vsub.s32 %v3937, %v4754
    %v4756 = vrot.slane %v3728, %v4755
    %v4757 = vsel %vm3942, %v4756, %v4752
    %v4758 = vlaneseq
    %v4759 = vshrl.u32 %v4758, 7
    %v4760 = vsub.s32 %v3944, %v4759
    %v4761 = vrot.slane %v3729, %v4760
    %v4762 = vsel %vm3949, %v4761, %v4757
    %v4763 = vlaneseq
    %v4764 = vshrl.u32 %v4763, 7
    %v4765 = vsub.s32 %v3951, %v4764
    %v4766 = vrot.slane %v3730, %v4765
    %v4767 = vsel %vm3956, %v4766, %v4762
    %v4768 = vlaneseq
    %v4769 = vshrl.u32 %v4768, 7
    %v4770 = vsub.s32 %v3958, %v4769
    %v4771 = vrot.slane %v3731, %v4770
    %v4772 = vsel %vm3963, %v4771, %v4767
    %v4773 = vlaneseq
    %v4774 = vshrl.u32 %v4773, 7
    %v4775 = vsub.s32 %v3965, %v4774
    %v4776 = vrot.slane %v3732, %v4775
    %v4777 = vsel %vm3970, %v4776, %v4772
    %v4778 = vlaneseq
    %v4779 = vshrl.u32 %v4778, 7
    %v4780 = vsub.s32 %v3972, %v4779
    %v4781 = vrot.slane %v3733, %v4780
    %v4782 = vsel %vm3977, %v4781, %v4777
    %v4783 = vlaneseq
    %v4784 = vshrl.u32 %v4783, 7
    %v4785 = vsub.s32 %v3979, %v4784
    %v4786 = vrot.slane %v3734, %v4785
    %v4787 = vsel %vm3984, %v4786, %v4782
    %v4788 = vlaneseq
    %v4789 = vshrl.u32 %v4788, 7
    %v4790 = vsub.s32 %v3986, %v4789
    %v4791 = vrot.slane %v3735, %v4790
    %v4792 = vsel %vm3991, %v4791, %v4787
    %v4793 = vlaneseq
    %v4794 = vshrl.u32 %v4793, 7
    %v4795 = vsub.s32 %v3993, %v4794
    %v4796 = vrot.slane %v3736, %v4795
    %v4797 = vsel %vm3998, %v4796, %v4792
    %v4798 = vlaneseq
    %v4799 = vshrl.u32 %v4798, 7
    %v4800 = vsub.s32 %v4000, %v4799
    %v4801 = vrot.slane %v3737, %v4800
    %v4802 = vsel %vm4005, %v4801, %v4797
    %v4803 = vlaneseq
    %v4804 = vshrl.u32 %v4803, 7
    %v4805 = vsub.s32 %v4007, %v4804
    %v4806 = vrot.slane %v3738, %v4805
    %v4807 = vsel %vm4012, %v4806, %v4802
    %v4808 = vlaneseq
    %v4809 = vshrl.u32 %v4808, 7
    %v4810 = vsub.s32 %v4014, %v4809
    %v4811 = vrot.slane %v3739, %v4810
    %v4812 = vsel %vm4019, %v4811, %v4807
    %v4813 = vlaneseq
    %v4814 = vshrl.u32 %v4813, 7
    %v4815 = vsub.s32 %v4021, %v4814
    %v4816 = vrot.slane %v3740, %v4815
    %v4817 = vsel %vm4026, %v4816, %v4812
    %v4818 = vlaneseq
    %v4819 = vshrl.u32 %v4818, 7
    %v4820 = vsub.s32 %v3918, %v4819
    %v4821 = vrot.slane %v3741, %v4820
    %v4822 = vlaneseq
    %v4823 = vshrl.u32 %v4822, 7
    %v4824 = vsub.s32 %v3923, %v4823
    %v4825 = vrot.slane %v3742, %v4824
    %v4826 = vsel %vm3928, %v4825, %v4821
    %v4827 = vlaneseq
    %v4828 = vshrl.u32 %v4827, 7
    %v4829 = vsub.s32 %v3930, %v4828
    %v4830 = vrot.slane %v3743, %v4829
    %v4831 = vsel %vm3935, %v4830, %v4826
    %v4832 = vlaneseq
    %v4833 = vshrl.u32 %v4832, 7
    %v4834 = vsub.s32 %v3937, %v4833
    %v4835 = vrot.slane %v3744, %v4834
    %v4836 = vsel %vm3942, %v4835, %v4831
    %v4837 = vlaneseq
    %v4838 = vshrl.u32 %v4837, 7
    %v4839 = vsub.s32 %v3944, %v4838
    %v4840 = vrot.slane %v3745, %v4839
    %v4841 = vsel %vm3949, %v4840, %v4836
    %v4842 = vlaneseq
    %v4843 = vshrl.u32 %v4842, 7
    %v4844 = vsub.s32 %v3951, %v4843
    %v4845 = vrot.slane %v3746, %v4844
    %v4846 = vsel %vm3956, %v4845, %v4841
    %v4847 = vlaneseq
    %v4848 = vshrl.u32 %v4847, 7
    %v4849 = vsub.s32 %v3958, %v4848
    %v4850 = vrot.slane %v3747, %v4849
    %v4851 = vsel %vm3963, %v4850, %v4846
    %v4852 = vlaneseq
    %v4853 = vshrl.u32 %v4852, 7
    %v4854 = vsub.s32 %v3965, %v4853
    %v4855 = vrot.slane %v3748, %v4854
    %v4856 = vsel %vm3970, %v4855, %v4851
    %v4857 = vlaneseq
    %v4858 = vshrl.u32 %v4857, 7
    %v4859 = vsub.s32 %v3972, %v4858
    %v4860 = vrot.slane %v3749, %v4859
    %v4861 = vsel %vm3977, %v4860, %v4856
    %v4862 = vlaneseq
    %v4863 = vshrl.u32 %v4862, 7
    %v4864 = vsub.s32 %v3979, %v4863
    %v4865 = vrot.slane %v3750, %v4864
    %v4866 = vsel %vm3984, %v4865, %v4861
    %v4867 = vlaneseq
    %v4868 = vshrl.u32 %v4867, 7
    %v4869 = vsub.s32 %v3986, %v4868
    %v4870 = vrot.slane %v3751, %v4869
    %v4871 = vsel %vm3991, %v4870, %v4866
    %v4872 = vlaneseq
    %v4873 = vshrl.u32 %v4872, 7
    %v4874 = vsub.s32 %v3993, %v4873
    %v4875 = vrot.slane %v3752, %v4874
    %v4876 = vsel %vm3998, %v4875, %v4871
    %v4877 = vlaneseq
    %v4878 = vshrl.u32 %v4877, 7
    %v4879 = vsub.s32 %v4000, %v4878
    %v4880 = vrot.slane %v3753, %v4879
    %v4881 = vsel %vm4005, %v4880, %v4876
    %v4882 = vlaneseq
    %v4883 = vshrl.u32 %v4882, 7
    %v4884 = vsub.s32 %v4007, %v4883
    %v4885 = vrot.slane %v3754, %v4884
    %v4886 = vsel %vm4012, %v4885, %v4881
    %v4887 = vlaneseq
    %v4888 = vshrl.u32 %v4887, 7
    %v4889 = vsub.s32 %v4014, %v4888
    %v4890 = vrot.slane %v3755, %v4889
    %v4891 = vsel %vm4019, %v4890, %v4886
    %v4892 = vlaneseq
    %v4893 = vshrl.u32 %v4892, 7
    %v4894 = vsub.s32 %v4021, %v4893
    %v4895 = vrot.slane %v3756, %v4894
    %v4896 = vsel %vm4026, %v4895, %v4891
    %v4897 = vlaneseq
    %v4898 = vshrl.u32 %v4897, 7
    %v4899 = vsub.s32 %v3918, %v4898
    %v4900 = vrot.slane %v3757, %v4899
    %v4901 = vlaneseq
    %v4902 = vshrl.u32 %v4901, 7
    %v4903 = vsub.s32 %v3923, %v4902
    %v4904 = vrot.slane %v3758, %v4903
    %v4905 = vsel %vm3928, %v4904, %v4900
    %v4906 = vlaneseq
    %v4907 = vshrl.u32 %v4906, 7
    %v4908 = vsub.s32 %v3930, %v4907
    %v4909 = vrot.slane %v3759, %v4908
    %v4910 = vsel %vm3935, %v4909, %v4905
    %v4911 = vlaneseq
    %v4912 = vshrl.u32 %v4911, 7
    %v4913 = vsub.s32 %v3937, %v4912
    %v4914 = vrot.slane %v3760, %v4913
    %v4915 = vsel %vm3942, %v4914, %v4910
    %v4916 = vlaneseq
    %v4917 = vshrl.u32 %v4916, 7
    %v4918 = vsub.s32 %v3944, %v4917
    %v4919 = vrot.slane %v3761, %v4918
    %v4920 = vsel %vm3949, %v4919, %v4915
    %v4921 = vlaneseq
    %v4922 = vshrl.u32 %v4921, 7
    %v4923 = vsub.s32 %v3951, %v4922
    %v4924 = vrot.slane %v3762, %v4923
    %v4925 = vsel %vm3956, %v4924, %v4920
    %v4926 = vlaneseq
    %v4927 = vshrl.u32 %v4926, 7
    %v4928 = vsub.s32 %v3958, %v4927
    %v4929 = vrot.slane %v3763, %v4928
    %v4930 = vsel %vm3963, %v4929, %v4925
    %v4931 = vlaneseq
    %v4932 = vshrl.u32 %v4931, 7
    %v4933 = vsub.s32 %v3965, %v4932
    %v4934 = vrot.slane %v3764, %v4933
    %v4935 = vsel %vm3970, %v4934, %v4930
    %v4936 = vlaneseq
    %v4937 = vshrl.u32 %v4936, 7
    %v4938 = vsub.s32 %v3972, %v4937
    %v4939 = vrot.slane %v3765, %v4938
    %v4940 = vsel %vm3977, %v4939, %v4935
    %v4941 = vlaneseq
    %v4942 = vshrl.u32 %v4941, 7
    %v4943 = vsub.s32 %v3979, %v4942
    %v4944 = vrot.slane %v3766, %v4943
    %v4945 = vsel %vm3984, %v4944, %v4940
    %v4946 = vlaneseq
    %v4947 = vshrl.u32 %v4946, 7
    %v4948 = vsub.s32 %v3986, %v4947
    %v4949 = vrot.slane %v3767, %v4948
    %v4950 = vsel %vm3991, %v4949, %v4945
    %v4951 = vlaneseq
    %v4952 = vshrl.u32 %v4951, 7
    %v4953 = vsub.s32 %v3993, %v4952
    %v4954 = vrot.slane %v3768, %v4953
    %v4955 = vsel %vm3998, %v4954, %v4950
    %v4956 = vlaneseq
    %v4957 = vshrl.u32 %v4956, 7
    %v4958 = vsub.s32 %v4000, %v4957
    %v4959 = vrot.slane %v3769, %v4958
    %v4960 = vsel %vm4005, %v4959, %v4955
    %v4961 = vlaneseq
    %v4962 = vshrl.u32 %v4961, 7
    %v4963 = vsub.s32 %v4007, %v4962
    %v4964 = vrot.slane %v3770, %v4963
    %v4965 = vsel %vm4012, %v4964, %v4960
    %v4966 = vlaneseq
    %v4967 = vshrl.u32 %v4966, 7
    %v4968 = vsub.s32 %v4014, %v4967
    %v4969 = vrot.slane %v3771, %v4968
    %v4970 = vsel %vm4019, %v4969, %v4965
    %v4971 = vlaneseq
    %v4972 = vshrl.u32 %v4971, 7
    %v4973 = vsub.s32 %v4021, %v4972
    %v4974 = vrot.slane %v3772, %v4973
    %v4975 = vsel %vm4026, %v4974, %v4970
    %v4976 = vlaneseq
    %v4977 = vshrl.u32 %v4976, 7
    %v4978 = vsub.s32 %v3918, %v4977
    %v4979 = vrot.slane %v3773, %v4978
    %v4980 = vlaneseq
    %v4981 = vshrl.u32 %v4980, 7
    %v4982 = vsub.s32 %v3923, %v4981
    %v4983 = vrot.slane %v3774, %v4982
    %v4984 = vsel %vm3928, %v4983, %v4979
    %v4985 = vlaneseq
    %v4986 = vshrl.u32 %v4985, 7
    %v4987 = vsub.s32 %v3930, %v4986
    %v4988 = vrot.slane %v3775, %v4987
    %v4989 = vsel %vm3935, %v4988, %v4984
    %v4990 = vlaneseq
    %v4991 = vshrl.u32 %v4990, 7
    %v4992 = vsub.s32 %v3937, %v4991
    %v4993 = vrot.slane %v3776, %v4992
    %v4994 = vsel %vm3942, %v4993, %v4989
    %v4995 = vlaneseq
    %v4996 = vshrl.u32 %v4995, 7
    %v4997 = vsub.s32 %v3944, %v4996
    %v4998 = vrot.slane %v3777, %v4997
    %v4999 = vsel %vm3949, %v4998, %v4994
    %v5000 = vlaneseq
    %v5001 = vshrl.u32 %v5000, 7
    %v5002 = vsub.s32 %v3951, %v5001
    %v5003 = vrot.slane %v3778, %v5002
    %v5004 = vsel %vm3956, %v5003, %v4999
    %v5005 = vlaneseq
    %v5006 = vshrl.u32 %v5005, 7
    %v5007 = vsub.s32 %v3958, %v5006
    %v5008 = vrot.slane %v3779, %v5007
    %v5009 = vsel %vm3963, %v5008, %v5004
    %v5010 = vlaneseq
    %v5011 = vshrl.u32 %v5010, 7
    %v5012 = vsub.s32 %v3965, %v5011
    %v5013 = vrot.slane %v3780, %v5012
    %v5014 = vsel %vm3970, %v5013, %v5009
    %v5015 = vlaneseq
    %v5016 = vshrl.u32 %v5015, 7
    %v5017 = vsub.s32 %v3972, %v5016
    %v5018 = vrot.slane %v3781, %v5017
    %v5019 = vsel %vm3977, %v5018, %v5014
    %v5020 = vlaneseq
    %v5021 = vshrl.u32 %v5020, 7
    %v5022 = vsub.s32 %v3979, %v5021
    %v5023 = vrot.slane %v3782, %v5022
    %v5024 = vsel %vm3984, %v5023, %v5019
    %v5025 = vlaneseq
    %v5026 = vshrl.u32 %v5025, 7
    %v5027 = vsub.s32 %v3986, %v5026
    %v5028 = vrot.slane %v3783, %v5027
    %v5029 = vsel %vm3991, %v5028, %v5024
    %v5030 = vlaneseq
    %v5031 = vshrl.u32 %v5030, 7
    %v5032 = vsub.s32 %v3993, %v5031
    %v5033 = vrot.slane %v3784, %v5032
    %v5034 = vsel %vm3998, %v5033, %v5029
    %v5035 = vlaneseq
    %v5036 = vshrl.u32 %v5035, 7
    %v5037 = vsub.s32 %v4000, %v5036
    %v5038 = vrot.slane %v3785, %v5037
    %v5039 = vsel %vm4005, %v5038, %v5034
    %v5040 = vlaneseq
    %v5041 = vshrl.u32 %v5040, 7
    %v5042 = vsub.s32 %v4007, %v5041
    %v5043 = vrot.slane %v3786, %v5042
    %v5044 = vsel %vm4012, %v5043, %v5039
    %v5045 = vlaneseq
    %v5046 = vshrl.u32 %v5045, 7
    %v5047 = vsub.s32 %v4014, %v5046
    %v5048 = vrot.slane %v3787, %v5047
    %v5049 = vsel %vm4019, %v5048, %v5044
    %v5050 = vlaneseq
    %v5051 = vshrl.u32 %v5050, 7
    %v5052 = vsub.s32 %v4021, %v5051
    %v5053 = vrot.slane %v3788, %v5052
    %v5054 = vsel %vm4026, %v5053, %v5049
    %v5055 = vlaneseq
    %v5056 = vshrl.u32 %v5055, 7
    %v5057 = vsub.s32 %v3918, %v5056
    %v5058 = vrot.slane %v3789, %v5057
    %v5059 = vlaneseq
    %v5060 = vshrl.u32 %v5059, 7
    %v5061 = vsub.s32 %v3923, %v5060
    %v5062 = vrot.slane %v3790, %v5061
    %v5063 = vsel %vm3928, %v5062, %v5058
    %v5064 = vlaneseq
    %v5065 = vshrl.u32 %v5064, 7
    %v5066 = vsub.s32 %v3930, %v5065
    %v5067 = vrot.slane %v3791, %v5066
    %v5068 = vsel %vm3935, %v5067, %v5063
    %v5069 = vlaneseq
    %v5070 = vshrl.u32 %v5069, 7
    %v5071 = vsub.s32 %v3937, %v5070
    %v5072 = vrot.slane %v3792, %v5071
    %v5073 = vsel %vm3942, %v5072, %v5068
    %v5074 = vlaneseq
    %v5075 = vshrl.u32 %v5074, 7
    %v5076 = vsub.s32 %v3944, %v5075
    %v5077 = vrot.slane %v3793, %v5076
    %v5078 = vsel %vm3949, %v5077, %v5073
    %v5079 = vlaneseq
    %v5080 = vshrl.u32 %v5079, 7
    %v5081 = vsub.s32 %v3951, %v5080
    %v5082 = vrot.slane %v3794, %v5081
    %v5083 = vsel %vm3956, %v5082, %v5078
    %v5084 = vlaneseq
    %v5085 = vshrl.u32 %v5084, 7
    %v5086 = vsub.s32 %v3958, %v5085
    %v5087 = vrot.slane %v3795, %v5086
    %v5088 = vsel %vm3963, %v5087, %v5083
    %v5089 = vlaneseq
    %v5090 = vshrl.u32 %v5089, 7
    %v5091 = vsub.s32 %v3965, %v5090
    %v5092 = vrot.slane %v3796, %v5091
    %v5093 = vsel %vm3970, %v5092, %v5088
    %v5094 = vlaneseq
    %v5095 = vshrl.u32 %v5094, 7
    %v5096 = vsub.s32 %v3972, %v5095
    %v5097 = vrot.slane %v3797, %v5096
    %v5098 = vsel %vm3977, %v5097, %v5093
    %v5099 = vlaneseq
    %v5100 = vshrl.u32 %v5099, 7
    %v5101 = vsub.s32 %v3979, %v5100
    %v5102 = vrot.slane %v3798, %v5101
    %v5103 = vsel %vm3984, %v5102, %v5098
    %v5104 = vlaneseq
    %v5105 = vshrl.u32 %v5104, 7
    %v5106 = vsub.s32 %v3986, %v5105
    %v5107 = vrot.slane %v3799, %v5106
    %v5108 = vsel %vm3991, %v5107, %v5103
    %v5109 = vlaneseq
    %v5110 = vshrl.u32 %v5109, 7
    %v5111 = vsub.s32 %v3993, %v5110
    %v5112 = vrot.slane %v3800, %v5111
    %v5113 = vsel %vm3998, %v5112, %v5108
    %v5114 = vlaneseq
    %v5115 = vshrl.u32 %v5114, 7
    %v5116 = vsub.s32 %v4000, %v5115
    %v5117 = vrot.slane %v3801, %v5116
    %v5118 = vsel %vm4005, %v5117, %v5113
    %v5119 = vlaneseq
    %v5120 = vshrl.u32 %v5119, 7
    %v5121 = vsub.s32 %v4007, %v5120
    %v5122 = vrot.slane %v3802, %v5121
    %v5123 = vsel %vm4012, %v5122, %v5118
    %v5124 = vlaneseq
    %v5125 = vshrl.u32 %v5124, 7
    %v5126 = vsub.s32 %v4014, %v5125
    %v5127 = vrot.slane %v3803, %v5126
    %v5128 = vsel %vm4019, %v5127, %v5123
    %v5129 = vlaneseq
    %v5130 = vshrl.u32 %v5129, 7
    %v5131 = vsub.s32 %v4021, %v5130
    %v5132 = vrot.slane %v3804, %v5131
    %v5133 = vsel %vm4026, %v5132, %v5128
    %v5134 = vlaneseq
    %v5135 = vshrl.u32 %v5134, 7
    %v5136 = vsub.s32 %v3918, %v5135
    %v5137 = vrot.slane %v3805, %v5136
    %v5138 = vlaneseq
    %v5139 = vshrl.u32 %v5138, 7
    %v5140 = vsub.s32 %v3923, %v5139
    %v5141 = vrot.slane %v3806, %v5140
    %v5142 = vsel %vm3928, %v5141, %v5137
    %v5143 = vlaneseq
    %v5144 = vshrl.u32 %v5143, 7
    %v5145 = vsub.s32 %v3930, %v5144
    %v5146 = vrot.slane %v3807, %v5145
    %v5147 = vsel %vm3935, %v5146, %v5142
    %v5148 = vlaneseq
    %v5149 = vshrl.u32 %v5148, 7
    %v5150 = vsub.s32 %v3937, %v5149
    %v5151 = vrot.slane %v3808, %v5150
    %v5152 = vsel %vm3942, %v5151, %v5147
    %v5153 = vlaneseq
    %v5154 = vshrl.u32 %v5153, 7
    %v5155 = vsub.s32 %v3944, %v5154
    %v5156 = vrot.slane %v3809, %v5155
    %v5157 = vsel %vm3949, %v5156, %v5152
    %v5158 = vlaneseq
    %v5159 = vshrl.u32 %v5158, 7
    %v5160 = vsub.s32 %v3951, %v5159
    %v5161 = vrot.slane %v3810, %v5160
    %v5162 = vsel %vm3956, %v5161, %v5157
    %v5163 = vlaneseq
    %v5164 = vshrl.u32 %v5163, 7
    %v5165 = vsub.s32 %v3958, %v5164
    %v5166 = vrot.slane %v3811, %v5165
    %v5167 = vsel %vm3963, %v5166, %v5162
    %v5168 = vlaneseq
    %v5169 = vshrl.u32 %v5168, 7
    %v5170 = vsub.s32 %v3965, %v5169
    %v5171 = vrot.slane %v3812, %v5170
    %v5172 = vsel %vm3970, %v5171, %v5167
    %v5173 = vlaneseq
    %v5174 = vshrl.u32 %v5173, 7
    %v5175 = vsub.s32 %v3972, %v5174
    %v5176 = vrot.slane %v3813, %v5175
    %v5177 = vsel %vm3977, %v5176, %v5172
    %v5178 = vlaneseq
    %v5179 = vshrl.u32 %v5178, 7
    %v5180 = vsub.s32 %v3979, %v5179
    %v5181 = vrot.slane %v3814, %v5180
    %v5182 = vsel %vm3984, %v5181, %v5177
    %v5183 = vlaneseq
    %v5184 = vshrl.u32 %v5183, 7
    %v5185 = vsub.s32 %v3986, %v5184
    %v5186 = vrot.slane %v3815, %v5185
    %v5187 = vsel %vm3991, %v5186, %v5182
    %v5188 = vlaneseq
    %v5189 = vshrl.u32 %v5188, 7
    %v5190 = vsub.s32 %v3993, %v5189
    %v5191 = vrot.slane %v3816, %v5190
    %v5192 = vsel %vm3998, %v5191, %v5187
    %v5193 = vlaneseq
    %v5194 = vshrl.u32 %v5193, 7
    %v5195 = vsub.s32 %v4000, %v5194
    %v5196 = vrot.slane %v3817, %v5195
    %v5197 = vsel %vm4005, %v5196, %v5192
    %v5198 = vlaneseq
    %v5199 = vshrl.u32 %v5198, 7
    %v5200 = vsub.s32 %v4007, %v5199
    %v5201 = vrot.slane %v3818, %v5200
    %v5202 = vsel %vm4012, %v5201, %v5197
    %v5203 = vlaneseq
    %v5204 = vshrl.u32 %v5203, 7
    %v5205 = vsub.s32 %v4014, %v5204
    %v5206 = vrot.slane %v3819, %v5205
    %v5207 = vsel %vm4019, %v5206, %v5202
    %v5208 = vlaneseq
    %v5209 = vshrl.u32 %v5208, 7
    %v5210 = vsub.s32 %v4021, %v5209
    %v5211 = vrot.slane %v3820, %v5210
    %v5212 = vsel %vm4026, %v5211, %v5207
    %v5213 = vlaneseq
    %v5214 = vshrl.u32 %v5213, 7
    %v5215 = vsub.s32 %v3918, %v5214
    %v5216 = vrot.slane %v3821, %v5215
    %v5217 = vlaneseq
    %v5218 = vshrl.u32 %v5217, 7
    %v5219 = vsub.s32 %v3923, %v5218
    %v5220 = vrot.slane %v3822, %v5219
    %v5221 = vsel %vm3928, %v5220, %v5216
    %v5222 = vlaneseq
    %v5223 = vshrl.u32 %v5222, 7
    %v5224 = vsub.s32 %v3930, %v5223
    %v5225 = vrot.slane %v3823, %v5224
    %v5226 = vsel %vm3935, %v5225, %v5221
    %v5227 = vlaneseq
    %v5228 = vshrl.u32 %v5227, 7
    %v5229 = vsub.s32 %v3937, %v5228
    %v5230 = vrot.slane %v3824, %v5229
    %v5231 = vsel %vm3942, %v5230, %v5226
    %v5232 = vlaneseq
    %v5233 = vshrl.u32 %v5232, 7
    %v5234 = vsub.s32 %v3944, %v5233
    %v5235 = vrot.slane %v3825, %v5234
    %v5236 = vsel %vm3949, %v5235, %v5231
    %v5237 = vlaneseq
    %v5238 = vshrl.u32 %v5237, 7
    %v5239 = vsub.s32 %v3951, %v5238
    %v5240 = vrot.slane %v3826, %v5239
    %v5241 = vsel %vm3956, %v5240, %v5236
    %v5242 = vlaneseq
    %v5243 = vshrl.u32 %v5242, 7
    %v5244 = vsub.s32 %v3958, %v5243
    %v5245 = vrot.slane %v3827, %v5244
    %v5246 = vsel %vm3963, %v5245, %v5241
    %v5247 = vlaneseq
    %v5248 = vshrl.u32 %v5247, 7
    %v5249 = vsub.s32 %v3965, %v5248
    %v5250 = vrot.slane %v3828, %v5249
    %v5251 = vsel %vm3970, %v5250, %v5246
    %v5252 = vlaneseq
    %v5253 = vshrl.u32 %v5252, 7
    %v5254 = vsub.s32 %v3972, %v5253
    %v5255 = vrot.slane %v3829, %v5254
    %v5256 = vsel %vm3977, %v5255, %v5251
    %v5257 = vlaneseq
    %v5258 = vshrl.u32 %v5257, 7
    %v5259 = vsub.s32 %v3979, %v5258
    %v5260 = vrot.slane %v3830, %v5259
    %v5261 = vsel %vm3984, %v5260, %v5256
    %v5262 = vlaneseq
    %v5263 = vshrl.u32 %v5262, 7
    %v5264 = vsub.s32 %v3986, %v5263
    %v5265 = vrot.slane %v3831, %v5264
    %v5266 = vsel %vm3991, %v5265, %v5261
    %v5267 = vlaneseq
    %v5268 = vshrl.u32 %v5267, 7
    %v5269 = vsub.s32 %v3993, %v5268
    %v5270 = vrot.slane %v3832, %v5269
    %v5271 = vsel %vm3998, %v5270, %v5266
    %v5272 = vlaneseq
    %v5273 = vshrl.u32 %v5272, 7
    %v5274 = vsub.s32 %v4000, %v5273
    %v5275 = vrot.slane %v3833, %v5274
    %v5276 = vsel %vm4005, %v5275, %v5271
    %v5277 = vlaneseq
    %v5278 = vshrl.u32 %v5277, 7
    %v5279 = vsub.s32 %v4007, %v5278
    %v5280 = vrot.slane %v3834, %v5279
    %v5281 = vsel %vm4012, %v5280, %v5276
    %v5282 = vlaneseq
    %v5283 = vshrl.u32 %v5282, 7
    %v5284 = vsub.s32 %v4014, %v5283
    %v5285 = vrot.slane %v3835, %v5284
    %v5286 = vsel %vm4019, %v5285, %v5281
    %v5287 = vlaneseq
    %v5288 = vshrl.u32 %v5287, 7
    %v5289 = vsub.s32 %v4021, %v5288
    %v5290 = vrot.slane %v3836, %v5289
    %v5291 = vsel %vm4026, %v5290, %v5286
    %v5292 = vlaneseq
    %v5293 = vshrl.u32 %v5292, 7
    %v5294 = vsub.s32 %v3918, %v5293
    %v5295 = vrot.slane %v3837, %v5294
    %v5296 = vlaneseq
    %v5297 = vshrl.u32 %v5296, 7
    %v5298 = vsub.s32 %v3923, %v5297
    %v5299 = vrot.slane %v3838, %v5298
    %v5300 = vsel %vm3928, %v5299, %v5295
    %v5301 = vlaneseq
    %v5302 = vshrl.u32 %v5301, 7
    %v5303 = vsub.s32 %v3930, %v5302
    %v5304 = vrot.slane %v3839, %v5303
    %v5305 = vsel %vm3935, %v5304, %v5300
    %v5306 = vlaneseq
    %v5307 = vshrl.u32 %v5306, 7
    %v5308 = vsub.s32 %v3937, %v5307
    %v5309 = vrot.slane %v3840, %v5308
    %v5310 = vsel %vm3942, %v5309, %v5305
    %v5311 = vlaneseq
    %v5312 = vshrl.u32 %v5311, 7
    %v5313 = vsub.s32 %v3944, %v5312
    %v5314 = vrot.slane %v3841, %v5313
    %v5315 = vsel %vm3949, %v5314, %v5310
    %v5316 = vlaneseq
    %v5317 = vshrl.u32 %v5316, 7
    %v5318 = vsub.s32 %v3951, %v5317
    %v5319 = vrot.slane %v3842, %v5318
    %v5320 = vsel %vm3956, %v5319, %v5315
    %v5321 = vlaneseq
    %v5322 = vshrl.u32 %v5321, 7
    %v5323 = vsub.s32 %v3958, %v5322
    %v5324 = vrot.slane %v3843, %v5323
    %v5325 = vsel %vm3963, %v5324, %v5320
    %v5326 = vlaneseq
    %v5327 = vshrl.u32 %v5326, 7
    %v5328 = vsub.s32 %v3965, %v5327
    %v5329 = vrot.slane %v3844, %v5328
    %v5330 = vsel %vm3970, %v5329, %v5325
    %v5331 = vlaneseq
    %v5332 = vshrl.u32 %v5331, 7
    %v5333 = vsub.s32 %v3972, %v5332
    %v5334 = vrot.slane %v3845, %v5333
    %v5335 = vsel %vm3977, %v5334, %v5330
    %v5336 = vlaneseq
    %v5337 = vshrl.u32 %v5336, 7
    %v5338 = vsub.s32 %v3979, %v5337
    %v5339 = vrot.slane %v3846, %v5338
    %v5340 = vsel %vm3984, %v5339, %v5335
    %v5341 = vlaneseq
    %v5342 = vshrl.u32 %v5341, 7
    %v5343 = vsub.s32 %v3986, %v5342
    %v5344 = vrot.slane %v3847, %v5343
    %v5345 = vsel %vm3991, %v5344, %v5340
    %v5346 = vlaneseq
    %v5347 = vshrl.u32 %v5346, 7
    %v5348 = vsub.s32 %v3993, %v5347
    %v5349 = vrot.slane %v3848, %v5348
    %v5350 = vsel %vm3998, %v5349, %v5345
    %v5351 = vlaneseq
    %v5352 = vshrl.u32 %v5351, 7
    %v5353 = vsub.s32 %v4000, %v5352
    %v5354 = vrot.slane %v3849, %v5353
    %v5355 = vsel %vm4005, %v5354, %v5350
    %v5356 = vlaneseq
    %v5357 = vshrl.u32 %v5356, 7
    %v5358 = vsub.s32 %v4007, %v5357
    %v5359 = vrot.slane %v3850, %v5358
    %v5360 = vsel %vm4012, %v5359, %v5355
    %v5361 = vlaneseq
    %v5362 = vshrl.u32 %v5361, 7
    %v5363 = vsub.s32 %v4014, %v5362
    %v5364 = vrot.slane %v3851, %v5363
    %v5365 = vsel %vm4019, %v5364, %v5360
    %v5366 = vlaneseq
    %v5367 = vshrl.u32 %v5366, 7
    %v5368 = vsub.s32 %v4021, %v5367
    %v5369 = vrot.slane %v3852, %v5368
    %v5370 = vsel %vm4026, %v5369, %v5365
    %v5371 = vlaneseq
    %v5372 = vshrl.u32 %v5371, 7
    %v5373 = vsub.s32 %v3918, %v5372
    %v5374 = vrot.slane %v3853, %v5373
    %v5375 = vlaneseq
    %v5376 = vshrl.u32 %v5375, 7
    %v5377 = vsub.s32 %v3923, %v5376
    %v5378 = vrot.slane %v3854, %v5377
    %v5379 = vsel %vm3928, %v5378, %v5374
    %v5380 = vlaneseq
    %v5381 = vshrl.u32 %v5380, 7
    %v5382 = vsub.s32 %v3930, %v5381
    %v5383 = vrot.slane %v3855, %v5382
    %v5384 = vsel %vm3935, %v5383, %v5379
    %v5385 = vlaneseq
    %v5386 = vshrl.u32 %v5385, 7
    %v5387 = vsub.s32 %v3937, %v5386
    %v5388 = vrot.slane %v3856, %v5387
    %v5389 = vsel %vm3942, %v5388, %v5384
    %v5390 = vlaneseq
    %v5391 = vshrl.u32 %v5390, 7
    %v5392 = vsub.s32 %v3944, %v5391
    %v5393 = vrot.slane %v3857, %v5392
    %v5394 = vsel %vm3949, %v5393, %v5389
    %v5395 = vlaneseq
    %v5396 = vshrl.u32 %v5395, 7
    %v5397 = vsub.s32 %v3951, %v5396
    %v5398 = vrot.slane %v3858, %v5397
    %v5399 = vsel %vm3956, %v5398, %v5394
    %v5400 = vlaneseq
    %v5401 = vshrl.u32 %v5400, 7
    %v5402 = vsub.s32 %v3958, %v5401
    %v5403 = vrot.slane %v3859, %v5402
    %v5404 = vsel %vm3963, %v5403, %v5399
    %v5405 = vlaneseq
    %v5406 = vshrl.u32 %v5405, 7
    %v5407 = vsub.s32 %v3965, %v5406
    %v5408 = vrot.slane %v3860, %v5407
    %v5409 = vsel %vm3970, %v5408, %v5404
    %v5410 = vlaneseq
    %v5411 = vshrl.u32 %v5410, 7
    %v5412 = vsub.s32 %v3972, %v5411
    %v5413 = vrot.slane %v3861, %v5412
    %v5414 = vsel %vm3977, %v5413, %v5409
    %v5415 = vlaneseq
    %v5416 = vshrl.u32 %v5415, 7
    %v5417 = vsub.s32 %v3979, %v5416
    %v5418 = vrot.slane %v3862, %v5417
    %v5419 = vsel %vm3984, %v5418, %v5414
    %v5420 = vlaneseq
    %v5421 = vshrl.u32 %v5420, 7
    %v5422 = vsub.s32 %v3986, %v5421
    %v5423 = vrot.slane %v3863, %v5422
    %v5424 = vsel %vm3991, %v5423, %v5419
    %v5425 = vlaneseq
    %v5426 = vshrl.u32 %v5425, 7
    %v5427 = vsub.s32 %v3993, %v5426
    %v5428 = vrot.slane %v3864, %v5427
    %v5429 = vsel %vm3998, %v5428, %v5424
    %v5430 = vlaneseq
    %v5431 = vshrl.u32 %v5430, 7
    %v5432 = vsub.s32 %v4000, %v5431
    %v5433 = vrot.slane %v3865, %v5432
    %v5434 = vsel %vm4005, %v5433, %v5429
    %v5435 = vlaneseq
    %v5436 = vshrl.u32 %v5435, 7
    %v5437 = vsub.s32 %v4007, %v5436
    %v5438 = vrot.slane %v3866, %v5437
    %v5439 = vsel %vm4012, %v5438, %v5434
    %v5440 = vlaneseq
    %v5441 = vshrl.u32 %v5440, 7
    %v5442 = vsub.s32 %v4014, %v5441
    %v5443 = vrot.slane %v3867, %v5442
    %v5444 = vsel %vm4019, %v5443, %v5439
    %v5445 = vlaneseq
    %v5446 = vshrl.u32 %v5445, 7
    %v5447 = vsub.s32 %v4021, %v5446
    %v5448 = vrot.slane %v3868, %v5447
    %v5449 = vsel %vm4026, %v5448, %v5444
    %v5450 = vlaneseq
    %v5451 = vshrl.u32 %v5450, 7
    %v5452 = vsub.s32 %v3918, %v5451
    %v5453 = vrot.slane %v3869, %v5452
    %v5454 = vlaneseq
    %v5455 = vshrl.u32 %v5454, 7
    %v5456 = vsub.s32 %v3923, %v5455
    %v5457 = vrot.slane %v3870, %v5456
    %v5458 = vsel %vm3928, %v5457, %v5453
    %v5459 = vlaneseq
    %v5460 = vshrl.u32 %v5459, 7
    %v5461 = vsub.s32 %v3930, %v5460
    %v5462 = vrot.slane %v3871, %v5461
    %v5463 = vsel %vm3935, %v5462, %v5458
    %v5464 = vlaneseq
    %v5465 = vshrl.u32 %v5464, 7
    %v5466 = vsub.s32 %v3937, %v5465
    %v5467 = vrot.slane %v3872, %v5466
    %v5468 = vsel %vm3942, %v5467, %v5463
    %v5469 = vlaneseq
    %v5470 = vshrl.u32 %v5469, 7
    %v5471 = vsub.s32 %v3944, %v5470
    %v5472 = vrot.slane %v3873, %v5471
    %v5473 = vsel %vm3949, %v5472, %v5468
    %v5474 = vlaneseq
    %v5475 = vshrl.u32 %v5474, 7
    %v5476 = vsub.s32 %v3951, %v5475
    %v5477 = vrot.slane %v3874, %v5476
    %v5478 = vsel %vm3956, %v5477, %v5473
    %v5479 = vlaneseq
    %v5480 = vshrl.u32 %v5479, 7
    %v5481 = vsub.s32 %v3958, %v5480
    %v5482 = vrot.slane %v3875, %v5481
    %v5483 = vsel %vm3963, %v5482, %v5478
    %v5484 = vlaneseq
    %v5485 = vshrl.u32 %v5484, 7
    %v5486 = vsub.s32 %v3965, %v5485
    %v5487 = vrot.slane %v3876, %v5486
    %v5488 = vsel %vm3970, %v5487, %v5483
    %v5489 = vlaneseq
    %v5490 = vshrl.u32 %v5489, 7
    %v5491 = vsub.s32 %v3972, %v5490
    %v5492 = vrot.slane %v3877, %v5491
    %v5493 = vsel %vm3977, %v5492, %v5488
    %v5494 = vlaneseq
    %v5495 = vshrl.u32 %v5494, 7
    %v5496 = vsub.s32 %v3979, %v5495
    %v5497 = vrot.slane %v3878, %v5496
    %v5498 = vsel %vm3984, %v5497, %v5493
    %v5499 = vlaneseq
    %v5500 = vshrl.u32 %v5499, 7
    %v5501 = vsub.s32 %v3986, %v5500
    %v5502 = vrot.slane %v3879, %v5501
    %v5503 = vsel %vm3991, %v5502, %v5498
    %v5504 = vlaneseq
    %v5505 = vshrl.u32 %v5504, 7
    %v5506 = vsub.s32 %v3993, %v5505
    %v5507 = vrot.slane %v3880, %v5506
    %v5508 = vsel %vm3998, %v5507, %v5503
    %v5509 = vlaneseq
    %v5510 = vshrl.u32 %v5509, 7
    %v5511 = vsub.s32 %v4000, %v5510
    %v5512 = vrot.slane %v3881, %v5511
    %v5513 = vsel %vm4005, %v5512, %v5508
    %v5514 = vlaneseq
    %v5515 = vshrl.u32 %v5514, 7
    %v5516 = vsub.s32 %v4007, %v5515
    %v5517 = vrot.slane %v3882, %v5516
    %v5518 = vsel %vm4012, %v5517, %v5513
    %v5519 = vlaneseq
    %v5520 = vshrl.u32 %v5519, 7
    %v5521 = vsub.s32 %v4014, %v5520
    %v5522 = vrot.slane %v3883, %v5521
    %v5523 = vsel %vm4019, %v5522, %v5518
    %v5524 = vlaneseq
    %v5525 = vshrl.u32 %v5524, 7
    %v5526 = vsub.s32 %v4021, %v5525
    %v5527 = vrot.slane %v3884, %v5526
    %v5528 = vsel %vm4026, %v5527, %v5523
    %v5529 = vlaneseq
    %v5530 = vshrl.u32 %v5529, 7
    %v5531 = vsub.s32 %v3918, %v5530
    %v5532 = vrot.slane %v3885, %v5531
    %v5533 = vlaneseq
    %v5534 = vshrl.u32 %v5533, 7
    %v5535 = vsub.s32 %v3923, %v5534
    %v5536 = vrot.slane %v3886, %v5535
    %v5537 = vsel %vm3928, %v5536, %v5532
    %v5538 = vlaneseq
    %v5539 = vshrl.u32 %v5538, 7
    %v5540 = vsub.s32 %v3930, %v5539
    %v5541 = vrot.slane %v3887, %v5540
    %v5542 = vsel %vm3935, %v5541, %v5537
    %v5543 = vlaneseq
    %v5544 = vshrl.u32 %v5543, 7
    %v5545 = vsub.s32 %v3937, %v5544
    %v5546 = vrot.slane %v3888, %v5545
    %v5547 = vsel %vm3942, %v5546, %v5542
    %v5548 = vlaneseq
    %v5549 = vshrl.u32 %v5548, 7
    %v5550 = vsub.s32 %v3944, %v5549
    %v5551 = vrot.slane %v3889, %v5550
    %v5552 = vsel %vm3949, %v5551, %v5547
    %v5553 = vlaneseq
    %v5554 = vshrl.u32 %v5553, 7
    %v5555 = vsub.s32 %v3951, %v5554
    %v5556 = vrot.slane %v3890, %v5555
    %v5557 = vsel %vm3956, %v5556, %v5552
    %v5558 = vlaneseq
    %v5559 = vshrl.u32 %v5558, 7
    %v5560 = vsub.s32 %v3958, %v5559
    %v5561 = vrot.slane %v3891, %v5560
    %v5562 = vsel %vm3963, %v5561, %v5557
    %v5563 = vlaneseq
    %v5564 = vshrl.u32 %v5563, 7
    %v5565 = vsub.s32 %v3965, %v5564
    %v5566 = vrot.slane %v3892, %v5565
    %v5567 = vsel %vm3970, %v5566, %v5562
    %v5568 = vlaneseq
    %v5569 = vshrl.u32 %v5568, 7
    %v5570 = vsub.s32 %v3972, %v5569
    %v5571 = vrot.slane %v3893, %v5570
    %v5572 = vsel %vm3977, %v5571, %v5567
    %v5573 = vlaneseq
    %v5574 = vshrl.u32 %v5573, 7
    %v5575 = vsub.s32 %v3979, %v5574
    %v5576 = vrot.slane %v3894, %v5575
    %v5577 = vsel %vm3984, %v5576, %v5572
    %v5578 = vlaneseq
    %v5579 = vshrl.u32 %v5578, 7
    %v5580 = vsub.s32 %v3986, %v5579
    %v5581 = vrot.slane %v3895, %v5580
    %v5582 = vsel %vm3991, %v5581, %v5577
    %v5583 = vlaneseq
    %v5584 = vshrl.u32 %v5583, 7
    %v5585 = vsub.s32 %v3993, %v5584
    %v5586 = vrot.slane %v3896, %v5585
    %v5587 = vsel %vm3998, %v5586, %v5582
    %v5588 = vlaneseq
    %v5589 = vshrl.u32 %v5588, 7
    %v5590 = vsub.s32 %v4000, %v5589
    %v5591 = vrot.slane %v3897, %v5590
    %v5592 = vsel %vm4005, %v5591, %v5587
    %v5593 = vlaneseq
    %v5594 = vshrl.u32 %v5593, 7
    %v5595 = vsub.s32 %v4007, %v5594
    %v5596 = vrot.slane %v3898, %v5595
    %v5597 = vsel %vm4012, %v5596, %v5592
    %v5598 = vlaneseq
    %v5599 = vshrl.u32 %v5598, 7
    %v5600 = vsub.s32 %v4014, %v5599
    %v5601 = vrot.slane %v3899, %v5600
    %v5602 = vsel %vm4019, %v5601, %v5597
    %v5603 = vlaneseq
    %v5604 = vshrl.u32 %v5603, 7
    %v5605 = vsub.s32 %v4021, %v5604
    %v5606 = vrot.slane %v3900, %v5605
    %v5607 = vsel %vm4026, %v5606, %v5602
    %v5608 = vlaneseq
    %v5609 = vshrl.u32 %v5608, 7
    %v5610 = vsub.s32 %v3918, %v5609
    %v5611 = vrot.slane %v3901, %v5610
    %v5612 = vlaneseq
    %v5613 = vshrl.u32 %v5612, 7
    %v5614 = vsub.s32 %v3923, %v5613
    %v5615 = vrot.slane %v3902, %v5614
    %v5616 = vsel %vm3928, %v5615, %v5611
    %v5617 = vlaneseq
    %v5618 = vshrl.u32 %v5617, 7
    %v5619 = vsub.s32 %v3930, %v5618
    %v5620 = vrot.slane %v3903, %v5619
    %v5621 = vsel %vm3935, %v5620, %v5616
    %v5622 = vlaneseq
    %v5623 = vshrl.u32 %v5622, 7
    %v5624 = vsub.s32 %v3937, %v5623
    %v5625 = vrot.slane %v3904, %v5624
    %v5626 = vsel %vm3942, %v5625, %v5621
    %v5627 = vlaneseq
    %v5628 = vshrl.u32 %v5627, 7
    %v5629 = vsub.s32 %v3944, %v5628
    %v5630 = vrot.slane %v3905, %v5629
    %v5631 = vsel %vm3949, %v5630, %v5626
    %v5632 = vlaneseq
    %v5633 = vshrl.u32 %v5632, 7
    %v5634 = vsub.s32 %v3951, %v5633
    %v5635 = vrot.slane %v3906, %v5634
    %v5636 = vsel %vm3956, %v5635, %v5631
    %v5637 = vlaneseq
    %v5638 = vshrl.u32 %v5637, 7
    %v5639 = vsub.s32 %v3958, %v5638
    %v5640 = vrot.slane %v3907, %v5639
    %v5641 = vsel %vm3963, %v5640, %v5636
    %v5642 = vlaneseq
    %v5643 = vshrl.u32 %v5642, 7
    %v5644 = vsub.s32 %v3965, %v5643
    %v5645 = vrot.slane %v3908, %v5644
    %v5646 = vsel %vm3970, %v5645, %v5641
    %v5647 = vlaneseq
    %v5648 = vshrl.u32 %v5647, 7
    %v5649 = vsub.s32 %v3972, %v5648
    %v5650 = vrot.slane %v3909, %v5649
    %v5651 = vsel %vm3977, %v5650, %v5646
    %v5652 = vlaneseq
    %v5653 = vshrl.u32 %v5652, 7
    %v5654 = vsub.s32 %v3979, %v5653
    %v5655 = vrot.slane %v3910, %v5654
    %v5656 = vsel %vm3984, %v5655, %v5651
    %v5657 = vlaneseq
    %v5658 = vshrl.u32 %v5657, 7
    %v5659 = vsub.s32 %v3986, %v5658
    %v5660 = vrot.slane %v3911, %v5659
    %v5661 = vsel %vm3991, %v5660, %v5656
    %v5662 = vlaneseq
    %v5663 = vshrl.u32 %v5662, 7
    %v5664 = vsub.s32 %v3993, %v5663
    %v5665 = vrot.slane %v3912, %v5664
    %v5666 = vsel %vm3998, %v5665, %v5661
    %v5667 = vlaneseq
    %v5668 = vshrl.u32 %v5667, 7
    %v5669 = vsub.s32 %v4000, %v5668
    %v5670 = vrot.slane %v3913, %v5669
    %v5671 = vsel %vm4005, %v5670, %v5666
    %v5672 = vlaneseq
    %v5673 = vshrl.u32 %v5672, 7
    %v5674 = vsub.s32 %v4007, %v5673
    %v5675 = vrot.slane %v3914, %v5674
    %v5676 = vsel %vm4012, %v5675, %v5671
    %v5677 = vlaneseq
    %v5678 = vshrl.u32 %v5677, 7
    %v5679 = vsub.s32 %v4014, %v5678
    %v5680 = vrot.slane %v3915, %v5679
    %v5681 = vsel %vm4019, %v5680, %v5676
    %v5682 = vlaneseq
    %v5683 = vshrl.u32 %v5682, 7
    %v5684 = vsub.s32 %v4021, %v5683
    %v5685 = vrot.slane %v3916, %v5684
    %v5686 = vsel %vm4026, %v5685, %v5681
    %vm5687 = vcmask 1041409
    %v5688 = vsel %vm5687, %v4896, %v4027
    %v5689 = vsel %vm5687, %v4975, %v4106
    %v5690 = vsel %vm5687, %v5054, %v4185
    %v5691 = vsel %vm5687, %v5133, %v4264
    %v5692 = vsel %vm5687, %v5212, %v4343
    %v5693 = vsel %vm5687, %v5291, %v4422
    %v5694 = vsel %vm5687, %v5370, %v4501
    %v5695 = vsel %vm5687, %v5449, %v4580
    %v5696 = vsel %vm5687, %v5528, %v4659
    %v5697 = vsel %vm5687, %v5607, %v4738
    %v5698 = vsel %vm5687, %v5686, %v4817
    %v5699 = vpack.c.b16 %v5688, %v5688
    %v5700 = vpack.c.b16 %v5689, %v5689
    %v5701 = vpack.c.b16 %v5690, %v5690
    %v5702 = vpack.c.b16 %v5691, %v5691
    %v5703 = vpack.c.b16 %v5692, %v5692
    %v5704 = vpack.c.b16 %v5693, %v5693
    %v5705 = vpack.c.b16 %v5694, %v5694
    %v5706 = vpack.c.b16 %v5695, %v5695
    %v5707 = vpack.c.b16 %v5696, %v5696
    %v5708 = vpack.c.b16 %v5697, %v5697
    %v5709 = vpack.c.b16 %v5698, %v5698
    %v6073 = vunpack.c.l.b16 %v3015
    %v6074 = vunpack.c.h.b16 %v3015
    %v6075 = vunpack.c.l.b16 %v3016
    %v6076 = vunpack.c.h.b16 %v3016
    %v6077 = vunpack.c.l.b16 %v3017
    %v6078 = vunpack.c.h.b16 %v3017
    %v6079 = vunpack.c.l.b16 %v3018
    %v6080 = vunpack.c.h.b16 %v3018
    %v6081 = vunpack.c.l.b16 %v3019
    %v6082 = vunpack.c.h.b16 %v3019
    %v6083 = vunpack.c.l.b16 %v3020
    %v6084 = vunpack.c.h.b16 %v3020
    %v6085 = vunpack.c.l.b16 %v3021
    %v6086 = vunpack.c.h.b16 %v3021
    %v6087 = vunpack.c.l.b16 %v3022
    %v6088 = vunpack.c.h.b16 %v3022
    %v6089 = vunpack.c.l.b16 %v3023
    %v6090 = vunpack.c.h.b16 %v3023
    %v6091 = vunpack.c.l.b16 %v3024
    %v6092 = vunpack.c.h.b16 %v3024
    %v6093 = vunpack.c.l.b16 %v3025
    %v6094 = vunpack.c.h.b16 %v3025
    %v6095 = vunpack.c.l.b16 %v3026
    %v6096 = vunpack.c.h.b16 %v3026
    %v6097 = vunpack.c.l.b16 %v3027
    %v6098 = vunpack.c.h.b16 %v3027
    %v6099 = vunpack.c.l.b16 %v3028
    %v6100 = vunpack.c.h.b16 %v3028
    %v6101 = vunpack.c.l.b16 %v3029
    %v6102 = vunpack.c.h.b16 %v3029
    %v6103 = vunpack.c.l.b16 %v3030
    %v6104 = vunpack.c.h.b16 %v3030
    %v6105 = vunpack.c.l.b16 %v3031
    %v6106 = vunpack.c.h.b16 %v3031
    %v6107 = vunpack.c.l.b16 %v3032
    %v6108 = vunpack.c.h.b16 %v3032
    %v6109 = vunpack.c.l.b16 %v3033
    %v6110 = vunpack.c.h.b16 %v3033
    %v6111 = vunpack.c.l.b16 %v3034
    %v6112 = vunpack.c.h.b16 %v3034
    %v6113 = vunpack.c.l.b16 %v3035
    %v6114 = vunpack.c.h.b16 %v3035
    %v6115 = vunpack.c.l.b16 %v3036
    %v6116 = vunpack.c.h.b16 %v3036
    %v6117 = vunpack.c.l.b16 %v3037
    %v6118 = vunpack.c.h.b16 %v3037
    %v6119 = vunpack.c.l.b16 %v3038
    %v6120 = vunpack.c.h.b16 %v3038
    %v6121 = vunpack.c.l.b16 %v3039
    %v6122 = vunpack.c.h.b16 %v3039
    %v6123 = vunpack.c.l.b16 %v3040
    %v6124 = vunpack.c.h.b16 %v3040
    %v6125 = vunpack.c.l.b16 %v3041
    %v6126 = vunpack.c.h.b16 %v3041
    %v6127 = vunpack.c.l.b16 %v3042
    %v6128 = vunpack.c.h.b16 %v3042
    %v6129 = vunpack.c.l.b16 %v3043
    %v6130 = vunpack.c.h.b16 %v3043
    %v6131 = vunpack.c.l.b16 %v3044
    %v6132 = vunpack.c.h.b16 %v3044
    %v6133 = vunpack.c.l.b16 %v3045
    %v6134 = vunpack.c.h.b16 %v3045
    %v6135 = vunpack.c.l.b16 %v3046
    %v6136 = vunpack.c.h.b16 %v3046
    %v6137 = vunpack.c.l.b16 %v3047
    %v6138 = vunpack.c.h.b16 %v3047
    %v6139 = vunpack.c.l.b16 %v3048
    %v6140 = vunpack.c.h.b16 %v3048
    %v6141 = vunpack.c.l.b16 %v3049
    %v6142 = vunpack.c.h.b16 %v3049
    %v6143 = vunpack.c.l.b16 %v3050
    %v6144 = vunpack.c.h.b16 %v3050
    %v6145 = vunpack.c.l.b16 %v3051
    %v6146 = vunpack.c.h.b16 %v3051
    %v6147 = vunpack.c.l.b16 %v3052
    %v6148 = vunpack.c.h.b16 %v3052
    %v6149 = vunpack.c.l.b16 %v3053
    %v6150 = vunpack.c.h.b16 %v3053
    %v6151 = vunpack.c.l.b16 %v3054
    %v6152 = vunpack.c.h.b16 %v3054
    %v6153 = vunpack.c.l.b16 %v3055
    %v6154 = vunpack.c.h.b16 %v3055
    %v6155 = vunpack.c.l.b16 %v3056
    %v6156 = vunpack.c.h.b16 %v3056
    %v6157 = vunpack.c.l.b16 %v3057
    %v6158 = vunpack.c.h.b16 %v3057
    %v6159 = vunpack.c.l.b16 %v3058
    %v6160 = vunpack.c.h.b16 %v3058
    %v6161 = vunpack.c.l.b16 %v3059
    %v6162 = vunpack.c.h.b16 %v3059
    %v6163 = vunpack.c.l.b16 %v3060
    %v6164 = vunpack.c.h.b16 %v3060
    %v6165 = vunpack.c.l.b16 %v3061
    %v6166 = vunpack.c.h.b16 %v3061
    %v6167 = vunpack.c.l.b16 %v3062
    %v6168 = vunpack.c.h.b16 %v3062
    %v6169 = vunpack.c.l.b16 %v3063
    %v6170 = vunpack.c.h.b16 %v3063
    %v6171 = vunpack.c.l.b16 %v3064
    %v6172 = vunpack.c.h.b16 %v3064
    %v6173 = vunpack.c.l.b16 %v3065
    %v6174 = vunpack.c.h.b16 %v3065
    %v6175 = vunpack.c.l.b16 %v3066
    %v6176 = vunpack.c.h.b16 %v3066
    %v6177 = vunpack.c.l.b16 %v3067
    %v6178 = vunpack.c.h.b16 %v3067
    %v6179 = vunpack.c.l.b16 %v3068
    %v6180 = vunpack.c.h.b16 %v3068
    %v6181 = vunpack.c.l.b16 %v3069
    %v6182 = vunpack.c.h.b16 %v3069
    %v6183 = vunpack.c.l.b16 %v3070
    %v6184 = vunpack.c.h.b16 %v3070
    %v6185 = vunpack.c.l.b16 %v3071
    %v6186 = vunpack.c.h.b16 %v3071
    %v6187 = vunpack.c.l.b16 %v3072
    %v6188 = vunpack.c.h.b16 %v3072
    %v6189 = vunpack.c.l.b16 %v3073
    %v6190 = vunpack.c.h.b16 %v3073
    %v6191 = vunpack.c.l.b16 %v3074
    %v6192 = vunpack.c.h.b16 %v3074
    %v6193 = vunpack.c.l.b16 %v3075
    %v6194 = vunpack.c.h.b16 %v3075
    %v6195 = vunpack.c.l.b16 %v3076
    %v6196 = vunpack.c.h.b16 %v3076
    %v6197 = vunpack.c.l.b16 %v3077
    %v6198 = vunpack.c.h.b16 %v3077
    %v6199 = vunpack.c.l.b16 %v3078
    %v6200 = vunpack.c.h.b16 %v3078
    %v6201 = vunpack.c.l.b16 %v3079
    %v6202 = vunpack.c.h.b16 %v3079
    %v6203 = vunpack.c.l.b16 %v3080
    %v6204 = vunpack.c.h.b16 %v3080
    %v6205 = vunpack.c.l.b16 %v3081
    %v6206 = vunpack.c.h.b16 %v3081
    %v6207 = vunpack.c.l.b16 %v3082
    %v6208 = vunpack.c.h.b16 %v3082
    %v6209 = vunpack.c.l.b16 %v3083
    %v6210 = vunpack.c.h.b16 %v3083
    %v6211 = vunpack.c.l.b16 %v3084
    %v6212 = vunpack.c.h.b16 %v3084
    %v6213 = vunpack.c.l.b16 %v3085
    %v6214 = vunpack.c.h.b16 %v3085
    %v6215 = vunpack.c.l.b16 %v3086
    %v6216 = vunpack.c.h.b16 %v3086
    %v6217 = vunpack.c.l.b16 %v3087
    %v6218 = vunpack.c.h.b16 %v3087
    %v6219 = vunpack.c.l.b16 %v3088
    %v6220 = vunpack.c.h.b16 %v3088
    %v6221 = vunpack.c.l.b16 %v3089
    %v6222 = vunpack.c.h.b16 %v3089
    %v6223 = vunpack.c.l.b16 %v3090
    %v6224 = vunpack.c.h.b16 %v3090
    %v6225 = vunpack.c.l.b16 %v3091
    %v6226 = vunpack.c.h.b16 %v3091
    %v6227 = vunpack.c.l.b16 %v3092
    %v6228 = vunpack.c.h.b16 %v3092
    %v6229 = vunpack.c.l.b16 %v3093
    %v6230 = vunpack.c.h.b16 %v3093
    %v6231 = vunpack.c.l.b16 %v3094
    %v6232 = vunpack.c.h.b16 %v3094
    %v6233 = vunpack.c.l.b16 %v3095
    %v6234 = vunpack.c.h.b16 %v3095
    %v6235 = vunpack.c.l.b16 %v3096
    %v6236 = vunpack.c.h.b16 %v3096
    %v6237 = vunpack.c.l.b16 %v3097
    %v6238 = vunpack.c.h.b16 %v3097
    %v6239 = vunpack.c.l.b16 %v3098
    %v6240 = vunpack.c.h.b16 %v3098
    %v6241 = vunpack.c.l.b16 %v3099
    %v6242 = vunpack.c.h.b16 %v3099
    %v6243 = vunpack.c.l.b16 %v3100
    %v6244 = vunpack.c.h.b16 %v3100
    %v6245 = vunpack.c.l.b16 %v3101
    %v6246 = vunpack.c.h.b16 %v3101
    %v6247 = vunpack.c.l.b16 %v3102
    %v6248 = vunpack.c.h.b16 %v3102
    %v6249 = vunpack.c.l.b16 %v3103
    %v6250 = vunpack.c.h.b16 %v3103
    %v6251 = vunpack.c.l.b16 %v3104
    %v6252 = vunpack.c.h.b16 %v3104
    %v6253 = vunpack.c.l.b16 %v3105
    %v6254 = vunpack.c.h.b16 %v3105
    %v6255 = vunpack.c.l.b16 %v3106
    %v6256 = vunpack.c.h.b16 %v3106
    %v6257 = vunpack.c.l.b16 %v3107
    %v6258 = vunpack.c.h.b16 %v3107
    %v6259 = vunpack.c.l.b16 %v3108
    %v6260 = vunpack.c.h.b16 %v3108
    %v6261 = vunpack.c.l.b16 %v3109
    %v6262 = vunpack.c.h.b16 %v3109
    %v6263 = vunpack.c.l.b16 %v3110
    %v6264 = vunpack.c.h.b16 %v3110
    %v6265 = vunpack.c.l.b16 %v3111
    %v6266 = vunpack.c.h.b16 %v3111
    %v6267 = vunpack.c.l.b16 %v3112
    %v6268 = vunpack.c.h.b16 %v3112
    %v6269 = vunpack.c.l.b16 %v3113
    %v6270 = vunpack.c.h.b16 %v3113
    %v6271 = vunpack.c.l.b16 %v3114
    %v6272 = vunpack.c.h.b16 %v3114
    %v6273 = vunpack.c.l.b16 %v3115
    %v6274 = vunpack.c.h.b16 %v3115
    %v6275 = vunpack.c.l.b16 %v3116
    %v6276 = vunpack.c.h.b16 %v3116
    %v6277 = vunpack.c.l.b16 %v3117
    %v6278 = vunpack.c.h.b16 %v3117
    %v6279 = vunpack.c.l.b16 %v3118
    %v6280 = vunpack.c.h.b16 %v3118
    %v6281 = vunpack.c.l.b16 %v3119
    %v6282 = vunpack.c.h.b16 %v3119
    %v6283 = vunpack.c.l.b16 %v3120
    %v6284 = vunpack.c.h.b16 %v3120
    %v6285 = vunpack.c.l.b16 %v3121
    %v6286 = vunpack.c.h.b16 %v3121
    %v6287 = vunpack.c.l.b16 %v3122
    %v6288 = vunpack.c.h.b16 %v3122
    %v6289 = vunpack.c.l.b16 %v3123
    %v6290 = vunpack.c.h.b16 %v3123
    %v6291 = vunpack.c.l.b16 %v3124
    %v6292 = vunpack.c.h.b16 %v3124
    %v6293 = vunpack.c.l.b16 %v3125
    %v6294 = vunpack.c.h.b16 %v3125
    %v6295 = vunpack.c.l.b16 %v3126
    %v6296 = vunpack.c.h.b16 %v3126
    %v6297 = vunpack.c.l.b16 %v3127
    %v6298 = vunpack.c.h.b16 %v3127
    %v6299 = vunpack.c.l.b16 %v3128
    %v6300 = vunpack.c.h.b16 %v3128
    %v6301 = vunpack.c.l.b16 %v3129
    %v6302 = vunpack.c.h.b16 %v3129
    %v6303 = vunpack.c.l.b16 %v3130
    %v6304 = vunpack.c.h.b16 %v3130
    %v6305 = vunpack.c.l.b16 %v3131
    %v6306 = vunpack.c.h.b16 %v3131
    %v6307 = vunpack.c.l.b16 %v3132
    %v6308 = vunpack.c.h.b16 %v3132
    %v6309 = vunpack.c.l.b16 %v3133
    %v6310 = vunpack.c.h.b16 %v3133
    %v6311 = vunpack.c.l.b16 %v3134
    %v6312 = vunpack.c.h.b16 %v3134
    %v6313 = vunpack.c.l.b16 %v3135
    %v6314 = vunpack.c.h.b16 %v3135
    %v6315 = vunpack.c.l.b16 %v3136
    %v6316 = vunpack.c.h.b16 %v3136
    %v6317 = vunpack.c.l.b16 %v3137
    %v6318 = vunpack.c.h.b16 %v3137
    %v6319 = vunpack.c.l.b16 %v3138
    %v6320 = vunpack.c.h.b16 %v3138
    %v6321 = vunpack.c.l.b16 %v3139
    %v6322 = vunpack.c.h.b16 %v3139
    %v6323 = vunpack.c.l.b16 %v3140
    %v6324 = vunpack.c.h.b16 %v3140
    %v6325 = vunpack.c.l.b16 %v3141
    %v6326 = vunpack.c.h.b16 %v3141
    %v6327 = vunpack.c.l.b16 %v3142
    %v6328 = vunpack.c.h.b16 %v3142
    %v6329 = vunpack.c.l.b16 %v3143
    %v6330 = vunpack.c.h.b16 %v3143
    %v6331 = vunpack.c.l.b16 %v3144
    %v6332 = vunpack.c.h.b16 %v3144
    %v6333 = vunpack.c.l.b16 %v3145
    %v6334 = vunpack.c.h.b16 %v3145
    %v6335 = vunpack.c.l.b16 %v3146
    %v6336 = vunpack.c.h.b16 %v3146
    %v6337 = vunpack.c.l.b16 %v3147
    %v6338 = vunpack.c.h.b16 %v3147
    %v6339 = vunpack.c.l.b16 %v3148
    %v6340 = vunpack.c.h.b16 %v3148
    %v6341 = vunpack.c.l.b16 %v3149
    %v6342 = vunpack.c.h.b16 %v3149
    %v6343 = vunpack.c.l.b16 %v3150
    %v6344 = vunpack.c.h.b16 %v3150
    %v6345 = vunpack.c.l.b16 %v3151
    %v6346 = vunpack.c.h.b16 %v3151
    %v6347 = vunpack.c.l.b16 %v3152
    %v6348 = vunpack.c.h.b16 %v3152
    %v6349 = vunpack.c.l.b16 %v3153
    %v6350 = vunpack.c.h.b16 %v3153
    %v6351 = vunpack.c.l.b16 %v3154
    %v6352 = vunpack.c.h.b16 %v3154
    %v6353 = vunpack.c.l.b16 %v3155
    %v6354 = vunpack.c.h.b16 %v3155
    %v6355 = vunpack.c.l.b16 %v3156
    %v6356 = vunpack.c.h.b16 %v3156
    %v6357 = vunpack.c.l.b16 %v3157
    %v6358 = vunpack.c.h.b16 %v3157
    %v6359 = vunpack.c.l.b16 %v3158
    %v6360 = vunpack.c.h.b16 %v3158
    %v6361 = vunpack.c.l.b16 %v3159
    %v6362 = vunpack.c.h.b16 %v3159
    %v6363 = vunpack.c.l.b16 %v3160
    %v6364 = vunpack.c.h.b16 %v3160
    %v6365 = vunpack.c.l.b16 %v3161
    %v6366 = vunpack.c.h.b16 %v3161
    %v6367 = vunpack.c.l.b16 %v3162
    %v6368 = vunpack.c.h.b16 %v3162
    %v6369 = vunpack.c.l.b16 %v3163
    %v6370 = vunpack.c.h.b16 %v3163
    %v6371 = vunpack.c.l.b16 %v3164
    %v6372 = vunpack.c.h.b16 %v3164
    %v6373 = vunpack.c.l.b16 %v3165
    %v6374 = vunpack.c.h.b16 %v3165
    %v6375 = vunpack.c.l.b16 %v3166
    %v6376 = vunpack.c.h.b16 %v3166
    %v6377 = vunpack.c.l.b16 %v3167
    %v6378 = vunpack.c.h.b16 %v3167
    %v6379 = vunpack.c.l.b16 %v3168
    %v6380 = vunpack.c.h.b16 %v3168
    %v6381 = vunpack.c.l.b16 %v3169
    %v6382 = vunpack.c.h.b16 %v3169
    %v6383 = vunpack.c.l.b16 %v3170
    %v6384 = vunpack.c.h.b16 %v3170
    %v6385 = vunpack.c.l.b16 %v3171
    %v6386 = vunpack.c.h.b16 %v3171
    %v6387 = vunpack.c.l.b16 %v3172
    %v6388 = vunpack.c.h.b16 %v3172
    %v6389 = vunpack.c.l.b16 %v3173
    %v6390 = vunpack.c.h.b16 %v3173
    %v6391 = vunpack.c.l.b16 %v3174
    %v6392 = vunpack.c.h.b16 %v3174
    %v6393 = vunpack.c.l.b16 %v3175
    %v6394 = vunpack.c.h.b16 %v3175
    %v6395 = vunpack.c.l.b16 %v3176
    %v6396 = vunpack.c.h.b16 %v3176
    %v6397 = vunpack.c.l.b16 %v3177
    %v6398 = vunpack.c.h.b16 %v3177
    %v6399 = vunpack.c.l.b16 %v3178
    %v6400 = vunpack.c.h.b16 %v3178
    %v6401 = vunpack.c.l.b16 %v3179
    %v6402 = vunpack.c.h.b16 %v3179
    %v6403 = vunpack.c.l.b16 %v3180
    %v6404 = vunpack.c.h.b16 %v3180
    %v6405 = vunpack.c.l.b16 %v3181
    %v6406 = vunpack.c.h.b16 %v3181
    %v6407 = vunpack.c.l.b16 %v3182
    %v6408 = vunpack.c.h.b16 %v3182
    %v6409 = vunpack.c.l.b16 %v3183
    %v6410 = vunpack.c.h.b16 %v3183
    %v6411 = vunpack.c.l.b16 %v3184
    %v6412 = vunpack.c.h.b16 %v3184
    %v6413 = vunpack.c.l.b16 %v3185
    %v6414 = vunpack.c.h.b16 %v3185
    %v6415 = vunpack.c.l.b16 %v3186
    %v6416 = vunpack.c.h.b16 %v3186
    %v6417 = vunpack.c.l.b16 %v3187
    %v6418 = vunpack.c.h.b16 %v3187
    %v6419 = vunpack.c.l.b16 %v3188
    %v6420 = vunpack.c.h.b16 %v3188
    %v6421 = vunpack.c.l.b16 %v3189
    %v6422 = vunpack.c.h.b16 %v3189
    %v6423 = vunpack.c.l.b16 %v3190
    %v6424 = vunpack.c.h.b16 %v3190
    %v6425 = vunpack.c.l.b16 %v3191
    %v6426 = vunpack.c.h.b16 %v3191
    %v6427 = vunpack.c.l.b16 %v3192
    %v6428 = vunpack.c.h.b16 %v3192
    %v6429 = vunpack.c.l.b16 %v3193
    %v6430 = vunpack.c.h.b16 %v3193
    %v6431 = vunpack.c.l.b16 %v3194
    %v6432 = vunpack.c.h.b16 %v3194
    %v6433 = vunpack.c.l.b16 %v3195
    %v6434 = vunpack.c.h.b16 %v3195
    %v6435 = vunpack.c.l.b16 %v3196
    %v6436 = vunpack.c.h.b16 %v3196
    %v6437 = vunpack.c.l.b16 %v3197
    %v6438 = vunpack.c.h.b16 %v3197
    %v6439 = vunpack.c.l.b16 %v3198
    %v6440 = vunpack.c.h.b16 %v3198
    %v6441 = vunpack.c.l.b16 %v3199
    %v6442 = vunpack.c.h.b16 %v3199
    %v6443 = vunpack.c.l.b16 %v3200
    %v6444 = vunpack.c.h.b16 %v3200
    %v6445 = vunpack.c.l.b16 %v3201
    %v6446 = vunpack.c.h.b16 %v3201
    %v6447 = vunpack.c.l.b16 %v3202
    %v6448 = vunpack.c.h.b16 %v3202
    %v6449 = vunpack.c.l.b16 %v3203
    %v6450 = vunpack.c.h.b16 %v3203
    %v6451 = vunpack.c.l.b16 %v3204
    %v6452 = vunpack.c.h.b16 %v3204
    %v6453 = vunpack.c.l.b16 %v3205
    %v6454 = vunpack.c.h.b16 %v3205
    %v6455 = vunpack.c.l.b16 %v3206
    %v6456 = vunpack.c.h.b16 %v3206
    %v6457 = vunpack.c.l.b16 %v3207
    %v6458 = vunpack.c.h.b16 %v3207
    %v6459 = vunpack.c.l.b16 %v3208
    %v6460 = vunpack.c.h.b16 %v3208
    %v6461 = vunpack.c.l.b16 %v3209
    %v6462 = vunpack.c.h.b16 %v3209
    %v6463 = vunpack.c.l.b16 %v3210
    %v6464 = vunpack.c.h.b16 %v3210
    %v6465 = vunpack.c.l.b16 %v3211
    %v6466 = vunpack.c.h.b16 %v3211
    %v6467 = vunpack.c.l.b16 %v3212
    %v6468 = vunpack.c.h.b16 %v3212
    %v6469 = vunpack.c.l.b16 %v3213
    %v6470 = vunpack.c.h.b16 %v3213
    %v6471 = vunpack.c.l.b16 %v3214
    %v6472 = vunpack.c.h.b16 %v3214
    %v6473 = vunpack.c.l.b16 %v3215
    %v6474 = vunpack.c.h.b16 %v3215
    %v6475 = vunpack.c.l.b16 %v3216
    %v6476 = vunpack.c.h.b16 %v3216
    %v6477 = vunpack.c.l.b16 %v3217
    %v6478 = vunpack.c.h.b16 %v3217
    %v6479 = vunpack.c.l.b16 %v3218
    %v6480 = vunpack.c.h.b16 %v3218
    %v6481 = vunpack.c.l.b16 %v3219
    %v6482 = vunpack.c.h.b16 %v3219
    %v6483 = vunpack.c.l.b16 %v3220
    %v6484 = vunpack.c.h.b16 %v3220
    %v6485 = vunpack.c.l.b16 %v3221
    %v6486 = vunpack.c.h.b16 %v3221
    %v6487 = vunpack.c.l.b16 %v3222
    %v6488 = vunpack.c.h.b16 %v3222
    %v6489 = vunpack.c.l.b16 %v3223
    %v6490 = vunpack.c.h.b16 %v3223
    %v6491 = vunpack.c.l.b16 %v3224
    %v6492 = vunpack.c.h.b16 %v3224
    %v6493 = vunpack.c.l.b16 %v3225
    %v6494 = vunpack.c.h.b16 %v3225
    %v6495 = vunpack.c.l.b16 %v3226
    %v6496 = vunpack.c.h.b16 %v3226
    %v6497 = vunpack.c.l.b16 %v3227
    %v6498 = vunpack.c.h.b16 %v3227
    %v6499 = vunpack.c.l.b16 %v3228
    %v6500 = vunpack.c.h.b16 %v3228
    %v6501 = vunpack.c.l.b16 %v3229
    %v6502 = vunpack.c.h.b16 %v3229
    %v6503 = vunpack.c.l.b16 %v3230
    %v6504 = vunpack.c.h.b16 %v3230
    %v6505 = vunpack.c.l.b16 %v3231
    %v6506 = vunpack.c.h.b16 %v3231
    %v6507 = vunpack.c.l.b16 %v3232
    %v6508 = vunpack.c.h.b16 %v3232
    %v6509 = vunpack.c.l.b16 %v3233
    %v6510 = vunpack.c.h.b16 %v3233
    %v6511 = vunpack.c.l.b16 %v3234
    %v6512 = vunpack.c.h.b16 %v3234
    %v6513 = vunpack.c.l.b16 %v3235
    %v6514 = vunpack.c.h.b16 %v3235
    %v6515 = vunpack.c.l.b16 %v3236
    %v6516 = vunpack.c.h.b16 %v3236
    %v6517 = vunpack.c.l.b16 %v3237
    %v6518 = vunpack.c.h.b16 %v3237
    %v6519 = vunpack.c.l.b16 %v3238
    %v6520 = vunpack.c.h.b16 %v3238
    %v6521 = vunpack.c.l.b16 %v3239
    %v6522 = vunpack.c.h.b16 %v3239
    %v6523 = vunpack.c.l.b16 %v3240
    %v6524 = vunpack.c.h.b16 %v3240
    %v6525 = vunpack.c.l.b16 %v3241
    %v6526 = vunpack.c.h.b16 %v3241
    %v6527 = vunpack.c.l.b16 %v3242
    %v6528 = vunpack.c.h.b16 %v3242
    %v6529 = vunpack.c.l.b16 %v3243
    %v6530 = vunpack.c.h.b16 %v3243
    %v6531 = vunpack.c.l.b16 %v3244
    %v6532 = vunpack.c.h.b16 %v3244
    %v6533 = vunpack.c.l.b16 %v3245
    %v6534 = vunpack.c.h.b16 %v3245
    %v6535 = vunpack.c.l.b16 %v3246
    %v6536 = vunpack.c.h.b16 %v3246
    %v6537 = vunpack.c.l.b16 %v3247
    %v6538 = vunpack.c.h.b16 %v3247
    %v6539 = vunpack.c.l.b16 %v3248
    %v6540 = vunpack.c.h.b16 %v3248
    %v6541 = vunpack.c.l.b16 %v3249
    %v6542 = vunpack.c.h.b16 %v3249
    %v6543 = vunpack.c.l.b16 %v3250
    %v6544 = vunpack.c.h.b16 %v3250
    %v6545 = vunpack.c.l.b16 %v3251
    %v6546 = vunpack.c.h.b16 %v3251
    %v6547 = vunpack.c.l.b16 %v3252
    %v6548 = vunpack.c.h.b16 %v3252
    %v6549 = vunpack.c.l.b16 %v3253
    %v6550 = vunpack.c.h.b16 %v3253
    %v6551 = vunpack.c.l.b16 %v3254
    %v6552 = vunpack.c.h.b16 %v3254
    %v6553 = vunpack.c.l.b16 %v3255
    %v6554 = vunpack.c.h.b16 %v3255
    %v6555 = vunpack.c.l.b16 %v3256
    %v6556 = vunpack.c.h.b16 %v3256
    %v6557 = vunpack.c.l.b16 %v3257
    %v6558 = vunpack.c.h.b16 %v3257
    %v6559 = vunpack.c.l.b16 %v3258
    %v6560 = vunpack.c.h.b16 %v3258
    %v6561 = vunpack.c.l.b16 %v3259
    %v6562 = vunpack.c.h.b16 %v3259
    %v6563 = vunpack.c.l.b16 %v3260
    %v6564 = vunpack.c.h.b16 %v3260
    %v6565 = vunpack.c.l.b16 %v3261
    %v6566 = vunpack.c.h.b16 %v3261
    %v6567 = vunpack.c.l.b16 %v3262
    %v6568 = vunpack.c.h.b16 %v3262
    %v6569 = vunpack.c.l.b16 %v3263
    %v6570 = vunpack.c.h.b16 %v3263
    %v6571 = vunpack.c.l.b16 %v3264
    %v6572 = vunpack.c.h.b16 %v3264
    %v6573 = vunpack.c.l.b16 %v3265
    %v6574 = vunpack.c.h.b16 %v3265
    %v6575 = vunpack.c.l.b16 %v3266
    %v6576 = vunpack.c.h.b16 %v3266
    %v6577 = vunpack.c.l.b16 %v3267
    %v6578 = vunpack.c.h.b16 %v3267
    %v6579 = vunpack.c.l.b16 %v3268
    %v6580 = vunpack.c.h.b16 %v3268
    %v6581 = vunpack.c.l.b16 %v3269
    %v6582 = vunpack.c.h.b16 %v3269
    %v6583 = vunpack.c.l.b16 %v3270
    %v6584 = vunpack.c.h.b16 %v3270
    %v6585 = vunpack.c.l.b16 %v3271
    %v6586 = vunpack.c.h.b16 %v3271
    %v6587 = vunpack.c.l.b16 %v3272
    %v6588 = vunpack.c.h.b16 %v3272
    %v6589 = vunpack.c.l.b16 %v3273
    %v6590 = vunpack.c.h.b16 %v3273
    %v6591 = vunpack.c.l.b16 %v3274
    %v6592 = vunpack.c.h.b16 %v3274
    %v6593 = vunpack.c.l.b16 %v3275
    %v6594 = vunpack.c.h.b16 %v3275
    %v6595 = vunpack.c.l.b16 %v3276
    %v6596 = vunpack.c.h.b16 %v3276
    %v6597 = vunpack.c.l.b16 %v3277
    %v6598 = vunpack.c.h.b16 %v3277
    %v6599 = vunpack.c.l.b16 %v3278
    %v6600 = vunpack.c.h.b16 %v3278
    %v6601 = vunpack.c.l.b16 %v3279
    %v6602 = vunpack.c.h.b16 %v3279
    %v6603 = vunpack.c.l.b16 %v3280
    %v6604 = vunpack.c.h.b16 %v3280
    %v6605 = vunpack.c.l.b16 %v3281
    %v6606 = vunpack.c.h.b16 %v3281
    %v6607 = vunpack.c.l.b16 %v3282
    %v6608 = vunpack.c.h.b16 %v3282
    %v6609 = vunpack.c.l.b16 %v3283
    %v6610 = vunpack.c.h.b16 %v3283
    %v6611 = vunpack.c.l.b16 %v3284
    %v6612 = vunpack.c.h.b16 %v3284
    %v6613 = vunpack.c.l.b16 %v3285
    %v6614 = vunpack.c.h.b16 %v3285
    %v6615 = vunpack.c.l.b16 %v3286
    %v6616 = vunpack.c.h.b16 %v3286
    %v6617 = vunpack.c.l.b16 %v3287
    %v6618 = vunpack.c.h.b16 %v3287
    %v6619 = vunpack.c.l.b16 %v3288
    %v6620 = vunpack.c.h.b16 %v3288
    %v6621 = vunpack.c.l.b16 %v3289
    %v6622 = vunpack.c.h.b16 %v3289
    %v6623 = vunpack.c.l.b16 %v3290
    %v6624 = vunpack.c.h.b16 %v3290
    %v6625 = vunpack.c.l.b16 %v3291
    %v6626 = vunpack.c.h.b16 %v3291
    %v6627 = vunpack.c.l.b16 %v3292
    %v6628 = vunpack.c.h.b16 %v3292
    %v6629 = vunpack.c.l.b16 %v3293
    %v6630 = vunpack.c.h.b16 %v3293
    %v6631 = vunpack.c.l.b16 %v3294
    %v6632 = vunpack.c.h.b16 %v3294
    %v6633 = vunpack.c.l.b16 %v3295
    %v6634 = vunpack.c.h.b16 %v3295
    %v6635 = vunpack.c.l.b16 %v3296
    %v6636 = vunpack.c.h.b16 %v3296
    %v6637 = vunpack.c.l.b16 %v3297
    %v6638 = vunpack.c.h.b16 %v3297
    %v6639 = vunpack.c.l.b16 %v3298
    %v6640 = vunpack.c.h.b16 %v3298
    %v6641 = vunpack.c.l.b16 %v3299
    %v6642 = vunpack.c.h.b16 %v3299
    %v6643 = vunpack.c.l.b16 %v3300
    %v6644 = vunpack.c.h.b16 %v3300
    %v6645 = vunpack.c.l.b16 %v3301
    %v6646 = vunpack.c.h.b16 %v3301
    %v6647 = vunpack.c.l.b16 %v3302
    %v6648 = vunpack.c.h.b16 %v3302
    %v6649 = vunpack.c.l.b16 %v3303
    %v6650 = vunpack.c.h.b16 %v3303
    %v6651 = vunpack.c.l.b16 %v3304
    %v6652 = vunpack.c.h.b16 %v3304
    %v6653 = vunpack.c.l.b16 %v3305
    %v6654 = vunpack.c.h.b16 %v3305
    %v6655 = vunpack.c.l.b16 %v3306
    %v6656 = vunpack.c.h.b16 %v3306
    %v6657 = vunpack.c.l.b16 %v3307
    %v6658 = vunpack.c.h.b16 %v3307
    %v6659 = vunpack.c.l.b16 %v3308
    %v6660 = vunpack.c.h.b16 %v3308
    %v6661 = vunpack.c.l.b16 %v3309
    %v6662 = vunpack.c.h.b16 %v3309
    %v6663 = vunpack.c.l.b16 %v3310
    %v6664 = vunpack.c.h.b16 %v3310
    %v6665 = vunpack.c.l.b16 %v3311
    %v6666 = vunpack.c.h.b16 %v3311
    %v6667 = vunpack.c.l.b16 %v3312
    %v6668 = vunpack.c.h.b16 %v3312
    %v6669 = vunpack.c.l.b16 %v3313
    %v6670 = vunpack.c.h.b16 %v3313
    %v6671 = vunpack.c.l.b16 %v3314
    %v6672 = vunpack.c.h.b16 %v3314
    %v6673 = vunpack.c.l.b16 %v3315
    %v6674 = vunpack.c.h.b16 %v3315
    %v6675 = vunpack.c.l.b16 %v3316
    %v6676 = vunpack.c.h.b16 %v3316
    %v6677 = vunpack.c.l.b16 %v3317
    %v6678 = vunpack.c.h.b16 %v3317
    %v6679 = vunpack.c.l.b16 %v3318
    %v6680 = vunpack.c.h.b16 %v3318
    %v6681 = vunpack.c.l.b16 %v3319
    %v6682 = vunpack.c.h.b16 %v3319
    %v6683 = vunpack.c.l.b16 %v3320
    %v6684 = vunpack.c.h.b16 %v3320
    %v6685 = vunpack.c.l.b16 %v3321
    %v6686 = vunpack.c.h.b16 %v3321
    %v6687 = vunpack.c.l.b16 %v3322
    %v6688 = vunpack.c.h.b16 %v3322
    %v6689 = vunpack.c.l.b16 %v3323
    %v6690 = vunpack.c.h.b16 %v3323
    %v6691 = vunpack.c.l.b16 %v3324
    %v6692 = vunpack.c.h.b16 %v3324
    %v6693 = vunpack.c.l.b16 %v3325
    %v6694 = vunpack.c.h.b16 %v3325
    %v6695 = vunpack.c.l.b16 %v3326
    %v6696 = vunpack.c.h.b16 %v3326
    %v6697 = vunpack.c.l.b16 %v3327
    %v6698 = vunpack.c.h.b16 %v3327
    %v6699 = vunpack.c.l.b16 %v3328
    %v6700 = vunpack.c.h.b16 %v3328
    %v6701 = vunpack.c.l.b16 %v3329
    %v6702 = vunpack.c.h.b16 %v3329
    %v6703 = vunpack.c.l.b16 %v3330
    %v6704 = vunpack.c.h.b16 %v3330
    %v6705 = vunpack.c.l.b16 %v3331
    %v6706 = vunpack.c.h.b16 %v3331
    %v6707 = vunpack.c.l.b16 %v3332
    %v6708 = vunpack.c.h.b16 %v3332
    %v6709 = vunpack.c.l.b16 %v3333
    %v6710 = vunpack.c.h.b16 %v3333
    %v6711 = vunpack.c.l.b16 %v3334
    %v6712 = vunpack.c.h.b16 %v3334
    %v6713 = vunpack.c.l.b16 %v3335
    %v6714 = vunpack.c.h.b16 %v3335
    %v6715 = vunpack.c.l.b16 %v3336
    %v6716 = vunpack.c.h.b16 %v3336
    %v6717 = vunpack.c.l.b16 %v3337
    %v6718 = vunpack.c.h.b16 %v3337
    %v6719 = vunpack.c.l.b16 %v3338
    %v6720 = vunpack.c.h.b16 %v3338
    %v6721 = vunpack.c.l.b16 %v3339
    %v6722 = vunpack.c.h.b16 %v3339
    %v6723 = vunpack.c.l.b16 %v3340
    %v6724 = vunpack.c.h.b16 %v3340
    %v6725 = vunpack.c.l.b16 %v3341
    %v6726 = vunpack.c.h.b16 %v3341
    %v6727 = vunpack.c.l.b16 %v3342
    %v6728 = vunpack.c.h.b16 %v3342
    %v6729 = vunpack.c.l.b16 %v3343
    %v6730 = vunpack.c.h.b16 %v3343
    %v6731 = vunpack.c.l.b16 %v3344
    %v6732 = vunpack.c.h.b16 %v3344
    %v6733 = vunpack.c.l.b16 %v3345
    %v6734 = vunpack.c.h.b16 %v3345
    %v6735 = vunpack.c.l.b16 %v3346
    %v6736 = vunpack.c.h.b16 %v3346
    %v6737 = vunpack.c.l.b16 %v3347
    %v6738 = vunpack.c.h.b16 %v3347
    %v6739 = vunpack.c.l.b16 %v3348
    %v6740 = vunpack.c.h.b16 %v3348
    %v6741 = vunpack.c.l.b16 %v3349
    %v6742 = vunpack.c.h.b16 %v3349
    %v6743 = vunpack.c.l.b16 %v3350
    %v6744 = vunpack.c.h.b16 %v3350
    %v6745 = vunpack.c.l.b16 %v3351
    %v6746 = vunpack.c.h.b16 %v3351
    %v6747 = vunpack.c.l.b16 %v3352
    %v6748 = vunpack.c.h.b16 %v3352
    %v6749 = vunpack.c.l.b16 %v3353
    %v6750 = vunpack.c.h.b16 %v3353
    %v6751 = vunpack.c.l.b16 %v3354
    %v6752 = vunpack.c.h.b16 %v3354
    %v6753 = vunpack.c.l.b16 %v3355
    %v6754 = vunpack.c.h.b16 %v3355
    %v6755 = vunpack.c.l.b16 %v3356
    %v6756 = vunpack.c.h.b16 %v3356
    %v6757 = vunpack.c.l.b16 %v3357
    %v6758 = vunpack.c.h.b16 %v3357
    %v6759 = vunpack.c.l.b16 %v3358
    %v6760 = vunpack.c.h.b16 %v3358
    %v6761 = vunpack.c.l.b16 %v3359
    %v6762 = vunpack.c.h.b16 %v3359
    %v6763 = vunpack.c.l.b16 %v3360
    %v6764 = vunpack.c.h.b16 %v3360
    %v6765 = vunpack.c.l.b16 %v3361
    %v6766 = vunpack.c.h.b16 %v3361
    %v6767 = vunpack.c.l.b16 %v3362
    %v6768 = vunpack.c.h.b16 %v3362
    %v6769 = vunpack.c.l.b16 %v3363
    %v6770 = vunpack.c.h.b16 %v3363
    %v6771 = vunpack.c.l.b16 %v3364
    %v6772 = vunpack.c.h.b16 %v3364
    %v6773 = vunpack.c.l.b16 %v3365
    %v6774 = vunpack.c.h.b16 %v3365
    %v6775 = vunpack.c.l.b16 %v3366
    %v6776 = vunpack.c.h.b16 %v3366
    %v6777 = vpack.c.b16 %v6077, %v6073
    %v6778 = vpack.c.b16 %v6078, %v6074
    %v6779 = vpack.c.b16 %v6079, %v6075
    %v6780 = vpack.c.b16 %v6080, %v6076
    %v6781 = vpack.c.b16 %v6085, %v6081
    %v6782 = vpack.c.b16 %v6086, %v6082
    %v6783 = vpack.c.b16 %v6087, %v6083
    %v6784 = vpack.c.b16 %v6088, %v6084
    %v6785 = vpack.c.b16 %v6093, %v6089
    %v6786 = vpack.c.b16 %v6094, %v6090
    %v6787 = vpack.c.b16 %v6095, %v6091
    %v6788 = vpack.c.b16 %v6096, %v6092
    %v6789 = vpack.c.b16 %v6101, %v6097
    %v6790 = vpack.c.b16 %v6102, %v6098
    %v6791 = vpack.c.b16 %v6103, %v6099
    %v6792 = vpack.c.b16 %v6104, %v6100
    %v6793 = vpack.c.b16 %v6109, %v6105
    %v6794 = vpack.c.b16 %v6110, %v6106
    %v6795 = vpack.c.b16 %v6111, %v6107
    %v6796 = vpack.c.b16 %v6112, %v6108
    %v6797 = vpack.c.b16 %v6117, %v6113
    %v6798 = vpack.c.b16 %v6118, %v6114
    %v6799 = vpack.c.b16 %v6119, %v6115
    %v6800 = vpack.c.b16 %v6120, %v6116
    %v6801 = vpack.c.b16 %v6125, %v6121
    %v6802 = vpack.c.b16 %v6126, %v6122
    %v6803 = vpack.c.b16 %v6127, %v6123
    %v6804 = vpack.c.b16 %v6128, %v6124
    %v6805 = vpack.c.b16 %v6133, %v6129
    %v6806 = vpack.c.b16 %v6134, %v6130
    %v6807 = vpack.c.b16 %v6135, %v6131
    %v6808 = vpack.c.b16 %v6136, %v6132
    %v6809 = vpack.c.b16 %v6141, %v6137
    %v6810 = vpack.c.b16 %v6142, %v6138
    %v6811 = vpack.c.b16 %v6143, %v6139
    %v6812 = vpack.c.b16 %v6144, %v6140
    %v6813 = vpack.c.b16 %v6149, %v6145
    %v6814 = vpack.c.b16 %v6150, %v6146
    %v6815 = vpack.c.b16 %v6151, %v6147
    %v6816 = vpack.c.b16 %v6152, %v6148
    %v6817 = vpack.c.b16 %v6157, %v6153
    %v6818 = vpack.c.b16 %v6158, %v6154
    %v6819 = vpack.c.b16 %v6159, %v6155
    %v6820 = vpack.c.b16 %v6160, %v6156
    %v6821 = vpack.c.b16 %v6165, %v6161
    %v6822 = vpack.c.b16 %v6166, %v6162
    %v6823 = vpack.c.b16 %v6167, %v6163
    %v6824 = vpack.c.b16 %v6168, %v6164
    %v6825 = vpack.c.b16 %v6173, %v6169
    %v6826 = vpack.c.b16 %v6174, %v6170
    %v6827 = vpack.c.b16 %v6175, %v6171
    %v6828 = vpack.c.b16 %v6176, %v6172
    %v6829 = vpack.c.b16 %v6181, %v6177
    %v6830 = vpack.c.b16 %v6182, %v6178
    %v6831 = vpack.c.b16 %v6183, %v6179
    %v6832 = vpack.c.b16 %v6184, %v6180
    %v6833 = vpack.c.b16 %v6189, %v6185
    %v6834 = vpack.c.b16 %v6190, %v6186
    %v6835 = vpack.c.b16 %v6191, %v6187
    %v6836 = vpack.c.b16 %v6192, %v6188
    %v6837 = vpack.c.b16 %v6197, %v6193
    %v6838 = vpack.c.b16 %v6198, %v6194
    %v6839 = vpack.c.b16 %v6199, %v6195
    %v6840 = vpack.c.b16 %v6200, %v6196
    %v6841 = vpack.c.b16 %v6205, %v6201
    %v6842 = vpack.c.b16 %v6206, %v6202
    %v6843 = vpack.c.b16 %v6207, %v6203
    %v6844 = vpack.c.b16 %v6208, %v6204
    %v6845 = vpack.c.b16 %v6213, %v6209
    %v6846 = vpack.c.b16 %v6214, %v6210
    %v6847 = vpack.c.b16 %v6215, %v6211
    %v6848 = vpack.c.b16 %v6216, %v6212
    %v6849 = vpack.c.b16 %v6221, %v6217
    %v6850 = vpack.c.b16 %v6222, %v6218
    %v6851 = vpack.c.b16 %v6223, %v6219
    %v6852 = vpack.c.b16 %v6224, %v6220
    %v6853 = vpack.c.b16 %v6229, %v6225
    %v6854 = vpack.c.b16 %v6230, %v6226
    %v6855 = vpack.c.b16 %v6231, %v6227
    %v6856 = vpack.c.b16 %v6232, %v6228
    %v6857 = vpack.c.b16 %v6237, %v6233
    %v6858 = vpack.c.b16 %v6238, %v6234
    %v6859 = vpack.c.b16 %v6239, %v6235
    %v6860 = vpack.c.b16 %v6240, %v6236
    %v6861 = vpack.c.b16 %v6245, %v6241
    %v6862 = vpack.c.b16 %v6246, %v6242
    %v6863 = vpack.c.b16 %v6247, %v6243
    %v6864 = vpack.c.b16 %v6248, %v6244
    %v6865 = vpack.c.b16 %v6253, %v6249
    %v6866 = vpack.c.b16 %v6254, %v6250
    %v6867 = vpack.c.b16 %v6255, %v6251
    %v6868 = vpack.c.b16 %v6256, %v6252
    %v6869 = vpack.c.b16 %v6261, %v6257
    %v6870 = vpack.c.b16 %v6262, %v6258
    %v6871 = vpack.c.b16 %v6263, %v6259
    %v6872 = vpack.c.b16 %v6264, %v6260
    %v6873 = vpack.c.b16 %v6269, %v6265
    %v6874 = vpack.c.b16 %v6270, %v6266
    %v6875 = vpack.c.b16 %v6271, %v6267
    %v6876 = vpack.c.b16 %v6272, %v6268
    %v6877 = vpack.c.b16 %v6277, %v6273
    %v6878 = vpack.c.b16 %v6278, %v6274
    %v6879 = vpack.c.b16 %v6279, %v6275
    %v6880 = vpack.c.b16 %v6280, %v6276
    %v6881 = vpack.c.b16 %v6285, %v6281
    %v6882 = vpack.c.b16 %v6286, %v6282
    %v6883 = vpack.c.b16 %v6287, %v6283
    %v6884 = vpack.c.b16 %v6288, %v6284
    %v6885 = vpack.c.b16 %v6293, %v6289
    %v6886 = vpack.c.b16 %v6294, %v6290
    %v6887 = vpack.c.b16 %v6295, %v6291
    %v6888 = vpack.c.b16 %v6296, %v6292
    %v6889 = vpack.c.b16 %v6301, %v6297
    %v6890 = vpack.c.b16 %v6302, %v6298
    %v6891 = vpack.c.b16 %v6303, %v6299
    %v6892 = vpack.c.b16 %v6304, %v6300
    %v6893 = vpack.c.b16 %v6309, %v6305
    %v6894 = vpack.c.b16 %v6310, %v6306
    %v6895 = vpack.c.b16 %v6311, %v6307
    %v6896 = vpack.c.b16 %v6312, %v6308
    %v6897 = vpack.c.b16 %v6317, %v6313
    %v6898 = vpack.c.b16 %v6318, %v6314
    %v6899 = vpack.c.b16 %v6319, %v6315
    %v6900 = vpack.c.b16 %v6320, %v6316
    %v6901 = vpack.c.b16 %v6325, %v6321
    %v6902 = vpack.c.b16 %v6326, %v6322
    %v6903 = vpack.c.b16 %v6327, %v6323
    %v6904 = vpack.c.b16 %v6328, %v6324
    %v6905 = vpack.c.b16 %v6333, %v6329
    %v6906 = vpack.c.b16 %v6334, %v6330
    %v6907 = vpack.c.b16 %v6335, %v6331
    %v6908 = vpack.c.b16 %v6336, %v6332
    %v6909 = vpack.c.b16 %v6341, %v6337
    %v6910 = vpack.c.b16 %v6342, %v6338
    %v6911 = vpack.c.b16 %v6343, %v6339
    %v6912 = vpack.c.b16 %v6344, %v6340
    %v6913 = vpack.c.b16 %v6349, %v6345
    %v6914 = vpack.c.b16 %v6350, %v6346
    %v6915 = vpack.c.b16 %v6351, %v6347
    %v6916 = vpack.c.b16 %v6352, %v6348
    %v6917 = vpack.c.b16 %v6357, %v6353
    %v6918 = vpack.c.b16 %v6358, %v6354
    %v6919 = vpack.c.b16 %v6359, %v6355
    %v6920 = vpack.c.b16 %v6360, %v6356
    %v6921 = vpack.c.b16 %v6365, %v6361
    %v6922 = vpack.c.b16 %v6366, %v6362
    %v6923 = vpack.c.b16 %v6367, %v6363
    %v6924 = vpack.c.b16 %v6368, %v6364
    %v6925 = vpack.c.b16 %v6373, %v6369
    %v6926 = vpack.c.b16 %v6374, %v6370
    %v6927 = vpack.c.b16 %v6375, %v6371
    %v6928 = vpack.c.b16 %v6376, %v6372
    %v6929 = vpack.c.b16 %v6381, %v6377
    %v6930 = vpack.c.b16 %v6382, %v6378
    %v6931 = vpack.c.b16 %v6383, %v6379
    %v6932 = vpack.c.b16 %v6384, %v6380
    %v6933 = vpack.c.b16 %v6389, %v6385
    %v6934 = vpack.c.b16 %v6390, %v6386
    %v6935 = vpack.c.b16 %v6391, %v6387
    %v6936 = vpack.c.b16 %v6392, %v6388
    %v6937 = vpack.c.b16 %v6397, %v6393
    %v6938 = vpack.c.b16 %v6398, %v6394
    %v6939 = vpack.c.b16 %v6399, %v6395
    %v6940 = vpack.c.b16 %v6400, %v6396
    %v6941 = vpack.c.b16 %v6405, %v6401
    %v6942 = vpack.c.b16 %v6406, %v6402
    %v6943 = vpack.c.b16 %v6407, %v6403
    %v6944 = vpack.c.b16 %v6408, %v6404
    %v6945 = vpack.c.b16 %v6413, %v6409
    %v6946 = vpack.c.b16 %v6414, %v6410
    %v6947 = vpack.c.b16 %v6415, %v6411
    %v6948 = vpack.c.b16 %v6416, %v6412
    %v6949 = vpack.c.b16 %v6421, %v6417
    %v6950 = vpack.c.b16 %v6422, %v6418
    %v6951 = vpack.c.b16 %v6423, %v6419
    %v6952 = vpack.c.b16 %v6424, %v6420
    %v6953 = vpack.c.b16 %v6429, %v6425
    %v6954 = vpack.c.b16 %v6430, %v6426
    %v6955 = vpack.c.b16 %v6431, %v6427
    %v6956 = vpack.c.b16 %v6432, %v6428
    %v6957 = vpack.c.b16 %v6437, %v6433
    %v6958 = vpack.c.b16 %v6438, %v6434
    %v6959 = vpack.c.b16 %v6439, %v6435
    %v6960 = vpack.c.b16 %v6440, %v6436
    %v6961 = vpack.c.b16 %v6445, %v6441
    %v6962 = vpack.c.b16 %v6446, %v6442
    %v6963 = vpack.c.b16 %v6447, %v6443
    %v6964 = vpack.c.b16 %v6448, %v6444
    %v6965 = vpack.c.b16 %v6453, %v6449
    %v6966 = vpack.c.b16 %v6454, %v6450
    %v6967 = vpack.c.b16 %v6455, %v6451
    %v6968 = vpack.c.b16 %v6456, %v6452
    %v6969 = vpack.c.b16 %v6461, %v6457
    %v6970 = vpack.c.b16 %v6462, %v6458
    %v6971 = vpack.c.b16 %v6463, %v6459
    %v6972 = vpack.c.b16 %v6464, %v6460
    %v6973 = vpack.c.b16 %v6469, %v6465
    %v6974 = vpack.c.b16 %v6470, %v6466
    %v6975 = vpack.c.b16 %v6471, %v6467
    %v6976 = vpack.c.b16 %v6472, %v6468
    %v6977 = vpack.c.b16 %v6477, %v6473
    %v6978 = vpack.c.b16 %v6478, %v6474
    %v6979 = vpack.c.b16 %v6479, %v6475
    %v6980 = vpack.c.b16 %v6480, %v6476
    %v6981 = vpack.c.b16 %v6485, %v6481
    %v6982 = vpack.c.b16 %v6486, %v6482
    %v6983 = vpack.c.b16 %v6487, %v6483
    %v6984 = vpack.c.b16 %v6488, %v6484
    %v6985 = vpack.c.b16 %v6493, %v6489
    %v6986 = vpack.c.b16 %v6494, %v6490
    %v6987 = vpack.c.b16 %v6495, %v6491
    %v6988 = vpack.c.b16 %v6496, %v6492
    %v6989 = vpack.c.b16 %v6501, %v6497
    %v6990 = vpack.c.b16 %v6502, %v6498
    %v6991 = vpack.c.b16 %v6503, %v6499
    %v6992 = vpack.c.b16 %v6504, %v6500
    %v6993 = vpack.c.b16 %v6509, %v6505
    %v6994 = vpack.c.b16 %v6510, %v6506
    %v6995 = vpack.c.b16 %v6511, %v6507
    %v6996 = vpack.c.b16 %v6512, %v6508
    %v6997 = vpack.c.b16 %v6517, %v6513
    %v6998 = vpack.c.b16 %v6518, %v6514
    %v6999 = vpack.c.b16 %v6519, %v6515
    %v7000 = vpack.c.b16 %v6520, %v6516
    %v7001 = vpack.c.b16 %v6525, %v6521
    %v7002 = vpack.c.b16 %v6526, %v6522
    %v7003 = vpack.c.b16 %v6527, %v6523
    %v7004 = vpack.c.b16 %v6528, %v6524
    %v7005 = vpack.c.b16 %v6533, %v6529
    %v7006 = vpack.c.b16 %v6534, %v6530
    %v7007 = vpack.c.b16 %v6535, %v6531
    %v7008 = vpack.c.b16 %v6536, %v6532
    %v7009 = vpack.c.b16 %v6541, %v6537
    %v7010 = vpack.c.b16 %v6542, %v6538
    %v7011 = vpack.c.b16 %v6543, %v6539
    %v7012 = vpack.c.b16 %v6544, %v6540
    %v7013 = vpack.c.b16 %v6549, %v6545
    %v7014 = vpack.c.b16 %v6550, %v6546
    %v7015 = vpack.c.b16 %v6551, %v6547
    %v7016 = vpack.c.b16 %v6552, %v6548
    %v7017 = vpack.c.b16 %v6557, %v6553
    %v7018 = vpack.c.b16 %v6558, %v6554
    %v7019 = vpack.c.b16 %v6559, %v6555
    %v7020 = vpack.c.b16 %v6560, %v6556
    %v7021 = vpack.c.b16 %v6565, %v6561
    %v7022 = vpack.c.b16 %v6566, %v6562
    %v7023 = vpack.c.b16 %v6567, %v6563
    %v7024 = vpack.c.b16 %v6568, %v6564
    %v7025 = vpack.c.b16 %v6573, %v6569
    %v7026 = vpack.c.b16 %v6574, %v6570
    %v7027 = vpack.c.b16 %v6575, %v6571
    %v7028 = vpack.c.b16 %v6576, %v6572
    %v7029 = vpack.c.b16 %v6581, %v6577
    %v7030 = vpack.c.b16 %v6582, %v6578
    %v7031 = vpack.c.b16 %v6583, %v6579
    %v7032 = vpack.c.b16 %v6584, %v6580
    %v7033 = vpack.c.b16 %v6589, %v6585
    %v7034 = vpack.c.b16 %v6590, %v6586
    %v7035 = vpack.c.b16 %v6591, %v6587
    %v7036 = vpack.c.b16 %v6592, %v6588
    %v7037 = vpack.c.b16 %v6597, %v6593
    %v7038 = vpack.c.b16 %v6598, %v6594
    %v7039 = vpack.c.b16 %v6599, %v6595
    %v7040 = vpack.c.b16 %v6600, %v6596
    %v7041 = vpack.c.b16 %v6605, %v6601
    %v7042 = vpack.c.b16 %v6606, %v6602
    %v7043 = vpack.c.b16 %v6607, %v6603
    %v7044 = vpack.c.b16 %v6608, %v6604
    %v7045 = vpack.c.b16 %v6613, %v6609
    %v7046 = vpack.c.b16 %v6614, %v6610
    %v7047 = vpack.c.b16 %v6615, %v6611
    %v7048 = vpack.c.b16 %v6616, %v6612
    %v7049 = vpack.c.b16 %v6621, %v6617
    %v7050 = vpack.c.b16 %v6622, %v6618
    %v7051 = vpack.c.b16 %v6623, %v6619
    %v7052 = vpack.c.b16 %v6624, %v6620
    %v7053 = vpack.c.b16 %v6629, %v6625
    %v7054 = vpack.c.b16 %v6630, %v6626
    %v7055 = vpack.c.b16 %v6631, %v6627
    %v7056 = vpack.c.b16 %v6632, %v6628
    %v7057 = vpack.c.b16 %v6637, %v6633
    %v7058 = vpack.c.b16 %v6638, %v6634
    %v7059 = vpack.c.b16 %v6639, %v6635
    %v7060 = vpack.c.b16 %v6640, %v6636
    %v7061 = vpack.c.b16 %v6645, %v6641
    %v7062 = vpack.c.b16 %v6646, %v6642
    %v7063 = vpack.c.b16 %v6647, %v6643
    %v7064 = vpack.c.b16 %v6648, %v6644
    %v7065 = vpack.c.b16 %v6653, %v6649
    %v7066 = vpack.c.b16 %v6654, %v6650
    %v7067 = vpack.c.b16 %v6655, %v6651
    %v7068 = vpack.c.b16 %v6656, %v6652
    %v7069 = vpack.c.b16 %v6661, %v6657
    %v7070 = vpack.c.b16 %v6662, %v6658
    %v7071 = vpack.c.b16 %v6663, %v6659
    %v7072 = vpack.c.b16 %v6664, %v6660
    %v7073 = vpack.c.b16 %v6669, %v6665
    %v7074 = vpack.c.b16 %v6670, %v6666
    %v7075 = vpack.c.b16 %v6671, %v6667
    %v7076 = vpack.c.b16 %v6672, %v6668
    %v7077 = vpack.c.b16 %v6677, %v6673
    %v7078 = vpack.c.b16 %v6678, %v6674
    %v7079 = vpack.c.b16 %v6679, %v6675
    %v7080 = vpack.c.b16 %v6680, %v6676
    %v7081 = vpack.c.b16 %v6685, %v6681
    %v7082 = vpack.c.b16 %v6686, %v6682
    %v7083 = vpack.c.b16 %v6687, %v6683
    %v7084 = vpack.c.b16 %v6688, %v6684
    %v7085 = vpack.c.b16 %v6693, %v6689
    %v7086 = vpack.c.b16 %v6694, %v6690
    %v7087 = vpack.c.b16 %v6695, %v6691
    %v7088 = vpack.c.b16 %v6696, %v6692
    %v7089 = vpack.c.b16 %v6701, %v6697
    %v7090 = vpack.c.b16 %v6702, %v6698
    %v7091 = vpack.c.b16 %v6703, %v6699
    %v7092 = vpack.c.b16 %v6704, %v6700
    %v7093 = vpack.c.b16 %v6709, %v6705
    %v7094 = vpack.c.b16 %v6710, %v6706
    %v7095 = vpack.c.b16 %v6711, %v6707
    %v7096 = vpack.c.b16 %v6712, %v6708
    %v7097 = vpack.c.b16 %v6717, %v6713
    %v7098 = vpack.c.b16 %v6718, %v6714
    %v7099 = vpack.c.b16 %v6719, %v6715
    %v7100 = vpack.c.b16 %v6720, %v6716
    %v7101 = vpack.c.b16 %v6725, %v6721
    %v7102 = vpack.c.b16 %v6726, %v6722
    %v7103 = vpack.c.b16 %v6727, %v6723
    %v7104 = vpack.c.b16 %v6728, %v6724
    %v7105 = vpack.c.b16 %v6733, %v6729
    %v7106 = vpack.c.b16 %v6734, %v6730
    %v7107 = vpack.c.b16 %v6735, %v6731
    %v7108 = vpack.c.b16 %v6736, %v6732
    %v7109 = vpack.c.b16 %v6741, %v6737
    %v7110 = vpack.c.b16 %v6742, %v6738
    %v7111 = vpack.c.b16 %v6743, %v6739
    %v7112 = vpack.c.b16 %v6744, %v6740
    %v7113 = vpack.c.b16 %v6749, %v6745
    %v7114 = vpack.c.b16 %v6750, %v6746
    %v7115 = vpack.c.b16 %v6751, %v6747
    %v7116 = vpack.c.b16 %v6752, %v6748
    %v7117 = vpack.c.b16 %v6757, %v6753
    %v7118 = vpack.c.b16 %v6758, %v6754
    %v7119 = vpack.c.b16 %v6759, %v6755
    %v7120 = vpack.c.b16 %v6760, %v6756
    %v7121 = vpack.c.b16 %v6765, %v6761
    %v7122 = vpack.c.b16 %v6766, %v6762
    %v7123 = vpack.c.b16 %v6767, %v6763
    %v7124 = vpack.c.b16 %v6768, %v6764
    %v7125 = vpack.c.b16 %v6773, %v6769
    %v7126 = vpack.c.b16 %v6774, %v6770
    %v7127 = vpack.c.b16 %v6775, %v6771
    %v7128 = vpack.c.b16 %v6776, %v6772
    %7481 = vmatprep.subr.bf16.mxu0 %v6806
    %7482 = vmatpush1.bf16.msra.mxu0 %v6805
    %7483 = vmatprep.subr.bf16.mxu0 %v6802
    %7484 = vmatpush1.bf16.msra.mxu0 %v6801
    %7485 = vmatprep.subr.bf16.mxu0 %v6798
    %7486 = vmatpush1.bf16.msra.mxu0 %v6797
    %7487 = vmatprep.subr.bf16.mxu0 %v6794
    %7488 = vmatpush1.bf16.msra.mxu0 %v6793
    %7489 = vmatprep.subr.bf16.mxu0 %v6790
    %7490 = vmatpush1.bf16.msra.mxu0 %v6789
    %7491 = vmatprep.subr.bf16.mxu0 %v6786
    %7492 = vmatpush1.bf16.msra.mxu0 %v6785
    %7493 = vmatprep.subr.bf16.mxu0 %v6782
    %7494 = vmatpush1.bf16.msra.mxu0 %v6781
    %7495 = vmatprep.subr.bf16.mxu0 %v6778
    %7496 = vmatpush1.bf16.msra.mxu0 %v6777
    %7497 = vmatprep.subr.bf16.mxu0 %v6838
    %7498 = vmatpush2.bf16.msra.mxu0 %v6837
    %7499 = vmatprep.subr.bf16.mxu0 %v6834
    %7500 = vmatpush2.bf16.msra.mxu0 %v6833
    %7501 = vmatprep.subr.bf16.mxu0 %v6830
    %7502 = vmatpush2.bf16.msra.mxu0 %v6829
    %7503 = vmatprep.subr.bf16.mxu0 %v6826
    %7504 = vmatpush2.bf16.msra.mxu0 %v6825
    %7505 = vmatprep.subr.bf16.mxu0 %v6822
    %7506 = vmatpush2.bf16.msra.mxu0 %v6821
    %7507 = vmatprep.subr.bf16.mxu0 %v6818
    %7508 = vmatpush2.bf16.msra.mxu0 %v6817
    %7509 = vmatprep.subr.bf16.mxu0 %v6814
    %7510 = vmatpush2.bf16.msra.mxu0 %v6813
    %7511 = vmatprep.subr.bf16.mxu0 %v6810
    %7512 = vmatpush2.bf16.msra.mxu0 %v6809
    %7513 = vmatprep.mubr.bf16.mxu0 %v5700
    %7514 = vmatmul.mubr.bf16.gmra.mxu0 %v5699
    %v7515 = vpop.f32.mrf.mxu0
    %v7516 = vadd.f32 %v3372, %v7515
    %v7517 = vpop.f32.mrf.mxu0
    %v7518 = vadd.f32 %v3376, %v7517
    %v7519 = vpop.f32.mrf.mxu0
    %v7520 = vpop.f32.mrf.mxu0
    %7521 = vdwg.mxu0
    %7522 = vmatprep.subr.bf16.mxu0 %v6870
    %7523 = vmatpush1.bf16.msra.mxu0 %v6869
    %7524 = vmatprep.subr.bf16.mxu0 %v6866
    %7525 = vmatpush1.bf16.msra.mxu0 %v6865
    %7526 = vmatprep.subr.bf16.mxu0 %v6862
    %7527 = vmatpush1.bf16.msra.mxu0 %v6861
    %7528 = vmatprep.subr.bf16.mxu0 %v6858
    %7529 = vmatpush1.bf16.msra.mxu0 %v6857
    %7530 = vmatprep.subr.bf16.mxu0 %v6854
    %7531 = vmatpush1.bf16.msra.mxu0 %v6853
    %7532 = vmatprep.subr.bf16.mxu0 %v6850
    %7533 = vmatpush1.bf16.msra.mxu0 %v6849
    %7534 = vmatprep.subr.bf16.mxu0 %v6846
    %7535 = vmatpush1.bf16.msra.mxu0 %v6845
    %7536 = vmatprep.subr.bf16.mxu0 %v6842
    %7537 = vmatpush1.bf16.msra.mxu0 %v6841
    %7538 = vmatprep.subr.bf16.mxu0 %v6902
    %7539 = vmatpush2.bf16.msra.mxu0 %v6901
    %7540 = vmatprep.subr.bf16.mxu0 %v6898
    %7541 = vmatpush2.bf16.msra.mxu0 %v6897
    %7542 = vmatprep.subr.bf16.mxu0 %v6894
    %7543 = vmatpush2.bf16.msra.mxu0 %v6893
    %7544 = vmatprep.subr.bf16.mxu0 %v6890
    %7545 = vmatpush2.bf16.msra.mxu0 %v6889
    %7546 = vmatprep.subr.bf16.mxu0 %v6886
    %7547 = vmatpush2.bf16.msra.mxu0 %v6885
    %7548 = vmatprep.subr.bf16.mxu0 %v6882
    %7549 = vmatpush2.bf16.msra.mxu0 %v6881
    %7550 = vmatprep.subr.bf16.mxu0 %v6878
    %7551 = vmatpush2.bf16.msra.mxu0 %v6877
    %7552 = vmatprep.subr.bf16.mxu0 %v6874
    %7553 = vmatpush2.bf16.msra.mxu0 %v6873
    %7554 = vmatprep.mubr.bf16.mxu0 %v5702
    %7555 = vmatmul.mubr.bf16.gmra.mxu0 %v5701
    %v7556 = vpop.f32.mrf.mxu0
    %v7557 = vadd.f32 %v7516, %v7556
    %v7558 = vpop.f32.mrf.mxu0
    %v7559 = vadd.f32 %v7518, %v7558
    %v7560 = vpop.f32.mrf.mxu0
    %v7561 = vpop.f32.mrf.mxu0
    %7562 = vdwg.mxu0
    %7563 = vmatprep.subr.bf16.mxu0 %v6934
    %7564 = vmatpush1.bf16.msra.mxu0 %v6933
    %7565 = vmatprep.subr.bf16.mxu0 %v6930
    %7566 = vmatpush1.bf16.msra.mxu0 %v6929
    %7567 = vmatprep.subr.bf16.mxu0 %v6926
    %7568 = vmatpush1.bf16.msra.mxu0 %v6925
    %7569 = vmatprep.subr.bf16.mxu0 %v6922
    %7570 = vmatpush1.bf16.msra.mxu0 %v6921
    %7571 = vmatprep.subr.bf16.mxu0 %v6918
    %7572 = vmatpush1.bf16.msra.mxu0 %v6917
    %7573 = vmatprep.subr.bf16.mxu0 %v6914
    %7574 = vmatpush1.bf16.msra.mxu0 %v6913
    %7575 = vmatprep.subr.bf16.mxu0 %v6910
    %7576 = vmatpush1.bf16.msra.mxu0 %v6909
    %7577 = vmatprep.subr.bf16.mxu0 %v6906
    %7578 = vmatpush1.bf16.msra.mxu0 %v6905
    %7579 = vmatprep.subr.bf16.mxu0 %v6966
    %7580 = vmatpush2.bf16.msra.mxu0 %v6965
    %7581 = vmatprep.subr.bf16.mxu0 %v6962
    %7582 = vmatpush2.bf16.msra.mxu0 %v6961
    %7583 = vmatprep.subr.bf16.mxu0 %v6958
    %7584 = vmatpush2.bf16.msra.mxu0 %v6957
    %7585 = vmatprep.subr.bf16.mxu0 %v6954
    %7586 = vmatpush2.bf16.msra.mxu0 %v6953
    %7587 = vmatprep.subr.bf16.mxu0 %v6950
    %7588 = vmatpush2.bf16.msra.mxu0 %v6949
    %7589 = vmatprep.subr.bf16.mxu0 %v6946
    %7590 = vmatpush2.bf16.msra.mxu0 %v6945
    %7591 = vmatprep.subr.bf16.mxu0 %v6942
    %7592 = vmatpush2.bf16.msra.mxu0 %v6941
    %7593 = vmatprep.subr.bf16.mxu0 %v6938
    %7594 = vmatpush2.bf16.msra.mxu0 %v6937
    %7595 = vmatprep.mubr.bf16.mxu0 %v5704
    %7596 = vmatmul.mubr.bf16.gmra.mxu0 %v5703
    %v7597 = vpop.f32.mrf.mxu0
    %v7598 = vadd.f32 %v7557, %v7597
    %v7599 = vpop.f32.mrf.mxu0
    %v7600 = vadd.f32 %v7559, %v7599
    %v7601 = vpop.f32.mrf.mxu0
    %v7602 = vpop.f32.mrf.mxu0
    %7603 = vdwg.mxu0
    %7604 = vmatprep.subr.bf16.mxu0 %v6998
    %7605 = vmatpush1.bf16.msra.mxu0 %v6997
    %7606 = vmatprep.subr.bf16.mxu0 %v6994
    %7607 = vmatpush1.bf16.msra.mxu0 %v6993
    %7608 = vmatprep.subr.bf16.mxu0 %v6990
    %7609 = vmatpush1.bf16.msra.mxu0 %v6989
    %7610 = vmatprep.subr.bf16.mxu0 %v6986
    %7611 = vmatpush1.bf16.msra.mxu0 %v6985
    %7612 = vmatprep.subr.bf16.mxu0 %v6982
    %7613 = vmatpush1.bf16.msra.mxu0 %v6981
    %7614 = vmatprep.subr.bf16.mxu0 %v6978
    %7615 = vmatpush1.bf16.msra.mxu0 %v6977
    %7616 = vmatprep.subr.bf16.mxu0 %v6974
    %7617 = vmatpush1.bf16.msra.mxu0 %v6973
    %7618 = vmatprep.subr.bf16.mxu0 %v6970
    %7619 = vmatpush1.bf16.msra.mxu0 %v6969
    %7620 = vmatprep.subr.bf16.mxu0 %v7030
    %7621 = vmatpush2.bf16.msra.mxu0 %v7029
    %7622 = vmatprep.subr.bf16.mxu0 %v7026
    %7623 = vmatpush2.bf16.msra.mxu0 %v7025
    %7624 = vmatprep.subr.bf16.mxu0 %v7022
    %7625 = vmatpush2.bf16.msra.mxu0 %v7021
    %7626 = vmatprep.subr.bf16.mxu0 %v7018
    %7627 = vmatpush2.bf16.msra.mxu0 %v7017
    %7628 = vmatprep.subr.bf16.mxu0 %v7014
    %7629 = vmatpush2.bf16.msra.mxu0 %v7013
    %7630 = vmatprep.subr.bf16.mxu0 %v7010
    %7631 = vmatpush2.bf16.msra.mxu0 %v7009
    %7632 = vmatprep.subr.bf16.mxu0 %v7006
    %7633 = vmatpush2.bf16.msra.mxu0 %v7005
    %7634 = vmatprep.subr.bf16.mxu0 %v7002
    %7635 = vmatpush2.bf16.msra.mxu0 %v7001
    %7636 = vmatprep.mubr.bf16.mxu0 %v5706
    %7637 = vmatmul.mubr.bf16.gmra.mxu0 %v5705
    %v7638 = vpop.f32.mrf.mxu0
    %v7639 = vadd.f32 %v7598, %v7638
    %v7640 = vpop.f32.mrf.mxu0
    %v7641 = vadd.f32 %v7600, %v7640
    %v7642 = vpop.f32.mrf.mxu0
    %v7643 = vpop.f32.mrf.mxu0
    %7644 = vdwg.mxu0
    %7645 = vmatprep.subr.bf16.mxu0 %v7062
    %7646 = vmatpush1.bf16.msra.mxu0 %v7061
    %7647 = vmatprep.subr.bf16.mxu0 %v7058
    %7648 = vmatpush1.bf16.msra.mxu0 %v7057
    %7649 = vmatprep.subr.bf16.mxu0 %v7054
    %7650 = vmatpush1.bf16.msra.mxu0 %v7053
    %7651 = vmatprep.subr.bf16.mxu0 %v7050
    %7652 = vmatpush1.bf16.msra.mxu0 %v7049
    %7653 = vmatprep.subr.bf16.mxu0 %v7046
    %7654 = vmatpush1.bf16.msra.mxu0 %v7045
    %7655 = vmatprep.subr.bf16.mxu0 %v7042
    %7656 = vmatpush1.bf16.msra.mxu0 %v7041
    %7657 = vmatprep.subr.bf16.mxu0 %v7038
    %7658 = vmatpush1.bf16.msra.mxu0 %v7037
    %7659 = vmatprep.subr.bf16.mxu0 %v7034
    %7660 = vmatpush1.bf16.msra.mxu0 %v7033
    %7661 = vmatprep.subr.bf16.mxu0 %v7094
    %7662 = vmatpush2.bf16.msra.mxu0 %v7093
    %7663 = vmatprep.subr.bf16.mxu0 %v7090
    %7664 = vmatpush2.bf16.msra.mxu0 %v7089
    %7665 = vmatprep.subr.bf16.mxu0 %v7086
    %7666 = vmatpush2.bf16.msra.mxu0 %v7085
    %7667 = vmatprep.subr.bf16.mxu0 %v7082
    %7668 = vmatpush2.bf16.msra.mxu0 %v7081
    %7669 = vmatprep.subr.bf16.mxu0 %v7078
    %7670 = vmatpush2.bf16.msra.mxu0 %v7077
    %7671 = vmatprep.subr.bf16.mxu0 %v7074
    %7672 = vmatpush2.bf16.msra.mxu0 %v7073
    %7673 = vmatprep.subr.bf16.mxu0 %v7070
    %7674 = vmatpush2.bf16.msra.mxu0 %v7069
    %7675 = vmatprep.subr.bf16.mxu0 %v7066
    %7676 = vmatpush2.bf16.msra.mxu0 %v7065
    %7677 = vmatprep.mubr.bf16.mxu0 %v5708
    %7678 = vmatmul.mubr.bf16.gmra.mxu0 %v5707
    %v7679 = vpop.f32.mrf.mxu0
    %v7680 = vadd.f32 %v7639, %v7679
    %v7681 = vpop.f32.mrf.mxu0
    %v7682 = vadd.f32 %v7641, %v7681
    %v7683 = vpop.f32.mrf.mxu0
    %v7684 = vpop.f32.mrf.mxu0
    %7685 = vdwg.mxu0
    %7686 = vmatprep.subr.bf16.mxu0 %v7126
    %7687 = vmatpush1.bf16.msra.mxu0 %v7125
    %7688 = vmatprep.subr.bf16.mxu0 %v7122
    %7689 = vmatpush1.bf16.msra.mxu0 %v7121
    %7690 = vmatprep.subr.bf16.mxu0 %v7118
    %7691 = vmatpush1.bf16.msra.mxu0 %v7117
    %7692 = vmatprep.subr.bf16.mxu0 %v7114
    %7693 = vmatpush1.bf16.msra.mxu0 %v7113
    %7694 = vmatprep.subr.bf16.mxu0 %v7110
    %7695 = vmatpush1.bf16.msra.mxu0 %v7109
    %7696 = vmatprep.subr.bf16.mxu0 %v7106
    %7697 = vmatpush1.bf16.msra.mxu0 %v7105
    %7698 = vmatprep.subr.bf16.mxu0 %v7102
    %7699 = vmatpush1.bf16.msra.mxu0 %v7101
    %7700 = vmatprep.subr.bf16.mxu0 %v7098
    %7701 = vmatpush1.bf16.msra.mxu0 %v7097
    %7702 = vmatprep.subr.bf16.mxu0 0
    %7703 = vmatpush2.bf16.msra.mxu0 0
    %7704 = vmatprep.subr.bf16.mxu0 0
    %7705 = vmatpush2.bf16.msra.mxu0 0
    %7706 = vmatprep.subr.bf16.mxu0 0
    %7707 = vmatpush2.bf16.msra.mxu0 0
    %7708 = vmatprep.subr.bf16.mxu0 0
    %7709 = vmatpush2.bf16.msra.mxu0 0
    %7710 = vmatprep.subr.bf16.mxu0 0
    %7711 = vmatpush2.bf16.msra.mxu0 0
    %7712 = vmatprep.subr.bf16.mxu0 0
    %7713 = vmatpush2.bf16.msra.mxu0 0
    %7714 = vmatprep.subr.bf16.mxu0 0
    %7715 = vmatpush2.bf16.msra.mxu0 0
    %7716 = vmatprep.subr.bf16.mxu0 0
    %7717 = vmatpush2.bf16.msra.mxu0 0
    %7718 = vmatprep.mubr.bf16.mxu0 0
    %7719 = vmatmul.mubr.bf16.gmra.mxu0 %v5709
    %v7720 = vpop.f32.mrf.mxu0
    %v7721 = vadd.f32 %v7680, %v7720
    %v7722 = vpop.f32.mrf.mxu0
    %v7723 = vadd.f32 %v7682, %v7722
    %v7724 = vpop.f32.mrf.mxu0
    %v7725 = vpop.f32.mrf.mxu0
    %7726 = vdwg.mxu0
    %7727 = vmatprep.subr.bf16.mxu0 %v6808
    %7728 = vmatpush1.bf16.msra.mxu0 %v6807
    %7729 = vmatprep.subr.bf16.mxu0 %v6804
    %7730 = vmatpush1.bf16.msra.mxu0 %v6803
    %7731 = vmatprep.subr.bf16.mxu0 %v6800
    %7732 = vmatpush1.bf16.msra.mxu0 %v6799
    %7733 = vmatprep.subr.bf16.mxu0 %v6796
    %7734 = vmatpush1.bf16.msra.mxu0 %v6795
    %7735 = vmatprep.subr.bf16.mxu0 %v6792
    %7736 = vmatpush1.bf16.msra.mxu0 %v6791
    %7737 = vmatprep.subr.bf16.mxu0 %v6788
    %7738 = vmatpush1.bf16.msra.mxu0 %v6787
    %7739 = vmatprep.subr.bf16.mxu0 %v6784
    %7740 = vmatpush1.bf16.msra.mxu0 %v6783
    %7741 = vmatprep.subr.bf16.mxu0 %v6780
    %7742 = vmatpush1.bf16.msra.mxu0 %v6779
    %7743 = vmatprep.subr.bf16.mxu0 %v6840
    %7744 = vmatpush2.bf16.msra.mxu0 %v6839
    %7745 = vmatprep.subr.bf16.mxu0 %v6836
    %7746 = vmatpush2.bf16.msra.mxu0 %v6835
    %7747 = vmatprep.subr.bf16.mxu0 %v6832
    %7748 = vmatpush2.bf16.msra.mxu0 %v6831
    %7749 = vmatprep.subr.bf16.mxu0 %v6828
    %7750 = vmatpush2.bf16.msra.mxu0 %v6827
    %7751 = vmatprep.subr.bf16.mxu0 %v6824
    %7752 = vmatpush2.bf16.msra.mxu0 %v6823
    %7753 = vmatprep.subr.bf16.mxu0 %v6820
    %7754 = vmatpush2.bf16.msra.mxu0 %v6819
    %7755 = vmatprep.subr.bf16.mxu0 %v6816
    %7756 = vmatpush2.bf16.msra.mxu0 %v6815
    %7757 = vmatprep.subr.bf16.mxu0 %v6812
    %7758 = vmatpush2.bf16.msra.mxu0 %v6811
    %7759 = vmatprep.mubr.bf16.mxu0 %v5700
    %7760 = vmatmul.mubr.bf16.gmra.mxu0 %v5699
    %v7761 = vpop.f32.mrf.mxu0
    %v7762 = vadd.f32 %v3380, %v7761
    %v7763 = vpop.f32.mrf.mxu0
    %v7764 = vadd.f32 %v3384, %v7763
    %v7765 = vpop.f32.mrf.mxu0
    %v7766 = vpop.f32.mrf.mxu0
    %7767 = vdwg.mxu0
    %7768 = vmatprep.subr.bf16.mxu0 %v6872
    %7769 = vmatpush1.bf16.msra.mxu0 %v6871
    %7770 = vmatprep.subr.bf16.mxu0 %v6868
    %7771 = vmatpush1.bf16.msra.mxu0 %v6867
    %7772 = vmatprep.subr.bf16.mxu0 %v6864
    %7773 = vmatpush1.bf16.msra.mxu0 %v6863
    %7774 = vmatprep.subr.bf16.mxu0 %v6860
    %7775 = vmatpush1.bf16.msra.mxu0 %v6859
    %7776 = vmatprep.subr.bf16.mxu0 %v6856
    %7777 = vmatpush1.bf16.msra.mxu0 %v6855
    %7778 = vmatprep.subr.bf16.mxu0 %v6852
    %7779 = vmatpush1.bf16.msra.mxu0 %v6851
    %7780 = vmatprep.subr.bf16.mxu0 %v6848
    %7781 = vmatpush1.bf16.msra.mxu0 %v6847
    %7782 = vmatprep.subr.bf16.mxu0 %v6844
    %7783 = vmatpush1.bf16.msra.mxu0 %v6843
    %7784 = vmatprep.subr.bf16.mxu0 %v6904
    %7785 = vmatpush2.bf16.msra.mxu0 %v6903
    %7786 = vmatprep.subr.bf16.mxu0 %v6900
    %7787 = vmatpush2.bf16.msra.mxu0 %v6899
    %7788 = vmatprep.subr.bf16.mxu0 %v6896
    %7789 = vmatpush2.bf16.msra.mxu0 %v6895
    %7790 = vmatprep.subr.bf16.mxu0 %v6892
    %7791 = vmatpush2.bf16.msra.mxu0 %v6891
    %7792 = vmatprep.subr.bf16.mxu0 %v6888
    %7793 = vmatpush2.bf16.msra.mxu0 %v6887
    %7794 = vmatprep.subr.bf16.mxu0 %v6884
    %7795 = vmatpush2.bf16.msra.mxu0 %v6883
    %7796 = vmatprep.subr.bf16.mxu0 %v6880
    %7797 = vmatpush2.bf16.msra.mxu0 %v6879
    %7798 = vmatprep.subr.bf16.mxu0 %v6876
    %7799 = vmatpush2.bf16.msra.mxu0 %v6875
    %7800 = vmatprep.mubr.bf16.mxu0 %v5702
    %7801 = vmatmul.mubr.bf16.gmra.mxu0 %v5701
    %v7802 = vpop.f32.mrf.mxu0
    %v7803 = vadd.f32 %v7762, %v7802
    %v7804 = vpop.f32.mrf.mxu0
    %v7805 = vadd.f32 %v7764, %v7804
    %v7806 = vpop.f32.mrf.mxu0
    %v7807 = vpop.f32.mrf.mxu0
    %7808 = vdwg.mxu0
    %7809 = vmatprep.subr.bf16.mxu0 %v6936
    %7810 = vmatpush1.bf16.msra.mxu0 %v6935
    %7811 = vmatprep.subr.bf16.mxu0 %v6932
    %7812 = vmatpush1.bf16.msra.mxu0 %v6931
    %7813 = vmatprep.subr.bf16.mxu0 %v6928
    %7814 = vmatpush1.bf16.msra.mxu0 %v6927
    %7815 = vmatprep.subr.bf16.mxu0 %v6924
    %7816 = vmatpush1.bf16.msra.mxu0 %v6923
    %7817 = vmatprep.subr.bf16.mxu0 %v6920
    %7818 = vmatpush1.bf16.msra.mxu0 %v6919
    %7819 = vmatprep.subr.bf16.mxu0 %v6916
    %7820 = vmatpush1.bf16.msra.mxu0 %v6915
    %7821 = vmatprep.subr.bf16.mxu0 %v6912
    %7822 = vmatpush1.bf16.msra.mxu0 %v6911
    %7823 = vmatprep.subr.bf16.mxu0 %v6908
    %7824 = vmatpush1.bf16.msra.mxu0 %v6907
    %7825 = vmatprep.subr.bf16.mxu0 %v6968
    %7826 = vmatpush2.bf16.msra.mxu0 %v6967
    %7827 = vmatprep.subr.bf16.mxu0 %v6964
    %7828 = vmatpush2.bf16.msra.mxu0 %v6963
    %7829 = vmatprep.subr.bf16.mxu0 %v6960
    %7830 = vmatpush2.bf16.msra.mxu0 %v6959
    %7831 = vmatprep.subr.bf16.mxu0 %v6956
    %7832 = vmatpush2.bf16.msra.mxu0 %v6955
    %7833 = vmatprep.subr.bf16.mxu0 %v6952
    %7834 = vmatpush2.bf16.msra.mxu0 %v6951
    %7835 = vmatprep.subr.bf16.mxu0 %v6948
    %7836 = vmatpush2.bf16.msra.mxu0 %v6947
    %7837 = vmatprep.subr.bf16.mxu0 %v6944
    %7838 = vmatpush2.bf16.msra.mxu0 %v6943
    %7839 = vmatprep.subr.bf16.mxu0 %v6940
    %7840 = vmatpush2.bf16.msra.mxu0 %v6939
    %7841 = vmatprep.mubr.bf16.mxu0 %v5704
    %7842 = vmatmul.mubr.bf16.gmra.mxu0 %v5703
    %v7843 = vpop.f32.mrf.mxu0
    %v7844 = vadd.f32 %v7803, %v7843
    %v7845 = vpop.f32.mrf.mxu0
    %v7846 = vadd.f32 %v7805, %v7845
    %v7847 = vpop.f32.mrf.mxu0
    %v7848 = vpop.f32.mrf.mxu0
    %7849 = vdwg.mxu0
    %7850 = vmatprep.subr.bf16.mxu0 %v7000
    %7851 = vmatpush1.bf16.msra.mxu0 %v6999
    %7852 = vmatprep.subr.bf16.mxu0 %v6996
    %7853 = vmatpush1.bf16.msra.mxu0 %v6995
    %7854 = vmatprep.subr.bf16.mxu0 %v6992
    %7855 = vmatpush1.bf16.msra.mxu0 %v6991
    %7856 = vmatprep.subr.bf16.mxu0 %v6988
    %7857 = vmatpush1.bf16.msra.mxu0 %v6987
    %7858 = vmatprep.subr.bf16.mxu0 %v6984
    %7859 = vmatpush1.bf16.msra.mxu0 %v6983
    %7860 = vmatprep.subr.bf16.mxu0 %v6980
    %7861 = vmatpush1.bf16.msra.mxu0 %v6979
    %7862 = vmatprep.subr.bf16.mxu0 %v6976
    %7863 = vmatpush1.bf16.msra.mxu0 %v6975
    %7864 = vmatprep.subr.bf16.mxu0 %v6972
    %7865 = vmatpush1.bf16.msra.mxu0 %v6971
    %7866 = vmatprep.subr.bf16.mxu0 %v7032
    %7867 = vmatpush2.bf16.msra.mxu0 %v7031
    %7868 = vmatprep.subr.bf16.mxu0 %v7028
    %7869 = vmatpush2.bf16.msra.mxu0 %v7027
    %7870 = vmatprep.subr.bf16.mxu0 %v7024
    %7871 = vmatpush2.bf16.msra.mxu0 %v7023
    %7872 = vmatprep.subr.bf16.mxu0 %v7020
    %7873 = vmatpush2.bf16.msra.mxu0 %v7019
    %7874 = vmatprep.subr.bf16.mxu0 %v7016
    %7875 = vmatpush2.bf16.msra.mxu0 %v7015
    %7876 = vmatprep.subr.bf16.mxu0 %v7012
    %7877 = vmatpush2.bf16.msra.mxu0 %v7011
    %7878 = vmatprep.subr.bf16.mxu0 %v7008
    %7879 = vmatpush2.bf16.msra.mxu0 %v7007
    %7880 = vmatprep.subr.bf16.mxu0 %v7004
    %7881 = vmatpush2.bf16.msra.mxu0 %v7003
    %7882 = vmatprep.mubr.bf16.mxu0 %v5706
    %7883 = vmatmul.mubr.bf16.gmra.mxu0 %v5705
    %v7884 = vpop.f32.mrf.mxu0
    %v7885 = vadd.f32 %v7844, %v7884
    %v7886 = vpop.f32.mrf.mxu0
    %v7887 = vadd.f32 %v7846, %v7886
    %v7888 = vpop.f32.mrf.mxu0
    %v7889 = vpop.f32.mrf.mxu0
    %7890 = vdwg.mxu0
    %7891 = vmatprep.subr.bf16.mxu0 %v7064
    %7892 = vmatpush1.bf16.msra.mxu0 %v7063
    %7893 = vmatprep.subr.bf16.mxu0 %v7060
    %7894 = vmatpush1.bf16.msra.mxu0 %v7059
    %7895 = vmatprep.subr.bf16.mxu0 %v7056
    %7896 = vmatpush1.bf16.msra.mxu0 %v7055
    %7897 = vmatprep.subr.bf16.mxu0 %v7052
    %7898 = vmatpush1.bf16.msra.mxu0 %v7051
    %7899 = vmatprep.subr.bf16.mxu0 %v7048
    %7900 = vmatpush1.bf16.msra.mxu0 %v7047
    %7901 = vmatprep.subr.bf16.mxu0 %v7044
    %7902 = vmatpush1.bf16.msra.mxu0 %v7043
    %7903 = vmatprep.subr.bf16.mxu0 %v7040
    %7904 = vmatpush1.bf16.msra.mxu0 %v7039
    %7905 = vmatprep.subr.bf16.mxu0 %v7036
    %7906 = vmatpush1.bf16.msra.mxu0 %v7035
    %7907 = vmatprep.subr.bf16.mxu0 %v7096
    %7908 = vmatpush2.bf16.msra.mxu0 %v7095
    %7909 = vmatprep.subr.bf16.mxu0 %v7092
    %7910 = vmatpush2.bf16.msra.mxu0 %v7091
    %7911 = vmatprep.subr.bf16.mxu0 %v7088
    %7912 = vmatpush2.bf16.msra.mxu0 %v7087
    %7913 = vmatprep.subr.bf16.mxu0 %v7084
    %7914 = vmatpush2.bf16.msra.mxu0 %v7083
    %7915 = vmatprep.subr.bf16.mxu0 %v7080
    %7916 = vmatpush2.bf16.msra.mxu0 %v7079
    %7917 = vmatprep.subr.bf16.mxu0 %v7076
    %7918 = vmatpush2.bf16.msra.mxu0 %v7075
    %7919 = vmatprep.subr.bf16.mxu0 %v7072
    %7920 = vmatpush2.bf16.msra.mxu0 %v7071
    %7921 = vmatprep.subr.bf16.mxu0 %v7068
    %7922 = vmatpush2.bf16.msra.mxu0 %v7067
    %7923 = vmatprep.mubr.bf16.mxu0 %v5708
    %7924 = vmatmul.mubr.bf16.gmra.mxu0 %v5707
    %v7925 = vpop.f32.mrf.mxu0
    %v7926 = vadd.f32 %v7885, %v7925
    %v7927 = vpop.f32.mrf.mxu0
    %v7928 = vadd.f32 %v7887, %v7927
    %v7929 = vpop.f32.mrf.mxu0
    %v7930 = vpop.f32.mrf.mxu0
    %7931 = vdwg.mxu0
    %7932 = vmatprep.subr.bf16.mxu0 %v7128
    %7933 = vmatpush1.bf16.msra.mxu0 %v7127
    %7934 = vmatprep.subr.bf16.mxu0 %v7124
    %7935 = vmatpush1.bf16.msra.mxu0 %v7123
    %7936 = vmatprep.subr.bf16.mxu0 %v7120
    %7937 = vmatpush1.bf16.msra.mxu0 %v7119
    %7938 = vmatprep.subr.bf16.mxu0 %v7116
    %7939 = vmatpush1.bf16.msra.mxu0 %v7115
    %7940 = vmatprep.subr.bf16.mxu0 %v7112
    %7941 = vmatpush1.bf16.msra.mxu0 %v7111
    %7942 = vmatprep.subr.bf16.mxu0 %v7108
    %7943 = vmatpush1.bf16.msra.mxu0 %v7107
    %7944 = vmatprep.subr.bf16.mxu0 %v7104
    %7945 = vmatpush1.bf16.msra.mxu0 %v7103
    %7946 = vmatprep.subr.bf16.mxu0 %v7100
    %7947 = vmatpush1.bf16.msra.mxu0 %v7099
    %7948 = vmatprep.subr.bf16.mxu0 0
    %7949 = vmatpush2.bf16.msra.mxu0 0
    %7950 = vmatprep.subr.bf16.mxu0 0
    %7951 = vmatpush2.bf16.msra.mxu0 0
    %7952 = vmatprep.subr.bf16.mxu0 0
    %7953 = vmatpush2.bf16.msra.mxu0 0
    %7954 = vmatprep.subr.bf16.mxu0 0
    %7955 = vmatpush2.bf16.msra.mxu0 0
    %7956 = vmatprep.subr.bf16.mxu0 0
    %7957 = vmatpush2.bf16.msra.mxu0 0
    %7958 = vmatprep.subr.bf16.mxu0 0
    %7959 = vmatpush2.bf16.msra.mxu0 0
    %7960 = vmatprep.subr.bf16.mxu0 0
    %7961 = vmatpush2.bf16.msra.mxu0 0
    %7962 = vmatprep.subr.bf16.mxu0 0
    %7963 = vmatpush2.bf16.msra.mxu0 0
    %7964 = vmatprep.mubr.bf16.mxu0 0
    %7965 = vmatmul.mubr.bf16.gmra.mxu0 %v5709
    %v7966 = vpop.f32.mrf.mxu0
    %v7967 = vadd.f32 %v7926, %v7966
    %v7968 = vpop.f32.mrf.mxu0
    %v7969 = vadd.f32 %v7928, %v7968
    %v7970 = vpop.f32.mrf.mxu0
    %v7971 = vpop.f32.mrf.mxu0
    %7972 = vdwg.mxu0
    %v7977 = vcombine.low %v7721, %v7723
    %v7978 = vcombine.low %v7967, %v7969
    %v7980 = vunpack.c.l.s4 1983009808
    %v7981 = vunpack.c.0.s8 %v7980
    %v7982 = vlaneseq
    %v7983 = vshrl.u32 %v7982, 7
    %v7984 = vsub.s32 %v7981, %v7983
    %v7985 = vrot.slane %v7977, %v7984
    %v7987 = vunpack.c.l.s4 1983009808
    %v7988 = vunpack.c.0.s8 %v7987
    %v7989 = vlaneseq
    %v7990 = vshrl.u32 %v7989, 7
    %v7991 = vsub.s32 %v7988, %v7990
    %v7992 = vrot.slane %v7978, %v7991
    %v7993 = vcombine.low %v7985, %v7992
    %7995 = vst [vmem:[#allocation2] sm:$0xff] %v7993
    %v7996 = vpack.c.bf16 %v1788, %v1785
    %v7997 = vpack.c.bf16 %v1794, %v1791
    %v7998 = vpack.c.bf16 %v1800, %v1797
    %v7999 = vpack.c.bf16 %v1806, %v1803
    %v8000 = vpack.c.bf16 %v1812, %v1809
    %v8001 = vpack.c.bf16 %v1818, %v1815
    %v8002 = vpack.c.bf16 %v1824, %v1821
    %v8003 = vpack.c.bf16 %v1830, %v1827
    %v8004 = vpack.c.bf16 %v1836, %v1833
    %v8005 = vpack.c.bf16 %v1842, %v1839
    %v8006 = vpack.c.bf16 %v1848, %v1845
    %v8007 = vpack.c.bf16 %v1854, %v1851
    %v8008 = vpack.c.bf16 %v1860, %v1857
    %v8009 = vpack.c.bf16 %v1866, %v1863
    %v8010 = vpack.c.bf16 %v1872, %v1869
    %v8011 = vpack.c.bf16 %v1878, %v1875
    %v8012 = vpack.c.bf16 %v1884, %v1881
    %v8013 = vpack.c.bf16 %v1890, %v1887
    %v8014 = vpack.c.bf16 %v1896, %v1893
    %v8015 = vpack.c.bf16 %v1902, %v1899
    %v8016 = vpack.c.bf16 %v1908, %v1905
    %v8017 = vpack.c.bf16 %v1914, %v1911
    %v8018 = vpack.c.bf16 %v1920, %v1917
    %v8019 = vpack.c.bf16 %v1926, %v1923
    %v8020 = vpack.c.bf16 %v1932, %v1929
    %v8021 = vpack.c.bf16 %v1938, %v1935
    %v8022 = vpack.c.bf16 %v1944, %v1941
    %v8023 = vpack.c.bf16 %v1950, %v1947
    %v8024 = vpack.c.bf16 %v1956, %v1953
    %v8025 = vpack.c.bf16 %v1962, %v1959
    %v8026 = vpack.c.bf16 %v1968, %v1965
    %v8027 = vpack.c.bf16 %v1974, %v1971
    %v8028 = vpack.c.bf16 %v1980, %v1977
    %v8029 = vpack.c.bf16 %v1986, %v1983
    %v8030 = vpack.c.bf16 %v1992, %v1989
    %v8031 = vpack.c.bf16 %v1998, %v1995
    %v8032 = vpack.c.bf16 %v2004, %v2001
    %v8033 = vpack.c.bf16 %v2010, %v2007
    %v8034 = vpack.c.bf16 %v2016, %v2013
    %v8035 = vpack.c.bf16 %v2022, %v2019
    %v8036 = vpack.c.bf16 %v2028, %v2025
    %v8037 = vpack.c.bf16 %v2034, %v2031
    %v8038 = vpack.c.bf16 %v2040, %v2037
    %v8039 = vpack.c.bf16 %v2046, %v2043
    %v8040 = vpack.c.bf16 %v2052, %v2049
    %v8041 = vpack.c.bf16 %v2058, %v2055
    %v8042 = vpack.c.bf16 %v2064, %v2061
    %v8043 = vpack.c.bf16 %v2070, %v2067
    %v8044 = vpack.c.bf16 %v2076, %v2073
    %v8045 = vpack.c.bf16 %v2082, %v2079
    %v8046 = vpack.c.bf16 %v2088, %v2085
    %v8047 = vpack.c.bf16 %v2094, %v2091
    %v8048 = vpack.c.bf16 %v2100, %v2097
    %v8049 = vpack.c.bf16 %v2106, %v2103
    %v8050 = vpack.c.bf16 %v2112, %v2109
    %v8051 = vpack.c.bf16 %v2118, %v2115
    %v8052 = vpack.c.bf16 %v2124, %v2121
    %v8053 = vpack.c.bf16 %v2130, %v2127
    %v8054 = vpack.c.bf16 %v2136, %v2133
    %v8055 = vpack.c.bf16 %v2142, %v2139
    %v8056 = vpack.c.bf16 %v2148, %v2145
    %v8057 = vpack.c.bf16 %v2154, %v2151
    %v8058 = vpack.c.bf16 %v2160, %v2157
    %v8059 = vpack.c.bf16 %v2166, %v2163
    %v8060 = vpack.c.bf16 %v2172, %v2169
    %v8061 = vpack.c.bf16 %v2178, %v2175
    %v8062 = vpack.c.bf16 %v2184, %v2181
    %v8063 = vpack.c.bf16 %v2190, %v2187
    %v8064 = vpack.c.bf16 %v2196, %v2193
    %v8065 = vpack.c.bf16 %v2202, %v2199
    %v8066 = vpack.c.bf16 %v2208, %v2205
    %v8067 = vpack.c.bf16 %v2214, %v2211
    %v8068 = vpack.c.bf16 %v2220, %v2217
    %v8069 = vpack.c.bf16 %v2226, %v2223
    %v8070 = vpack.c.bf16 %v2232, %v2229
    %v8071 = vpack.c.bf16 %v2238, %v2235
    %v8072 = vpack.c.bf16 %v2244, %v2241
    %v8073 = vpack.c.bf16 %v2250, %v2247
    %v8074 = vpack.c.bf16 %v2256, %v2253
    %v8075 = vpack.c.bf16 %v2262, %v2259
    %v8076 = vpack.c.bf16 %v2268, %v2265
    %v8077 = vpack.c.bf16 %v2274, %v2271
    %v8078 = vpack.c.bf16 %v2280, %v2277
    %v8079 = vpack.c.bf16 %v2286, %v2283
    %v8080 = vpack.c.bf16 %v2292, %v2289
    %v8081 = vpack.c.bf16 %v2298, %v2295
    %v8082 = vpack.c.bf16 %v2304, %v2301
    %v8083 = vpack.c.bf16 %v2310, %v2307
    %v8084 = vpack.c.bf16 %v2316, %v2313
    %v8085 = vpack.c.bf16 %v2322, %v2319
    %v8086 = vpack.c.bf16 %v2328, %v2325
    %v8087 = vpack.c.bf16 %v2334, %v2331
    %v8088 = vpack.c.bf16 %v2340, %v2337
    %v8089 = vpack.c.bf16 %v2346, %v2343
    %v8090 = vpack.c.bf16 %v2352, %v2349
    %v8091 = vpack.c.bf16 %v2358, %v2355
    %v8092 = vpack.c.bf16 %v2364, %v2361
    %v8093 = vpack.c.bf16 %v2370, %v2367
    %v8094 = vpack.c.bf16 %v2376, %v2373
    %v8095 = vpack.c.bf16 %v2382, %v2379
    %v8096 = vpack.c.bf16 %v2388, %v2385
    %v8097 = vpack.c.bf16 %v2394, %v2391
    %v8098 = vpack.c.bf16 %v2400, %v2397
    %v8099 = vpack.c.bf16 %v2406, %v2403
    %v8100 = vpack.c.bf16 %v2412, %v2409
    %v8101 = vpack.c.bf16 %v2418, %v2415
    %v8102 = vpack.c.bf16 %v2424, %v2421
    %v8103 = vpack.c.bf16 %v2430, %v2427
    %v8104 = vpack.c.bf16 %v2436, %v2433
    %v8105 = vpack.c.bf16 %v2442, %v2439
    %v8106 = vpack.c.bf16 %v2448, %v2445
    %v8107 = vpack.c.bf16 %v2454, %v2451
    %v8108 = vpack.c.bf16 %v2460, %v2457
    %v8109 = vpack.c.bf16 %v2466, %v2463
    %v8110 = vpack.c.bf16 %v2472, %v2469
    %v8111 = vpack.c.bf16 %v2478, %v2475
    %v8112 = vpack.c.bf16 %v2484, %v2481
    %v8113 = vpack.c.bf16 %v2490, %v2487
    %v8114 = vpack.c.bf16 %v2496, %v2493
    %v8115 = vpack.c.bf16 %v2502, %v2499
    %v8116 = vpack.c.bf16 %v2508, %v2505
    %v8117 = vpack.c.bf16 %v2514, %v2511
    %v8118 = vpack.c.bf16 %v2520, %v2517
    %v8119 = vpack.c.bf16 %v2526, %v2523
    %v8120 = vpack.c.bf16 %v2532, %v2529
    %v8121 = vpack.c.bf16 %v2538, %v2535
    %v8122 = vpack.c.bf16 %v2544, %v2541
    %v8123 = vpack.c.bf16 %v2550, %v2547
    %v8124 = vpack.c.bf16 %v2556, %v2553
    %v8125 = vpack.c.bf16 %v2562, %v2559
    %v8126 = vpack.c.bf16 %v2568, %v2565
    %v8127 = vpack.c.bf16 %v2574, %v2571
    %v8128 = vpack.c.bf16 %v2580, %v2577
    %v8129 = vpack.c.bf16 %v2586, %v2583
    %v8130 = vpack.c.bf16 %v2592, %v2589
    %v8131 = vpack.c.bf16 %v2598, %v2595
    %v8132 = vpack.c.bf16 %v2604, %v2601
    %v8133 = vpack.c.bf16 %v2610, %v2607
    %v8134 = vpack.c.bf16 %v2616, %v2613
    %v8135 = vpack.c.bf16 %v2622, %v2619
    %v8136 = vpack.c.bf16 %v2628, %v2625
    %v8137 = vpack.c.bf16 %v2634, %v2631
    %v8138 = vpack.c.bf16 %v2640, %v2637
    %v8139 = vpack.c.bf16 %v2646, %v2643
    %v8140 = vpack.c.bf16 %v2652, %v2649
    %v8141 = vpack.c.bf16 %v2658, %v2655
    %v8142 = vpack.c.bf16 %v2664, %v2661
    %v8143 = vpack.c.bf16 %v2670, %v2667
    %v8144 = vpack.c.bf16 %v2676, %v2673
    %v8145 = vpack.c.bf16 %v2682, %v2679
    %v8146 = vpack.c.bf16 %v2688, %v2685
    %v8147 = vpack.c.bf16 %v2694, %v2691
    %v8148 = vpack.c.bf16 %v2700, %v2697
    %v8149 = vpack.c.bf16 %v2706, %v2703
    %v8150 = vpack.c.bf16 %v2712, %v2709
    %v8151 = vpack.c.bf16 %v2718, %v2715
    %v8152 = vpack.c.bf16 %v2724, %v2721
    %v8153 = vpack.c.bf16 %v2730, %v2727
    %v8154 = vpack.c.bf16 %v2736, %v2733
    %v8155 = vpack.c.bf16 %v2742, %v2739
    %v8156 = vpack.c.bf16 %v2748, %v2745
    %v8157 = vpack.c.bf16 %v2754, %v2751
    %v8158 = vpack.c.bf16 %v2760, %v2757
    %v8159 = vpack.c.bf16 %v2766, %v2763
    %v8160 = vpack.c.bf16 %v2772, %v2769
    %v8161 = vpack.c.bf16 %v2778, %v2775
    %v8162 = vpack.c.bf16 %v2784, %v2781
    %v8163 = vpack.c.bf16 %v2790, %v2787
    %v8164 = vpack.c.bf16 %v2796, %v2793
    %v8165 = vpack.c.bf16 %v2802, %v2799
    %v8166 = vpack.c.bf16 %v2808, %v2805
    %v8167 = vpack.c.bf16 %v2814, %v2811
    %v8168 = vpack.c.bf16 %v2820, %v2817
    %v8169 = vpack.c.bf16 %v2826, %v2823
    %v8170 = vpack.c.bf16 %v2832, %v2829
    %v8171 = vpack.c.bf16 %v2838, %v2835
    %v8172 = vld [vmem:[%s2] sm:$0xff]
    %v8173 = vld [vmem:[%s2 + $0x8] sm:$0xff]
    %v8174 = vld [vmem:[%s2 + $0x10] sm:$0xff]
    %v8175 = vld [vmem:[%s2 + $0x18] sm:$0xff]
    %v8176 = vld [vmem:[%s2 + $0x20] sm:$0xff]
    %v8177 = vld [vmem:[%s2 + $0x28] sm:$0xff]
    %v8178 = vld [vmem:[%s2 + $0x30] sm:$0xff]
    %v8179 = vld [vmem:[%s2 + $0x38] sm:$0xff]
    %v8180 = vld [vmem:[%s2 + $0x40] sm:$0xff]
    %v8181 = vld [vmem:[%s2 + $0x48] sm:$0xff]
    %v8182 = vld [vmem:[%s2 + $0x50] sm:$0xff]
    %v8183 = vld [vmem:[%s2 + $0x58] sm:$0xff]
    %v8184 = vld [vmem:[%s2 + $0x60] sm:$0xff]
    %v8185 = vld [vmem:[%s2 + $0x68] sm:$0xff]
    %v8186 = vld [vmem:[%s2 + $0x70] sm:$0xff]
    %v8187 = vld [vmem:[%s2 + $0x78] sm:$0xff]
    %v8188 = vld [vmem:[%s2 + $0x80] sm:$0xff]
    %v8189 = vld [vmem:[%s2 + $0x88] sm:$0xff]
    %v8190 = vld [vmem:[%s2 + $0x90] sm:$0xff]
    %v8191 = vld [vmem:[%s2 + $0x98] sm:$0xff]
    %v8192 = vld [vmem:[%s2 + $0xa0] sm:$0xff]
    %v8193 = vld [vmem:[%s2 + $0xa8] sm:$0xff]
    %v8194 = vld [vmem:[%s2 + $0xb0] sm:$0xff]
    %v8195 = vld [vmem:[%s2 + $0xb8] sm:$0xff]
    %v8196 = vld [vmem:[%s2 + $0xc0] sm:$0xff]
    %v8197 = vld [vmem:[%s2 + $0xc8] sm:$0xff]
    %v8198 = vld [vmem:[%s2 + $0xd0] sm:$0xff]
    %v8199 = vld [vmem:[%s2 + $0xd8] sm:$0xff]
    %v8200 = vld [vmem:[%s2 + $0xe0] sm:$0xff]
    %v8201 = vld [vmem:[%s2 + $0xe8] sm:$0xff]
    %v8202 = vld [vmem:[%s2 + $0xf0] sm:$0xff]
    %v8203 = vld [vmem:[%s2 + $0xf8] sm:$0xff]
    %v8204 = vld [vmem:[%s2 + $0x100] sm:$0xff]
    %v8205 = vld [vmem:[%s2 + $0x108] sm:$0xff]
    %v8206 = vld [vmem:[%s2 + $0x110] sm:$0xff]
    %v8207 = vld [vmem:[%s2 + $0x118] sm:$0xff]
    %v8208 = vld [vmem:[%s2 + $0x120] sm:$0xff]
    %v8209 = vld [vmem:[%s2 + $0x128] sm:$0xff]
    %v8210 = vld [vmem:[%s2 + $0x130] sm:$0xff]
    %v8211 = vld [vmem:[%s2 + $0x138] sm:$0xff]
    %v8212 = vld [vmem:[%s2 + $0x140] sm:$0xff]
    %v8213 = vld [vmem:[%s2 + $0x148] sm:$0xff]
    %v8214 = vld [vmem:[%s2 + $0x150] sm:$0xff]
    %v8215 = vld [vmem:[%s2 + $0x158] sm:$0xff]
    %v8216 = vld [vmem:[%s2 + $0x160] sm:$0xff]
    %v8217 = vld [vmem:[%s2 + $0x168] sm:$0xff]
    %v8218 = vld [vmem:[%s2 + $0x170] sm:$0xff]
    %v8219 = vld [vmem:[%s2 + $0x178] sm:$0xff]
    %v8220 = vld [vmem:[%s2 + $0x180] sm:$0xff]
    %v8221 = vld [vmem:[%s2 + $0x188] sm:$0xff]
    %v8222 = vld [vmem:[%s2 + $0x190] sm:$0xff]
    %v8223 = vld [vmem:[%s2 + $0x198] sm:$0xff]
    %v8224 = vld [vmem:[%s2 + $0x1a0] sm:$0xff]
    %v8225 = vld [vmem:[%s2 + $0x1a8] sm:$0xff]
    %v8226 = vld [vmem:[%s2 + $0x1b0] sm:$0xff]
    %v8227 = vld [vmem:[%s2 + $0x1b8] sm:$0xff]
    %v8228 = vld [vmem:[%s2 + $0x1c0] sm:$0xff]
    %v8229 = vld [vmem:[%s2 + $0x1c8] sm:$0xff]
    %v8230 = vld [vmem:[%s2 + $0x1d0] sm:$0xff]
    %v8231 = vld [vmem:[%s2 + $0x1d8] sm:$0xff]
    %v8232 = vld [vmem:[%s2 + $0x1e0] sm:$0xff]
    %v8233 = vld [vmem:[%s2 + $0x1e8] sm:$0xff]
    %v8234 = vld [vmem:[%s2 + $0x1f0] sm:$0xff]
    %v8235 = vld [vmem:[%s2 + $0x1f8] sm:$0xff]
    %v8236 = vld [vmem:[%s2 + $0x200] sm:$0xff]
    %v8237 = vld [vmem:[%s2 + $0x208] sm:$0xff]
    %v8238 = vld [vmem:[%s2 + $0x210] sm:$0xff]
    %v8239 = vld [vmem:[%s2 + $0x218] sm:$0xff]
    %v8240 = vld [vmem:[%s2 + $0x220] sm:$0xff]
    %v8241 = vld [vmem:[%s2 + $0x228] sm:$0xff]
    %v8242 = vld [vmem:[%s2 + $0x230] sm:$0xff]
    %v8243 = vld [vmem:[%s2 + $0x238] sm:$0xff]
    %v8244 = vld [vmem:[%s2 + $0x240] sm:$0xff]
    %v8245 = vld [vmem:[%s2 + $0x248] sm:$0xff]
    %v8246 = vld [vmem:[%s2 + $0x250] sm:$0xff]
    %v8247 = vld [vmem:[%s2 + $0x258] sm:$0xff]
    %v8248 = vld [vmem:[%s2 + $0x260] sm:$0xff]
    %v8249 = vld [vmem:[%s2 + $0x268] sm:$0xff]
    %v8250 = vld [vmem:[%s2 + $0x270] sm:$0xff]
    %v8251 = vld [vmem:[%s2 + $0x278] sm:$0xff]
    %v8252 = vld [vmem:[%s2 + $0x280] sm:$0xff]
    %v8253 = vld [vmem:[%s2 + $0x288] sm:$0xff]
    %v8254 = vld [vmem:[%s2 + $0x290] sm:$0xff]
    %v8255 = vld [vmem:[%s2 + $0x298] sm:$0xff]
    %v8256 = vld [vmem:[%s2 + $0x2a0] sm:$0xff]
    %v8257 = vld [vmem:[%s2 + $0x2a8] sm:$0xff]
    %v8258 = vld [vmem:[%s2 + $0x2b0] sm:$0xff]
    %v8259 = vld [vmem:[%s2 + $0x2b8] sm:$0xff]
    %v8260 = vld [vmem:[%s2 + $0x2c0] sm:$0xff]
    %v8261 = vld [vmem:[%s2 + $0x2c8] sm:$0xff]
    %v8262 = vld [vmem:[%s2 + $0x2d0] sm:$0xff]
    %v8263 = vld [vmem:[%s2 + $0x2d8] sm:$0xff]
    %v8264 = vld [vmem:[%s2 + $0x2e0] sm:$0xff]
    %v8265 = vld [vmem:[%s2 + $0x2e8] sm:$0xff]
    %v8266 = vld [vmem:[%s2 + $0x2f0] sm:$0xff]
    %v8267 = vld [vmem:[%s2 + $0x2f8] sm:$0xff]
    %v8268 = vld [vmem:[%s2 + $0x300] sm:$0xff]
    %v8269 = vld [vmem:[%s2 + $0x308] sm:$0xff]
    %v8270 = vld [vmem:[%s2 + $0x310] sm:$0xff]
    %v8271 = vld [vmem:[%s2 + $0x318] sm:$0xff]
    %v8272 = vld [vmem:[%s2 + $0x320] sm:$0xff]
    %v8273 = vld [vmem:[%s2 + $0x328] sm:$0xff]
    %v8274 = vld [vmem:[%s2 + $0x330] sm:$0xff]
    %v8275 = vld [vmem:[%s2 + $0x338] sm:$0xff]
    %v8276 = vld [vmem:[%s2 + $0x340] sm:$0xff]
    %v8277 = vld [vmem:[%s2 + $0x348] sm:$0xff]
    %v8278 = vld [vmem:[%s2 + $0x350] sm:$0xff]
    %v8279 = vld [vmem:[%s2 + $0x358] sm:$0xff]
    %v8280 = vld [vmem:[%s2 + $0x360] sm:$0xff]
    %v8281 = vld [vmem:[%s2 + $0x368] sm:$0xff]
    %v8282 = vld [vmem:[%s2 + $0x370] sm:$0xff]
    %v8283 = vld [vmem:[%s2 + $0x378] sm:$0xff]
    %v8284 = vld [vmem:[%s2 + $0x380] sm:$0xff]
    %v8285 = vld [vmem:[%s2 + $0x388] sm:$0xff]
    %v8286 = vld [vmem:[%s2 + $0x390] sm:$0xff]
    %v8287 = vld [vmem:[%s2 + $0x398] sm:$0xff]
    %v8288 = vld [vmem:[%s2 + $0x3a0] sm:$0xff]
    %v8289 = vld [vmem:[%s2 + $0x3a8] sm:$0xff]
    %v8290 = vld [vmem:[%s2 + $0x3b0] sm:$0xff]
    %v8291 = vld [vmem:[%s2 + $0x3b8] sm:$0xff]
    %v8292 = vld [vmem:[%s2 + $0x3c0] sm:$0xff]
    %v8293 = vld [vmem:[%s2 + $0x3c8] sm:$0xff]
    %v8294 = vld [vmem:[%s2 + $0x3d0] sm:$0xff]
    %v8295 = vld [vmem:[%s2 + $0x3d8] sm:$0xff]
    %v8296 = vld [vmem:[%s2 + $0x3e0] sm:$0xff]
    %v8297 = vld [vmem:[%s2 + $0x3e8] sm:$0xff]
    %v8298 = vld [vmem:[%s2 + $0x3f0] sm:$0xff]
    %v8299 = vld [vmem:[%s2 + $0x3f8] sm:$0xff]
    %v8300 = vld [vmem:[%s2 + $0x400] sm:$0xff]
    %v8301 = vld [vmem:[%s2 + $0x408] sm:$0xff]
    %v8302 = vld [vmem:[%s2 + $0x410] sm:$0xff]
    %v8303 = vld [vmem:[%s2 + $0x418] sm:$0xff]
    %v8304 = vld [vmem:[%s2 + $0x420] sm:$0xff]
    %v8305 = vld [vmem:[%s2 + $0x428] sm:$0xff]
    %v8306 = vld [vmem:[%s2 + $0x430] sm:$0xff]
    %v8307 = vld [vmem:[%s2 + $0x438] sm:$0xff]
    %v8308 = vld [vmem:[%s2 + $0x440] sm:$0xff]
    %v8309 = vld [vmem:[%s2 + $0x448] sm:$0xff]
    %v8310 = vld [vmem:[%s2 + $0x450] sm:$0xff]
    %v8311 = vld [vmem:[%s2 + $0x458] sm:$0xff]
    %v8312 = vld [vmem:[%s2 + $0x460] sm:$0xff]
    %v8313 = vld [vmem:[%s2 + $0x468] sm:$0xff]
    %v8314 = vld [vmem:[%s2 + $0x470] sm:$0xff]
    %v8315 = vld [vmem:[%s2 + $0x478] sm:$0xff]
    %v8316 = vld [vmem:[%s2 + $0x480] sm:$0xff]
    %v8317 = vld [vmem:[%s2 + $0x488] sm:$0xff]
    %v8318 = vld [vmem:[%s2 + $0x490] sm:$0xff]
    %v8319 = vld [vmem:[%s2 + $0x498] sm:$0xff]
    %v8320 = vld [vmem:[%s2 + $0x4a0] sm:$0xff]
    %v8321 = vld [vmem:[%s2 + $0x4a8] sm:$0xff]
    %v8322 = vld [vmem:[%s2 + $0x4b0] sm:$0xff]
    %v8323 = vld [vmem:[%s2 + $0x4b8] sm:$0xff]
    %v8324 = vld [vmem:[%s2 + $0x4c0] sm:$0xff]
    %v8325 = vld [vmem:[%s2 + $0x4c8] sm:$0xff]
    %v8326 = vld [vmem:[%s2 + $0x4d0] sm:$0xff]
    %v8327 = vld [vmem:[%s2 + $0x4d8] sm:$0xff]
    %v8328 = vld [vmem:[%s2 + $0x4e0] sm:$0xff]
    %v8329 = vld [vmem:[%s2 + $0x4e8] sm:$0xff]
    %v8330 = vld [vmem:[%s2 + $0x4f0] sm:$0xff]
    %v8331 = vld [vmem:[%s2 + $0x4f8] sm:$0xff]
    %v8332 = vld [vmem:[%s2 + $0x500] sm:$0xff]
    %v8333 = vld [vmem:[%s2 + $0x508] sm:$0xff]
    %v8334 = vld [vmem:[%s2 + $0x510] sm:$0xff]
    %v8335 = vld [vmem:[%s2 + $0x518] sm:$0xff]
    %v8336 = vld [vmem:[%s2 + $0x520] sm:$0xff]
    %v8337 = vld [vmem:[%s2 + $0x528] sm:$0xff]
    %v8338 = vld [vmem:[%s2 + $0x530] sm:$0xff]
    %v8339 = vld [vmem:[%s2 + $0x538] sm:$0xff]
    %v8340 = vld [vmem:[%s2 + $0x540] sm:$0xff]
    %v8341 = vld [vmem:[%s2 + $0x548] sm:$0xff]
    %v8342 = vld [vmem:[%s2 + $0x550] sm:$0xff]
    %v8343 = vld [vmem:[%s2 + $0x558] sm:$0xff]
    %v8344 = vld [vmem:[%s2 + $0x560] sm:$0xff]
    %v8345 = vld [vmem:[%s2 + $0x568] sm:$0xff]
    %v8346 = vld [vmem:[%s2 + $0x570] sm:$0xff]
    %v8347 = vld [vmem:[%s2 + $0x578] sm:$0xff]
    %v8348 = vld [vmem:[%s2 + $0x580] sm:$0xff]
    %v8349 = vld [vmem:[%s2 + $0x588] sm:$0xff]
    %v8350 = vld [vmem:[%s2 + $0x590] sm:$0xff]
    %v8351 = vld [vmem:[%s2 + $0x598] sm:$0xff]
    %v8352 = vld [vmem:[%s2 + $0x5a0] sm:$0xff]
    %v8353 = vld [vmem:[%s2 + $0x5a8] sm:$0xff]
    %v8354 = vld [vmem:[%s2 + $0x5b0] sm:$0xff]
    %v8355 = vld [vmem:[%s2 + $0x5b8] sm:$0xff]
    %v8356 = vld [vmem:[%s2 + $0x5c0] sm:$0xff]
    %v8357 = vld [vmem:[%s2 + $0x5c8] sm:$0xff]
    %v8358 = vld [vmem:[%s2 + $0x5d0] sm:$0xff]
    %v8359 = vld [vmem:[%s2 + $0x5d8] sm:$0xff]
    %v8360 = vld [vmem:[%s2 + $0x5e0] sm:$0xff]
    %v8361 = vld [vmem:[%s2 + $0x5e8] sm:$0xff]
    %v8362 = vld [vmem:[%s2 + $0x5f0] sm:$0xff]
    %v8363 = vld [vmem:[%s2 + $0x5f8] sm:$0xff]
    %v8364 = vld [vmem:[%s2 + $0x600] sm:$0xff]
    %v8365 = vld [vmem:[%s2 + $0x608] sm:$0xff]
    %v8366 = vld [vmem:[%s2 + $0x610] sm:$0xff]
    %v8367 = vld [vmem:[%s2 + $0x618] sm:$0xff]
    %v8368 = vld [vmem:[%s2 + $0x620] sm:$0xff]
    %v8369 = vld [vmem:[%s2 + $0x628] sm:$0xff]
    %v8370 = vld [vmem:[%s2 + $0x630] sm:$0xff]
    %v8371 = vld [vmem:[%s2 + $0x638] sm:$0xff]
    %v8372 = vld [vmem:[%s2 + $0x640] sm:$0xff]
    %v8373 = vld [vmem:[%s2 + $0x648] sm:$0xff]
    %v8374 = vld [vmem:[%s2 + $0x650] sm:$0xff]
    %v8375 = vld [vmem:[%s2 + $0x658] sm:$0xff]
    %v8376 = vld [vmem:[%s2 + $0x660] sm:$0xff]
    %v8377 = vld [vmem:[%s2 + $0x668] sm:$0xff]
    %v8378 = vld [vmem:[%s2 + $0x670] sm:$0xff]
    %v8379 = vld [vmem:[%s2 + $0x678] sm:$0xff]
    %v8380 = vld [vmem:[%s2 + $0x680] sm:$0xff]
    %v8381 = vld [vmem:[%s2 + $0x688] sm:$0xff]
    %v8382 = vld [vmem:[%s2 + $0x690] sm:$0xff]
    %v8383 = vld [vmem:[%s2 + $0x698] sm:$0xff]
    %v8384 = vld [vmem:[%s2 + $0x6a0] sm:$0xff]
    %v8385 = vld [vmem:[%s2 + $0x6a8] sm:$0xff]
    %v8386 = vld [vmem:[%s2 + $0x6b0] sm:$0xff]
    %v8387 = vld [vmem:[%s2 + $0x6b8] sm:$0xff]
    %v8388 = vld [vmem:[%s2 + $0x6c0] sm:$0xff]
    %v8389 = vld [vmem:[%s2 + $0x6c8] sm:$0xff]
    %v8390 = vld [vmem:[%s2 + $0x6d0] sm:$0xff]
    %v8391 = vld [vmem:[%s2 + $0x6d8] sm:$0xff]
    %v8392 = vld [vmem:[%s2 + $0x6e0] sm:$0xff]
    %v8393 = vld [vmem:[%s2 + $0x6e8] sm:$0xff]
    %v8394 = vld [vmem:[%s2 + $0x6f0] sm:$0xff]
    %v8395 = vld [vmem:[%s2 + $0x6f8] sm:$0xff]
    %v8396 = vld [vmem:[%s2 + $0x700] sm:$0xff]
    %v8397 = vld [vmem:[%s2 + $0x708] sm:$0xff]
    %v8398 = vld [vmem:[%s2 + $0x710] sm:$0xff]
    %v8399 = vld [vmem:[%s2 + $0x718] sm:$0xff]
    %v8400 = vld [vmem:[%s2 + $0x720] sm:$0xff]
    %v8401 = vld [vmem:[%s2 + $0x728] sm:$0xff]
    %v8402 = vld [vmem:[%s2 + $0x730] sm:$0xff]
    %v8403 = vld [vmem:[%s2 + $0x738] sm:$0xff]
    %v8404 = vld [vmem:[%s2 + $0x740] sm:$0xff]
    %v8405 = vld [vmem:[%s2 + $0x748] sm:$0xff]
    %v8406 = vld [vmem:[%s2 + $0x750] sm:$0xff]
    %v8407 = vld [vmem:[%s2 + $0x758] sm:$0xff]
    %v8408 = vld [vmem:[%s2 + $0x760] sm:$0xff]
    %v8409 = vld [vmem:[%s2 + $0x768] sm:$0xff]
    %v8410 = vld [vmem:[%s2 + $0x770] sm:$0xff]
    %v8411 = vld [vmem:[%s2 + $0x778] sm:$0xff]
    %v8412 = vld [vmem:[%s2 + $0x780] sm:$0xff]
    %v8413 = vld [vmem:[%s2 + $0x788] sm:$0xff]
    %v8414 = vld [vmem:[%s2 + $0x790] sm:$0xff]
    %v8415 = vld [vmem:[%s2 + $0x798] sm:$0xff]
    %v8416 = vld [vmem:[%s2 + $0x7a0] sm:$0xff]
    %v8417 = vld [vmem:[%s2 + $0x7a8] sm:$0xff]
    %v8418 = vld [vmem:[%s2 + $0x7b0] sm:$0xff]
    %v8419 = vld [vmem:[%s2 + $0x7b8] sm:$0xff]
    %v8420 = vld [vmem:[%s2 + $0x7c0] sm:$0xff]
    %v8421 = vld [vmem:[%s2 + $0x7c8] sm:$0xff]
    %v8422 = vld [vmem:[%s2 + $0x7d0] sm:$0xff]
    %v8423 = vld [vmem:[%s2 + $0x7d8] sm:$0xff]
    %v8424 = vld [vmem:[%s2 + $0x7e0] sm:$0xff]
    %v8425 = vld [vmem:[%s2 + $0x7e8] sm:$0xff]
    %v8426 = vld [vmem:[%s2 + $0x7f0] sm:$0xff]
    %v8427 = vld [vmem:[%s2 + $0x7f8] sm:$0xff]
    %v8428 = vld [vmem:[%s2 + $0x800] sm:$0xff]
    %v8429 = vld [vmem:[%s2 + $0x808] sm:$0xff]
    %v8430 = vld [vmem:[%s2 + $0x810] sm:$0xff]
    %v8431 = vld [vmem:[%s2 + $0x818] sm:$0xff]
    %v8432 = vld [vmem:[%s2 + $0x820] sm:$0xff]
    %v8433 = vld [vmem:[%s2 + $0x828] sm:$0xff]
    %v8434 = vld [vmem:[%s2 + $0x830] sm:$0xff]
    %v8435 = vld [vmem:[%s2 + $0x838] sm:$0xff]
    %v8436 = vld [vmem:[%s2 + $0x840] sm:$0xff]
    %v8437 = vld [vmem:[%s2 + $0x848] sm:$0xff]
    %v8438 = vld [vmem:[%s2 + $0x850] sm:$0xff]
    %v8439 = vld [vmem:[%s2 + $0x858] sm:$0xff]
    %v8440 = vld [vmem:[%s2 + $0x860] sm:$0xff]
    %v8441 = vld [vmem:[%s2 + $0x868] sm:$0xff]
    %v8442 = vld [vmem:[%s2 + $0x870] sm:$0xff]
    %v8443 = vld [vmem:[%s2 + $0x878] sm:$0xff]
    %v8444 = vld [vmem:[%s2 + $0x880] sm:$0xff]
    %v8445 = vld [vmem:[%s2 + $0x888] sm:$0xff]
    %v8446 = vld [vmem:[%s2 + $0x890] sm:$0xff]
    %v8447 = vld [vmem:[%s2 + $0x898] sm:$0xff]
    %v8448 = vld [vmem:[%s2 + $0x8a0] sm:$0xff]
    %v8449 = vld [vmem:[%s2 + $0x8a8] sm:$0xff]
    %v8450 = vld [vmem:[%s2 + $0x8b0] sm:$0xff]
    %v8451 = vld [vmem:[%s2 + $0x8b8] sm:$0xff]
    %v8452 = vld [vmem:[%s2 + $0x8c0] sm:$0xff]
    %v8453 = vld [vmem:[%s2 + $0x8c8] sm:$0xff]
    %v8454 = vld [vmem:[%s2 + $0x8d0] sm:$0xff]
    %v8455 = vld [vmem:[%s2 + $0x8d8] sm:$0xff]
    %v8456 = vld [vmem:[%s2 + $0x8e0] sm:$0xff]
    %v8457 = vld [vmem:[%s2 + $0x8e8] sm:$0xff]
    %v8458 = vld [vmem:[%s2 + $0x8f0] sm:$0xff]
    %v8459 = vld [vmem:[%s2 + $0x8f8] sm:$0xff]
    %v8460 = vld [vmem:[%s2 + $0x900] sm:$0xff]
    %v8461 = vld [vmem:[%s2 + $0x908] sm:$0xff]
    %v8462 = vld [vmem:[%s2 + $0x910] sm:$0xff]
    %v8463 = vld [vmem:[%s2 + $0x918] sm:$0xff]
    %v8464 = vld [vmem:[%s2 + $0x920] sm:$0xff]
    %v8465 = vld [vmem:[%s2 + $0x928] sm:$0xff]
    %v8466 = vld [vmem:[%s2 + $0x930] sm:$0xff]
    %v8467 = vld [vmem:[%s2 + $0x938] sm:$0xff]
    %v8468 = vld [vmem:[%s2 + $0x940] sm:$0xff]
    %v8469 = vld [vmem:[%s2 + $0x948] sm:$0xff]
    %v8470 = vld [vmem:[%s2 + $0x950] sm:$0xff]
    %v8471 = vld [vmem:[%s2 + $0x958] sm:$0xff]
    %v8472 = vld [vmem:[%s2 + $0x960] sm:$0xff]
    %v8473 = vld [vmem:[%s2 + $0x968] sm:$0xff]
    %v8474 = vld [vmem:[%s2 + $0x970] sm:$0xff]
    %v8475 = vld [vmem:[%s2 + $0x978] sm:$0xff]
    %v8476 = vld [vmem:[%s2 + $0x980] sm:$0xff]
    %v8477 = vld [vmem:[%s2 + $0x988] sm:$0xff]
    %v8478 = vld [vmem:[%s2 + $0x990] sm:$0xff]
    %v8479 = vld [vmem:[%s2 + $0x998] sm:$0xff]
    %v8480 = vld [vmem:[%s2 + $0x9a0] sm:$0xff]
    %v8481 = vld [vmem:[%s2 + $0x9a8] sm:$0xff]
    %v8482 = vld [vmem:[%s2 + $0x9b0] sm:$0xff]
    %v8483 = vld [vmem:[%s2 + $0x9b8] sm:$0xff]
    %v8484 = vld [vmem:[%s2 + $0x9c0] sm:$0xff]
    %v8485 = vld [vmem:[%s2 + $0x9c8] sm:$0xff]
    %v8486 = vld [vmem:[%s2 + $0x9d0] sm:$0xff]
    %v8487 = vld [vmem:[%s2 + $0x9d8] sm:$0xff]
    %v8488 = vld [vmem:[%s2 + $0x9e0] sm:$0xff]
    %v8489 = vld [vmem:[%s2 + $0x9e8] sm:$0xff]
    %v8490 = vld [vmem:[%s2 + $0x9f0] sm:$0xff]
    %v8491 = vld [vmem:[%s2 + $0x9f8] sm:$0xff]
    %v8492 = vld [vmem:[%s2 + $0xa00] sm:$0xff]
    %v8493 = vld [vmem:[%s2 + $0xa08] sm:$0xff]
    %v8494 = vld [vmem:[%s2 + $0xa10] sm:$0xff]
    %v8495 = vld [vmem:[%s2 + $0xa18] sm:$0xff]
    %v8496 = vld [vmem:[%s2 + $0xa20] sm:$0xff]
    %v8497 = vld [vmem:[%s2 + $0xa28] sm:$0xff]
    %v8498 = vld [vmem:[%s2 + $0xa30] sm:$0xff]
    %v8499 = vld [vmem:[%s2 + $0xa38] sm:$0xff]
    %v8500 = vld [vmem:[%s2 + $0xa40] sm:$0xff]
    %v8501 = vld [vmem:[%s2 + $0xa48] sm:$0xff]
    %v8502 = vld [vmem:[%s2 + $0xa50] sm:$0xff]
    %v8503 = vld [vmem:[%s2 + $0xa58] sm:$0xff]
    %v8504 = vld [vmem:[%s2 + $0xa60] sm:$0xff]
    %v8505 = vld [vmem:[%s2 + $0xa68] sm:$0xff]
    %v8506 = vld [vmem:[%s2 + $0xa70] sm:$0xff]
    %v8507 = vld [vmem:[%s2 + $0xa78] sm:$0xff]
    %v8508 = vld [vmem:[%s2 + $0xa80] sm:$0xff]
    %v8509 = vld [vmem:[%s2 + $0xa88] sm:$0xff]
    %v8510 = vld [vmem:[%s2 + $0xa90] sm:$0xff]
    %v8511 = vld [vmem:[%s2 + $0xa98] sm:$0xff]
    %v8512 = vld [vmem:[%s2 + $0xaa0] sm:$0xff]
    %v8513 = vld [vmem:[%s2 + $0xaa8] sm:$0xff]
    %v8514 = vld [vmem:[%s2 + $0xab0] sm:$0xff]
    %v8515 = vld [vmem:[%s2 + $0xab8] sm:$0xff]
    %v8516 = vld [vmem:[%s2 + $0xac0] sm:$0xff]
    %v8517 = vld [vmem:[%s2 + $0xac8] sm:$0xff]
    %v8518 = vld [vmem:[%s2 + $0xad0] sm:$0xff]
    %v8519 = vld [vmem:[%s2 + $0xad8] sm:$0xff]
    %v8520 = vld [vmem:[%s2 + $0xae0] sm:$0xff]
    %v8521 = vld [vmem:[%s2 + $0xae8] sm:$0xff]
    %v8522 = vld [vmem:[%s2 + $0xaf0] sm:$0xff]
    %v8523 = vld [vmem:[%s2 + $0xaf8] sm:$0xff]
    %v8524 = vld [vmem:[%s3] sm:$0xf]
    %v8526 = vlaneseq
    %v8527 = vshrl.u32 %v8526, 7
    %v8528 = vsub.s32 0, %v8527
    %v8529 = vrot.slane %v8524, %v8528
    %v8530 = vlaneseq
    %v8531 = vshrl.u32 %v8530, 7
    %v8532 = vsub.s32 1, %v8531
    %v8533 = vrot.slane %v8524, %v8532
    %v8534 = vlaneseq
    %v8535 = vshrl.u32 %v8534, 7
    %v8536 = vsub.s32 2, %v8535
    %v8537 = vrot.slane %v8524, %v8536
    %v8538 = vlaneseq
    %v8539 = vshrl.u32 %v8538, 7
    %v8540 = vsub.s32 3, %v8539
    %v8541 = vrot.slane %v8524, %v8540
    %v8722 = vunpack.c.l.b16 %v7996
    %v8723 = vunpack.c.h.b16 %v7996
    %v8724 = vunpack.c.l.b16 %v7997
    %v8725 = vunpack.c.h.b16 %v7997
    %v8726 = vunpack.c.l.b16 %v7998
    %v8727 = vunpack.c.h.b16 %v7998
    %v8728 = vunpack.c.l.b16 %v7999
    %v8729 = vunpack.c.h.b16 %v7999
    %v8730 = vunpack.c.l.b16 %v8000
    %v8731 = vunpack.c.h.b16 %v8000
    %v8732 = vunpack.c.l.b16 %v8001
    %v8733 = vunpack.c.h.b16 %v8001
    %v8734 = vunpack.c.l.b16 %v8002
    %v8735 = vunpack.c.h.b16 %v8002
    %v8736 = vunpack.c.l.b16 %v8003
    %v8737 = vunpack.c.h.b16 %v8003
    %v8738 = vunpack.c.l.b16 %v8004
    %v8739 = vunpack.c.h.b16 %v8004
    %v8740 = vunpack.c.l.b16 %v8005
    %v8741 = vunpack.c.h.b16 %v8005
    %v8742 = vunpack.c.l.b16 %v8006
    %v8743 = vunpack.c.h.b16 %v8006
    %v8744 = vunpack.c.l.b16 %v8007
    %v8745 = vunpack.c.h.b16 %v8007
    %v8746 = vunpack.c.l.b16 %v8008
    %v8747 = vunpack.c.h.b16 %v8008
    %v8748 = vunpack.c.l.b16 %v8009
    %v8749 = vunpack.c.h.b16 %v8009
    %v8750 = vunpack.c.l.b16 %v8010
    %v8751 = vunpack.c.h.b16 %v8010
    %v8752 = vunpack.c.l.b16 %v8011
    %v8753 = vunpack.c.h.b16 %v8011
    %v8754 = vunpack.c.l.b16 %v8012
    %v8755 = vunpack.c.h.b16 %v8012
    %v8756 = vunpack.c.l.b16 %v8013
    %v8757 = vunpack.c.h.b16 %v8013
    %v8758 = vunpack.c.l.b16 %v8014
    %v8759 = vunpack.c.h.b16 %v8014
    %v8760 = vunpack.c.l.b16 %v8015
    %v8761 = vunpack.c.h.b16 %v8015
    %v8762 = vunpack.c.l.b16 %v8016
    %v8763 = vunpack.c.h.b16 %v8016
    %v8764 = vunpack.c.l.b16 %v8017
    %v8765 = vunpack.c.h.b16 %v8017
    %v8766 = vunpack.c.l.b16 %v8018
    %v8767 = vunpack.c.h.b16 %v8018
    %v8768 = vunpack.c.l.b16 %v8019
    %v8769 = vunpack.c.h.b16 %v8019
    %v8770 = vunpack.c.l.b16 %v8020
    %v8771 = vunpack.c.h.b16 %v8020
    %v8772 = vunpack.c.l.b16 %v8021
    %v8773 = vunpack.c.h.b16 %v8021
    %v8774 = vunpack.c.l.b16 %v8022
    %v8775 = vunpack.c.h.b16 %v8022
    %v8776 = vunpack.c.l.b16 %v8023
    %v8777 = vunpack.c.h.b16 %v8023
    %v8778 = vunpack.c.l.b16 %v8024
    %v8779 = vunpack.c.h.b16 %v8024
    %v8780 = vunpack.c.l.b16 %v8025
    %v8781 = vunpack.c.h.b16 %v8025
    %v8782 = vunpack.c.l.b16 %v8026
    %v8783 = vunpack.c.h.b16 %v8026
    %v8784 = vunpack.c.l.b16 %v8027
    %v8785 = vunpack.c.h.b16 %v8027
    %v8786 = vunpack.c.l.b16 %v8028
    %v8787 = vunpack.c.h.b16 %v8028
    %v8788 = vunpack.c.l.b16 %v8029
    %v8789 = vunpack.c.h.b16 %v8029
    %v8790 = vunpack.c.l.b16 %v8030
    %v8791 = vunpack.c.h.b16 %v8030
    %v8792 = vunpack.c.l.b16 %v8031
    %v8793 = vunpack.c.h.b16 %v8031
    %v8794 = vunpack.c.l.b16 %v8032
    %v8795 = vunpack.c.h.b16 %v8032
    %v8796 = vunpack.c.l.b16 %v8033
    %v8797 = vunpack.c.h.b16 %v8033
    %v8798 = vunpack.c.l.b16 %v8034
    %v8799 = vunpack.c.h.b16 %v8034
    %v8800 = vunpack.c.l.b16 %v8035
    %v8801 = vunpack.c.h.b16 %v8035
    %v8802 = vunpack.c.l.b16 %v8036
    %v8803 = vunpack.c.h.b16 %v8036
    %v8804 = vunpack.c.l.b16 %v8037
    %v8805 = vunpack.c.h.b16 %v8037
    %v8806 = vunpack.c.l.b16 %v8038
    %v8807 = vunpack.c.h.b16 %v8038
    %v8808 = vunpack.c.l.b16 %v8039
    %v8809 = vunpack.c.h.b16 %v8039
    %v8810 = vunpack.c.l.b16 %v8040
    %v8811 = vunpack.c.h.b16 %v8040
    %v8812 = vunpack.c.l.b16 %v8041
    %v8813 = vunpack.c.h.b16 %v8041
    %v8814 = vunpack.c.l.b16 %v8042
    %v8815 = vunpack.c.h.b16 %v8042
    %v8816 = vunpack.c.l.b16 %v8043
    %v8817 = vunpack.c.h.b16 %v8043
    %v8818 = vunpack.c.l.b16 %v8044
    %v8819 = vunpack.c.h.b16 %v8044
    %v8820 = vunpack.c.l.b16 %v8045
    %v8821 = vunpack.c.h.b16 %v8045
    %v8822 = vunpack.c.l.b16 %v8046
    %v8823 = vunpack.c.h.b16 %v8046
    %v8824 = vunpack.c.l.b16 %v8047
    %v8825 = vunpack.c.h.b16 %v8047
    %v8826 = vunpack.c.l.b16 %v8048
    %v8827 = vunpack.c.h.b16 %v8048
    %v8828 = vunpack.c.l.b16 %v8049
    %v8829 = vunpack.c.h.b16 %v8049
    %v8830 = vunpack.c.l.b16 %v8050
    %v8831 = vunpack.c.h.b16 %v8050
    %v8832 = vunpack.c.l.b16 %v8051
    %v8833 = vunpack.c.h.b16 %v8051
    %v8834 = vunpack.c.l.b16 %v8052
    %v8835 = vunpack.c.h.b16 %v8052
    %v8836 = vunpack.c.l.b16 %v8053
    %v8837 = vunpack.c.h.b16 %v8053
    %v8838 = vunpack.c.l.b16 %v8054
    %v8839 = vunpack.c.h.b16 %v8054
    %v8840 = vunpack.c.l.b16 %v8055
    %v8841 = vunpack.c.h.b16 %v8055
    %v8842 = vunpack.c.l.b16 %v8056
    %v8843 = vunpack.c.h.b16 %v8056
    %v8844 = vunpack.c.l.b16 %v8057
    %v8845 = vunpack.c.h.b16 %v8057
    %v8846 = vunpack.c.l.b16 %v8058
    %v8847 = vunpack.c.h.b16 %v8058
    %v8848 = vunpack.c.l.b16 %v8059
    %v8849 = vunpack.c.h.b16 %v8059
    %v8850 = vunpack.c.l.b16 %v8060
    %v8851 = vunpack.c.h.b16 %v8060
    %v8852 = vunpack.c.l.b16 %v8061
    %v8853 = vunpack.c.h.b16 %v8061
    %v8854 = vunpack.c.l.b16 %v8062
    %v8855 = vunpack.c.h.b16 %v8062
    %v8856 = vunpack.c.l.b16 %v8063
    %v8857 = vunpack.c.h.b16 %v8063
    %v8858 = vunpack.c.l.b16 %v8064
    %v8859 = vunpack.c.h.b16 %v8064
    %v8860 = vunpack.c.l.b16 %v8065
    %v8861 = vunpack.c.h.b16 %v8065
    %v8862 = vunpack.c.l.b16 %v8066
    %v8863 = vunpack.c.h.b16 %v8066
    %v8864 = vunpack.c.l.b16 %v8067
    %v8865 = vunpack.c.h.b16 %v8067
    %v8866 = vunpack.c.l.b16 %v8068
    %v8867 = vunpack.c.h.b16 %v8068
    %v8868 = vunpack.c.l.b16 %v8069
    %v8869 = vunpack.c.h.b16 %v8069
    %v8870 = vunpack.c.l.b16 %v8070
    %v8871 = vunpack.c.h.b16 %v8070
    %v8872 = vunpack.c.l.b16 %v8071
    %v8873 = vunpack.c.h.b16 %v8071
    %v8874 = vunpack.c.l.b16 %v8072
    %v8875 = vunpack.c.h.b16 %v8072
    %v8876 = vunpack.c.l.b16 %v8073
    %v8877 = vunpack.c.h.b16 %v8073
    %v8878 = vunpack.c.l.b16 %v8074
    %v8879 = vunpack.c.h.b16 %v8074
    %v8880 = vunpack.c.l.b16 %v8075
    %v8881 = vunpack.c.h.b16 %v8075
    %v8882 = vunpack.c.l.b16 %v8076
    %v8883 = vunpack.c.h.b16 %v8076
    %v8884 = vunpack.c.l.b16 %v8077
    %v8885 = vunpack.c.h.b16 %v8077
    %v8886 = vunpack.c.l.b16 %v8078
    %v8887 = vunpack.c.h.b16 %v8078
    %v8888 = vunpack.c.l.b16 %v8079
    %v8889 = vunpack.c.h.b16 %v8079
    %v8890 = vunpack.c.l.b16 %v8080
    %v8891 = vunpack.c.h.b16 %v8080
    %v8892 = vunpack.c.l.b16 %v8081
    %v8893 = vunpack.c.h.b16 %v8081
    %v8894 = vunpack.c.l.b16 %v8082
    %v8895 = vunpack.c.h.b16 %v8082
    %v8896 = vunpack.c.l.b16 %v8083
    %v8897 = vunpack.c.h.b16 %v8083
    %v8898 = vunpack.c.l.b16 %v8084
    %v8899 = vunpack.c.h.b16 %v8084
    %v8900 = vunpack.c.l.b16 %v8085
    %v8901 = vunpack.c.h.b16 %v8085
    %v8902 = vunpack.c.l.b16 %v8086
    %v8903 = vunpack.c.h.b16 %v8086
    %v8904 = vunpack.c.l.b16 %v8087
    %v8905 = vunpack.c.h.b16 %v8087
    %v8906 = vunpack.c.l.b16 %v8088
    %v8907 = vunpack.c.h.b16 %v8088
    %v8908 = vunpack.c.l.b16 %v8089
    %v8909 = vunpack.c.h.b16 %v8089
    %v8910 = vunpack.c.l.b16 %v8090
    %v8911 = vunpack.c.h.b16 %v8090
    %v8912 = vunpack.c.l.b16 %v8091
    %v8913 = vunpack.c.h.b16 %v8091
    %v8914 = vunpack.c.l.b16 %v8092
    %v8915 = vunpack.c.h.b16 %v8092
    %v8916 = vunpack.c.l.b16 %v8093
    %v8917 = vunpack.c.h.b16 %v8093
    %v8918 = vunpack.c.l.b16 %v8094
    %v8919 = vunpack.c.h.b16 %v8094
    %v8920 = vunpack.c.l.b16 %v8095
    %v8921 = vunpack.c.h.b16 %v8095
    %v8922 = vunpack.c.l.b16 %v8096
    %v8923 = vunpack.c.h.b16 %v8096
    %v8924 = vunpack.c.l.b16 %v8097
    %v8925 = vunpack.c.h.b16 %v8097
    %v8926 = vunpack.c.l.b16 %v8098
    %v8927 = vunpack.c.h.b16 %v8098
    %v8928 = vunpack.c.l.b16 %v8099
    %v8929 = vunpack.c.h.b16 %v8099
    %v8930 = vunpack.c.l.b16 %v8100
    %v8931 = vunpack.c.h.b16 %v8100
    %v8932 = vunpack.c.l.b16 %v8101
    %v8933 = vunpack.c.h.b16 %v8101
    %v8934 = vunpack.c.l.b16 %v8102
    %v8935 = vunpack.c.h.b16 %v8102
    %v8936 = vunpack.c.l.b16 %v8103
    %v8937 = vunpack.c.h.b16 %v8103
    %v8938 = vunpack.c.l.b16 %v8104
    %v8939 = vunpack.c.h.b16 %v8104
    %v8940 = vunpack.c.l.b16 %v8105
    %v8941 = vunpack.c.h.b16 %v8105
    %v8942 = vunpack.c.l.b16 %v8106
    %v8943 = vunpack.c.h.b16 %v8106
    %v8944 = vunpack.c.l.b16 %v8107
    %v8945 = vunpack.c.h.b16 %v8107
    %v8946 = vunpack.c.l.b16 %v8108
    %v8947 = vunpack.c.h.b16 %v8108
    %v8948 = vunpack.c.l.b16 %v8109
    %v8949 = vunpack.c.h.b16 %v8109
    %v8950 = vunpack.c.l.b16 %v8110
    %v8951 = vunpack.c.h.b16 %v8110
    %v8952 = vunpack.c.l.b16 %v8111
    %v8953 = vunpack.c.h.b16 %v8111
    %v8954 = vunpack.c.l.b16 %v8112
    %v8955 = vunpack.c.h.b16 %v8112
    %v8956 = vunpack.c.l.b16 %v8113
    %v8957 = vunpack.c.h.b16 %v8113
    %v8958 = vunpack.c.l.b16 %v8114
    %v8959 = vunpack.c.h.b16 %v8114
    %v8960 = vunpack.c.l.b16 %v8115
    %v8961 = vunpack.c.h.b16 %v8115
    %v8962 = vunpack.c.l.b16 %v8116
    %v8963 = vunpack.c.h.b16 %v8116
    %v8964 = vunpack.c.l.b16 %v8117
    %v8965 = vunpack.c.h.b16 %v8117
    %v8966 = vunpack.c.l.b16 %v8118
    %v8967 = vunpack.c.h.b16 %v8118
    %v8968 = vunpack.c.l.b16 %v8119
    %v8969 = vunpack.c.h.b16 %v8119
    %v8970 = vunpack.c.l.b16 %v8120
    %v8971 = vunpack.c.h.b16 %v8120
    %v8972 = vunpack.c.l.b16 %v8121
    %v8973 = vunpack.c.h.b16 %v8121
    %v8974 = vunpack.c.l.b16 %v8122
    %v8975 = vunpack.c.h.b16 %v8122
    %v8976 = vunpack.c.l.b16 %v8123
    %v8977 = vunpack.c.h.b16 %v8123
    %v8978 = vunpack.c.l.b16 %v8124
    %v8979 = vunpack.c.h.b16 %v8124
    %v8980 = vunpack.c.l.b16 %v8125
    %v8981 = vunpack.c.h.b16 %v8125
    %v8982 = vunpack.c.l.b16 %v8126
    %v8983 = vunpack.c.h.b16 %v8126
    %v8984 = vunpack.c.l.b16 %v8127
    %v8985 = vunpack.c.h.b16 %v8127
    %v8986 = vunpack.c.l.b16 %v8128
    %v8987 = vunpack.c.h.b16 %v8128
    %v8988 = vunpack.c.l.b16 %v8129
    %v8989 = vunpack.c.h.b16 %v8129
    %v8990 = vunpack.c.l.b16 %v8130
    %v8991 = vunpack.c.h.b16 %v8130
    %v8992 = vunpack.c.l.b16 %v8131
    %v8993 = vunpack.c.h.b16 %v8131
    %v8994 = vunpack.c.l.b16 %v8132
    %v8995 = vunpack.c.h.b16 %v8132
    %v8996 = vunpack.c.l.b16 %v8133
    %v8997 = vunpack.c.h.b16 %v8133
    %v8998 = vunpack.c.l.b16 %v8134
    %v8999 = vunpack.c.h.b16 %v8134
    %v9000 = vunpack.c.l.b16 %v8135
    %v9001 = vunpack.c.h.b16 %v8135
    %v9002 = vunpack.c.l.b16 %v8136
    %v9003 = vunpack.c.h.b16 %v8136
    %v9004 = vunpack.c.l.b16 %v8137
    %v9005 = vunpack.c.h.b16 %v8137
    %v9006 = vunpack.c.l.b16 %v8138
    %v9007 = vunpack.c.h.b16 %v8138
    %v9008 = vunpack.c.l.b16 %v8139
    %v9009 = vunpack.c.h.b16 %v8139
    %v9010 = vunpack.c.l.b16 %v8140
    %v9011 = vunpack.c.h.b16 %v8140
    %v9012 = vunpack.c.l.b16 %v8141
    %v9013 = vunpack.c.h.b16 %v8141
    %v9014 = vunpack.c.l.b16 %v8142
    %v9015 = vunpack.c.h.b16 %v8142
    %v9016 = vunpack.c.l.b16 %v8143
    %v9017 = vunpack.c.h.b16 %v8143
    %v9018 = vunpack.c.l.b16 %v8144
    %v9019 = vunpack.c.h.b16 %v8144
    %v9020 = vunpack.c.l.b16 %v8145
    %v9021 = vunpack.c.h.b16 %v8145
    %v9022 = vunpack.c.l.b16 %v8146
    %v9023 = vunpack.c.h.b16 %v8146
    %v9024 = vunpack.c.l.b16 %v8147
    %v9025 = vunpack.c.h.b16 %v8147
    %v9026 = vunpack.c.l.b16 %v8148
    %v9027 = vunpack.c.h.b16 %v8148
    %v9028 = vunpack.c.l.b16 %v8149
    %v9029 = vunpack.c.h.b16 %v8149
    %v9030 = vunpack.c.l.b16 %v8150
    %v9031 = vunpack.c.h.b16 %v8150
    %v9032 = vunpack.c.l.b16 %v8151
    %v9033 = vunpack.c.h.b16 %v8151
    %v9034 = vunpack.c.l.b16 %v8152
    %v9035 = vunpack.c.h.b16 %v8152
    %v9036 = vunpack.c.l.b16 %v8153
    %v9037 = vunpack.c.h.b16 %v8153
    %v9038 = vunpack.c.l.b16 %v8154
    %v9039 = vunpack.c.h.b16 %v8154
    %v9040 = vunpack.c.l.b16 %v8155
    %v9041 = vunpack.c.h.b16 %v8155
    %v9042 = vunpack.c.l.b16 %v8156
    %v9043 = vunpack.c.h.b16 %v8156
    %v9044 = vunpack.c.l.b16 %v8157
    %v9045 = vunpack.c.h.b16 %v8157
    %v9046 = vunpack.c.l.b16 %v8158
    %v9047 = vunpack.c.h.b16 %v8158
    %v9048 = vunpack.c.l.b16 %v8159
    %v9049 = vunpack.c.h.b16 %v8159
    %v9050 = vunpack.c.l.b16 %v8160
    %v9051 = vunpack.c.h.b16 %v8160
    %v9052 = vunpack.c.l.b16 %v8161
    %v9053 = vunpack.c.h.b16 %v8161
    %v9054 = vunpack.c.l.b16 %v8162
    %v9055 = vunpack.c.h.b16 %v8162
    %v9056 = vunpack.c.l.b16 %v8163
    %v9057 = vunpack.c.h.b16 %v8163
    %v9058 = vunpack.c.l.b16 %v8164
    %v9059 = vunpack.c.h.b16 %v8164
    %v9060 = vunpack.c.l.b16 %v8165
    %v9061 = vunpack.c.h.b16 %v8165
    %v9062 = vunpack.c.l.b16 %v8166
    %v9063 = vunpack.c.h.b16 %v8166
    %v9064 = vunpack.c.l.b16 %v8167
    %v9065 = vunpack.c.h.b16 %v8167
    %v9066 = vunpack.c.l.b16 %v8168
    %v9067 = vunpack.c.h.b16 %v8168
    %v9068 = vunpack.c.l.b16 %v8169
    %v9069 = vunpack.c.h.b16 %v8169
    %v9070 = vunpack.c.l.b16 %v8170
    %v9071 = vunpack.c.h.b16 %v8170
    %v9072 = vunpack.c.l.b16 %v8171
    %v9073 = vunpack.c.h.b16 %v8171
    %v9074 = vlaneseq
    %v9075 = vshrl.u32 %v9074, 7
    %v9076 = vsub.s32 %v3918, %v9075
    %v9077 = vrot.slane %v8722, %v9076
    %v9078 = vlaneseq
    %v9079 = vshrl.u32 %v9078, 7
    %v9080 = vsub.s32 %v3923, %v9079
    %v9081 = vrot.slane %v8723, %v9080
    %v9082 = vsel %vm3928, %v9081, %v9077
    %v9083 = vlaneseq
    %v9084 = vshrl.u32 %v9083, 7
    %v9085 = vsub.s32 %v3930, %v9084
    %v9086 = vrot.slane %v8724, %v9085
    %v9087 = vsel %vm3935, %v9086, %v9082
    %v9088 = vlaneseq
    %v9089 = vshrl.u32 %v9088, 7
    %v9090 = vsub.s32 %v3937, %v9089
    %v9091 = vrot.slane %v8725, %v9090
    %v9092 = vsel %vm3942, %v9091, %v9087
    %v9093 = vlaneseq
    %v9094 = vshrl.u32 %v9093, 7
    %v9095 = vsub.s32 %v3944, %v9094
    %v9096 = vrot.slane %v8726, %v9095
    %v9097 = vsel %vm3949, %v9096, %v9092
    %v9098 = vlaneseq
    %v9099 = vshrl.u32 %v9098, 7
    %v9100 = vsub.s32 %v3951, %v9099
    %v9101 = vrot.slane %v8727, %v9100
    %v9102 = vsel %vm3956, %v9101, %v9097
    %v9103 = vlaneseq
    %v9104 = vshrl.u32 %v9103, 7
    %v9105 = vsub.s32 %v3958, %v9104
    %v9106 = vrot.slane %v8728, %v9105
    %v9107 = vsel %vm3963, %v9106, %v9102
    %v9108 = vlaneseq
    %v9109 = vshrl.u32 %v9108, 7
    %v9110 = vsub.s32 %v3965, %v9109
    %v9111 = vrot.slane %v8729, %v9110
    %v9112 = vsel %vm3970, %v9111, %v9107
    %v9113 = vlaneseq
    %v9114 = vshrl.u32 %v9113, 7
    %v9115 = vsub.s32 %v3972, %v9114
    %v9116 = vrot.slane %v8730, %v9115
    %v9117 = vsel %vm3977, %v9116, %v9112
    %v9118 = vlaneseq
    %v9119 = vshrl.u32 %v9118, 7
    %v9120 = vsub.s32 %v3979, %v9119
    %v9121 = vrot.slane %v8731, %v9120
    %v9122 = vsel %vm3984, %v9121, %v9117
    %v9123 = vlaneseq
    %v9124 = vshrl.u32 %v9123, 7
    %v9125 = vsub.s32 %v3986, %v9124
    %v9126 = vrot.slane %v8732, %v9125
    %v9127 = vsel %vm3991, %v9126, %v9122
    %v9128 = vlaneseq
    %v9129 = vshrl.u32 %v9128, 7
    %v9130 = vsub.s32 %v3993, %v9129
    %v9131 = vrot.slane %v8733, %v9130
    %v9132 = vsel %vm3998, %v9131, %v9127
    %v9133 = vlaneseq
    %v9134 = vshrl.u32 %v9133, 7
    %v9135 = vsub.s32 %v4000, %v9134
    %v9136 = vrot.slane %v8734, %v9135
    %v9137 = vsel %vm4005, %v9136, %v9132
    %v9138 = vlaneseq
    %v9139 = vshrl.u32 %v9138, 7
    %v9140 = vsub.s32 %v4007, %v9139
    %v9141 = vrot.slane %v8735, %v9140
    %v9142 = vsel %vm4012, %v9141, %v9137
    %v9143 = vlaneseq
    %v9144 = vshrl.u32 %v9143, 7
    %v9145 = vsub.s32 %v4014, %v9144
    %v9146 = vrot.slane %v8736, %v9145
    %v9147 = vsel %vm4019, %v9146, %v9142
    %v9148 = vlaneseq
    %v9149 = vshrl.u32 %v9148, 7
    %v9150 = vsub.s32 %v4021, %v9149
    %v9151 = vrot.slane %v8737, %v9150
    %v9152 = vsel %vm4026, %v9151, %v9147
    %v9153 = vlaneseq
    %v9154 = vshrl.u32 %v9153, 7
    %v9155 = vsub.s32 %v3918, %v9154
    %v9156 = vrot.slane %v8738, %v9155
    %v9157 = vlaneseq
    %v9158 = vshrl.u32 %v9157, 7
    %v9159 = vsub.s32 %v3923, %v9158
    %v9160 = vrot.slane %v8739, %v9159
    %v9161 = vsel %vm3928, %v9160, %v9156
    %v9162 = vlaneseq
    %v9163 = vshrl.u32 %v9162, 7
    %v9164 = vsub.s32 %v3930, %v9163
    %v9165 = vrot.slane %v8740, %v9164
    %v9166 = vsel %vm3935, %v9165, %v9161
    %v9167 = vlaneseq
    %v9168 = vshrl.u32 %v9167, 7
    %v9169 = vsub.s32 %v3937, %v9168
    %v9170 = vrot.slane %v8741, %v9169
    %v9171 = vsel %vm3942, %v9170, %v9166
    %v9172 = vlaneseq
    %v9173 = vshrl.u32 %v9172, 7
    %v9174 = vsub.s32 %v3944, %v9173
    %v9175 = vrot.slane %v8742, %v9174
    %v9176 = vsel %vm3949, %v9175, %v9171
    %v9177 = vlaneseq
    %v9178 = vshrl.u32 %v9177, 7
    %v9179 = vsub.s32 %v3951, %v9178
    %v9180 = vrot.slane %v8743, %v9179
    %v9181 = vsel %vm3956, %v9180, %v9176
    %v9182 = vlaneseq
    %v9183 = vshrl.u32 %v9182, 7
    %v9184 = vsub.s32 %v3958, %v9183
    %v9185 = vrot.slane %v8744, %v9184
    %v9186 = vsel %vm3963, %v9185, %v9181
    %v9187 = vlaneseq
    %v9188 = vshrl.u32 %v9187, 7
    %v9189 = vsub.s32 %v3965, %v9188
    %v9190 = vrot.slane %v8745, %v9189
    %v9191 = vsel %vm3970, %v9190, %v9186
    %v9192 = vlaneseq
    %v9193 = vshrl.u32 %v9192, 7
    %v9194 = vsub.s32 %v3972, %v9193
    %v9195 = vrot.slane %v8746, %v9194
    %v9196 = vsel %vm3977, %v9195, %v9191
    %v9197 = vlaneseq
    %v9198 = vshrl.u32 %v9197, 7
    %v9199 = vsub.s32 %v3979, %v9198
    %v9200 = vrot.slane %v8747, %v9199
    %v9201 = vsel %vm3984, %v9200, %v9196
    %v9202 = vlaneseq
    %v9203 = vshrl.u32 %v9202, 7
    %v9204 = vsub.s32 %v3986, %v9203
    %v9205 = vrot.slane %v8748, %v9204
    %v9206 = vsel %vm3991, %v9205, %v9201
    %v9207 = vlaneseq
    %v9208 = vshrl.u32 %v9207, 7
    %v9209 = vsub.s32 %v3993, %v9208
    %v9210 = vrot.slane %v8749, %v9209
    %v9211 = vsel %vm3998, %v9210, %v9206
    %v9212 = vlaneseq
    %v9213 = vshrl.u32 %v9212, 7
    %v9214 = vsub.s32 %v4000, %v9213
    %v9215 = vrot.slane %v8750, %v9214
    %v9216 = vsel %vm4005, %v9215, %v9211
    %v9217 = vlaneseq
    %v9218 = vshrl.u32 %v9217, 7
    %v9219 = vsub.s32 %v4007, %v9218
    %v9220 = vrot.slane %v8751, %v9219
    %v9221 = vsel %vm4012, %v9220, %v9216
    %v9222 = vlaneseq
    %v9223 = vshrl.u32 %v9222, 7
    %v9224 = vsub.s32 %v4014, %v9223
    %v9225 = vrot.slane %v8752, %v9224
    %v9226 = vsel %vm4019, %v9225, %v9221
    %v9227 = vlaneseq
    %v9228 = vshrl.u32 %v9227, 7
    %v9229 = vsub.s32 %v4021, %v9228
    %v9230 = vrot.slane %v8753, %v9229
    %v9231 = vsel %vm4026, %v9230, %v9226
    %v9232 = vlaneseq
    %v9233 = vshrl.u32 %v9232, 7
    %v9234 = vsub.s32 %v3918, %v9233
    %v9235 = vrot.slane %v8754, %v9234
    %v9236 = vlaneseq
    %v9237 = vshrl.u32 %v9236, 7
    %v9238 = vsub.s32 %v3923, %v9237
    %v9239 = vrot.slane %v8755, %v9238
    %v9240 = vsel %vm3928, %v9239, %v9235
    %v9241 = vlaneseq
    %v9242 = vshrl.u32 %v9241, 7
    %v9243 = vsub.s32 %v3930, %v9242
    %v9244 = vrot.slane %v8756, %v9243
    %v9245 = vsel %vm3935, %v9244, %v9240
    %v9246 = vlaneseq
    %v9247 = vshrl.u32 %v9246, 7
    %v9248 = vsub.s32 %v3937, %v9247
    %v9249 = vrot.slane %v8757, %v9248
    %v9250 = vsel %vm3942, %v9249, %v9245
    %v9251 = vlaneseq
    %v9252 = vshrl.u32 %v9251, 7
    %v9253 = vsub.s32 %v3944, %v9252
    %v9254 = vrot.slane %v8758, %v9253
    %v9255 = vsel %vm3949, %v9254, %v9250
    %v9256 = vlaneseq
    %v9257 = vshrl.u32 %v9256, 7
    %v9258 = vsub.s32 %v3951, %v9257
    %v9259 = vrot.slane %v8759, %v9258
    %v9260 = vsel %vm3956, %v9259, %v9255
    %v9261 = vlaneseq
    %v9262 = vshrl.u32 %v9261, 7
    %v9263 = vsub.s32 %v3958, %v9262
    %v9264 = vrot.slane %v8760, %v9263
    %v9265 = vsel %vm3963, %v9264, %v9260
    %v9266 = vlaneseq
    %v9267 = vshrl.u32 %v9266, 7
    %v9268 = vsub.s32 %v3965, %v9267
    %v9269 = vrot.slane %v8761, %v9268
    %v9270 = vsel %vm3970, %v9269, %v9265
    %v9271 = vlaneseq
    %v9272 = vshrl.u32 %v9271, 7
    %v9273 = vsub.s32 %v3972, %v9272
    %v9274 = vrot.slane %v8762, %v9273
    %v9275 = vsel %vm3977, %v9274, %v9270
    %v9276 = vlaneseq
    %v9277 = vshrl.u32 %v9276, 7
    %v9278 = vsub.s32 %v3979, %v9277
    %v9279 = vrot.slane %v8763, %v9278
    %v9280 = vsel %vm3984, %v9279, %v9275
    %v9281 = vlaneseq
    %v9282 = vshrl.u32 %v9281, 7
    %v9283 = vsub.s32 %v3986, %v9282
    %v9284 = vrot.slane %v8764, %v9283
    %v9285 = vsel %vm3991, %v9284, %v9280
    %v9286 = vlaneseq
    %v9287 = vshrl.u32 %v9286, 7
    %v9288 = vsub.s32 %v3993, %v9287
    %v9289 = vrot.slane %v8765, %v9288
    %v9290 = vsel %vm3998, %v9289, %v9285
    %v9291 = vlaneseq
    %v9292 = vshrl.u32 %v9291, 7
    %v9293 = vsub.s32 %v4000, %v9292
    %v9294 = vrot.slane %v8766, %v9293
    %v9295 = vsel %vm4005, %v9294, %v9290
    %v9296 = vlaneseq
    %v9297 = vshrl.u32 %v9296, 7
    %v9298 = vsub.s32 %v4007, %v9297
    %v9299 = vrot.slane %v8767, %v9298
    %v9300 = vsel %vm4012, %v9299, %v9295
    %v9301 = vlaneseq
    %v9302 = vshrl.u32 %v9301, 7
    %v9303 = vsub.s32 %v4014, %v9302
    %v9304 = vrot.slane %v8768, %v9303
    %v9305 = vsel %vm4019, %v9304, %v9300
    %v9306 = vlaneseq
    %v9307 = vshrl.u32 %v9306, 7
    %v9308 = vsub.s32 %v4021, %v9307
    %v9309 = vrot.slane %v8769, %v9308
    %v9310 = vsel %vm4026, %v9309, %v9305
    %v9311 = vlaneseq
    %v9312 = vshrl.u32 %v9311, 7
    %v9313 = vsub.s32 %v3918, %v9312
    %v9314 = vrot.slane %v8770, %v9313
    %v9315 = vlaneseq
    %v9316 = vshrl.u32 %v9315, 7
    %v9317 = vsub.s32 %v3923, %v9316
    %v9318 = vrot.slane %v8771, %v9317
    %v9319 = vsel %vm3928, %v9318, %v9314
    %v9320 = vlaneseq
    %v9321 = vshrl.u32 %v9320, 7
    %v9322 = vsub.s32 %v3930, %v9321
    %v9323 = vrot.slane %v8772, %v9322
    %v9324 = vsel %vm3935, %v9323, %v9319
    %v9325 = vlaneseq
    %v9326 = vshrl.u32 %v9325, 7
    %v9327 = vsub.s32 %v3937, %v9326
    %v9328 = vrot.slane %v8773, %v9327
    %v9329 = vsel %vm3942, %v9328, %v9324
    %v9330 = vlaneseq
    %v9331 = vshrl.u32 %v9330, 7
    %v9332 = vsub.s32 %v3944, %v9331
    %v9333 = vrot.slane %v8774, %v9332
    %v9334 = vsel %vm3949, %v9333, %v9329
    %v9335 = vlaneseq
    %v9336 = vshrl.u32 %v9335, 7
    %v9337 = vsub.s32 %v3951, %v9336
    %v9338 = vrot.slane %v8775, %v9337
    %v9339 = vsel %vm3956, %v9338, %v9334
    %v9340 = vlaneseq
    %v9341 = vshrl.u32 %v9340, 7
    %v9342 = vsub.s32 %v3958, %v9341
    %v9343 = vrot.slane %v8776, %v9342
    %v9344 = vsel %vm3963, %v9343, %v9339
    %v9345 = vlaneseq
    %v9346 = vshrl.u32 %v9345, 7
    %v9347 = vsub.s32 %v3965, %v9346
    %v9348 = vrot.slane %v8777, %v9347
    %v9349 = vsel %vm3970, %v9348, %v9344
    %v9350 = vlaneseq
    %v9351 = vshrl.u32 %v9350, 7
    %v9352 = vsub.s32 %v3972, %v9351
    %v9353 = vrot.slane %v8778, %v9352
    %v9354 = vsel %vm3977, %v9353, %v9349
    %v9355 = vlaneseq
    %v9356 = vshrl.u32 %v9355, 7
    %v9357 = vsub.s32 %v3979, %v9356
    %v9358 = vrot.slane %v8779, %v9357
    %v9359 = vsel %vm3984, %v9358, %v9354
    %v9360 = vlaneseq
    %v9361 = vshrl.u32 %v9360, 7
    %v9362 = vsub.s32 %v3986, %v9361
    %v9363 = vrot.slane %v8780, %v9362
    %v9364 = vsel %vm3991, %v9363, %v9359
    %v9365 = vlaneseq
    %v9366 = vshrl.u32 %v9365, 7
    %v9367 = vsub.s32 %v3993, %v9366
    %v9368 = vrot.slane %v8781, %v9367
    %v9369 = vsel %vm3998, %v9368, %v9364
    %v9370 = vlaneseq
    %v9371 = vshrl.u32 %v9370, 7
    %v9372 = vsub.s32 %v4000, %v9371
    %v9373 = vrot.slane %v8782, %v9372
    %v9374 = vsel %vm4005, %v9373, %v9369
    %v9375 = vlaneseq
    %v9376 = vshrl.u32 %v9375, 7
    %v9377 = vsub.s32 %v4007, %v9376
    %v9378 = vrot.slane %v8783, %v9377
    %v9379 = vsel %vm4012, %v9378, %v9374
    %v9380 = vlaneseq
    %v9381 = vshrl.u32 %v9380, 7
    %v9382 = vsub.s32 %v4014, %v9381
    %v9383 = vrot.slane %v8784, %v9382
    %v9384 = vsel %vm4019, %v9383, %v9379
    %v9385 = vlaneseq
    %v9386 = vshrl.u32 %v9385, 7
    %v9387 = vsub.s32 %v4021, %v9386
    %v9388 = vrot.slane %v8785, %v9387
    %v9389 = vsel %vm4026, %v9388, %v9384
    %v9390 = vlaneseq
    %v9391 = vshrl.u32 %v9390, 7
    %v9392 = vsub.s32 %v3918, %v9391
    %v9393 = vrot.slane %v8786, %v9392
    %v9394 = vlaneseq
    %v9395 = vshrl.u32 %v9394, 7
    %v9396 = vsub.s32 %v3923, %v9395
    %v9397 = vrot.slane %v8787, %v9396
    %v9398 = vsel %vm3928, %v9397, %v9393
    %v9399 = vlaneseq
    %v9400 = vshrl.u32 %v9399, 7
    %v9401 = vsub.s32 %v3930, %v9400
    %v9402 = vrot.slane %v8788, %v9401
    %v9403 = vsel %vm3935, %v9402, %v9398
    %v9404 = vlaneseq
    %v9405 = vshrl.u32 %v9404, 7
    %v9406 = vsub.s32 %v3937, %v9405
    %v9407 = vrot.slane %v8789, %v9406
    %v9408 = vsel %vm3942, %v9407, %v9403
    %v9409 = vlaneseq
    %v9410 = vshrl.u32 %v9409, 7
    %v9411 = vsub.s32 %v3944, %v9410
    %v9412 = vrot.slane %v8790, %v9411
    %v9413 = vsel %vm3949, %v9412, %v9408
    %v9414 = vlaneseq
    %v9415 = vshrl.u32 %v9414, 7
    %v9416 = vsub.s32 %v3951, %v9415
    %v9417 = vrot.slane %v8791, %v9416
    %v9418 = vsel %vm3956, %v9417, %v9413
    %v9419 = vlaneseq
    %v9420 = vshrl.u32 %v9419, 7
    %v9421 = vsub.s32 %v3958, %v9420
    %v9422 = vrot.slane %v8792, %v9421
    %v9423 = vsel %vm3963, %v9422, %v9418
    %v9424 = vlaneseq
    %v9425 = vshrl.u32 %v9424, 7
    %v9426 = vsub.s32 %v3965, %v9425
    %v9427 = vrot.slane %v8793, %v9426
    %v9428 = vsel %vm3970, %v9427, %v9423
    %v9429 = vlaneseq
    %v9430 = vshrl.u32 %v9429, 7
    %v9431 = vsub.s32 %v3972, %v9430
    %v9432 = vrot.slane %v8794, %v9431
    %v9433 = vsel %vm3977, %v9432, %v9428
    %v9434 = vlaneseq
    %v9435 = vshrl.u32 %v9434, 7
    %v9436 = vsub.s32 %v3979, %v9435
    %v9437 = vrot.slane %v8795, %v9436
    %v9438 = vsel %vm3984, %v9437, %v9433
    %v9439 = vlaneseq
    %v9440 = vshrl.u32 %v9439, 7
    %v9441 = vsub.s32 %v3986, %v9440
    %v9442 = vrot.slane %v8796, %v9441
    %v9443 = vsel %vm3991, %v9442, %v9438
    %v9444 = vlaneseq
    %v9445 = vshrl.u32 %v9444, 7
    %v9446 = vsub.s32 %v3993, %v9445
    %v9447 = vrot.slane %v8797, %v9446
    %v9448 = vsel %vm3998, %v9447, %v9443
    %v9449 = vlaneseq
    %v9450 = vshrl.u32 %v9449, 7
    %v9451 = vsub.s32 %v4000, %v9450
    %v9452 = vrot.slane %v8798, %v9451
    %v9453 = vsel %vm4005, %v9452, %v9448
    %v9454 = vlaneseq
    %v9455 = vshrl.u32 %v9454, 7
    %v9456 = vsub.s32 %v4007, %v9455
    %v9457 = vrot.slane %v8799, %v9456
    %v9458 = vsel %vm4012, %v9457, %v9453
    %v9459 = vlaneseq
    %v9460 = vshrl.u32 %v9459, 7
    %v9461 = vsub.s32 %v4014, %v9460
    %v9462 = vrot.slane %v8800, %v9461
    %v9463 = vsel %vm4019, %v9462, %v9458
    %v9464 = vlaneseq
    %v9465 = vshrl.u32 %v9464, 7
    %v9466 = vsub.s32 %v4021, %v9465
    %v9467 = vrot.slane %v8801, %v9466
    %v9468 = vsel %vm4026, %v9467, %v9463
    %v9469 = vlaneseq
    %v9470 = vshrl.u32 %v9469, 7
    %v9471 = vsub.s32 %v3918, %v9470
    %v9472 = vrot.slane %v8802, %v9471
    %v9473 = vlaneseq
    %v9474 = vshrl.u32 %v9473, 7
    %v9475 = vsub.s32 %v3923, %v9474
    %v9476 = vrot.slane %v8803, %v9475
    %v9477 = vsel %vm3928, %v9476, %v9472
    %v9478 = vlaneseq
    %v9479 = vshrl.u32 %v9478, 7
    %v9480 = vsub.s32 %v3930, %v9479
    %v9481 = vrot.slane %v8804, %v9480
    %v9482 = vsel %vm3935, %v9481, %v9477
    %v9483 = vlaneseq
    %v9484 = vshrl.u32 %v9483, 7
    %v9485 = vsub.s32 %v3937, %v9484
    %v9486 = vrot.slane %v8805, %v9485
    %v9487 = vsel %vm3942, %v9486, %v9482
    %v9488 = vlaneseq
    %v9489 = vshrl.u32 %v9488, 7
    %v9490 = vsub.s32 %v3944, %v9489
    %v9491 = vrot.slane %v8806, %v9490
    %v9492 = vsel %vm3949, %v9491, %v9487
    %v9493 = vlaneseq
    %v9494 = vshrl.u32 %v9493, 7
    %v9495 = vsub.s32 %v3951, %v9494
    %v9496 = vrot.slane %v8807, %v9495
    %v9497 = vsel %vm3956, %v9496, %v9492
    %v9498 = vlaneseq
    %v9499 = vshrl.u32 %v9498, 7
    %v9500 = vsub.s32 %v3958, %v9499
    %v9501 = vrot.slane %v8808, %v9500
    %v9502 = vsel %vm3963, %v9501, %v9497
    %v9503 = vlaneseq
    %v9504 = vshrl.u32 %v9503, 7
    %v9505 = vsub.s32 %v3965, %v9504
    %v9506 = vrot.slane %v8809, %v9505
    %v9507 = vsel %vm3970, %v9506, %v9502
    %v9508 = vlaneseq
    %v9509 = vshrl.u32 %v9508, 7
    %v9510 = vsub.s32 %v3972, %v9509
    %v9511 = vrot.slane %v8810, %v9510
    %v9512 = vsel %vm3977, %v9511, %v9507
    %v9513 = vlaneseq
    %v9514 = vshrl.u32 %v9513, 7
    %v9515 = vsub.s32 %v3979, %v9514
    %v9516 = vrot.slane %v8811, %v9515
    %v9517 = vsel %vm3984, %v9516, %v9512
    %v9518 = vlaneseq
    %v9519 = vshrl.u32 %v9518, 7
    %v9520 = vsub.s32 %v3986, %v9519
    %v9521 = vrot.slane %v8812, %v9520
    %v9522 = vsel %vm3991, %v9521, %v9517
    %v9523 = vlaneseq
    %v9524 = vshrl.u32 %v9523, 7
    %v9525 = vsub.s32 %v3993, %v9524
    %v9526 = vrot.slane %v8813, %v9525
    %v9527 = vsel %vm3998, %v9526, %v9522
    %v9528 = vlaneseq
    %v9529 = vshrl.u32 %v9528, 7
    %v9530 = vsub.s32 %v4000, %v9529
    %v9531 = vrot.slane %v8814, %v9530
    %v9532 = vsel %vm4005, %v9531, %v9527
    %v9533 = vlaneseq
    %v9534 = vshrl.u32 %v9533, 7
    %v9535 = vsub.s32 %v4007, %v9534
    %v9536 = vrot.slane %v8815, %v9535
    %v9537 = vsel %vm4012, %v9536, %v9532
    %v9538 = vlaneseq
    %v9539 = vshrl.u32 %v9538, 7
    %v9540 = vsub.s32 %v4014, %v9539
    %v9541 = vrot.slane %v8816, %v9540
    %v9542 = vsel %vm4019, %v9541, %v9537
    %v9543 = vlaneseq
    %v9544 = vshrl.u32 %v9543, 7
    %v9545 = vsub.s32 %v4021, %v9544
    %v9546 = vrot.slane %v8817, %v9545
    %v9547 = vsel %vm4026, %v9546, %v9542
    %v9548 = vlaneseq
    %v9549 = vshrl.u32 %v9548, 7
    %v9550 = vsub.s32 %v3918, %v9549
    %v9551 = vrot.slane %v8818, %v9550
    %v9552 = vlaneseq
    %v9553 = vshrl.u32 %v9552, 7
    %v9554 = vsub.s32 %v3923, %v9553
    %v9555 = vrot.slane %v8819, %v9554
    %v9556 = vsel %vm3928, %v9555, %v9551
    %v9557 = vlaneseq
    %v9558 = vshrl.u32 %v9557, 7
    %v9559 = vsub.s32 %v3930, %v9558
    %v9560 = vrot.slane %v8820, %v9559
    %v9561 = vsel %vm3935, %v9560, %v9556
    %v9562 = vlaneseq
    %v9563 = vshrl.u32 %v9562, 7
    %v9564 = vsub.s32 %v3937, %v9563
    %v9565 = vrot.slane %v8821, %v9564
    %v9566 = vsel %vm3942, %v9565, %v9561
    %v9567 = vlaneseq
    %v9568 = vshrl.u32 %v9567, 7
    %v9569 = vsub.s32 %v3944, %v9568
    %v9570 = vrot.slane %v8822, %v9569
    %v9571 = vsel %vm3949, %v9570, %v9566
    %v9572 = vlaneseq
    %v9573 = vshrl.u32 %v9572, 7
    %v9574 = vsub.s32 %v3951, %v9573
    %v9575 = vrot.slane %v8823, %v9574
    %v9576 = vsel %vm3956, %v9575, %v9571
    %v9577 = vlaneseq
    %v9578 = vshrl.u32 %v9577, 7
    %v9579 = vsub.s32 %v3958, %v9578
    %v9580 = vrot.slane %v8824, %v9579
    %v9581 = vsel %vm3963, %v9580, %v9576
    %v9582 = vlaneseq
    %v9583 = vshrl.u32 %v9582, 7
    %v9584 = vsub.s32 %v3965, %v9583
    %v9585 = vrot.slane %v8825, %v9584
    %v9586 = vsel %vm3970, %v9585, %v9581
    %v9587 = vlaneseq
    %v9588 = vshrl.u32 %v9587, 7
    %v9589 = vsub.s32 %v3972, %v9588
    %v9590 = vrot.slane %v8826, %v9589
    %v9591 = vsel %vm3977, %v9590, %v9586
    %v9592 = vlaneseq
    %v9593 = vshrl.u32 %v9592, 7
    %v9594 = vsub.s32 %v3979, %v9593
    %v9595 = vrot.slane %v8827, %v9594
    %v9596 = vsel %vm3984, %v9595, %v9591
    %v9597 = vlaneseq
    %v9598 = vshrl.u32 %v9597, 7
    %v9599 = vsub.s32 %v3986, %v9598
    %v9600 = vrot.slane %v8828, %v9599
    %v9601 = vsel %vm3991, %v9600, %v9596
    %v9602 = vlaneseq
    %v9603 = vshrl.u32 %v9602, 7
    %v9604 = vsub.s32 %v3993, %v9603
    %v9605 = vrot.slane %v8829, %v9604
    %v9606 = vsel %vm3998, %v9605, %v9601
    %v9607 = vlaneseq
    %v9608 = vshrl.u32 %v9607, 7
    %v9609 = vsub.s32 %v4000, %v9608
    %v9610 = vrot.slane %v8830, %v9609
    %v9611 = vsel %vm4005, %v9610, %v9606
    %v9612 = vlaneseq
    %v9613 = vshrl.u32 %v9612, 7
    %v9614 = vsub.s32 %v4007, %v9613
    %v9615 = vrot.slane %v8831, %v9614
    %v9616 = vsel %vm4012, %v9615, %v9611
    %v9617 = vlaneseq
    %v9618 = vshrl.u32 %v9617, 7
    %v9619 = vsub.s32 %v4014, %v9618
    %v9620 = vrot.slane %v8832, %v9619
    %v9621 = vsel %vm4019, %v9620, %v9616
    %v9622 = vlaneseq
    %v9623 = vshrl.u32 %v9622, 7
    %v9624 = vsub.s32 %v4021, %v9623
    %v9625 = vrot.slane %v8833, %v9624
    %v9626 = vsel %vm4026, %v9625, %v9621
    %v9627 = vlaneseq
    %v9628 = vshrl.u32 %v9627, 7
    %v9629 = vsub.s32 %v3918, %v9628
    %v9630 = vrot.slane %v8834, %v9629
    %v9631 = vlaneseq
    %v9632 = vshrl.u32 %v9631, 7
    %v9633 = vsub.s32 %v3923, %v9632
    %v9634 = vrot.slane %v8835, %v9633
    %v9635 = vsel %vm3928, %v9634, %v9630
    %v9636 = vlaneseq
    %v9637 = vshrl.u32 %v9636, 7
    %v9638 = vsub.s32 %v3930, %v9637
    %v9639 = vrot.slane %v8836, %v9638
    %v9640 = vsel %vm3935, %v9639, %v9635
    %v9641 = vlaneseq
    %v9642 = vshrl.u32 %v9641, 7
    %v9643 = vsub.s32 %v3937, %v9642
    %v9644 = vrot.slane %v8837, %v9643
    %v9645 = vsel %vm3942, %v9644, %v9640
    %v9646 = vlaneseq
    %v9647 = vshrl.u32 %v9646, 7
    %v9648 = vsub.s32 %v3944, %v9647
    %v9649 = vrot.slane %v8838, %v9648
    %v9650 = vsel %vm3949, %v9649, %v9645
    %v9651 = vlaneseq
    %v9652 = vshrl.u32 %v9651, 7
    %v9653 = vsub.s32 %v3951, %v9652
    %v9654 = vrot.slane %v8839, %v9653
    %v9655 = vsel %vm3956, %v9654, %v9650
    %v9656 = vlaneseq
    %v9657 = vshrl.u32 %v9656, 7
    %v9658 = vsub.s32 %v3958, %v9657
    %v9659 = vrot.slane %v8840, %v9658
    %v9660 = vsel %vm3963, %v9659, %v9655
    %v9661 = vlaneseq
    %v9662 = vshrl.u32 %v9661, 7
    %v9663 = vsub.s32 %v3965, %v9662
    %v9664 = vrot.slane %v8841, %v9663
    %v9665 = vsel %vm3970, %v9664, %v9660
    %v9666 = vlaneseq
    %v9667 = vshrl.u32 %v9666, 7
    %v9668 = vsub.s32 %v3972, %v9667
    %v9669 = vrot.slane %v8842, %v9668
    %v9670 = vsel %vm3977, %v9669, %v9665
    %v9671 = vlaneseq
    %v9672 = vshrl.u32 %v9671, 7
    %v9673 = vsub.s32 %v3979, %v9672
    %v9674 = vrot.slane %v8843, %v9673
    %v9675 = vsel %vm3984, %v9674, %v9670
    %v9676 = vlaneseq
    %v9677 = vshrl.u32 %v9676, 7
    %v9678 = vsub.s32 %v3986, %v9677
    %v9679 = vrot.slane %v8844, %v9678
    %v9680 = vsel %vm3991, %v9679, %v9675
    %v9681 = vlaneseq
    %v9682 = vshrl.u32 %v9681, 7
    %v9683 = vsub.s32 %v3993, %v9682
    %v9684 = vrot.slane %v8845, %v9683
    %v9685 = vsel %vm3998, %v9684, %v9680
    %v9686 = vlaneseq
    %v9687 = vshrl.u32 %v9686, 7
    %v9688 = vsub.s32 %v4000, %v9687
    %v9689 = vrot.slane %v8846, %v9688
    %v9690 = vsel %vm4005, %v9689, %v9685
    %v9691 = vlaneseq
    %v9692 = vshrl.u32 %v9691, 7
    %v9693 = vsub.s32 %v4007, %v9692
    %v9694 = vrot.slane %v8847, %v9693
    %v9695 = vsel %vm4012, %v9694, %v9690
    %v9696 = vlaneseq
    %v9697 = vshrl.u32 %v9696, 7
    %v9698 = vsub.s32 %v4014, %v9697
    %v9699 = vrot.slane %v8848, %v9698
    %v9700 = vsel %vm4019, %v9699, %v9695
    %v9701 = vlaneseq
    %v9702 = vshrl.u32 %v9701, 7
    %v9703 = vsub.s32 %v4021, %v9702
    %v9704 = vrot.slane %v8849, %v9703
    %v9705 = vsel %vm4026, %v9704, %v9700
    %v9706 = vlaneseq
    %v9707 = vshrl.u32 %v9706, 7
    %v9708 = vsub.s32 %v3918, %v9707
    %v9709 = vrot.slane %v8850, %v9708
    %v9710 = vlaneseq
    %v9711 = vshrl.u32 %v9710, 7
    %v9712 = vsub.s32 %v3923, %v9711
    %v9713 = vrot.slane %v8851, %v9712
    %v9714 = vsel %vm3928, %v9713, %v9709
    %v9715 = vlaneseq
    %v9716 = vshrl.u32 %v9715, 7
    %v9717 = vsub.s32 %v3930, %v9716
    %v9718 = vrot.slane %v8852, %v9717
    %v9719 = vsel %vm3935, %v9718, %v9714
    %v9720 = vlaneseq
    %v9721 = vshrl.u32 %v9720, 7
    %v9722 = vsub.s32 %v3937, %v9721
    %v9723 = vrot.slane %v8853, %v9722
    %v9724 = vsel %vm3942, %v9723, %v9719
    %v9725 = vlaneseq
    %v9726 = vshrl.u32 %v9725, 7
    %v9727 = vsub.s32 %v3944, %v9726
    %v9728 = vrot.slane %v8854, %v9727
    %v9729 = vsel %vm3949, %v9728, %v9724
    %v9730 = vlaneseq
    %v9731 = vshrl.u32 %v9730, 7
    %v9732 = vsub.s32 %v3951, %v9731
    %v9733 = vrot.slane %v8855, %v9732
    %v9734 = vsel %vm3956, %v9733, %v9729
    %v9735 = vlaneseq
    %v9736 = vshrl.u32 %v9735, 7
    %v9737 = vsub.s32 %v3958, %v9736
    %v9738 = vrot.slane %v8856, %v9737
    %v9739 = vsel %vm3963, %v9738, %v9734
    %v9740 = vlaneseq
    %v9741 = vshrl.u32 %v9740, 7
    %v9742 = vsub.s32 %v3965, %v9741
    %v9743 = vrot.slane %v8857, %v9742
    %v9744 = vsel %vm3970, %v9743, %v9739
    %v9745 = vlaneseq
    %v9746 = vshrl.u32 %v9745, 7
    %v9747 = vsub.s32 %v3972, %v9746
    %v9748 = vrot.slane %v8858, %v9747
    %v9749 = vsel %vm3977, %v9748, %v9744
    %v9750 = vlaneseq
    %v9751 = vshrl.u32 %v9750, 7
    %v9752 = vsub.s32 %v3979, %v9751
    %v9753 = vrot.slane %v8859, %v9752
    %v9754 = vsel %vm3984, %v9753, %v9749
    %v9755 = vlaneseq
    %v9756 = vshrl.u32 %v9755, 7
    %v9757 = vsub.s32 %v3986, %v9756
    %v9758 = vrot.slane %v8860, %v9757
    %v9759 = vsel %vm3991, %v9758, %v9754
    %v9760 = vlaneseq
    %v9761 = vshrl.u32 %v9760, 7
    %v9762 = vsub.s32 %v3993, %v9761
    %v9763 = vrot.slane %v8861, %v9762
    %v9764 = vsel %vm3998, %v9763, %v9759
    %v9765 = vlaneseq
    %v9766 = vshrl.u32 %v9765, 7
    %v9767 = vsub.s32 %v4000, %v9766
    %v9768 = vrot.slane %v8862, %v9767
    %v9769 = vsel %vm4005, %v9768, %v9764
    %v9770 = vlaneseq
    %v9771 = vshrl.u32 %v9770, 7
    %v9772 = vsub.s32 %v4007, %v9771
    %v9773 = vrot.slane %v8863, %v9772
    %v9774 = vsel %vm4012, %v9773, %v9769
    %v9775 = vlaneseq
    %v9776 = vshrl.u32 %v9775, 7
    %v9777 = vsub.s32 %v4014, %v9776
    %v9778 = vrot.slane %v8864, %v9777
    %v9779 = vsel %vm4019, %v9778, %v9774
    %v9780 = vlaneseq
    %v9781 = vshrl.u32 %v9780, 7
    %v9782 = vsub.s32 %v4021, %v9781
    %v9783 = vrot.slane %v8865, %v9782
    %v9784 = vsel %vm4026, %v9783, %v9779
    %v9785 = vlaneseq
    %v9786 = vshrl.u32 %v9785, 7
    %v9787 = vsub.s32 %v3918, %v9786
    %v9788 = vrot.slane %v8866, %v9787
    %v9789 = vlaneseq
    %v9790 = vshrl.u32 %v9789, 7
    %v9791 = vsub.s32 %v3923, %v9790
    %v9792 = vrot.slane %v8867, %v9791
    %v9793 = vsel %vm3928, %v9792, %v9788
    %v9794 = vlaneseq
    %v9795 = vshrl.u32 %v9794, 7
    %v9796 = vsub.s32 %v3930, %v9795
    %v9797 = vrot.slane %v8868, %v9796
    %v9798 = vsel %vm3935, %v9797, %v9793
    %v9799 = vlaneseq
    %v9800 = vshrl.u32 %v9799, 7
    %v9801 = vsub.s32 %v3937, %v9800
    %v9802 = vrot.slane %v8869, %v9801
    %v9803 = vsel %vm3942, %v9802, %v9798
    %v9804 = vlaneseq
    %v9805 = vshrl.u32 %v9804, 7
    %v9806 = vsub.s32 %v3944, %v9805
    %v9807 = vrot.slane %v8870, %v9806
    %v9808 = vsel %vm3949, %v9807, %v9803
    %v9809 = vlaneseq
    %v9810 = vshrl.u32 %v9809, 7
    %v9811 = vsub.s32 %v3951, %v9810
    %v9812 = vrot.slane %v8871, %v9811
    %v9813 = vsel %vm3956, %v9812, %v9808
    %v9814 = vlaneseq
    %v9815 = vshrl.u32 %v9814, 7
    %v9816 = vsub.s32 %v3958, %v9815
    %v9817 = vrot.slane %v8872, %v9816
    %v9818 = vsel %vm3963, %v9817, %v9813
    %v9819 = vlaneseq
    %v9820 = vshrl.u32 %v9819, 7
    %v9821 = vsub.s32 %v3965, %v9820
    %v9822 = vrot.slane %v8873, %v9821
    %v9823 = vsel %vm3970, %v9822, %v9818
    %v9824 = vlaneseq
    %v9825 = vshrl.u32 %v9824, 7
    %v9826 = vsub.s32 %v3972, %v9825
    %v9827 = vrot.slane %v8874, %v9826
    %v9828 = vsel %vm3977, %v9827, %v9823
    %v9829 = vlaneseq
    %v9830 = vshrl.u32 %v9829, 7
    %v9831 = vsub.s32 %v3979, %v9830
    %v9832 = vrot.slane %v8875, %v9831
    %v9833 = vsel %vm3984, %v9832, %v9828
    %v9834 = vlaneseq
    %v9835 = vshrl.u32 %v9834, 7
    %v9836 = vsub.s32 %v3986, %v9835
    %v9837 = vrot.slane %v8876, %v9836
    %v9838 = vsel %vm3991, %v9837, %v9833
    %v9839 = vlaneseq
    %v9840 = vshrl.u32 %v9839, 7
    %v9841 = vsub.s32 %v3993, %v9840
    %v9842 = vrot.slane %v8877, %v9841
    %v9843 = vsel %vm3998, %v9842, %v9838
    %v9844 = vlaneseq
    %v9845 = vshrl.u32 %v9844, 7
    %v9846 = vsub.s32 %v4000, %v9845
    %v9847 = vrot.slane %v8878, %v9846
    %v9848 = vsel %vm4005, %v9847, %v9843
    %v9849 = vlaneseq
    %v9850 = vshrl.u32 %v9849, 7
    %v9851 = vsub.s32 %v4007, %v9850
    %v9852 = vrot.slane %v8879, %v9851
    %v9853 = vsel %vm4012, %v9852, %v9848
    %v9854 = vlaneseq
    %v9855 = vshrl.u32 %v9854, 7
    %v9856 = vsub.s32 %v4014, %v9855
    %v9857 = vrot.slane %v8880, %v9856
    %v9858 = vsel %vm4019, %v9857, %v9853
    %v9859 = vlaneseq
    %v9860 = vshrl.u32 %v9859, 7
    %v9861 = vsub.s32 %v4021, %v9860
    %v9862 = vrot.slane %v8881, %v9861
    %v9863 = vsel %vm4026, %v9862, %v9858
    %v9864 = vlaneseq
    %v9865 = vshrl.u32 %v9864, 7
    %v9866 = vsub.s32 %v3918, %v9865
    %v9867 = vrot.slane %v8882, %v9866
    %v9868 = vlaneseq
    %v9869 = vshrl.u32 %v9868, 7
    %v9870 = vsub.s32 %v3923, %v9869
    %v9871 = vrot.slane %v8883, %v9870
    %v9872 = vsel %vm3928, %v9871, %v9867
    %v9873 = vlaneseq
    %v9874 = vshrl.u32 %v9873, 7
    %v9875 = vsub.s32 %v3930, %v9874
    %v9876 = vrot.slane %v8884, %v9875
    %v9877 = vsel %vm3935, %v9876, %v9872
    %v9878 = vlaneseq
    %v9879 = vshrl.u32 %v9878, 7
    %v9880 = vsub.s32 %v3937, %v9879
    %v9881 = vrot.slane %v8885, %v9880
    %v9882 = vsel %vm3942, %v9881, %v9877
    %v9883 = vlaneseq
    %v9884 = vshrl.u32 %v9883, 7
    %v9885 = vsub.s32 %v3944, %v9884
    %v9886 = vrot.slane %v8886, %v9885
    %v9887 = vsel %vm3949, %v9886, %v9882
    %v9888 = vlaneseq
    %v9889 = vshrl.u32 %v9888, 7
    %v9890 = vsub.s32 %v3951, %v9889
    %v9891 = vrot.slane %v8887, %v9890
    %v9892 = vsel %vm3956, %v9891, %v9887
    %v9893 = vlaneseq
    %v9894 = vshrl.u32 %v9893, 7
    %v9895 = vsub.s32 %v3958, %v9894
    %v9896 = vrot.slane %v8888, %v9895
    %v9897 = vsel %vm3963, %v9896, %v9892
    %v9898 = vlaneseq
    %v9899 = vshrl.u32 %v9898, 7
    %v9900 = vsub.s32 %v3965, %v9899
    %v9901 = vrot.slane %v8889, %v9900
    %v9902 = vsel %vm3970, %v9901, %v9897
    %v9903 = vlaneseq
    %v9904 = vshrl.u32 %v9903, 7
    %v9905 = vsub.s32 %v3972, %v9904
    %v9906 = vrot.slane %v8890, %v9905
    %v9907 = vsel %vm3977, %v9906, %v9902
    %v9908 = vlaneseq
    %v9909 = vshrl.u32 %v9908, 7
    %v9910 = vsub.s32 %v3979, %v9909
    %v9911 = vrot.slane %v8891, %v9910
    %v9912 = vsel %vm3984, %v9911, %v9907
    %v9913 = vlaneseq
    %v9914 = vshrl.u32 %v9913, 7
    %v9915 = vsub.s32 %v3986, %v9914
    %v9916 = vrot.slane %v8892, %v9915
    %v9917 = vsel %vm3991, %v9916, %v9912
    %v9918 = vlaneseq
    %v9919 = vshrl.u32 %v9918, 7
    %v9920 = vsub.s32 %v3993, %v9919
    %v9921 = vrot.slane %v8893, %v9920
    %v9922 = vsel %vm3998, %v9921, %v9917
    %v9923 = vlaneseq
    %v9924 = vshrl.u32 %v9923, 7
    %v9925 = vsub.s32 %v4000, %v9924
    %v9926 = vrot.slane %v8894, %v9925
    %v9927 = vsel %vm4005, %v9926, %v9922
    %v9928 = vlaneseq
    %v9929 = vshrl.u32 %v9928, 7
    %v9930 = vsub.s32 %v4007, %v9929
    %v9931 = vrot.slane %v8895, %v9930
    %v9932 = vsel %vm4012, %v9931, %v9927
    %v9933 = vlaneseq
    %v9934 = vshrl.u32 %v9933, 7
    %v9935 = vsub.s32 %v4014, %v9934
    %v9936 = vrot.slane %v8896, %v9935
    %v9937 = vsel %vm4019, %v9936, %v9932
    %v9938 = vlaneseq
    %v9939 = vshrl.u32 %v9938, 7
    %v9940 = vsub.s32 %v4021, %v9939
    %v9941 = vrot.slane %v8897, %v9940
    %v9942 = vsel %vm4026, %v9941, %v9937
    %v9943 = vlaneseq
    %v9944 = vshrl.u32 %v9943, 7
    %v9945 = vsub.s32 %v3918, %v9944
    %v9946 = vrot.slane %v8898, %v9945
    %v9947 = vlaneseq
    %v9948 = vshrl.u32 %v9947, 7
    %v9949 = vsub.s32 %v3923, %v9948
    %v9950 = vrot.slane %v8899, %v9949
    %v9951 = vsel %vm3928, %v9950, %v9946
    %v9952 = vlaneseq
    %v9953 = vshrl.u32 %v9952, 7
    %v9954 = vsub.s32 %v3930, %v9953
    %v9955 = vrot.slane %v8900, %v9954
    %v9956 = vsel %vm3935, %v9955, %v9951
    %v9957 = vlaneseq
    %v9958 = vshrl.u32 %v9957, 7
    %v9959 = vsub.s32 %v3937, %v9958
    %v9960 = vrot.slane %v8901, %v9959
    %v9961 = vsel %vm3942, %v9960, %v9956
    %v9962 = vlaneseq
    %v9963 = vshrl.u32 %v9962, 7
    %v9964 = vsub.s32 %v3944, %v9963
    %v9965 = vrot.slane %v8902, %v9964
    %v9966 = vsel %vm3949, %v9965, %v9961
    %v9967 = vlaneseq
    %v9968 = vshrl.u32 %v9967, 7
    %v9969 = vsub.s32 %v3951, %v9968
    %v9970 = vrot.slane %v8903, %v9969
    %v9971 = vsel %vm3956, %v9970, %v9966
    %v9972 = vlaneseq
    %v9973 = vshrl.u32 %v9972, 7
    %v9974 = vsub.s32 %v3958, %v9973
    %v9975 = vrot.slane %v8904, %v9974
    %v9976 = vsel %vm3963, %v9975, %v9971
    %v9977 = vlaneseq
    %v9978 = vshrl.u32 %v9977, 7
    %v9979 = vsub.s32 %v3965, %v9978
    %v9980 = vrot.slane %v8905, %v9979
    %v9981 = vsel %vm3970, %v9980, %v9976
    %v9982 = vlaneseq
    %v9983 = vshrl.u32 %v9982, 7
    %v9984 = vsub.s32 %v3972, %v9983
    %v9985 = vrot.slane %v8906, %v9984
    %v9986 = vsel %vm3977, %v9985, %v9981
    %v9987 = vlaneseq
    %v9988 = vshrl.u32 %v9987, 7
    %v9989 = vsub.s32 %v3979, %v9988
    %v9990 = vrot.slane %v8907, %v9989
    %v9991 = vsel %vm3984, %v9990, %v9986
    %v9992 = vlaneseq
    %v9993 = vshrl.u32 %v9992, 7
    %v9994 = vsub.s32 %v3986, %v9993
    %v9995 = vrot.slane %v8908, %v9994
    %v9996 = vsel %vm3991, %v9995, %v9991
    %v9997 = vlaneseq
    %v9998 = vshrl.u32 %v9997, 7
    %v9999 = vsub.s32 %v3993, %v9998
    %v10000 = vrot.slane %v8909, %v9999
    %v10001 = vsel %vm3998, %v10000, %v9996
    %v10002 = vlaneseq
    %v10003 = vshrl.u32 %v10002, 7
    %v10004 = vsub.s32 %v4000, %v10003
    %v10005 = vrot.slane %v8910, %v10004
    %v10006 = vsel %vm4005, %v10005, %v10001
    %v10007 = vlaneseq
    %v10008 = vshrl.u32 %v10007, 7
    %v10009 = vsub.s32 %v4007, %v10008
    %v10010 = vrot.slane %v8911, %v10009
    %v10011 = vsel %vm4012, %v10010, %v10006
    %v10012 = vlaneseq
    %v10013 = vshrl.u32 %v10012, 7
    %v10014 = vsub.s32 %v4014, %v10013
    %v10015 = vrot.slane %v8912, %v10014
    %v10016 = vsel %vm4019, %v10015, %v10011
    %v10017 = vlaneseq
    %v10018 = vshrl.u32 %v10017, 7
    %v10019 = vsub.s32 %v4021, %v10018
    %v10020 = vrot.slane %v8913, %v10019
    %v10021 = vsel %vm4026, %v10020, %v10016
    %v10022 = vlaneseq
    %v10023 = vshrl.u32 %v10022, 7
    %v10024 = vsub.s32 %v3918, %v10023
    %v10025 = vrot.slane %v8914, %v10024
    %v10026 = vlaneseq
    %v10027 = vshrl.u32 %v10026, 7
    %v10028 = vsub.s32 %v3923, %v10027
    %v10029 = vrot.slane %v8915, %v10028
    %v10030 = vsel %vm3928, %v10029, %v10025
    %v10031 = vlaneseq
    %v10032 = vshrl.u32 %v10031, 7
    %v10033 = vsub.s32 %v3930, %v10032
    %v10034 = vrot.slane %v8916, %v10033
    %v10035 = vsel %vm3935, %v10034, %v10030
    %v10036 = vlaneseq
    %v10037 = vshrl.u32 %v10036, 7
    %v10038 = vsub.s32 %v3937, %v10037
    %v10039 = vrot.slane %v8917, %v10038
    %v10040 = vsel %vm3942, %v10039, %v10035
    %v10041 = vlaneseq
    %v10042 = vshrl.u32 %v10041, 7
    %v10043 = vsub.s32 %v3944, %v10042
    %v10044 = vrot.slane %v8918, %v10043
    %v10045 = vsel %vm3949, %v10044, %v10040
    %v10046 = vlaneseq
    %v10047 = vshrl.u32 %v10046, 7
    %v10048 = vsub.s32 %v3951, %v10047
    %v10049 = vrot.slane %v8919, %v10048
    %v10050 = vsel %vm3956, %v10049, %v10045
    %v10051 = vlaneseq
    %v10052 = vshrl.u32 %v10051, 7
    %v10053 = vsub.s32 %v3958, %v10052
    %v10054 = vrot.slane %v8920, %v10053
    %v10055 = vsel %vm3963, %v10054, %v10050
    %v10056 = vlaneseq
    %v10057 = vshrl.u32 %v10056, 7
    %v10058 = vsub.s32 %v3965, %v10057
    %v10059 = vrot.slane %v8921, %v10058
    %v10060 = vsel %vm3970, %v10059, %v10055
    %v10061 = vlaneseq
    %v10062 = vshrl.u32 %v10061, 7
    %v10063 = vsub.s32 %v3972, %v10062
    %v10064 = vrot.slane %v8922, %v10063
    %v10065 = vsel %vm3977, %v10064, %v10060
    %v10066 = vlaneseq
    %v10067 = vshrl.u32 %v10066, 7
    %v10068 = vsub.s32 %v3979, %v10067
    %v10069 = vrot.slane %v8923, %v10068
    %v10070 = vsel %vm3984, %v10069, %v10065
    %v10071 = vlaneseq
    %v10072 = vshrl.u32 %v10071, 7
    %v10073 = vsub.s32 %v3986, %v10072
    %v10074 = vrot.slane %v8924, %v10073
    %v10075 = vsel %vm3991, %v10074, %v10070
    %v10076 = vlaneseq
    %v10077 = vshrl.u32 %v10076, 7
    %v10078 = vsub.s32 %v3993, %v10077
    %v10079 = vrot.slane %v8925, %v10078
    %v10080 = vsel %vm3998, %v10079, %v10075
    %v10081 = vlaneseq
    %v10082 = vshrl.u32 %v10081, 7
    %v10083 = vsub.s32 %v4000, %v10082
    %v10084 = vrot.slane %v8926, %v10083
    %v10085 = vsel %vm4005, %v10084, %v10080
    %v10086 = vlaneseq
    %v10087 = vshrl.u32 %v10086, 7
    %v10088 = vsub.s32 %v4007, %v10087
    %v10089 = vrot.slane %v8927, %v10088
    %v10090 = vsel %vm4012, %v10089, %v10085
    %v10091 = vlaneseq
    %v10092 = vshrl.u32 %v10091, 7
    %v10093 = vsub.s32 %v4014, %v10092
    %v10094 = vrot.slane %v8928, %v10093
    %v10095 = vsel %vm4019, %v10094, %v10090
    %v10096 = vlaneseq
    %v10097 = vshrl.u32 %v10096, 7
    %v10098 = vsub.s32 %v4021, %v10097
    %v10099 = vrot.slane %v8929, %v10098
    %v10100 = vsel %vm4026, %v10099, %v10095
    %v10101 = vlaneseq
    %v10102 = vshrl.u32 %v10101, 7
    %v10103 = vsub.s32 %v3918, %v10102
    %v10104 = vrot.slane %v8930, %v10103
    %v10105 = vlaneseq
    %v10106 = vshrl.u32 %v10105, 7
    %v10107 = vsub.s32 %v3923, %v10106
    %v10108 = vrot.slane %v8931, %v10107
    %v10109 = vsel %vm3928, %v10108, %v10104
    %v10110 = vlaneseq
    %v10111 = vshrl.u32 %v10110, 7
    %v10112 = vsub.s32 %v3930, %v10111
    %v10113 = vrot.slane %v8932, %v10112
    %v10114 = vsel %vm3935, %v10113, %v10109
    %v10115 = vlaneseq
    %v10116 = vshrl.u32 %v10115, 7
    %v10117 = vsub.s32 %v3937, %v10116
    %v10118 = vrot.slane %v8933, %v10117
    %v10119 = vsel %vm3942, %v10118, %v10114
    %v10120 = vlaneseq
    %v10121 = vshrl.u32 %v10120, 7
    %v10122 = vsub.s32 %v3944, %v10121
    %v10123 = vrot.slane %v8934, %v10122
    %v10124 = vsel %vm3949, %v10123, %v10119
    %v10125 = vlaneseq
    %v10126 = vshrl.u32 %v10125, 7
    %v10127 = vsub.s32 %v3951, %v10126
    %v10128 = vrot.slane %v8935, %v10127
    %v10129 = vsel %vm3956, %v10128, %v10124
    %v10130 = vlaneseq
    %v10131 = vshrl.u32 %v10130, 7
    %v10132 = vsub.s32 %v3958, %v10131
    %v10133 = vrot.slane %v8936, %v10132
    %v10134 = vsel %vm3963, %v10133, %v10129
    %v10135 = vlaneseq
    %v10136 = vshrl.u32 %v10135, 7
    %v10137 = vsub.s32 %v3965, %v10136
    %v10138 = vrot.slane %v8937, %v10137
    %v10139 = vsel %vm3970, %v10138, %v10134
    %v10140 = vlaneseq
    %v10141 = vshrl.u32 %v10140, 7
    %v10142 = vsub.s32 %v3972, %v10141
    %v10143 = vrot.slane %v8938, %v10142
    %v10144 = vsel %vm3977, %v10143, %v10139
    %v10145 = vlaneseq
    %v10146 = vshrl.u32 %v10145, 7
    %v10147 = vsub.s32 %v3979, %v10146
    %v10148 = vrot.slane %v8939, %v10147
    %v10149 = vsel %vm3984, %v10148, %v10144
    %v10150 = vlaneseq
    %v10151 = vshrl.u32 %v10150, 7
    %v10152 = vsub.s32 %v3986, %v10151
    %v10153 = vrot.slane %v8940, %v10152
    %v10154 = vsel %vm3991, %v10153, %v10149
    %v10155 = vlaneseq
    %v10156 = vshrl.u32 %v10155, 7
    %v10157 = vsub.s32 %v3993, %v10156
    %v10158 = vrot.slane %v8941, %v10157
    %v10159 = vsel %vm3998, %v10158, %v10154
    %v10160 = vlaneseq
    %v10161 = vshrl.u32 %v10160, 7
    %v10162 = vsub.s32 %v4000, %v10161
    %v10163 = vrot.slane %v8942, %v10162
    %v10164 = vsel %vm4005, %v10163, %v10159
    %v10165 = vlaneseq
    %v10166 = vshrl.u32 %v10165, 7
    %v10167 = vsub.s32 %v4007, %v10166
    %v10168 = vrot.slane %v8943, %v10167
    %v10169 = vsel %vm4012, %v10168, %v10164
    %v10170 = vlaneseq
    %v10171 = vshrl.u32 %v10170, 7
    %v10172 = vsub.s32 %v4014, %v10171
    %v10173 = vrot.slane %v8944, %v10172
    %v10174 = vsel %vm4019, %v10173, %v10169
    %v10175 = vlaneseq
    %v10176 = vshrl.u32 %v10175, 7
    %v10177 = vsub.s32 %v4021, %v10176
    %v10178 = vrot.slane %v8945, %v10177
    %v10179 = vsel %vm4026, %v10178, %v10174
    %v10180 = vlaneseq
    %v10181 = vshrl.u32 %v10180, 7
    %v10182 = vsub.s32 %v3918, %v10181
    %v10183 = vrot.slane %v8946, %v10182
    %v10184 = vlaneseq
    %v10185 = vshrl.u32 %v10184, 7
    %v10186 = vsub.s32 %v3923, %v10185
    %v10187 = vrot.slane %v8947, %v10186
    %v10188 = vsel %vm3928, %v10187, %v10183
    %v10189 = vlaneseq
    %v10190 = vshrl.u32 %v10189, 7
    %v10191 = vsub.s32 %v3930, %v10190
    %v10192 = vrot.slane %v8948, %v10191
    %v10193 = vsel %vm3935, %v10192, %v10188
    %v10194 = vlaneseq
    %v10195 = vshrl.u32 %v10194, 7
    %v10196 = vsub.s32 %v3937, %v10195
    %v10197 = vrot.slane %v8949, %v10196
    %v10198 = vsel %vm3942, %v10197, %v10193
    %v10199 = vlaneseq
    %v10200 = vshrl.u32 %v10199, 7
    %v10201 = vsub.s32 %v3944, %v10200
    %v10202 = vrot.slane %v8950, %v10201
    %v10203 = vsel %vm3949, %v10202, %v10198
    %v10204 = vlaneseq
    %v10205 = vshrl.u32 %v10204, 7
    %v10206 = vsub.s32 %v3951, %v10205
    %v10207 = vrot.slane %v8951, %v10206
    %v10208 = vsel %vm3956, %v10207, %v10203
    %v10209 = vlaneseq
    %v10210 = vshrl.u32 %v10209, 7
    %v10211 = vsub.s32 %v3958, %v10210
    %v10212 = vrot.slane %v8952, %v10211
    %v10213 = vsel %vm3963, %v10212, %v10208
    %v10214 = vlaneseq
    %v10215 = vshrl.u32 %v10214, 7
    %v10216 = vsub.s32 %v3965, %v10215
    %v10217 = vrot.slane %v8953, %v10216
    %v10218 = vsel %vm3970, %v10217, %v10213
    %v10219 = vlaneseq
    %v10220 = vshrl.u32 %v10219, 7
    %v10221 = vsub.s32 %v3972, %v10220
    %v10222 = vrot.slane %v8954, %v10221
    %v10223 = vsel %vm3977, %v10222, %v10218
    %v10224 = vlaneseq
    %v10225 = vshrl.u32 %v10224, 7
    %v10226 = vsub.s32 %v3979, %v10225
    %v10227 = vrot.slane %v8955, %v10226
    %v10228 = vsel %vm3984, %v10227, %v10223
    %v10229 = vlaneseq
    %v10230 = vshrl.u32 %v10229, 7
    %v10231 = vsub.s32 %v3986, %v10230
    %v10232 = vrot.slane %v8956, %v10231
    %v10233 = vsel %vm3991, %v10232, %v10228
    %v10234 = vlaneseq
    %v10235 = vshrl.u32 %v10234, 7
    %v10236 = vsub.s32 %v3993, %v10235
    %v10237 = vrot.slane %v8957, %v10236
    %v10238 = vsel %vm3998, %v10237, %v10233
    %v10239 = vlaneseq
    %v10240 = vshrl.u32 %v10239, 7
    %v10241 = vsub.s32 %v4000, %v10240
    %v10242 = vrot.slane %v8958, %v10241
    %v10243 = vsel %vm4005, %v10242, %v10238
    %v10244 = vlaneseq
    %v10245 = vshrl.u32 %v10244, 7
    %v10246 = vsub.s32 %v4007, %v10245
    %v10247 = vrot.slane %v8959, %v10246
    %v10248 = vsel %vm4012, %v10247, %v10243
    %v10249 = vlaneseq
    %v10250 = vshrl.u32 %v10249, 7
    %v10251 = vsub.s32 %v4014, %v10250
    %v10252 = vrot.slane %v8960, %v10251
    %v10253 = vsel %vm4019, %v10252, %v10248
    %v10254 = vlaneseq
    %v10255 = vshrl.u32 %v10254, 7
    %v10256 = vsub.s32 %v4021, %v10255
    %v10257 = vrot.slane %v8961, %v10256
    %v10258 = vsel %vm4026, %v10257, %v10253
    %v10259 = vlaneseq
    %v10260 = vshrl.u32 %v10259, 7
    %v10261 = vsub.s32 %v3918, %v10260
    %v10262 = vrot.slane %v8962, %v10261
    %v10263 = vlaneseq
    %v10264 = vshrl.u32 %v10263, 7
    %v10265 = vsub.s32 %v3923, %v10264
    %v10266 = vrot.slane %v8963, %v10265
    %v10267 = vsel %vm3928, %v10266, %v10262
    %v10268 = vlaneseq
    %v10269 = vshrl.u32 %v10268, 7
    %v10270 = vsub.s32 %v3930, %v10269
    %v10271 = vrot.slane %v8964, %v10270
    %v10272 = vsel %vm3935, %v10271, %v10267
    %v10273 = vlaneseq
    %v10274 = vshrl.u32 %v10273, 7
    %v10275 = vsub.s32 %v3937, %v10274
    %v10276 = vrot.slane %v8965, %v10275
    %v10277 = vsel %vm3942, %v10276, %v10272
    %v10278 = vlaneseq
    %v10279 = vshrl.u32 %v10278, 7
    %v10280 = vsub.s32 %v3944, %v10279
    %v10281 = vrot.slane %v8966, %v10280
    %v10282 = vsel %vm3949, %v10281, %v10277
    %v10283 = vlaneseq
    %v10284 = vshrl.u32 %v10283, 7
    %v10285 = vsub.s32 %v3951, %v10284
    %v10286 = vrot.slane %v8967, %v10285
    %v10287 = vsel %vm3956, %v10286, %v10282
    %v10288 = vlaneseq
    %v10289 = vshrl.u32 %v10288, 7
    %v10290 = vsub.s32 %v3958, %v10289
    %v10291 = vrot.slane %v8968, %v10290
    %v10292 = vsel %vm3963, %v10291, %v10287
    %v10293 = vlaneseq
    %v10294 = vshrl.u32 %v10293, 7
    %v10295 = vsub.s32 %v3965, %v10294
    %v10296 = vrot.slane %v8969, %v10295
    %v10297 = vsel %vm3970, %v10296, %v10292
    %v10298 = vlaneseq
    %v10299 = vshrl.u32 %v10298, 7
    %v10300 = vsub.s32 %v3972, %v10299
    %v10301 = vrot.slane %v8970, %v10300
    %v10302 = vsel %vm3977, %v10301, %v10297
    %v10303 = vlaneseq
    %v10304 = vshrl.u32 %v10303, 7
    %v10305 = vsub.s32 %v3979, %v10304
    %v10306 = vrot.slane %v8971, %v10305
    %v10307 = vsel %vm3984, %v10306, %v10302
    %v10308 = vlaneseq
    %v10309 = vshrl.u32 %v10308, 7
    %v10310 = vsub.s32 %v3986, %v10309
    %v10311 = vrot.slane %v8972, %v10310
    %v10312 = vsel %vm3991, %v10311, %v10307
    %v10313 = vlaneseq
    %v10314 = vshrl.u32 %v10313, 7
    %v10315 = vsub.s32 %v3993, %v10314
    %v10316 = vrot.slane %v8973, %v10315
    %v10317 = vsel %vm3998, %v10316, %v10312
    %v10318 = vlaneseq
    %v10319 = vshrl.u32 %v10318, 7
    %v10320 = vsub.s32 %v4000, %v10319
    %v10321 = vrot.slane %v8974, %v10320
    %v10322 = vsel %vm4005, %v10321, %v10317
    %v10323 = vlaneseq
    %v10324 = vshrl.u32 %v10323, 7
    %v10325 = vsub.s32 %v4007, %v10324
    %v10326 = vrot.slane %v8975, %v10325
    %v10327 = vsel %vm4012, %v10326, %v10322
    %v10328 = vlaneseq
    %v10329 = vshrl.u32 %v10328, 7
    %v10330 = vsub.s32 %v4014, %v10329
    %v10331 = vrot.slane %v8976, %v10330
    %v10332 = vsel %vm4019, %v10331, %v10327
    %v10333 = vlaneseq
    %v10334 = vshrl.u32 %v10333, 7
    %v10335 = vsub.s32 %v4021, %v10334
    %v10336 = vrot.slane %v8977, %v10335
    %v10337 = vsel %vm4026, %v10336, %v10332
    %v10338 = vlaneseq
    %v10339 = vshrl.u32 %v10338, 7
    %v10340 = vsub.s32 %v3918, %v10339
    %v10341 = vrot.slane %v8978, %v10340
    %v10342 = vlaneseq
    %v10343 = vshrl.u32 %v10342, 7
    %v10344 = vsub.s32 %v3923, %v10343
    %v10345 = vrot.slane %v8979, %v10344
    %v10346 = vsel %vm3928, %v10345, %v10341
    %v10347 = vlaneseq
    %v10348 = vshrl.u32 %v10347, 7
    %v10349 = vsub.s32 %v3930, %v10348
    %v10350 = vrot.slane %v8980, %v10349
    %v10351 = vsel %vm3935, %v10350, %v10346
    %v10352 = vlaneseq
    %v10353 = vshrl.u32 %v10352, 7
    %v10354 = vsub.s32 %v3937, %v10353
    %v10355 = vrot.slane %v8981, %v10354
    %v10356 = vsel %vm3942, %v10355, %v10351
    %v10357 = vlaneseq
    %v10358 = vshrl.u32 %v10357, 7
    %v10359 = vsub.s32 %v3944, %v10358
    %v10360 = vrot.slane %v8982, %v10359
    %v10361 = vsel %vm3949, %v10360, %v10356
    %v10362 = vlaneseq
    %v10363 = vshrl.u32 %v10362, 7
    %v10364 = vsub.s32 %v3951, %v10363
    %v10365 = vrot.slane %v8983, %v10364
    %v10366 = vsel %vm3956, %v10365, %v10361
    %v10367 = vlaneseq
    %v10368 = vshrl.u32 %v10367, 7
    %v10369 = vsub.s32 %v3958, %v10368
    %v10370 = vrot.slane %v8984, %v10369
    %v10371 = vsel %vm3963, %v10370, %v10366
    %v10372 = vlaneseq
    %v10373 = vshrl.u32 %v10372, 7
    %v10374 = vsub.s32 %v3965, %v10373
    %v10375 = vrot.slane %v8985, %v10374
    %v10376 = vsel %vm3970, %v10375, %v10371
    %v10377 = vlaneseq
    %v10378 = vshrl.u32 %v10377, 7
    %v10379 = vsub.s32 %v3972, %v10378
    %v10380 = vrot.slane %v8986, %v10379
    %v10381 = vsel %vm3977, %v10380, %v10376
    %v10382 = vlaneseq
    %v10383 = vshrl.u32 %v10382, 7
    %v10384 = vsub.s32 %v3979, %v10383
    %v10385 = vrot.slane %v8987, %v10384
    %v10386 = vsel %vm3984, %v10385, %v10381
    %v10387 = vlaneseq
    %v10388 = vshrl.u32 %v10387, 7
    %v10389 = vsub.s32 %v3986, %v10388
    %v10390 = vrot.slane %v8988, %v10389
    %v10391 = vsel %vm3991, %v10390, %v10386
    %v10392 = vlaneseq
    %v10393 = vshrl.u32 %v10392, 7
    %v10394 = vsub.s32 %v3993, %v10393
    %v10395 = vrot.slane %v8989, %v10394
    %v10396 = vsel %vm3998, %v10395, %v10391
    %v10397 = vlaneseq
    %v10398 = vshrl.u32 %v10397, 7
    %v10399 = vsub.s32 %v4000, %v10398
    %v10400 = vrot.slane %v8990, %v10399
    %v10401 = vsel %vm4005, %v10400, %v10396
    %v10402 = vlaneseq
    %v10403 = vshrl.u32 %v10402, 7
    %v10404 = vsub.s32 %v4007, %v10403
    %v10405 = vrot.slane %v8991, %v10404
    %v10406 = vsel %vm4012, %v10405, %v10401
    %v10407 = vlaneseq
    %v10408 = vshrl.u32 %v10407, 7
    %v10409 = vsub.s32 %v4014, %v10408
    %v10410 = vrot.slane %v8992, %v10409
    %v10411 = vsel %vm4019, %v10410, %v10406
    %v10412 = vlaneseq
    %v10413 = vshrl.u32 %v10412, 7
    %v10414 = vsub.s32 %v4021, %v10413
    %v10415 = vrot.slane %v8993, %v10414
    %v10416 = vsel %vm4026, %v10415, %v10411
    %v10417 = vlaneseq
    %v10418 = vshrl.u32 %v10417, 7
    %v10419 = vsub.s32 %v3918, %v10418
    %v10420 = vrot.slane %v8994, %v10419
    %v10421 = vlaneseq
    %v10422 = vshrl.u32 %v10421, 7
    %v10423 = vsub.s32 %v3923, %v10422
    %v10424 = vrot.slane %v8995, %v10423
    %v10425 = vsel %vm3928, %v10424, %v10420
    %v10426 = vlaneseq
    %v10427 = vshrl.u32 %v10426, 7
    %v10428 = vsub.s32 %v3930, %v10427
    %v10429 = vrot.slane %v8996, %v10428
    %v10430 = vsel %vm3935, %v10429, %v10425
    %v10431 = vlaneseq
    %v10432 = vshrl.u32 %v10431, 7
    %v10433 = vsub.s32 %v3937, %v10432
    %v10434 = vrot.slane %v8997, %v10433
    %v10435 = vsel %vm3942, %v10434, %v10430
    %v10436 = vlaneseq
    %v10437 = vshrl.u32 %v10436, 7
    %v10438 = vsub.s32 %v3944, %v10437
    %v10439 = vrot.slane %v8998, %v10438
    %v10440 = vsel %vm3949, %v10439, %v10435
    %v10441 = vlaneseq
    %v10442 = vshrl.u32 %v10441, 7
    %v10443 = vsub.s32 %v3951, %v10442
    %v10444 = vrot.slane %v8999, %v10443
    %v10445 = vsel %vm3956, %v10444, %v10440
    %v10446 = vlaneseq
    %v10447 = vshrl.u32 %v10446, 7
    %v10448 = vsub.s32 %v3958, %v10447
    %v10449 = vrot.slane %v9000, %v10448
    %v10450 = vsel %vm3963, %v10449, %v10445
    %v10451 = vlaneseq
    %v10452 = vshrl.u32 %v10451, 7
    %v10453 = vsub.s32 %v3965, %v10452
    %v10454 = vrot.slane %v9001, %v10453
    %v10455 = vsel %vm3970, %v10454, %v10450
    %v10456 = vlaneseq
    %v10457 = vshrl.u32 %v10456, 7
    %v10458 = vsub.s32 %v3972, %v10457
    %v10459 = vrot.slane %v9002, %v10458
    %v10460 = vsel %vm3977, %v10459, %v10455
    %v10461 = vlaneseq
    %v10462 = vshrl.u32 %v10461, 7
    %v10463 = vsub.s32 %v3979, %v10462
    %v10464 = vrot.slane %v9003, %v10463
    %v10465 = vsel %vm3984, %v10464, %v10460
    %v10466 = vlaneseq
    %v10467 = vshrl.u32 %v10466, 7
    %v10468 = vsub.s32 %v3986, %v10467
    %v10469 = vrot.slane %v9004, %v10468
    %v10470 = vsel %vm3991, %v10469, %v10465
    %v10471 = vlaneseq
    %v10472 = vshrl.u32 %v10471, 7
    %v10473 = vsub.s32 %v3993, %v10472
    %v10474 = vrot.slane %v9005, %v10473
    %v10475 = vsel %vm3998, %v10474, %v10470
    %v10476 = vlaneseq
    %v10477 = vshrl.u32 %v10476, 7
    %v10478 = vsub.s32 %v4000, %v10477
    %v10479 = vrot.slane %v9006, %v10478
    %v10480 = vsel %vm4005, %v10479, %v10475
    %v10481 = vlaneseq
    %v10482 = vshrl.u32 %v10481, 7
    %v10483 = vsub.s32 %v4007, %v10482
    %v10484 = vrot.slane %v9007, %v10483
    %v10485 = vsel %vm4012, %v10484, %v10480
    %v10486 = vlaneseq
    %v10487 = vshrl.u32 %v10486, 7
    %v10488 = vsub.s32 %v4014, %v10487
    %v10489 = vrot.slane %v9008, %v10488
    %v10490 = vsel %vm4019, %v10489, %v10485
    %v10491 = vlaneseq
    %v10492 = vshrl.u32 %v10491, 7
    %v10493 = vsub.s32 %v4021, %v10492
    %v10494 = vrot.slane %v9009, %v10493
    %v10495 = vsel %vm4026, %v10494, %v10490
    %v10496 = vlaneseq
    %v10497 = vshrl.u32 %v10496, 7
    %v10498 = vsub.s32 %v3918, %v10497
    %v10499 = vrot.slane %v9010, %v10498
    %v10500 = vlaneseq
    %v10501 = vshrl.u32 %v10500, 7
    %v10502 = vsub.s32 %v3923, %v10501
    %v10503 = vrot.slane %v9011, %v10502
    %v10504 = vsel %vm3928, %v10503, %v10499
    %v10505 = vlaneseq
    %v10506 = vshrl.u32 %v10505, 7
    %v10507 = vsub.s32 %v3930, %v10506
    %v10508 = vrot.slane %v9012, %v10507
    %v10509 = vsel %vm3935, %v10508, %v10504
    %v10510 = vlaneseq
    %v10511 = vshrl.u32 %v10510, 7
    %v10512 = vsub.s32 %v3937, %v10511
    %v10513 = vrot.slane %v9013, %v10512
    %v10514 = vsel %vm3942, %v10513, %v10509
    %v10515 = vlaneseq
    %v10516 = vshrl.u32 %v10515, 7
    %v10517 = vsub.s32 %v3944, %v10516
    %v10518 = vrot.slane %v9014, %v10517
    %v10519 = vsel %vm3949, %v10518, %v10514
    %v10520 = vlaneseq
    %v10521 = vshrl.u32 %v10520, 7
    %v10522 = vsub.s32 %v3951, %v10521
    %v10523 = vrot.slane %v9015, %v10522
    %v10524 = vsel %vm3956, %v10523, %v10519
    %v10525 = vlaneseq
    %v10526 = vshrl.u32 %v10525, 7
    %v10527 = vsub.s32 %v3958, %v10526
    %v10528 = vrot.slane %v9016, %v10527
    %v10529 = vsel %vm3963, %v10528, %v10524
    %v10530 = vlaneseq
    %v10531 = vshrl.u32 %v10530, 7
    %v10532 = vsub.s32 %v3965, %v10531
    %v10533 = vrot.slane %v9017, %v10532
    %v10534 = vsel %vm3970, %v10533, %v10529
    %v10535 = vlaneseq
    %v10536 = vshrl.u32 %v10535, 7
    %v10537 = vsub.s32 %v3972, %v10536
    %v10538 = vrot.slane %v9018, %v10537
    %v10539 = vsel %vm3977, %v10538, %v10534
    %v10540 = vlaneseq
    %v10541 = vshrl.u32 %v10540, 7
    %v10542 = vsub.s32 %v3979, %v10541
    %v10543 = vrot.slane %v9019, %v10542
    %v10544 = vsel %vm3984, %v10543, %v10539
    %v10545 = vlaneseq
    %v10546 = vshrl.u32 %v10545, 7
    %v10547 = vsub.s32 %v3986, %v10546
    %v10548 = vrot.slane %v9020, %v10547
    %v10549 = vsel %vm3991, %v10548, %v10544
    %v10550 = vlaneseq
    %v10551 = vshrl.u32 %v10550, 7
    %v10552 = vsub.s32 %v3993, %v10551
    %v10553 = vrot.slane %v9021, %v10552
    %v10554 = vsel %vm3998, %v10553, %v10549
    %v10555 = vlaneseq
    %v10556 = vshrl.u32 %v10555, 7
    %v10557 = vsub.s32 %v4000, %v10556
    %v10558 = vrot.slane %v9022, %v10557
    %v10559 = vsel %vm4005, %v10558, %v10554
    %v10560 = vlaneseq
    %v10561 = vshrl.u32 %v10560, 7
    %v10562 = vsub.s32 %v4007, %v10561
    %v10563 = vrot.slane %v9023, %v10562
    %v10564 = vsel %vm4012, %v10563, %v10559
    %v10565 = vlaneseq
    %v10566 = vshrl.u32 %v10565, 7
    %v10567 = vsub.s32 %v4014, %v10566
    %v10568 = vrot.slane %v9024, %v10567
    %v10569 = vsel %vm4019, %v10568, %v10564
    %v10570 = vlaneseq
    %v10571 = vshrl.u32 %v10570, 7
    %v10572 = vsub.s32 %v4021, %v10571
    %v10573 = vrot.slane %v9025, %v10572
    %v10574 = vsel %vm4026, %v10573, %v10569
    %v10575 = vlaneseq
    %v10576 = vshrl.u32 %v10575, 7
    %v10577 = vsub.s32 %v3918, %v10576
    %v10578 = vrot.slane %v9026, %v10577
    %v10579 = vlaneseq
    %v10580 = vshrl.u32 %v10579, 7
    %v10581 = vsub.s32 %v3923, %v10580
    %v10582 = vrot.slane %v9027, %v10581
    %v10583 = vsel %vm3928, %v10582, %v10578
    %v10584 = vlaneseq
    %v10585 = vshrl.u32 %v10584, 7
    %v10586 = vsub.s32 %v3930, %v10585
    %v10587 = vrot.slane %v9028, %v10586
    %v10588 = vsel %vm3935, %v10587, %v10583
    %v10589 = vlaneseq
    %v10590 = vshrl.u32 %v10589, 7
    %v10591 = vsub.s32 %v3937, %v10590
    %v10592 = vrot.slane %v9029, %v10591
    %v10593 = vsel %vm3942, %v10592, %v10588
    %v10594 = vlaneseq
    %v10595 = vshrl.u32 %v10594, 7
    %v10596 = vsub.s32 %v3944, %v10595
    %v10597 = vrot.slane %v9030, %v10596
    %v10598 = vsel %vm3949, %v10597, %v10593
    %v10599 = vlaneseq
    %v10600 = vshrl.u32 %v10599, 7
    %v10601 = vsub.s32 %v3951, %v10600
    %v10602 = vrot.slane %v9031, %v10601
    %v10603 = vsel %vm3956, %v10602, %v10598
    %v10604 = vlaneseq
    %v10605 = vshrl.u32 %v10604, 7
    %v10606 = vsub.s32 %v3958, %v10605
    %v10607 = vrot.slane %v9032, %v10606
    %v10608 = vsel %vm3963, %v10607, %v10603
    %v10609 = vlaneseq
    %v10610 = vshrl.u32 %v10609, 7
    %v10611 = vsub.s32 %v3965, %v10610
    %v10612 = vrot.slane %v9033, %v10611
    %v10613 = vsel %vm3970, %v10612, %v10608
    %v10614 = vlaneseq
    %v10615 = vshrl.u32 %v10614, 7
    %v10616 = vsub.s32 %v3972, %v10615
    %v10617 = vrot.slane %v9034, %v10616
    %v10618 = vsel %vm3977, %v10617, %v10613
    %v10619 = vlaneseq
    %v10620 = vshrl.u32 %v10619, 7
    %v10621 = vsub.s32 %v3979, %v10620
    %v10622 = vrot.slane %v9035, %v10621
    %v10623 = vsel %vm3984, %v10622, %v10618
    %v10624 = vlaneseq
    %v10625 = vshrl.u32 %v10624, 7
    %v10626 = vsub.s32 %v3986, %v10625
    %v10627 = vrot.slane %v9036, %v10626
    %v10628 = vsel %vm3991, %v10627, %v10623
    %v10629 = vlaneseq
    %v10630 = vshrl.u32 %v10629, 7
    %v10631 = vsub.s32 %v3993, %v10630
    %v10632 = vrot.slane %v9037, %v10631
    %v10633 = vsel %vm3998, %v10632, %v10628
    %v10634 = vlaneseq
    %v10635 = vshrl.u32 %v10634, 7
    %v10636 = vsub.s32 %v4000, %v10635
    %v10637 = vrot.slane %v9038, %v10636
    %v10638 = vsel %vm4005, %v10637, %v10633
    %v10639 = vlaneseq
    %v10640 = vshrl.u32 %v10639, 7
    %v10641 = vsub.s32 %v4007, %v10640
    %v10642 = vrot.slane %v9039, %v10641
    %v10643 = vsel %vm4012, %v10642, %v10638
    %v10644 = vlaneseq
    %v10645 = vshrl.u32 %v10644, 7
    %v10646 = vsub.s32 %v4014, %v10645
    %v10647 = vrot.slane %v9040, %v10646
    %v10648 = vsel %vm4019, %v10647, %v10643
    %v10649 = vlaneseq
    %v10650 = vshrl.u32 %v10649, 7
    %v10651 = vsub.s32 %v4021, %v10650
    %v10652 = vrot.slane %v9041, %v10651
    %v10653 = vsel %vm4026, %v10652, %v10648
    %v10654 = vlaneseq
    %v10655 = vshrl.u32 %v10654, 7
    %v10656 = vsub.s32 %v3918, %v10655
    %v10657 = vrot.slane %v9042, %v10656
    %v10658 = vlaneseq
    %v10659 = vshrl.u32 %v10658, 7
    %v10660 = vsub.s32 %v3923, %v10659
    %v10661 = vrot.slane %v9043, %v10660
    %v10662 = vsel %vm3928, %v10661, %v10657
    %v10663 = vlaneseq
    %v10664 = vshrl.u32 %v10663, 7
    %v10665 = vsub.s32 %v3930, %v10664
    %v10666 = vrot.slane %v9044, %v10665
    %v10667 = vsel %vm3935, %v10666, %v10662
    %v10668 = vlaneseq
    %v10669 = vshrl.u32 %v10668, 7
    %v10670 = vsub.s32 %v3937, %v10669
    %v10671 = vrot.slane %v9045, %v10670
    %v10672 = vsel %vm3942, %v10671, %v10667
    %v10673 = vlaneseq
    %v10674 = vshrl.u32 %v10673, 7
    %v10675 = vsub.s32 %v3944, %v10674
    %v10676 = vrot.slane %v9046, %v10675
    %v10677 = vsel %vm3949, %v10676, %v10672
    %v10678 = vlaneseq
    %v10679 = vshrl.u32 %v10678, 7
    %v10680 = vsub.s32 %v3951, %v10679
    %v10681 = vrot.slane %v9047, %v10680
    %v10682 = vsel %vm3956, %v10681, %v10677
    %v10683 = vlaneseq
    %v10684 = vshrl.u32 %v10683, 7
    %v10685 = vsub.s32 %v3958, %v10684
    %v10686 = vrot.slane %v9048, %v10685
    %v10687 = vsel %vm3963, %v10686, %v10682
    %v10688 = vlaneseq
    %v10689 = vshrl.u32 %v10688, 7
    %v10690 = vsub.s32 %v3965, %v10689
    %v10691 = vrot.slane %v9049, %v10690
    %v10692 = vsel %vm3970, %v10691, %v10687
    %v10693 = vlaneseq
    %v10694 = vshrl.u32 %v10693, 7
    %v10695 = vsub.s32 %v3972, %v10694
    %v10696 = vrot.slane %v9050, %v10695
    %v10697 = vsel %vm3977, %v10696, %v10692
    %v10698 = vlaneseq
    %v10699 = vshrl.u32 %v10698, 7
    %v10700 = vsub.s32 %v3979, %v10699
    %v10701 = vrot.slane %v9051, %v10700
    %v10702 = vsel %vm3984, %v10701, %v10697
    %v10703 = vlaneseq
    %v10704 = vshrl.u32 %v10703, 7
    %v10705 = vsub.s32 %v3986, %v10704
    %v10706 = vrot.slane %v9052, %v10705
    %v10707 = vsel %vm3991, %v10706, %v10702
    %v10708 = vlaneseq
    %v10709 = vshrl.u32 %v10708, 7
    %v10710 = vsub.s32 %v3993, %v10709
    %v10711 = vrot.slane %v9053, %v10710
    %v10712 = vsel %vm3998, %v10711, %v10707
    %v10713 = vlaneseq
    %v10714 = vshrl.u32 %v10713, 7
    %v10715 = vsub.s32 %v4000, %v10714
    %v10716 = vrot.slane %v9054, %v10715
    %v10717 = vsel %vm4005, %v10716, %v10712
    %v10718 = vlaneseq
    %v10719 = vshrl.u32 %v10718, 7
    %v10720 = vsub.s32 %v4007, %v10719
    %v10721 = vrot.slane %v9055, %v10720
    %v10722 = vsel %vm4012, %v10721, %v10717
    %v10723 = vlaneseq
    %v10724 = vshrl.u32 %v10723, 7
    %v10725 = vsub.s32 %v4014, %v10724
    %v10726 = vrot.slane %v9056, %v10725
    %v10727 = vsel %vm4019, %v10726, %v10722
    %v10728 = vlaneseq
    %v10729 = vshrl.u32 %v10728, 7
    %v10730 = vsub.s32 %v4021, %v10729
    %v10731 = vrot.slane %v9057, %v10730
    %v10732 = vsel %vm4026, %v10731, %v10727
    %v10733 = vlaneseq
    %v10734 = vshrl.u32 %v10733, 7
    %v10735 = vsub.s32 %v3918, %v10734
    %v10736 = vrot.slane %v9058, %v10735
    %v10737 = vlaneseq
    %v10738 = vshrl.u32 %v10737, 7
    %v10739 = vsub.s32 %v3923, %v10738
    %v10740 = vrot.slane %v9059, %v10739
    %v10741 = vsel %vm3928, %v10740, %v10736
    %v10742 = vlaneseq
    %v10743 = vshrl.u32 %v10742, 7
    %v10744 = vsub.s32 %v3930, %v10743
    %v10745 = vrot.slane %v9060, %v10744
    %v10746 = vsel %vm3935, %v10745, %v10741
    %v10747 = vlaneseq
    %v10748 = vshrl.u32 %v10747, 7
    %v10749 = vsub.s32 %v3937, %v10748
    %v10750 = vrot.slane %v9061, %v10749
    %v10751 = vsel %vm3942, %v10750, %v10746
    %v10752 = vlaneseq
    %v10753 = vshrl.u32 %v10752, 7
    %v10754 = vsub.s32 %v3944, %v10753
    %v10755 = vrot.slane %v9062, %v10754
    %v10756 = vsel %vm3949, %v10755, %v10751
    %v10757 = vlaneseq
    %v10758 = vshrl.u32 %v10757, 7
    %v10759 = vsub.s32 %v3951, %v10758
    %v10760 = vrot.slane %v9063, %v10759
    %v10761 = vsel %vm3956, %v10760, %v10756
    %v10762 = vlaneseq
    %v10763 = vshrl.u32 %v10762, 7
    %v10764 = vsub.s32 %v3958, %v10763
    %v10765 = vrot.slane %v9064, %v10764
    %v10766 = vsel %vm3963, %v10765, %v10761
    %v10767 = vlaneseq
    %v10768 = vshrl.u32 %v10767, 7
    %v10769 = vsub.s32 %v3965, %v10768
    %v10770 = vrot.slane %v9065, %v10769
    %v10771 = vsel %vm3970, %v10770, %v10766
    %v10772 = vlaneseq
    %v10773 = vshrl.u32 %v10772, 7
    %v10774 = vsub.s32 %v3972, %v10773
    %v10775 = vrot.slane %v9066, %v10774
    %v10776 = vsel %vm3977, %v10775, %v10771
    %v10777 = vlaneseq
    %v10778 = vshrl.u32 %v10777, 7
    %v10779 = vsub.s32 %v3979, %v10778
    %v10780 = vrot.slane %v9067, %v10779
    %v10781 = vsel %vm3984, %v10780, %v10776
    %v10782 = vlaneseq
    %v10783 = vshrl.u32 %v10782, 7
    %v10784 = vsub.s32 %v3986, %v10783
    %v10785 = vrot.slane %v9068, %v10784
    %v10786 = vsel %vm3991, %v10785, %v10781
    %v10787 = vlaneseq
    %v10788 = vshrl.u32 %v10787, 7
    %v10789 = vsub.s32 %v3993, %v10788
    %v10790 = vrot.slane %v9069, %v10789
    %v10791 = vsel %vm3998, %v10790, %v10786
    %v10792 = vlaneseq
    %v10793 = vshrl.u32 %v10792, 7
    %v10794 = vsub.s32 %v4000, %v10793
    %v10795 = vrot.slane %v9070, %v10794
    %v10796 = vsel %vm4005, %v10795, %v10791
    %v10797 = vlaneseq
    %v10798 = vshrl.u32 %v10797, 7
    %v10799 = vsub.s32 %v4007, %v10798
    %v10800 = vrot.slane %v9071, %v10799
    %v10801 = vsel %vm4012, %v10800, %v10796
    %v10802 = vlaneseq
    %v10803 = vshrl.u32 %v10802, 7
    %v10804 = vsub.s32 %v4014, %v10803
    %v10805 = vrot.slane %v9072, %v10804
    %v10806 = vsel %vm4019, %v10805, %v10801
    %v10807 = vlaneseq
    %v10808 = vshrl.u32 %v10807, 7
    %v10809 = vsub.s32 %v4021, %v10808
    %v10810 = vrot.slane %v9073, %v10809
    %v10811 = vsel %vm4026, %v10810, %v10806
    %v10812 = vsel %vm5687, %v10021, %v9152
    %v10813 = vsel %vm5687, %v10100, %v9231
    %v10814 = vsel %vm5687, %v10179, %v9310
    %v10815 = vsel %vm5687, %v10258, %v9389
    %v10816 = vsel %vm5687, %v10337, %v9468
    %v10817 = vsel %vm5687, %v10416, %v9547
    %v10818 = vsel %vm5687, %v10495, %v9626
    %v10819 = vsel %vm5687, %v10574, %v9705
    %v10820 = vsel %vm5687, %v10653, %v9784
    %v10821 = vsel %vm5687, %v10732, %v9863
    %v10822 = vsel %vm5687, %v10811, %v9942
    %v10823 = vpack.c.b16 %v10812, %v10812
    %v10824 = vpack.c.b16 %v10813, %v10813
    %v10825 = vpack.c.b16 %v10814, %v10814
    %v10826 = vpack.c.b16 %v10815, %v10815
    %v10827 = vpack.c.b16 %v10816, %v10816
    %v10828 = vpack.c.b16 %v10817, %v10817
    %v10829 = vpack.c.b16 %v10818, %v10818
    %v10830 = vpack.c.b16 %v10819, %v10819
    %v10831 = vpack.c.b16 %v10820, %v10820
    %v10832 = vpack.c.b16 %v10821, %v10821
    %v10833 = vpack.c.b16 %v10822, %v10822
    %v11197 = vunpack.c.l.b16 %v8172
    %v11198 = vunpack.c.h.b16 %v8172
    %v11199 = vunpack.c.l.b16 %v8173
    %v11200 = vunpack.c.h.b16 %v8173
    %v11201 = vunpack.c.l.b16 %v8174
    %v11202 = vunpack.c.h.b16 %v8174
    %v11203 = vunpack.c.l.b16 %v8175
    %v11204 = vunpack.c.h.b16 %v8175
    %v11205 = vunpack.c.l.b16 %v8176
    %v11206 = vunpack.c.h.b16 %v8176
    %v11207 = vunpack.c.l.b16 %v8177
    %v11208 = vunpack.c.h.b16 %v8177
    %v11209 = vunpack.c.l.b16 %v8178
    %v11210 = vunpack.c.h.b16 %v8178
    %v11211 = vunpack.c.l.b16 %v8179
    %v11212 = vunpack.c.h.b16 %v8179
    %v11213 = vunpack.c.l.b16 %v8180
    %v11214 = vunpack.c.h.b16 %v8180
    %v11215 = vunpack.c.l.b16 %v8181
    %v11216 = vunpack.c.h.b16 %v8181
    %v11217 = vunpack.c.l.b16 %v8182
    %v11218 = vunpack.c.h.b16 %v8182
    %v11219 = vunpack.c.l.b16 %v8183
    %v11220 = vunpack.c.h.b16 %v8183
    %v11221 = vunpack.c.l.b16 %v8184
    %v11222 = vunpack.c.h.b16 %v8184
    %v11223 = vunpack.c.l.b16 %v8185
    %v11224 = vunpack.c.h.b16 %v8185
    %v11225 = vunpack.c.l.b16 %v8186
    %v11226 = vunpack.c.h.b16 %v8186
    %v11227 = vunpack.c.l.b16 %v8187
    %v11228 = vunpack.c.h.b16 %v8187
    %v11229 = vunpack.c.l.b16 %v8188
    %v11230 = vunpack.c.h.b16 %v8188
    %v11231 = vunpack.c.l.b16 %v8189
    %v11232 = vunpack.c.h.b16 %v8189
    %v11233 = vunpack.c.l.b16 %v8190
    %v11234 = vunpack.c.h.b16 %v8190
    %v11235 = vunpack.c.l.b16 %v8191
    %v11236 = vunpack.c.h.b16 %v8191
    %v11237 = vunpack.c.l.b16 %v8192
    %v11238 = vunpack.c.h.b16 %v8192
    %v11239 = vunpack.c.l.b16 %v8193
    %v11240 = vunpack.c.h.b16 %v8193
    %v11241 = vunpack.c.l.b16 %v8194
    %v11242 = vunpack.c.h.b16 %v8194
    %v11243 = vunpack.c.l.b16 %v8195
    %v11244 = vunpack.c.h.b16 %v8195
    %v11245 = vunpack.c.l.b16 %v8196
    %v11246 = vunpack.c.h.b16 %v8196
    %v11247 = vunpack.c.l.b16 %v8197
    %v11248 = vunpack.c.h.b16 %v8197
    %v11249 = vunpack.c.l.b16 %v8198
    %v11250 = vunpack.c.h.b16 %v8198
    %v11251 = vunpack.c.l.b16 %v8199
    %v11252 = vunpack.c.h.b16 %v8199
    %v11253 = vunpack.c.l.b16 %v8200
    %v11254 = vunpack.c.h.b16 %v8200
    %v11255 = vunpack.c.l.b16 %v8201
    %v11256 = vunpack.c.h.b16 %v8201
    %v11257 = vunpack.c.l.b16 %v8202
    %v11258 = vunpack.c.h.b16 %v8202
    %v11259 = vunpack.c.l.b16 %v8203
    %v11260 = vunpack.c.h.b16 %v8203
    %v11261 = vunpack.c.l.b16 %v8204
    %v11262 = vunpack.c.h.b16 %v8204
    %v11263 = vunpack.c.l.b16 %v8205
    %v11264 = vunpack.c.h.b16 %v8205
    %v11265 = vunpack.c.l.b16 %v8206
    %v11266 = vunpack.c.h.b16 %v8206
    %v11267 = vunpack.c.l.b16 %v8207
    %v11268 = vunpack.c.h.b16 %v8207
    %v11269 = vunpack.c.l.b16 %v8208
    %v11270 = vunpack.c.h.b16 %v8208
    %v11271 = vunpack.c.l.b16 %v8209
    %v11272 = vunpack.c.h.b16 %v8209
    %v11273 = vunpack.c.l.b16 %v8210
    %v11274 = vunpack.c.h.b16 %v8210
    %v11275 = vunpack.c.l.b16 %v8211
    %v11276 = vunpack.c.h.b16 %v8211
    %v11277 = vunpack.c.l.b16 %v8212
    %v11278 = vunpack.c.h.b16 %v8212
    %v11279 = vunpack.c.l.b16 %v8213
    %v11280 = vunpack.c.h.b16 %v8213
    %v11281 = vunpack.c.l.b16 %v8214
    %v11282 = vunpack.c.h.b16 %v8214
    %v11283 = vunpack.c.l.b16 %v8215
    %v11284 = vunpack.c.h.b16 %v8215
    %v11285 = vunpack.c.l.b16 %v8216
    %v11286 = vunpack.c.h.b16 %v8216
    %v11287 = vunpack.c.l.b16 %v8217
    %v11288 = vunpack.c.h.b16 %v8217
    %v11289 = vunpack.c.l.b16 %v8218
    %v11290 = vunpack.c.h.b16 %v8218
    %v11291 = vunpack.c.l.b16 %v8219
    %v11292 = vunpack.c.h.b16 %v8219
    %v11293 = vunpack.c.l.b16 %v8220
    %v11294 = vunpack.c.h.b16 %v8220
    %v11295 = vunpack.c.l.b16 %v8221
    %v11296 = vunpack.c.h.b16 %v8221
    %v11297 = vunpack.c.l.b16 %v8222
    %v11298 = vunpack.c.h.b16 %v8222
    %v11299 = vunpack.c.l.b16 %v8223
    %v11300 = vunpack.c.h.b16 %v8223
    %v11301 = vunpack.c.l.b16 %v8224
    %v11302 = vunpack.c.h.b16 %v8224
    %v11303 = vunpack.c.l.b16 %v8225
    %v11304 = vunpack.c.h.b16 %v8225
    %v11305 = vunpack.c.l.b16 %v8226
    %v11306 = vunpack.c.h.b16 %v8226
    %v11307 = vunpack.c.l.b16 %v8227
    %v11308 = vunpack.c.h.b16 %v8227
    %v11309 = vunpack.c.l.b16 %v8228
    %v11310 = vunpack.c.h.b16 %v8228
    %v11311 = vunpack.c.l.b16 %v8229
    %v11312 = vunpack.c.h.b16 %v8229
    %v11313 = vunpack.c.l.b16 %v8230
    %v11314 = vunpack.c.h.b16 %v8230
    %v11315 = vunpack.c.l.b16 %v8231
    %v11316 = vunpack.c.h.b16 %v8231
    %v11317 = vunpack.c.l.b16 %v8232
    %v11318 = vunpack.c.h.b16 %v8232
    %v11319 = vunpack.c.l.b16 %v8233
    %v11320 = vunpack.c.h.b16 %v8233
    %v11321 = vunpack.c.l.b16 %v8234
    %v11322 = vunpack.c.h.b16 %v8234
    %v11323 = vunpack.c.l.b16 %v8235
    %v11324 = vunpack.c.h.b16 %v8235
    %v11325 = vunpack.c.l.b16 %v8236
    %v11326 = vunpack.c.h.b16 %v8236
    %v11327 = vunpack.c.l.b16 %v8237
    %v11328 = vunpack.c.h.b16 %v8237
    %v11329 = vunpack.c.l.b16 %v8238
    %v11330 = vunpack.c.h.b16 %v8238
    %v11331 = vunpack.c.l.b16 %v8239
    %v11332 = vunpack.c.h.b16 %v8239
    %v11333 = vunpack.c.l.b16 %v8240
    %v11334 = vunpack.c.h.b16 %v8240
    %v11335 = vunpack.c.l.b16 %v8241
    %v11336 = vunpack.c.h.b16 %v8241
    %v11337 = vunpack.c.l.b16 %v8242
    %v11338 = vunpack.c.h.b16 %v8242
    %v11339 = vunpack.c.l.b16 %v8243
    %v11340 = vunpack.c.h.b16 %v8243
    %v11341 = vunpack.c.l.b16 %v8244
    %v11342 = vunpack.c.h.b16 %v8244
    %v11343 = vunpack.c.l.b16 %v8245
    %v11344 = vunpack.c.h.b16 %v8245
    %v11345 = vunpack.c.l.b16 %v8246
    %v11346 = vunpack.c.h.b16 %v8246
    %v11347 = vunpack.c.l.b16 %v8247
    %v11348 = vunpack.c.h.b16 %v8247
    %v11349 = vunpack.c.l.b16 %v8248
    %v11350 = vunpack.c.h.b16 %v8248
    %v11351 = vunpack.c.l.b16 %v8249
    %v11352 = vunpack.c.h.b16 %v8249
    %v11353 = vunpack.c.l.b16 %v8250
    %v11354 = vunpack.c.h.b16 %v8250
    %v11355 = vunpack.c.l.b16 %v8251
    %v11356 = vunpack.c.h.b16 %v8251
    %v11357 = vunpack.c.l.b16 %v8252
    %v11358 = vunpack.c.h.b16 %v8252
    %v11359 = vunpack.c.l.b16 %v8253
    %v11360 = vunpack.c.h.b16 %v8253
    %v11361 = vunpack.c.l.b16 %v8254
    %v11362 = vunpack.c.h.b16 %v8254
    %v11363 = vunpack.c.l.b16 %v8255
    %v11364 = vunpack.c.h.b16 %v8255
    %v11365 = vunpack.c.l.b16 %v8256
    %v11366 = vunpack.c.h.b16 %v8256
    %v11367 = vunpack.c.l.b16 %v8257
    %v11368 = vunpack.c.h.b16 %v8257
    %v11369 = vunpack.c.l.b16 %v8258
    %v11370 = vunpack.c.h.b16 %v8258
    %v11371 = vunpack.c.l.b16 %v8259
    %v11372 = vunpack.c.h.b16 %v8259
    %v11373 = vunpack.c.l.b16 %v8260
    %v11374 = vunpack.c.h.b16 %v8260
    %v11375 = vunpack.c.l.b16 %v8261
    %v11376 = vunpack.c.h.b16 %v8261
    %v11377 = vunpack.c.l.b16 %v8262
    %v11378 = vunpack.c.h.b16 %v8262
    %v11379 = vunpack.c.l.b16 %v8263
    %v11380 = vunpack.c.h.b16 %v8263
    %v11381 = vunpack.c.l.b16 %v8264
    %v11382 = vunpack.c.h.b16 %v8264
    %v11383 = vunpack.c.l.b16 %v8265
    %v11384 = vunpack.c.h.b16 %v8265
    %v11385 = vunpack.c.l.b16 %v8266
    %v11386 = vunpack.c.h.b16 %v8266
    %v11387 = vunpack.c.l.b16 %v8267
    %v11388 = vunpack.c.h.b16 %v8267
    %v11389 = vunpack.c.l.b16 %v8268
    %v11390 = vunpack.c.h.b16 %v8268
    %v11391 = vunpack.c.l.b16 %v8269
    %v11392 = vunpack.c.h.b16 %v8269
    %v11393 = vunpack.c.l.b16 %v8270
    %v11394 = vunpack.c.h.b16 %v8270
    %v11395 = vunpack.c.l.b16 %v8271
    %v11396 = vunpack.c.h.b16 %v8271
    %v11397 = vunpack.c.l.b16 %v8272
    %v11398 = vunpack.c.h.b16 %v8272
    %v11399 = vunpack.c.l.b16 %v8273
    %v11400 = vunpack.c.h.b16 %v8273
    %v11401 = vunpack.c.l.b16 %v8274
    %v11402 = vunpack.c.h.b16 %v8274
    %v11403 = vunpack.c.l.b16 %v8275
    %v11404 = vunpack.c.h.b16 %v8275
    %v11405 = vunpack.c.l.b16 %v8276
    %v11406 = vunpack.c.h.b16 %v8276
    %v11407 = vunpack.c.l.b16 %v8277
    %v11408 = vunpack.c.h.b16 %v8277
    %v11409 = vunpack.c.l.b16 %v8278
    %v11410 = vunpack.c.h.b16 %v8278
    %v11411 = vunpack.c.l.b16 %v8279
    %v11412 = vunpack.c.h.b16 %v8279
    %v11413 = vunpack.c.l.b16 %v8280
    %v11414 = vunpack.c.h.b16 %v8280
    %v11415 = vunpack.c.l.b16 %v8281
    %v11416 = vunpack.c.h.b16 %v8281
    %v11417 = vunpack.c.l.b16 %v8282
    %v11418 = vunpack.c.h.b16 %v8282
    %v11419 = vunpack.c.l.b16 %v8283
    %v11420 = vunpack.c.h.b16 %v8283
    %v11421 = vunpack.c.l.b16 %v8284
    %v11422 = vunpack.c.h.b16 %v8284
    %v11423 = vunpack.c.l.b16 %v8285
    %v11424 = vunpack.c.h.b16 %v8285
    %v11425 = vunpack.c.l.b16 %v8286
    %v11426 = vunpack.c.h.b16 %v8286
    %v11427 = vunpack.c.l.b16 %v8287
    %v11428 = vunpack.c.h.b16 %v8287
    %v11429 = vunpack.c.l.b16 %v8288
    %v11430 = vunpack.c.h.b16 %v8288
    %v11431 = vunpack.c.l.b16 %v8289
    %v11432 = vunpack.c.h.b16 %v8289
    %v11433 = vunpack.c.l.b16 %v8290
    %v11434 = vunpack.c.h.b16 %v8290
    %v11435 = vunpack.c.l.b16 %v8291
    %v11436 = vunpack.c.h.b16 %v8291
    %v11437 = vunpack.c.l.b16 %v8292
    %v11438 = vunpack.c.h.b16 %v8292
    %v11439 = vunpack.c.l.b16 %v8293
    %v11440 = vunpack.c.h.b16 %v8293
    %v11441 = vunpack.c.l.b16 %v8294
    %v11442 = vunpack.c.h.b16 %v8294
    %v11443 = vunpack.c.l.b16 %v8295
    %v11444 = vunpack.c.h.b16 %v8295
    %v11445 = vunpack.c.l.b16 %v8296
    %v11446 = vunpack.c.h.b16 %v8296
    %v11447 = vunpack.c.l.b16 %v8297
    %v11448 = vunpack.c.h.b16 %v8297
    %v11449 = vunpack.c.l.b16 %v8298
    %v11450 = vunpack.c.h.b16 %v8298
    %v11451 = vunpack.c.l.b16 %v8299
    %v11452 = vunpack.c.h.b16 %v8299
    %v11453 = vunpack.c.l.b16 %v8300
    %v11454 = vunpack.c.h.b16 %v8300
    %v11455 = vunpack.c.l.b16 %v8301
    %v11456 = vunpack.c.h.b16 %v8301
    %v11457 = vunpack.c.l.b16 %v8302
    %v11458 = vunpack.c.h.b16 %v8302
    %v11459 = vunpack.c.l.b16 %v8303
    %v11460 = vunpack.c.h.b16 %v8303
    %v11461 = vunpack.c.l.b16 %v8304
    %v11462 = vunpack.c.h.b16 %v8304
    %v11463 = vunpack.c.l.b16 %v8305
    %v11464 = vunpack.c.h.b16 %v8305
    %v11465 = vunpack.c.l.b16 %v8306
    %v11466 = vunpack.c.h.b16 %v8306
    %v11467 = vunpack.c.l.b16 %v8307
    %v11468 = vunpack.c.h.b16 %v8307
    %v11469 = vunpack.c.l.b16 %v8308
    %v11470 = vunpack.c.h.b16 %v8308
    %v11471 = vunpack.c.l.b16 %v8309
    %v11472 = vunpack.c.h.b16 %v8309
    %v11473 = vunpack.c.l.b16 %v8310
    %v11474 = vunpack.c.h.b16 %v8310
    %v11475 = vunpack.c.l.b16 %v8311
    %v11476 = vunpack.c.h.b16 %v8311
    %v11477 = vunpack.c.l.b16 %v8312
    %v11478 = vunpack.c.h.b16 %v8312
    %v11479 = vunpack.c.l.b16 %v8313
    %v11480 = vunpack.c.h.b16 %v8313
    %v11481 = vunpack.c.l.b16 %v8314
    %v11482 = vunpack.c.h.b16 %v8314
    %v11483 = vunpack.c.l.b16 %v8315
    %v11484 = vunpack.c.h.b16 %v8315
    %v11485 = vunpack.c.l.b16 %v8316
    %v11486 = vunpack.c.h.b16 %v8316
    %v11487 = vunpack.c.l.b16 %v8317
    %v11488 = vunpack.c.h.b16 %v8317
    %v11489 = vunpack.c.l.b16 %v8318
    %v11490 = vunpack.c.h.b16 %v8318
    %v11491 = vunpack.c.l.b16 %v8319
    %v11492 = vunpack.c.h.b16 %v8319
    %v11493 = vunpack.c.l.b16 %v8320
    %v11494 = vunpack.c.h.b16 %v8320
    %v11495 = vunpack.c.l.b16 %v8321
    %v11496 = vunpack.c.h.b16 %v8321
    %v11497 = vunpack.c.l.b16 %v8322
    %v11498 = vunpack.c.h.b16 %v8322
    %v11499 = vunpack.c.l.b16 %v8323
    %v11500 = vunpack.c.h.b16 %v8323
    %v11501 = vunpack.c.l.b16 %v8324
    %v11502 = vunpack.c.h.b16 %v8324
    %v11503 = vunpack.c.l.b16 %v8325
    %v11504 = vunpack.c.h.b16 %v8325
    %v11505 = vunpack.c.l.b16 %v8326
    %v11506 = vunpack.c.h.b16 %v8326
    %v11507 = vunpack.c.l.b16 %v8327
    %v11508 = vunpack.c.h.b16 %v8327
    %v11509 = vunpack.c.l.b16 %v8328
    %v11510 = vunpack.c.h.b16 %v8328
    %v11511 = vunpack.c.l.b16 %v8329
    %v11512 = vunpack.c.h.b16 %v8329
    %v11513 = vunpack.c.l.b16 %v8330
    %v11514 = vunpack.c.h.b16 %v8330
    %v11515 = vunpack.c.l.b16 %v8331
    %v11516 = vunpack.c.h.b16 %v8331
    %v11517 = vunpack.c.l.b16 %v8332
    %v11518 = vunpack.c.h.b16 %v8332
    %v11519 = vunpack.c.l.b16 %v8333
    %v11520 = vunpack.c.h.b16 %v8333
    %v11521 = vunpack.c.l.b16 %v8334
    %v11522 = vunpack.c.h.b16 %v8334
    %v11523 = vunpack.c.l.b16 %v8335
    %v11524 = vunpack.c.h.b16 %v8335
    %v11525 = vunpack.c.l.b16 %v8336
    %v11526 = vunpack.c.h.b16 %v8336
    %v11527 = vunpack.c.l.b16 %v8337
    %v11528 = vunpack.c.h.b16 %v8337
    %v11529 = vunpack.c.l.b16 %v8338
    %v11530 = vunpack.c.h.b16 %v8338
    %v11531 = vunpack.c.l.b16 %v8339
    %v11532 = vunpack.c.h.b16 %v8339
    %v11533 = vunpack.c.l.b16 %v8340
    %v11534 = vunpack.c.h.b16 %v8340
    %v11535 = vunpack.c.l.b16 %v8341
    %v11536 = vunpack.c.h.b16 %v8341
    %v11537 = vunpack.c.l.b16 %v8342
    %v11538 = vunpack.c.h.b16 %v8342
    %v11539 = vunpack.c.l.b16 %v8343
    %v11540 = vunpack.c.h.b16 %v8343
    %v11541 = vunpack.c.l.b16 %v8344
    %v11542 = vunpack.c.h.b16 %v8344
    %v11543 = vunpack.c.l.b16 %v8345
    %v11544 = vunpack.c.h.b16 %v8345
    %v11545 = vunpack.c.l.b16 %v8346
    %v11546 = vunpack.c.h.b16 %v8346
    %v11547 = vunpack.c.l.b16 %v8347
    %v11548 = vunpack.c.h.b16 %v8347
    %v11549 = vunpack.c.l.b16 %v8348
    %v11550 = vunpack.c.h.b16 %v8348
    %v11551 = vunpack.c.l.b16 %v8349
    %v11552 = vunpack.c.h.b16 %v8349
    %v11553 = vunpack.c.l.b16 %v8350
    %v11554 = vunpack.c.h.b16 %v8350
    %v11555 = vunpack.c.l.b16 %v8351
    %v11556 = vunpack.c.h.b16 %v8351
    %v11557 = vunpack.c.l.b16 %v8352
    %v11558 = vunpack.c.h.b16 %v8352
    %v11559 = vunpack.c.l.b16 %v8353
    %v11560 = vunpack.c.h.b16 %v8353
    %v11561 = vunpack.c.l.b16 %v8354
    %v11562 = vunpack.c.h.b16 %v8354
    %v11563 = vunpack.c.l.b16 %v8355
    %v11564 = vunpack.c.h.b16 %v8355
    %v11565 = vunpack.c.l.b16 %v8356
    %v11566 = vunpack.c.h.b16 %v8356
    %v11567 = vunpack.c.l.b16 %v8357
    %v11568 = vunpack.c.h.b16 %v8357
    %v11569 = vunpack.c.l.b16 %v8358
    %v11570 = vunpack.c.h.b16 %v8358
    %v11571 = vunpack.c.l.b16 %v8359
    %v11572 = vunpack.c.h.b16 %v8359
    %v11573 = vunpack.c.l.b16 %v8360
    %v11574 = vunpack.c.h.b16 %v8360
    %v11575 = vunpack.c.l.b16 %v8361
    %v11576 = vunpack.c.h.b16 %v8361
    %v11577 = vunpack.c.l.b16 %v8362
    %v11578 = vunpack.c.h.b16 %v8362
    %v11579 = vunpack.c.l.b16 %v8363
    %v11580 = vunpack.c.h.b16 %v8363
    %v11581 = vunpack.c.l.b16 %v8364
    %v11582 = vunpack.c.h.b16 %v8364
    %v11583 = vunpack.c.l.b16 %v8365
    %v11584 = vunpack.c.h.b16 %v8365
    %v11585 = vunpack.c.l.b16 %v8366
    %v11586 = vunpack.c.h.b16 %v8366
    %v11587 = vunpack.c.l.b16 %v8367
    %v11588 = vunpack.c.h.b16 %v8367
    %v11589 = vunpack.c.l.b16 %v8368
    %v11590 = vunpack.c.h.b16 %v8368
    %v11591 = vunpack.c.l.b16 %v8369
    %v11592 = vunpack.c.h.b16 %v8369
    %v11593 = vunpack.c.l.b16 %v8370
    %v11594 = vunpack.c.h.b16 %v8370
    %v11595 = vunpack.c.l.b16 %v8371
    %v11596 = vunpack.c.h.b16 %v8371
    %v11597 = vunpack.c.l.b16 %v8372
    %v11598 = vunpack.c.h.b16 %v8372
    %v11599 = vunpack.c.l.b16 %v8373
    %v11600 = vunpack.c.h.b16 %v8373
    %v11601 = vunpack.c.l.b16 %v8374
    %v11602 = vunpack.c.h.b16 %v8374
    %v11603 = vunpack.c.l.b16 %v8375
    %v11604 = vunpack.c.h.b16 %v8375
    %v11605 = vunpack.c.l.b16 %v8376
    %v11606 = vunpack.c.h.b16 %v8376
    %v11607 = vunpack.c.l.b16 %v8377
    %v11608 = vunpack.c.h.b16 %v8377
    %v11609 = vunpack.c.l.b16 %v8378
    %v11610 = vunpack.c.h.b16 %v8378
    %v11611 = vunpack.c.l.b16 %v8379
    %v11612 = vunpack.c.h.b16 %v8379
    %v11613 = vunpack.c.l.b16 %v8380
    %v11614 = vunpack.c.h.b16 %v8380
    %v11615 = vunpack.c.l.b16 %v8381
    %v11616 = vunpack.c.h.b16 %v8381
    %v11617 = vunpack.c.l.b16 %v8382
    %v11618 = vunpack.c.h.b16 %v8382
    %v11619 = vunpack.c.l.b16 %v8383
    %v11620 = vunpack.c.h.b16 %v8383
    %v11621 = vunpack.c.l.b16 %v8384
    %v11622 = vunpack.c.h.b16 %v8384
    %v11623 = vunpack.c.l.b16 %v8385
    %v11624 = vunpack.c.h.b16 %v8385
    %v11625 = vunpack.c.l.b16 %v8386
    %v11626 = vunpack.c.h.b16 %v8386
    %v11627 = vunpack.c.l.b16 %v8387
    %v11628 = vunpack.c.h.b16 %v8387
    %v11629 = vunpack.c.l.b16 %v8388
    %v11630 = vunpack.c.h.b16 %v8388
    %v11631 = vunpack.c.l.b16 %v8389
    %v11632 = vunpack.c.h.b16 %v8389
    %v11633 = vunpack.c.l.b16 %v8390
    %v11634 = vunpack.c.h.b16 %v8390
    %v11635 = vunpack.c.l.b16 %v8391
    %v11636 = vunpack.c.h.b16 %v8391
    %v11637 = vunpack.c.l.b16 %v8392
    %v11638 = vunpack.c.h.b16 %v8392
    %v11639 = vunpack.c.l.b16 %v8393
    %v11640 = vunpack.c.h.b16 %v8393
    %v11641 = vunpack.c.l.b16 %v8394
    %v11642 = vunpack.c.h.b16 %v8394
    %v11643 = vunpack.c.l.b16 %v8395
    %v11644 = vunpack.c.h.b16 %v8395
    %v11645 = vunpack.c.l.b16 %v8396
    %v11646 = vunpack.c.h.b16 %v8396
    %v11647 = vunpack.c.l.b16 %v8397
    %v11648 = vunpack.c.h.b16 %v8397
    %v11649 = vunpack.c.l.b16 %v8398
    %v11650 = vunpack.c.h.b16 %v8398
    %v11651 = vunpack.c.l.b16 %v8399
    %v11652 = vunpack.c.h.b16 %v8399
    %v11653 = vunpack.c.l.b16 %v8400
    %v11654 = vunpack.c.h.b16 %v8400
    %v11655 = vunpack.c.l.b16 %v8401
    %v11656 = vunpack.c.h.b16 %v8401
    %v11657 = vunpack.c.l.b16 %v8402
    %v11658 = vunpack.c.h.b16 %v8402
    %v11659 = vunpack.c.l.b16 %v8403
    %v11660 = vunpack.c.h.b16 %v8403
    %v11661 = vunpack.c.l.b16 %v8404
    %v11662 = vunpack.c.h.b16 %v8404
    %v11663 = vunpack.c.l.b16 %v8405
    %v11664 = vunpack.c.h.b16 %v8405
    %v11665 = vunpack.c.l.b16 %v8406
    %v11666 = vunpack.c.h.b16 %v8406
    %v11667 = vunpack.c.l.b16 %v8407
    %v11668 = vunpack.c.h.b16 %v8407
    %v11669 = vunpack.c.l.b16 %v8408
    %v11670 = vunpack.c.h.b16 %v8408
    %v11671 = vunpack.c.l.b16 %v8409
    %v11672 = vunpack.c.h.b16 %v8409
    %v11673 = vunpack.c.l.b16 %v8410
    %v11674 = vunpack.c.h.b16 %v8410
    %v11675 = vunpack.c.l.b16 %v8411
    %v11676 = vunpack.c.h.b16 %v8411
    %v11677 = vunpack.c.l.b16 %v8412
    %v11678 = vunpack.c.h.b16 %v8412
    %v11679 = vunpack.c.l.b16 %v8413
    %v11680 = vunpack.c.h.b16 %v8413
    %v11681 = vunpack.c.l.b16 %v8414
    %v11682 = vunpack.c.h.b16 %v8414
    %v11683 = vunpack.c.l.b16 %v8415
    %v11684 = vunpack.c.h.b16 %v8415
    %v11685 = vunpack.c.l.b16 %v8416
    %v11686 = vunpack.c.h.b16 %v8416
    %v11687 = vunpack.c.l.b16 %v8417
    %v11688 = vunpack.c.h.b16 %v8417
    %v11689 = vunpack.c.l.b16 %v8418
    %v11690 = vunpack.c.h.b16 %v8418
    %v11691 = vunpack.c.l.b16 %v8419
    %v11692 = vunpack.c.h.b16 %v8419
    %v11693 = vunpack.c.l.b16 %v8420
    %v11694 = vunpack.c.h.b16 %v8420
    %v11695 = vunpack.c.l.b16 %v8421
    %v11696 = vunpack.c.h.b16 %v8421
    %v11697 = vunpack.c.l.b16 %v8422
    %v11698 = vunpack.c.h.b16 %v8422
    %v11699 = vunpack.c.l.b16 %v8423
    %v11700 = vunpack.c.h.b16 %v8423
    %v11701 = vunpack.c.l.b16 %v8424
    %v11702 = vunpack.c.h.b16 %v8424
    %v11703 = vunpack.c.l.b16 %v8425
    %v11704 = vunpack.c.h.b16 %v8425
    %v11705 = vunpack.c.l.b16 %v8426
    %v11706 = vunpack.c.h.b16 %v8426
    %v11707 = vunpack.c.l.b16 %v8427
    %v11708 = vunpack.c.h.b16 %v8427
    %v11709 = vunpack.c.l.b16 %v8428
    %v11710 = vunpack.c.h.b16 %v8428
    %v11711 = vunpack.c.l.b16 %v8429
    %v11712 = vunpack.c.h.b16 %v8429
    %v11713 = vunpack.c.l.b16 %v8430
    %v11714 = vunpack.c.h.b16 %v8430
    %v11715 = vunpack.c.l.b16 %v8431
    %v11716 = vunpack.c.h.b16 %v8431
    %v11717 = vunpack.c.l.b16 %v8432
    %v11718 = vunpack.c.h.b16 %v8432
    %v11719 = vunpack.c.l.b16 %v8433
    %v11720 = vunpack.c.h.b16 %v8433
    %v11721 = vunpack.c.l.b16 %v8434
    %v11722 = vunpack.c.h.b16 %v8434
    %v11723 = vunpack.c.l.b16 %v8435
    %v11724 = vunpack.c.h.b16 %v8435
    %v11725 = vunpack.c.l.b16 %v8436
    %v11726 = vunpack.c.h.b16 %v8436
    %v11727 = vunpack.c.l.b16 %v8437
    %v11728 = vunpack.c.h.b16 %v8437
    %v11729 = vunpack.c.l.b16 %v8438
    %v11730 = vunpack.c.h.b16 %v8438
    %v11731 = vunpack.c.l.b16 %v8439
    %v11732 = vunpack.c.h.b16 %v8439
    %v11733 = vunpack.c.l.b16 %v8440
    %v11734 = vunpack.c.h.b16 %v8440
    %v11735 = vunpack.c.l.b16 %v8441
    %v11736 = vunpack.c.h.b16 %v8441
    %v11737 = vunpack.c.l.b16 %v8442
    %v11738 = vunpack.c.h.b16 %v8442
    %v11739 = vunpack.c.l.b16 %v8443
    %v11740 = vunpack.c.h.b16 %v8443
    %v11741 = vunpack.c.l.b16 %v8444
    %v11742 = vunpack.c.h.b16 %v8444
    %v11743 = vunpack.c.l.b16 %v8445
    %v11744 = vunpack.c.h.b16 %v8445
    %v11745 = vunpack.c.l.b16 %v8446
    %v11746 = vunpack.c.h.b16 %v8446
    %v11747 = vunpack.c.l.b16 %v8447
    %v11748 = vunpack.c.h.b16 %v8447
    %v11749 = vunpack.c.l.b16 %v8448
    %v11750 = vunpack.c.h.b16 %v8448
    %v11751 = vunpack.c.l.b16 %v8449
    %v11752 = vunpack.c.h.b16 %v8449
    %v11753 = vunpack.c.l.b16 %v8450
    %v11754 = vunpack.c.h.b16 %v8450
    %v11755 = vunpack.c.l.b16 %v8451
    %v11756 = vunpack.c.h.b16 %v8451
    %v11757 = vunpack.c.l.b16 %v8452
    %v11758 = vunpack.c.h.b16 %v8452
    %v11759 = vunpack.c.l.b16 %v8453
    %v11760 = vunpack.c.h.b16 %v8453
    %v11761 = vunpack.c.l.b16 %v8454
    %v11762 = vunpack.c.h.b16 %v8454
    %v11763 = vunpack.c.l.b16 %v8455
    %v11764 = vunpack.c.h.b16 %v8455
    %v11765 = vunpack.c.l.b16 %v8456
    %v11766 = vunpack.c.h.b16 %v8456
    %v11767 = vunpack.c.l.b16 %v8457
    %v11768 = vunpack.c.h.b16 %v8457
    %v11769 = vunpack.c.l.b16 %v8458
    %v11770 = vunpack.c.h.b16 %v8458
    %v11771 = vunpack.c.l.b16 %v8459
    %v11772 = vunpack.c.h.b16 %v8459
    %v11773 = vunpack.c.l.b16 %v8460
    %v11774 = vunpack.c.h.b16 %v8460
    %v11775 = vunpack.c.l.b16 %v8461
    %v11776 = vunpack.c.h.b16 %v8461
    %v11777 = vunpack.c.l.b16 %v8462
    %v11778 = vunpack.c.h.b16 %v8462
    %v11779 = vunpack.c.l.b16 %v8463
    %v11780 = vunpack.c.h.b16 %v8463
    %v11781 = vunpack.c.l.b16 %v8464
    %v11782 = vunpack.c.h.b16 %v8464
    %v11783 = vunpack.c.l.b16 %v8465
    %v11784 = vunpack.c.h.b16 %v8465
    %v11785 = vunpack.c.l.b16 %v8466
    %v11786 = vunpack.c.h.b16 %v8466
    %v11787 = vunpack.c.l.b16 %v8467
    %v11788 = vunpack.c.h.b16 %v8467
    %v11789 = vunpack.c.l.b16 %v8468
    %v11790 = vunpack.c.h.b16 %v8468
    %v11791 = vunpack.c.l.b16 %v8469
    %v11792 = vunpack.c.h.b16 %v8469
    %v11793 = vunpack.c.l.b16 %v8470
    %v11794 = vunpack.c.h.b16 %v8470
    %v11795 = vunpack.c.l.b16 %v8471
    %v11796 = vunpack.c.h.b16 %v8471
    %v11797 = vunpack.c.l.b16 %v8472
    %v11798 = vunpack.c.h.b16 %v8472
    %v11799 = vunpack.c.l.b16 %v8473
    %v11800 = vunpack.c.h.b16 %v8473
    %v11801 = vunpack.c.l.b16 %v8474
    %v11802 = vunpack.c.h.b16 %v8474
    %v11803 = vunpack.c.l.b16 %v8475
    %v11804 = vunpack.c.h.b16 %v8475
    %v11805 = vunpack.c.l.b16 %v8476
    %v11806 = vunpack.c.h.b16 %v8476
    %v11807 = vunpack.c.l.b16 %v8477
    %v11808 = vunpack.c.h.b16 %v8477
    %v11809 = vunpack.c.l.b16 %v8478
    %v11810 = vunpack.c.h.b16 %v8478
    %v11811 = vunpack.c.l.b16 %v8479
    %v11812 = vunpack.c.h.b16 %v8479
    %v11813 = vunpack.c.l.b16 %v8480
    %v11814 = vunpack.c.h.b16 %v8480
    %v11815 = vunpack.c.l.b16 %v8481
    %v11816 = vunpack.c.h.b16 %v8481
    %v11817 = vunpack.c.l.b16 %v8482
    %v11818 = vunpack.c.h.b16 %v8482
    %v11819 = vunpack.c.l.b16 %v8483
    %v11820 = vunpack.c.h.b16 %v8483
    %v11821 = vunpack.c.l.b16 %v8484
    %v11822 = vunpack.c.h.b16 %v8484
    %v11823 = vunpack.c.l.b16 %v8485
    %v11824 = vunpack.c.h.b16 %v8485
    %v11825 = vunpack.c.l.b16 %v8486
    %v11826 = vunpack.c.h.b16 %v8486
    %v11827 = vunpack.c.l.b16 %v8487
    %v11828 = vunpack.c.h.b16 %v8487
    %v11829 = vunpack.c.l.b16 %v8488
    %v11830 = vunpack.c.h.b16 %v8488
    %v11831 = vunpack.c.l.b16 %v8489
    %v11832 = vunpack.c.h.b16 %v8489
    %v11833 = vunpack.c.l.b16 %v8490
    %v11834 = vunpack.c.h.b16 %v8490
    %v11835 = vunpack.c.l.b16 %v8491
    %v11836 = vunpack.c.h.b16 %v8491
    %v11837 = vunpack.c.l.b16 %v8492
    %v11838 = vunpack.c.h.b16 %v8492
    %v11839 = vunpack.c.l.b16 %v8493
    %v11840 = vunpack.c.h.b16 %v8493
    %v11841 = vunpack.c.l.b16 %v8494
    %v11842 = vunpack.c.h.b16 %v8494
    %v11843 = vunpack.c.l.b16 %v8495
    %v11844 = vunpack.c.h.b16 %v8495
    %v11845 = vunpack.c.l.b16 %v8496
    %v11846 = vunpack.c.h.b16 %v8496
    %v11847 = vunpack.c.l.b16 %v8497
    %v11848 = vunpack.c.h.b16 %v8497
    %v11849 = vunpack.c.l.b16 %v8498
    %v11850 = vunpack.c.h.b16 %v8498
    %v11851 = vunpack.c.l.b16 %v8499
    %v11852 = vunpack.c.h.b16 %v8499
    %v11853 = vunpack.c.l.b16 %v8500
    %v11854 = vunpack.c.h.b16 %v8500
    %v11855 = vunpack.c.l.b16 %v8501
    %v11856 = vunpack.c.h.b16 %v8501
    %v11857 = vunpack.c.l.b16 %v8502
    %v11858 = vunpack.c.h.b16 %v8502
    %v11859 = vunpack.c.l.b16 %v8503
    %v11860 = vunpack.c.h.b16 %v8503
    %v11861 = vunpack.c.l.b16 %v8504
    %v11862 = vunpack.c.h.b16 %v8504
    %v11863 = vunpack.c.l.b16 %v8505
    %v11864 = vunpack.c.h.b16 %v8505
    %v11865 = vunpack.c.l.b16 %v8506
    %v11866 = vunpack.c.h.b16 %v8506
    %v11867 = vunpack.c.l.b16 %v8507
    %v11868 = vunpack.c.h.b16 %v8507
    %v11869 = vunpack.c.l.b16 %v8508
    %v11870 = vunpack.c.h.b16 %v8508
    %v11871 = vunpack.c.l.b16 %v8509
    %v11872 = vunpack.c.h.b16 %v8509
    %v11873 = vunpack.c.l.b16 %v8510
    %v11874 = vunpack.c.h.b16 %v8510
    %v11875 = vunpack.c.l.b16 %v8511
    %v11876 = vunpack.c.h.b16 %v8511
    %v11877 = vunpack.c.l.b16 %v8512
    %v11878 = vunpack.c.h.b16 %v8512
    %v11879 = vunpack.c.l.b16 %v8513
    %v11880 = vunpack.c.h.b16 %v8513
    %v11881 = vunpack.c.l.b16 %v8514
    %v11882 = vunpack.c.h.b16 %v8514
    %v11883 = vunpack.c.l.b16 %v8515
    %v11884 = vunpack.c.h.b16 %v8515
    %v11885 = vunpack.c.l.b16 %v8516
    %v11886 = vunpack.c.h.b16 %v8516
    %v11887 = vunpack.c.l.b16 %v8517
    %v11888 = vunpack.c.h.b16 %v8517
    %v11889 = vunpack.c.l.b16 %v8518
    %v11890 = vunpack.c.h.b16 %v8518
    %v11891 = vunpack.c.l.b16 %v8519
    %v11892 = vunpack.c.h.b16 %v8519
    %v11893 = vunpack.c.l.b16 %v8520
    %v11894 = vunpack.c.h.b16 %v8520
    %v11895 = vunpack.c.l.b16 %v8521
    %v11896 = vunpack.c.h.b16 %v8521
    %v11897 = vunpack.c.l.b16 %v8522
    %v11898 = vunpack.c.h.b16 %v8522
    %v11899 = vunpack.c.l.b16 %v8523
    %v11900 = vunpack.c.h.b16 %v8523
    %v11901 = vpack.c.b16 %v11201, %v11197
    %v11902 = vpack.c.b16 %v11202, %v11198
    %v11903 = vpack.c.b16 %v11203, %v11199
    %v11904 = vpack.c.b16 %v11204, %v11200
    %v11905 = vpack.c.b16 %v11209, %v11205
    %v11906 = vpack.c.b16 %v11210, %v11206
    %v11907 = vpack.c.b16 %v11211, %v11207
    %v11908 = vpack.c.b16 %v11212, %v11208
    %v11909 = vpack.c.b16 %v11217, %v11213
    %v11910 = vpack.c.b16 %v11218, %v11214
    %v11911 = vpack.c.b16 %v11219, %v11215
    %v11912 = vpack.c.b16 %v11220, %v11216
    %v11913 = vpack.c.b16 %v11225, %v11221
    %v11914 = vpack.c.b16 %v11226, %v11222
    %v11915 = vpack.c.b16 %v11227, %v11223
    %v11916 = vpack.c.b16 %v11228, %v11224
    %v11917 = vpack.c.b16 %v11233, %v11229
    %v11918 = vpack.c.b16 %v11234, %v11230
    %v11919 = vpack.c.b16 %v11235, %v11231
    %v11920 = vpack.c.b16 %v11236, %v11232
    %v11921 = vpack.c.b16 %v11241, %v11237
    %v11922 = vpack.c.b16 %v11242, %v11238
    %v11923 = vpack.c.b16 %v11243, %v11239
    %v11924 = vpack.c.b16 %v11244, %v11240
    %v11925 = vpack.c.b16 %v11249, %v11245
    %v11926 = vpack.c.b16 %v11250, %v11246
    %v11927 = vpack.c.b16 %v11251, %v11247
    %v11928 = vpack.c.b16 %v11252, %v11248
    %v11929 = vpack.c.b16 %v11257, %v11253
    %v11930 = vpack.c.b16 %v11258, %v11254
    %v11931 = vpack.c.b16 %v11259, %v11255
    %v11932 = vpack.c.b16 %v11260, %v11256
    %v11933 = vpack.c.b16 %v11265, %v11261
    %v11934 = vpack.c.b16 %v11266, %v11262
    %v11935 = vpack.c.b16 %v11267, %v11263
    %v11936 = vpack.c.b16 %v11268, %v11264
    %v11937 = vpack.c.b16 %v11273, %v11269
    %v11938 = vpack.c.b16 %v11274, %v11270
    %v11939 = vpack.c.b16 %v11275, %v11271
    %v11940 = vpack.c.b16 %v11276, %v11272
    %v11941 = vpack.c.b16 %v11281, %v11277
    %v11942 = vpack.c.b16 %v11282, %v11278
    %v11943 = vpack.c.b16 %v11283, %v11279
    %v11944 = vpack.c.b16 %v11284, %v11280
    %v11945 = vpack.c.b16 %v11289, %v11285
    %v11946 = vpack.c.b16 %v11290, %v11286
    %v11947 = vpack.c.b16 %v11291, %v11287
    %v11948 = vpack.c.b16 %v11292, %v11288
    %v11949 = vpack.c.b16 %v11297, %v11293
    %v11950 = vpack.c.b16 %v11298, %v11294
    %v11951 = vpack.c.b16 %v11299, %v11295
    %v11952 = vpack.c.b16 %v11300, %v11296
    %v11953 = vpack.c.b16 %v11305, %v11301
    %v11954 = vpack.c.b16 %v11306, %v11302
    %v11955 = vpack.c.b16 %v11307, %v11303
    %v11956 = vpack.c.b16 %v11308, %v11304
    %v11957 = vpack.c.b16 %v11313, %v11309
    %v11958 = vpack.c.b16 %v11314, %v11310
    %v11959 = vpack.c.b16 %v11315, %v11311
    %v11960 = vpack.c.b16 %v11316, %v11312
    %v11961 = vpack.c.b16 %v11321, %v11317
    %v11962 = vpack.c.b16 %v11322, %v11318
    %v11963 = vpack.c.b16 %v11323, %v11319
    %v11964 = vpack.c.b16 %v11324, %v11320
    %v11965 = vpack.c.b16 %v11329, %v11325
    %v11966 = vpack.c.b16 %v11330, %v11326
    %v11967 = vpack.c.b16 %v11331, %v11327
    %v11968 = vpack.c.b16 %v11332, %v11328
    %v11969 = vpack.c.b16 %v11337, %v11333
    %v11970 = vpack.c.b16 %v11338, %v11334
    %v11971 = vpack.c.b16 %v11339, %v11335
    %v11972 = vpack.c.b16 %v11340, %v11336
    %v11973 = vpack.c.b16 %v11345, %v11341
    %v11974 = vpack.c.b16 %v11346, %v11342
    %v11975 = vpack.c.b16 %v11347, %v11343
    %v11976 = vpack.c.b16 %v11348, %v11344
    %v11977 = vpack.c.b16 %v11353, %v11349
    %v11978 = vpack.c.b16 %v11354, %v11350
    %v11979 = vpack.c.b16 %v11355, %v11351
    %v11980 = vpack.c.b16 %v11356, %v11352
    %v11981 = vpack.c.b16 %v11361, %v11357
    %v11982 = vpack.c.b16 %v11362, %v11358
    %v11983 = vpack.c.b16 %v11363, %v11359
    %v11984 = vpack.c.b16 %v11364, %v11360
    %v11985 = vpack.c.b16 %v11369, %v11365
    %v11986 = vpack.c.b16 %v11370, %v11366
    %v11987 = vpack.c.b16 %v11371, %v11367
    %v11988 = vpack.c.b16 %v11372, %v11368
    %v11989 = vpack.c.b16 %v11377, %v11373
    %v11990 = vpack.c.b16 %v11378, %v11374
    %v11991 = vpack.c.b16 %v11379, %v11375
    %v11992 = vpack.c.b16 %v11380, %v11376
    %v11993 = vpack.c.b16 %v11385, %v11381
    %v11994 = vpack.c.b16 %v11386, %v11382
    %v11995 = vpack.c.b16 %v11387, %v11383
    %v11996 = vpack.c.b16 %v11388, %v11384
    %v11997 = vpack.c.b16 %v11393, %v11389
    %v11998 = vpack.c.b16 %v11394, %v11390
    %v11999 = vpack.c.b16 %v11395, %v11391
    %v12000 = vpack.c.b16 %v11396, %v11392
    %v12001 = vpack.c.b16 %v11401, %v11397
    %v12002 = vpack.c.b16 %v11402, %v11398
    %v12003 = vpack.c.b16 %v11403, %v11399
    %v12004 = vpack.c.b16 %v11404, %v11400
    %v12005 = vpack.c.b16 %v11409, %v11405
    %v12006 = vpack.c.b16 %v11410, %v11406
    %v12007 = vpack.c.b16 %v11411, %v11407
    %v12008 = vpack.c.b16 %v11412, %v11408
    %v12009 = vpack.c.b16 %v11417, %v11413
    %v12010 = vpack.c.b16 %v11418, %v11414
    %v12011 = vpack.c.b16 %v11419, %v11415
    %v12012 = vpack.c.b16 %v11420, %v11416
    %v12013 = vpack.c.b16 %v11425, %v11421
    %v12014 = vpack.c.b16 %v11426, %v11422
    %v12015 = vpack.c.b16 %v11427, %v11423
    %v12016 = vpack.c.b16 %v11428, %v11424
    %v12017 = vpack.c.b16 %v11433, %v11429
    %v12018 = vpack.c.b16 %v11434, %v11430
    %v12019 = vpack.c.b16 %v11435, %v11431
    %v12020 = vpack.c.b16 %v11436, %v11432
    %v12021 = vpack.c.b16 %v11441, %v11437
    %v12022 = vpack.c.b16 %v11442, %v11438
    %v12023 = vpack.c.b16 %v11443, %v11439
    %v12024 = vpack.c.b16 %v11444, %v11440
    %v12025 = vpack.c.b16 %v11449, %v11445
    %v12026 = vpack.c.b16 %v11450, %v11446
    %v12027 = vpack.c.b16 %v11451, %v11447
    %v12028 = vpack.c.b16 %v11452, %v11448
    %v12029 = vpack.c.b16 %v11457, %v11453
    %v12030 = vpack.c.b16 %v11458, %v11454
    %v12031 = vpack.c.b16 %v11459, %v11455
    %v12032 = vpack.c.b16 %v11460, %v11456
    %v12033 = vpack.c.b16 %v11465, %v11461
    %v12034 = vpack.c.b16 %v11466, %v11462
    %v12035 = vpack.c.b16 %v11467, %v11463
    %v12036 = vpack.c.b16 %v11468, %v11464
    %v12037 = vpack.c.b16 %v11473, %v11469
    %v12038 = vpack.c.b16 %v11474, %v11470
    %v12039 = vpack.c.b16 %v11475, %v11471
    %v12040 = vpack.c.b16 %v11476, %v11472
    %v12041 = vpack.c.b16 %v11481, %v11477
    %v12042 = vpack.c.b16 %v11482, %v11478
    %v12043 = vpack.c.b16 %v11483, %v11479
    %v12044 = vpack.c.b16 %v11484, %v11480
    %v12045 = vpack.c.b16 %v11489, %v11485
    %v12046 = vpack.c.b16 %v11490, %v11486
    %v12047 = vpack.c.b16 %v11491, %v11487
    %v12048 = vpack.c.b16 %v11492, %v11488
    %v12049 = vpack.c.b16 %v11497, %v11493
    %v12050 = vpack.c.b16 %v11498, %v11494
    %v12051 = vpack.c.b16 %v11499, %v11495
    %v12052 = vpack.c.b16 %v11500, %v11496
    %v12053 = vpack.c.b16 %v11505, %v11501
    %v12054 = vpack.c.b16 %v11506, %v11502
    %v12055 = vpack.c.b16 %v11507, %v11503
    %v12056 = vpack.c.b16 %v11508, %v11504
    %v12057 = vpack.c.b16 %v11513, %v11509
    %v12058 = vpack.c.b16 %v11514, %v11510
    %v12059 = vpack.c.b16 %v11515, %v11511
    %v12060 = vpack.c.b16 %v11516, %v11512
    %v12061 = vpack.c.b16 %v11521, %v11517
    %v12062 = vpack.c.b16 %v11522, %v11518
    %v12063 = vpack.c.b16 %v11523, %v11519
    %v12064 = vpack.c.b16 %v11524, %v11520
    %v12065 = vpack.c.b16 %v11529, %v11525
    %v12066 = vpack.c.b16 %v11530, %v11526
    %v12067 = vpack.c.b16 %v11531, %v11527
    %v12068 = vpack.c.b16 %v11532, %v11528
    %v12069 = vpack.c.b16 %v11537, %v11533
    %v12070 = vpack.c.b16 %v11538, %v11534
    %v12071 = vpack.c.b16 %v11539, %v11535
    %v12072 = vpack.c.b16 %v11540, %v11536
    %v12073 = vpack.c.b16 %v11545, %v11541
    %v12074 = vpack.c.b16 %v11546, %v11542
    %v12075 = vpack.c.b16 %v11547, %v11543
    %v12076 = vpack.c.b16 %v11548, %v11544
    %v12077 = vpack.c.b16 %v11553, %v11549
    %v12078 = vpack.c.b16 %v11554, %v11550
    %v12079 = vpack.c.b16 %v11555, %v11551
    %v12080 = vpack.c.b16 %v11556, %v11552
    %v12081 = vpack.c.b16 %v11561, %v11557
    %v12082 = vpack.c.b16 %v11562, %v11558
    %v12083 = vpack.c.b16 %v11563, %v11559
    %v12084 = vpack.c.b16 %v11564, %v11560
    %v12085 = vpack.c.b16 %v11569, %v11565
    %v12086 = vpack.c.b16 %v11570, %v11566
    %v12087 = vpack.c.b16 %v11571, %v11567
    %v12088 = vpack.c.b16 %v11572, %v11568
    %v12089 = vpack.c.b16 %v11577, %v11573
    %v12090 = vpack.c.b16 %v11578, %v11574
    %v12091 = vpack.c.b16 %v11579, %v11575
    %v12092 = vpack.c.b16 %v11580, %v11576
    %v12093 = vpack.c.b16 %v11585, %v11581
    %v12094 = vpack.c.b16 %v11586, %v11582
    %v12095 = vpack.c.b16 %v11587, %v11583
    %v12096 = vpack.c.b16 %v11588, %v11584
    %v12097 = vpack.c.b16 %v11593, %v11589
    %v12098 = vpack.c.b16 %v11594, %v11590
    %v12099 = vpack.c.b16 %v11595, %v11591
    %v12100 = vpack.c.b16 %v11596, %v11592
    %v12101 = vpack.c.b16 %v11601, %v11597
    %v12102 = vpack.c.b16 %v11602, %v11598
    %v12103 = vpack.c.b16 %v11603, %v11599
    %v12104 = vpack.c.b16 %v11604, %v11600
    %v12105 = vpack.c.b16 %v11609, %v11605
    %v12106 = vpack.c.b16 %v11610, %v11606
    %v12107 = vpack.c.b16 %v11611, %v11607
    %v12108 = vpack.c.b16 %v11612, %v11608
    %v12109 = vpack.c.b16 %v11617, %v11613
    %v12110 = vpack.c.b16 %v11618, %v11614
    %v12111 = vpack.c.b16 %v11619, %v11615
    %v12112 = vpack.c.b16 %v11620, %v11616
    %v12113 = vpack.c.b16 %v11625, %v11621
    %v12114 = vpack.c.b16 %v11626, %v11622
    %v12115 = vpack.c.b16 %v11627, %v11623
    %v12116 = vpack.c.b16 %v11628, %v11624
    %v12117 = vpack.c.b16 %v11633, %v11629
    %v12118 = vpack.c.b16 %v11634, %v11630
    %v12119 = vpack.c.b16 %v11635, %v11631
    %v12120 = vpack.c.b16 %v11636, %v11632
    %v12121 = vpack.c.b16 %v11641, %v11637
    %v12122 = vpack.c.b16 %v11642, %v11638
    %v12123 = vpack.c.b16 %v11643, %v11639
    %v12124 = vpack.c.b16 %v11644, %v11640
    %v12125 = vpack.c.b16 %v11649, %v11645
    %v12126 = vpack.c.b16 %v11650, %v11646
    %v12127 = vpack.c.b16 %v11651, %v11647
    %v12128 = vpack.c.b16 %v11652, %v11648
    %v12129 = vpack.c.b16 %v11657, %v11653
    %v12130 = vpack.c.b16 %v11658, %v11654
    %v12131 = vpack.c.b16 %v11659, %v11655
    %v12132 = vpack.c.b16 %v11660, %v11656
    %v12133 = vpack.c.b16 %v11665, %v11661
    %v12134 = vpack.c.b16 %v11666, %v11662
    %v12135 = vpack.c.b16 %v11667, %v11663
    %v12136 = vpack.c.b16 %v11668, %v11664
    %v12137 = vpack.c.b16 %v11673, %v11669
    %v12138 = vpack.c.b16 %v11674, %v11670
    %v12139 = vpack.c.b16 %v11675, %v11671
    %v12140 = vpack.c.b16 %v11676, %v11672
    %v12141 = vpack.c.b16 %v11681, %v11677
    %v12142 = vpack.c.b16 %v11682, %v11678
    %v12143 = vpack.c.b16 %v11683, %v11679
    %v12144 = vpack.c.b16 %v11684, %v11680
    %v12145 = vpack.c.b16 %v11689, %v11685
    %v12146 = vpack.c.b16 %v11690, %v11686
    %v12147 = vpack.c.b16 %v11691, %v11687
    %v12148 = vpack.c.b16 %v11692, %v11688
    %v12149 = vpack.c.b16 %v11697, %v11693
    %v12150 = vpack.c.b16 %v11698, %v11694
    %v12151 = vpack.c.b16 %v11699, %v11695
    %v12152 = vpack.c.b16 %v11700, %v11696
    %v12153 = vpack.c.b16 %v11705, %v11701
    %v12154 = vpack.c.b16 %v11706, %v11702
    %v12155 = vpack.c.b16 %v11707, %v11703
    %v12156 = vpack.c.b16 %v11708, %v11704
    %v12157 = vpack.c.b16 %v11713, %v11709
    %v12158 = vpack.c.b16 %v11714, %v11710
    %v12159 = vpack.c.b16 %v11715, %v11711
    %v12160 = vpack.c.b16 %v11716, %v11712
    %v12161 = vpack.c.b16 %v11721, %v11717
    %v12162 = vpack.c.b16 %v11722, %v11718
    %v12163 = vpack.c.b16 %v11723, %v11719
    %v12164 = vpack.c.b16 %v11724, %v11720
    %v12165 = vpack.c.b16 %v11729, %v11725
    %v12166 = vpack.c.b16 %v11730, %v11726
    %v12167 = vpack.c.b16 %v11731, %v11727
    %v12168 = vpack.c.b16 %v11732, %v11728
    %v12169 = vpack.c.b16 %v11737, %v11733
    %v12170 = vpack.c.b16 %v11738, %v11734
    %v12171 = vpack.c.b16 %v11739, %v11735
    %v12172 = vpack.c.b16 %v11740, %v11736
    %v12173 = vpack.c.b16 %v11745, %v11741
    %v12174 = vpack.c.b16 %v11746, %v11742
    %v12175 = vpack.c.b16 %v11747, %v11743
    %v12176 = vpack.c.b16 %v11748, %v11744
    %v12177 = vpack.c.b16 %v11753, %v11749
    %v12178 = vpack.c.b16 %v11754, %v11750
    %v12179 = vpack.c.b16 %v11755, %v11751
    %v12180 = vpack.c.b16 %v11756, %v11752
    %v12181 = vpack.c.b16 %v11761, %v11757
    %v12182 = vpack.c.b16 %v11762, %v11758
    %v12183 = vpack.c.b16 %v11763, %v11759
    %v12184 = vpack.c.b16 %v11764, %v11760
    %v12185 = vpack.c.b16 %v11769, %v11765
    %v12186 = vpack.c.b16 %v11770, %v11766
    %v12187 = vpack.c.b16 %v11771, %v11767
    %v12188 = vpack.c.b16 %v11772, %v11768
    %v12189 = vpack.c.b16 %v11777, %v11773
    %v12190 = vpack.c.b16 %v11778, %v11774
    %v12191 = vpack.c.b16 %v11779, %v11775
    %v12192 = vpack.c.b16 %v11780, %v11776
    %v12193 = vpack.c.b16 %v11785, %v11781
    %v12194 = vpack.c.b16 %v11786, %v11782
    %v12195 = vpack.c.b16 %v11787, %v11783
    %v12196 = vpack.c.b16 %v11788, %v11784
    %v12197 = vpack.c.b16 %v11793, %v11789
    %v12198 = vpack.c.b16 %v11794, %v11790
    %v12199 = vpack.c.b16 %v11795, %v11791
    %v12200 = vpack.c.b16 %v11796, %v11792
    %v12201 = vpack.c.b16 %v11801, %v11797
    %v12202 = vpack.c.b16 %v11802, %v11798
    %v12203 = vpack.c.b16 %v11803, %v11799
    %v12204 = vpack.c.b16 %v11804, %v11800
    %v12205 = vpack.c.b16 %v11809, %v11805
    %v12206 = vpack.c.b16 %v11810, %v11806
    %v12207 = vpack.c.b16 %v11811, %v11807
    %v12208 = vpack.c.b16 %v11812, %v11808
    %v12209 = vpack.c.b16 %v11817, %v11813
    %v12210 = vpack.c.b16 %v11818, %v11814
    %v12211 = vpack.c.b16 %v11819, %v11815
    %v12212 = vpack.c.b16 %v11820, %v11816
    %v12213 = vpack.c.b16 %v11825, %v11821
    %v12214 = vpack.c.b16 %v11826, %v11822
    %v12215 = vpack.c.b16 %v11827, %v11823
    %v12216 = vpack.c.b16 %v11828, %v11824
    %v12217 = vpack.c.b16 %v11833, %v11829
    %v12218 = vpack.c.b16 %v11834, %v11830
    %v12219 = vpack.c.b16 %v11835, %v11831
    %v12220 = vpack.c.b16 %v11836, %v11832
    %v12221 = vpack.c.b16 %v11841, %v11837
    %v12222 = vpack.c.b16 %v11842, %v11838
    %v12223 = vpack.c.b16 %v11843, %v11839
    %v12224 = vpack.c.b16 %v11844, %v11840
    %v12225 = vpack.c.b16 %v11849, %v11845
    %v12226 = vpack.c.b16 %v11850, %v11846
    %v12227 = vpack.c.b16 %v11851, %v11847
    %v12228 = vpack.c.b16 %v11852, %v11848
    %v12229 = vpack.c.b16 %v11857, %v11853
    %v12230 = vpack.c.b16 %v11858, %v11854
    %v12231 = vpack.c.b16 %v11859, %v11855
    %v12232 = vpack.c.b16 %v11860, %v11856
    %v12233 = vpack.c.b16 %v11865, %v11861
    %v12234 = vpack.c.b16 %v11866, %v11862
    %v12235 = vpack.c.b16 %v11867, %v11863
    %v12236 = vpack.c.b16 %v11868, %v11864
    %v12237 = vpack.c.b16 %v11873, %v11869
    %v12238 = vpack.c.b16 %v11874, %v11870
    %v12239 = vpack.c.b16 %v11875, %v11871
    %v12240 = vpack.c.b16 %v11876, %v11872
    %v12241 = vpack.c.b16 %v11881, %v11877
    %v12242 = vpack.c.b16 %v11882, %v11878
    %v12243 = vpack.c.b16 %v11883, %v11879
    %v12244 = vpack.c.b16 %v11884, %v11880
    %v12245 = vpack.c.b16 %v11889, %v11885
    %v12246 = vpack.c.b16 %v11890, %v11886
    %v12247 = vpack.c.b16 %v11891, %v11887
    %v12248 = vpack.c.b16 %v11892, %v11888
    %v12249 = vpack.c.b16 %v11897, %v11893
    %v12250 = vpack.c.b16 %v11898, %v11894
    %v12251 = vpack.c.b16 %v11899, %v11895
    %v12252 = vpack.c.b16 %v11900, %v11896
    %12605 = vmatprep.subr.bf16.mxu0 %v11930
    %12606 = vmatpush1.bf16.msra.mxu0 %v11929
    %12607 = vmatprep.subr.bf16.mxu0 %v11926
    %12608 = vmatpush1.bf16.msra.mxu0 %v11925
    %12609 = vmatprep.subr.bf16.mxu0 %v11922
    %12610 = vmatpush1.bf16.msra.mxu0 %v11921
    %12611 = vmatprep.subr.bf16.mxu0 %v11918
    %12612 = vmatpush1.bf16.msra.mxu0 %v11917
    %12613 = vmatprep.subr.bf16.mxu0 %v11914
    %12614 = vmatpush1.bf16.msra.mxu0 %v11913
    %12615 = vmatprep.subr.bf16.mxu0 %v11910
    %12616 = vmatpush1.bf16.msra.mxu0 %v11909
    %12617 = vmatprep.subr.bf16.mxu0 %v11906
    %12618 = vmatpush1.bf16.msra.mxu0 %v11905
    %12619 = vmatprep.subr.bf16.mxu0 %v11902
    %12620 = vmatpush1.bf16.msra.mxu0 %v11901
    %12621 = vmatprep.subr.bf16.mxu0 %v11962
    %12622 = vmatpush2.bf16.msra.mxu0 %v11961
    %12623 = vmatprep.subr.bf16.mxu0 %v11958
    %12624 = vmatpush2.bf16.msra.mxu0 %v11957
    %12625 = vmatprep.subr.bf16.mxu0 %v11954
    %12626 = vmatpush2.bf16.msra.mxu0 %v11953
    %12627 = vmatprep.subr.bf16.mxu0 %v11950
    %12628 = vmatpush2.bf16.msra.mxu0 %v11949
    %12629 = vmatprep.subr.bf16.mxu0 %v11946
    %12630 = vmatpush2.bf16.msra.mxu0 %v11945
    %12631 = vmatprep.subr.bf16.mxu0 %v11942
    %12632 = vmatpush2.bf16.msra.mxu0 %v11941
    %12633 = vmatprep.subr.bf16.mxu0 %v11938
    %12634 = vmatpush2.bf16.msra.mxu0 %v11937
    %12635 = vmatprep.subr.bf16.mxu0 %v11934
    %12636 = vmatpush2.bf16.msra.mxu0 %v11933
    %12637 = vmatprep.mubr.bf16.mxu0 %v10824
    %12638 = vmatmul.mubr.bf16.gmra.mxu0 %v10823
    %v12639 = vpop.f32.mrf.mxu0
    %v12640 = vadd.f32 %v8529, %v12639
    %v12641 = vpop.f32.mrf.mxu0
    %v12642 = vadd.f32 %v8533, %v12641
    %v12643 = vpop.f32.mrf.mxu0
    %v12644 = vpop.f32.mrf.mxu0
    %12645 = vdwg.mxu0
    %12646 = vmatprep.subr.bf16.mxu0 %v11994
    %12647 = vmatpush1.bf16.msra.mxu0 %v11993
    %12648 = vmatprep.subr.bf16.mxu0 %v11990
    %12649 = vmatpush1.bf16.msra.mxu0 %v11989
    %12650 = vmatprep.subr.bf16.mxu0 %v11986
    %12651 = vmatpush1.bf16.msra.mxu0 %v11985
    %12652 = vmatprep.subr.bf16.mxu0 %v11982
    %12653 = vmatpush1.bf16.msra.mxu0 %v11981
    %12654 = vmatprep.subr.bf16.mxu0 %v11978
    %12655 = vmatpush1.bf16.msra.mxu0 %v11977
    %12656 = vmatprep.subr.bf16.mxu0 %v11974
    %12657 = vmatpush1.bf16.msra.mxu0 %v11973
    %12658 = vmatprep.subr.bf16.mxu0 %v11970
    %12659 = vmatpush1.bf16.msra.mxu0 %v11969
    %12660 = vmatprep.subr.bf16.mxu0 %v11966
    %12661 = vmatpush1.bf16.msra.mxu0 %v11965
    %12662 = vmatprep.subr.bf16.mxu0 %v12026
    %12663 = vmatpush2.bf16.msra.mxu0 %v12025
    %12664 = vmatprep.subr.bf16.mxu0 %v12022
    %12665 = vmatpush2.bf16.msra.mxu0 %v12021
    %12666 = vmatprep.subr.bf16.mxu0 %v12018
    %12667 = vmatpush2.bf16.msra.mxu0 %v12017
    %12668 = vmatprep.subr.bf16.mxu0 %v12014
    %12669 = vmatpush2.bf16.msra.mxu0 %v12013
    %12670 = vmatprep.subr.bf16.mxu0 %v12010
    %12671 = vmatpush2.bf16.msra.mxu0 %v12009
    %12672 = vmatprep.subr.bf16.mxu0 %v12006
    %12673 = vmatpush2.bf16.msra.mxu0 %v12005
    %12674 = vmatprep.subr.bf16.mxu0 %v12002
    %12675 = vmatpush2.bf16.msra.mxu0 %v12001
    %12676 = vmatprep.subr.bf16.mxu0 %v11998
    %12677 = vmatpush2.bf16.msra.mxu0 %v11997
    %12678 = vmatprep.mubr.bf16.mxu0 %v10826
    %12679 = vmatmul.mubr.bf16.gmra.mxu0 %v10825
    %v12680 = vpop.f32.mrf.mxu0
    %v12681 = vadd.f32 %v12640, %v12680
    %v12682 = vpop.f32.mrf.mxu0
    %v12683 = vadd.f32 %v12642, %v12682
    %v12684 = vpop.f32.mrf.mxu0
    %v12685 = vpop.f32.mrf.mxu0
    %12686 = vdwg.mxu0
    %12687 = vmatprep.subr.bf16.mxu0 %v12058
    %12688 = vmatpush1.bf16.msra.mxu0 %v12057
    %12689 = vmatprep.subr.bf16.mxu0 %v12054
    %12690 = vmatpush1.bf16.msra.mxu0 %v12053
    %12691 = vmatprep.subr.bf16.mxu0 %v12050
    %12692 = vmatpush1.bf16.msra.mxu0 %v12049
    %12693 = vmatprep.subr.bf16.mxu0 %v12046
    %12694 = vmatpush1.bf16.msra.mxu0 %v12045
    %12695 = vmatprep.subr.bf16.mxu0 %v12042
    %12696 = vmatpush1.bf16.msra.mxu0 %v12041
    %12697 = vmatprep.subr.bf16.mxu0 %v12038
    %12698 = vmatpush1.bf16.msra.mxu0 %v12037
    %12699 = vmatprep.subr.bf16.mxu0 %v12034
    %12700 = vmatpush1.bf16.msra.mxu0 %v12033
    %12701 = vmatprep.subr.bf16.mxu0 %v12030
    %12702 = vmatpush1.bf16.msra.mxu0 %v12029
    %12703 = vmatprep.subr.bf16.mxu0 %v12090
    %12704 = vmatpush2.bf16.msra.mxu0 %v12089
    %12705 = vmatprep.subr.bf16.mxu0 %v12086
    %12706 = vmatpush2.bf16.msra.mxu0 %v12085
    %12707 = vmatprep.subr.bf16.mxu0 %v12082
    %12708 = vmatpush2.bf16.msra.mxu0 %v12081
    %12709 = vmatprep.subr.bf16.mxu0 %v12078
    %12710 = vmatpush2.bf16.msra.mxu0 %v12077
    %12711 = vmatprep.subr.bf16.mxu0 %v12074
    %12712 = vmatpush2.bf16.msra.mxu0 %v12073
    %12713 = vmatprep.subr.bf16.mxu0 %v12070
    %12714 = vmatpush2.bf16.msra.mxu0 %v12069
    %12715 = vmatprep.subr.bf16.mxu0 %v12066
    %12716 = vmatpush2.bf16.msra.mxu0 %v12065
    %12717 = vmatprep.subr.bf16.mxu0 %v12062
    %12718 = vmatpush2.bf16.msra.mxu0 %v12061
    %12719 = vmatprep.mubr.bf16.mxu0 %v10828
    %12720 = vmatmul.mubr.bf16.gmra.mxu0 %v10827
    %v12721 = vpop.f32.mrf.mxu0
    %v12722 = vadd.f32 %v12681, %v12721
    %v12723 = vpop.f32.mrf.mxu0
    %v12724 = vadd.f32 %v12683, %v12723
    %v12725 = vpop.f32.mrf.mxu0
    %v12726 = vpop.f32.mrf.mxu0
    %12727 = vdwg.mxu0
    %12728 = vmatprep.subr.bf16.mxu0 %v12122
    %12729 = vmatpush1.bf16.msra.mxu0 %v12121
    %12730 = vmatprep.subr.bf16.mxu0 %v12118
    %12731 = vmatpush1.bf16.msra.mxu0 %v12117
    %12732 = vmatprep.subr.bf16.mxu0 %v12114
    %12733 = vmatpush1.bf16.msra.mxu0 %v12113
    %12734 = vmatprep.subr.bf16.mxu0 %v12110
    %12735 = vmatpush1.bf16.msra.mxu0 %v12109
    %12736 = vmatprep.subr.bf16.mxu0 %v12106
    %12737 = vmatpush1.bf16.msra.mxu0 %v12105
    %12738 = vmatprep.subr.bf16.mxu0 %v12102
    %12739 = vmatpush1.bf16.msra.mxu0 %v12101
    %12740 = vmatprep.subr.bf16.mxu0 %v12098
    %12741 = vmatpush1.bf16.msra.mxu0 %v12097
    %12742 = vmatprep.subr.bf16.mxu0 %v12094
    %12743 = vmatpush1.bf16.msra.mxu0 %v12093
    %12744 = vmatprep.subr.bf16.mxu0 %v12154
    %12745 = vmatpush2.bf16.msra.mxu0 %v12153
    %12746 = vmatprep.subr.bf16.mxu0 %v12150
    %12747 = vmatpush2.bf16.msra.mxu0 %v12149
    %12748 = vmatprep.subr.bf16.mxu0 %v12146
    %12749 = vmatpush2.bf16.msra.mxu0 %v12145
    %12750 = vmatprep.subr.bf16.mxu0 %v12142
    %12751 = vmatpush2.bf16.msra.mxu0 %v12141
    %12752 = vmatprep.subr.bf16.mxu0 %v12138
    %12753 = vmatpush2.bf16.msra.mxu0 %v12137
    %12754 = vmatprep.subr.bf16.mxu0 %v12134
    %12755 = vmatpush2.bf16.msra.mxu0 %v12133
    %12756 = vmatprep.subr.bf16.mxu0 %v12130
    %12757 = vmatpush2.bf16.msra.mxu0 %v12129
    %12758 = vmatprep.subr.bf16.mxu0 %v12126
    %12759 = vmatpush2.bf16.msra.mxu0 %v12125
    %12760 = vmatprep.mubr.bf16.mxu0 %v10830
    %12761 = vmatmul.mubr.bf16.gmra.mxu0 %v10829
    %v12762 = vpop.f32.mrf.mxu0
    %v12763 = vadd.f32 %v12722, %v12762
    %v12764 = vpop.f32.mrf.mxu0
    %v12765 = vadd.f32 %v12724, %v12764
    %v12766 = vpop.f32.mrf.mxu0
    %v12767 = vpop.f32.mrf.mxu0
    %12768 = vdwg.mxu0
    %12769 = vmatprep.subr.bf16.mxu0 %v12186
    %12770 = vmatpush1.bf16.msra.mxu0 %v12185
    %12771 = vmatprep.subr.bf16.mxu0 %v12182
    %12772 = vmatpush1.bf16.msra.mxu0 %v12181
    %12773 = vmatprep.subr.bf16.mxu0 %v12178
    %12774 = vmatpush1.bf16.msra.mxu0 %v12177
    %12775 = vmatprep.subr.bf16.mxu0 %v12174
    %12776 = vmatpush1.bf16.msra.mxu0 %v12173
    %12777 = vmatprep.subr.bf16.mxu0 %v12170
    %12778 = vmatpush1.bf16.msra.mxu0 %v12169
    %12779 = vmatprep.subr.bf16.mxu0 %v12166
    %12780 = vmatpush1.bf16.msra.mxu0 %v12165
    %12781 = vmatprep.subr.bf16.mxu0 %v12162
    %12782 = vmatpush1.bf16.msra.mxu0 %v12161
    %12783 = vmatprep.subr.bf16.mxu0 %v12158
    %12784 = vmatpush1.bf16.msra.mxu0 %v12157
    %12785 = vmatprep.subr.bf16.mxu0 %v12218
    %12786 = vmatpush2.bf16.msra.mxu0 %v12217
    %12787 = vmatprep.subr.bf16.mxu0 %v12214
    %12788 = vmatpush2.bf16.msra.mxu0 %v12213
    %12789 = vmatprep.subr.bf16.mxu0 %v12210
    %12790 = vmatpush2.bf16.msra.mxu0 %v12209
    %12791 = vmatprep.subr.bf16.mxu0 %v12206
    %12792 = vmatpush2.bf16.msra.mxu0 %v12205
    %12793 = vmatprep.subr.bf16.mxu0 %v12202
    %12794 = vmatpush2.bf16.msra.mxu0 %v12201
    %12795 = vmatprep.subr.bf16.mxu0 %v12198
    %12796 = vmatpush2.bf16.msra.mxu0 %v12197
    %12797 = vmatprep.subr.bf16.mxu0 %v12194
    %12798 = vmatpush2.bf16.msra.mxu0 %v12193
    %12799 = vmatprep.subr.bf16.mxu0 %v12190
    %12800 = vmatpush2.bf16.msra.mxu0 %v12189
    %12801 = vmatprep.mubr.bf16.mxu0 %v10832
    %12802 = vmatmul.mubr.bf16.gmra.mxu0 %v10831
    %v12803 = vpop.f32.mrf.mxu0
    %v12804 = vadd.f32 %v12763, %v12803
    %v12805 = vpop.f32.mrf.mxu0
    %v12806 = vadd.f32 %v12765, %v12805
    %v12807 = vpop.f32.mrf.mxu0
    %v12808 = vpop.f32.mrf.mxu0
    %12809 = vdwg.mxu0
    %12810 = vmatprep.subr.bf16.mxu0 %v12250
    %12811 = vmatpush1.bf16.msra.mxu0 %v12249
    %12812 = vmatprep.subr.bf16.mxu0 %v12246
    %12813 = vmatpush1.bf16.msra.mxu0 %v12245
    %12814 = vmatprep.subr.bf16.mxu0 %v12242
    %12815 = vmatpush1.bf16.msra.mxu0 %v12241
    %12816 = vmatprep.subr.bf16.mxu0 %v12238
    %12817 = vmatpush1.bf16.msra.mxu0 %v12237
    %12818 = vmatprep.subr.bf16.mxu0 %v12234
    %12819 = vmatpush1.bf16.msra.mxu0 %v12233
    %12820 = vmatprep.subr.bf16.mxu0 %v12230
    %12821 = vmatpush1.bf16.msra.mxu0 %v12229
    %12822 = vmatprep.subr.bf16.mxu0 %v12226
    %12823 = vmatpush1.bf16.msra.mxu0 %v12225
    %12824 = vmatprep.subr.bf16.mxu0 %v12222
    %12825 = vmatpush1.bf16.msra.mxu0 %v12221
    %12826 = vmatprep.subr.bf16.mxu0 0
    %12827 = vmatpush2.bf16.msra.mxu0 0
    %12828 = vmatprep.subr.bf16.mxu0 0
    %12829 = vmatpush2.bf16.msra.mxu0 0
    %12830 = vmatprep.subr.bf16.mxu0 0
    %12831 = vmatpush2.bf16.msra.mxu0 0
    %12832 = vmatprep.subr.bf16.mxu0 0
    %12833 = vmatpush2.bf16.msra.mxu0 0
    %12834 = vmatprep.subr.bf16.mxu0 0
    %12835 = vmatpush2.bf16.msra.mxu0 0
    %12836 = vmatprep.subr.bf16.mxu0 0
    %12837 = vmatpush2.bf16.msra.mxu0 0
    %12838 = vmatprep.subr.bf16.mxu0 0
    %12839 = vmatpush2.bf16.msra.mxu0 0
    %12840 = vmatprep.subr.bf16.mxu0 0
    %12841 = vmatpush2.bf16.msra.mxu0 0
    %12842 = vmatprep.mubr.bf16.mxu0 0
    %12843 = vmatmul.mubr.bf16.gmra.mxu0 %v10833
    %v12844 = vpop.f32.mrf.mxu0
    %v12845 = vadd.f32 %v12804, %v12844
    %v12846 = vpop.f32.mrf.mxu0
    %v12847 = vadd.f32 %v12806, %v12846
    %v12848 = vpop.f32.mrf.mxu0
    %v12849 = vpop.f32.mrf.mxu0
    %12850 = vdwg.mxu0
    %12851 = vmatprep.subr.bf16.mxu0 %v11932
    %12852 = vmatpush1.bf16.msra.mxu0 %v11931
    %12853 = vmatprep.subr.bf16.mxu0 %v11928
    %12854 = vmatpush1.bf16.msra.mxu0 %v11927
    %12855 = vmatprep.subr.bf16.mxu0 %v11924
    %12856 = vmatpush1.bf16.msra.mxu0 %v11923
    %12857 = vmatprep.subr.bf16.mxu0 %v11920
    %12858 = vmatpush1.bf16.msra.mxu0 %v11919
    %12859 = vmatprep.subr.bf16.mxu0 %v11916
    %12860 = vmatpush1.bf16.msra.mxu0 %v11915
    %12861 = vmatprep.subr.bf16.mxu0 %v11912
    %12862 = vmatpush1.bf16.msra.mxu0 %v11911
    %12863 = vmatprep.subr.bf16.mxu0 %v11908
    %12864 = vmatpush1.bf16.msra.mxu0 %v11907
    %12865 = vmatprep.subr.bf16.mxu0 %v11904
    %12866 = vmatpush1.bf16.msra.mxu0 %v11903
    %12867 = vmatprep.subr.bf16.mxu0 %v11964
    %12868 = vmatpush2.bf16.msra.mxu0 %v11963
    %12869 = vmatprep.subr.bf16.mxu0 %v11960
    %12870 = vmatpush2.bf16.msra.mxu0 %v11959
    %12871 = vmatprep.subr.bf16.mxu0 %v11956
    %12872 = vmatpush2.bf16.msra.mxu0 %v11955
    %12873 = vmatprep.subr.bf16.mxu0 %v11952
    %12874 = vmatpush2.bf16.msra.mxu0 %v11951
    %12875 = vmatprep.subr.bf16.mxu0 %v11948
    %12876 = vmatpush2.bf16.msra.mxu0 %v11947
    %12877 = vmatprep.subr.bf16.mxu0 %v11944
    %12878 = vmatpush2.bf16.msra.mxu0 %v11943
    %12879 = vmatprep.subr.bf16.mxu0 %v11940
    %12880 = vmatpush2.bf16.msra.mxu0 %v11939
    %12881 = vmatprep.subr.bf16.mxu0 %v11936
    %12882 = vmatpush2.bf16.msra.mxu0 %v11935
    %12883 = vmatprep.mubr.bf16.mxu0 %v10824
    %12884 = vmatmul.mubr.bf16.gmra.mxu0 %v10823
    %v12885 = vpop.f32.mrf.mxu0
    %v12886 = vadd.f32 %v8537, %v12885
    %v12887 = vpop.f32.mrf.mxu0
    %v12888 = vadd.f32 %v8541, %v12887
    %v12889 = vpop.f32.mrf.mxu0
    %v12890 = vpop.f32.mrf.mxu0
    %12891 = vdwg.mxu0
    %12892 = vmatprep.subr.bf16.mxu0 %v11996
    %12893 = vmatpush1.bf16.msra.mxu0 %v11995
    %12894 = vmatprep.subr.bf16.mxu0 %v11992
    %12895 = vmatpush1.bf16.msra.mxu0 %v11991
    %12896 = vmatprep.subr.bf16.mxu0 %v11988
    %12897 = vmatpush1.bf16.msra.mxu0 %v11987
    %12898 = vmatprep.subr.bf16.mxu0 %v11984
    %12899 = vmatpush1.bf16.msra.mxu0 %v11983
    %12900 = vmatprep.subr.bf16.mxu0 %v11980
    %12901 = vmatpush1.bf16.msra.mxu0 %v11979
    %12902 = vmatprep.subr.bf16.mxu0 %v11976
    %12903 = vmatpush1.bf16.msra.mxu0 %v11975
    %12904 = vmatprep.subr.bf16.mxu0 %v11972
    %12905 = vmatpush1.bf16.msra.mxu0 %v11971
    %12906 = vmatprep.subr.bf16.mxu0 %v11968
    %12907 = vmatpush1.bf16.msra.mxu0 %v11967
    %12908 = vmatprep.subr.bf16.mxu0 %v12028
    %12909 = vmatpush2.bf16.msra.mxu0 %v12027
    %12910 = vmatprep.subr.bf16.mxu0 %v12024
    %12911 = vmatpush2.bf16.msra.mxu0 %v12023
    %12912 = vmatprep.subr.bf16.mxu0 %v12020
    %12913 = vmatpush2.bf16.msra.mxu0 %v12019
    %12914 = vmatprep.subr.bf16.mxu0 %v12016
    %12915 = vmatpush2.bf16.msra.mxu0 %v12015
    %12916 = vmatprep.subr.bf16.mxu0 %v12012
    %12917 = vmatpush2.bf16.msra.mxu0 %v12011
    %12918 = vmatprep.subr.bf16.mxu0 %v12008
    %12919 = vmatpush2.bf16.msra.mxu0 %v12007
    %12920 = vmatprep.subr.bf16.mxu0 %v12004
    %12921 = vmatpush2.bf16.msra.mxu0 %v12003
    %12922 = vmatprep.subr.bf16.mxu0 %v12000
    %12923 = vmatpush2.bf16.msra.mxu0 %v11999
    %12924 = vmatprep.mubr.bf16.mxu0 %v10826
    %12925 = vmatmul.mubr.bf16.gmra.mxu0 %v10825
    %v12926 = vpop.f32.mrf.mxu0
    %v12927 = vadd.f32 %v12886, %v12926
    %v12928 = vpop.f32.mrf.mxu0
    %v12929 = vadd.f32 %v12888, %v12928
    %v12930 = vpop.f32.mrf.mxu0
    %v12931 = vpop.f32.mrf.mxu0
    %12932 = vdwg.mxu0
    %12933 = vmatprep.subr.bf16.mxu0 %v12060
    %12934 = vmatpush1.bf16.msra.mxu0 %v12059
    %12935 = vmatprep.subr.bf16.mxu0 %v12056
    %12936 = vmatpush1.bf16.msra.mxu0 %v12055
    %12937 = vmatprep.subr.bf16.mxu0 %v12052
    %12938 = vmatpush1.bf16.msra.mxu0 %v12051
    %12939 = vmatprep.subr.bf16.mxu0 %v12048
    %12940 = vmatpush1.bf16.msra.mxu0 %v12047
    %12941 = vmatprep.subr.bf16.mxu0 %v12044
    %12942 = vmatpush1.bf16.msra.mxu0 %v12043
    %12943 = vmatprep.subr.bf16.mxu0 %v12040
    %12944 = vmatpush1.bf16.msra.mxu0 %v12039
    %12945 = vmatprep.subr.bf16.mxu0 %v12036
    %12946 = vmatpush1.bf16.msra.mxu0 %v12035
    %12947 = vmatprep.subr.bf16.mxu0 %v12032
    %12948 = vmatpush1.bf16.msra.mxu0 %v12031
    %12949 = vmatprep.subr.bf16.mxu0 %v12092
    %12950 = vmatpush2.bf16.msra.mxu0 %v12091
    %12951 = vmatprep.subr.bf16.mxu0 %v12088
    %12952 = vmatpush2.bf16.msra.mxu0 %v12087
    %12953 = vmatprep.subr.bf16.mxu0 %v12084
    %12954 = vmatpush2.bf16.msra.mxu0 %v12083
    %12955 = vmatprep.subr.bf16.mxu0 %v12080
    %12956 = vmatpush2.bf16.msra.mxu0 %v12079
    %12957 = vmatprep.subr.bf16.mxu0 %v12076
    %12958 = vmatpush2.bf16.msra.mxu0 %v12075
    %12959 = vmatprep.subr.bf16.mxu0 %v12072
    %12960 = vmatpush2.bf16.msra.mxu0 %v12071
    %12961 = vmatprep.subr.bf16.mxu0 %v12068
    %12962 = vmatpush2.bf16.msra.mxu0 %v12067
    %12963 = vmatprep.subr.bf16.mxu0 %v12064
    %12964 = vmatpush2.bf16.msra.mxu0 %v12063
    %12965 = vmatprep.mubr.bf16.mxu0 %v10828
    %12966 = vmatmul.mubr.bf16.gmra.mxu0 %v10827
    %v12967 = vpop.f32.mrf.mxu0
    %v12968 = vadd.f32 %v12927, %v12967
    %v12969 = vpop.f32.mrf.mxu0
    %v12970 = vadd.f32 %v12929, %v12969
    %v12971 = vpop.f32.mrf.mxu0
    %v12972 = vpop.f32.mrf.mxu0
    %12973 = vdwg.mxu0
    %12974 = vmatprep.subr.bf16.mxu0 %v12124
    %12975 = vmatpush1.bf16.msra.mxu0 %v12123
    %12976 = vmatprep.subr.bf16.mxu0 %v12120
    %12977 = vmatpush1.bf16.msra.mxu0 %v12119
    %12978 = vmatprep.subr.bf16.mxu0 %v12116
    %12979 = vmatpush1.bf16.msra.mxu0 %v12115
    %12980 = vmatprep.subr.bf16.mxu0 %v12112
    %12981 = vmatpush1.bf16.msra.mxu0 %v12111
    %12982 = vmatprep.subr.bf16.mxu0 %v12108
    %12983 = vmatpush1.bf16.msra.mxu0 %v12107
    %12984 = vmatprep.subr.bf16.mxu0 %v12104
    %12985 = vmatpush1.bf16.msra.mxu0 %v12103
    %12986 = vmatprep.subr.bf16.mxu0 %v12100
    %12987 = vmatpush1.bf16.msra.mxu0 %v12099
    %12988 = vmatprep.subr.bf16.mxu0 %v12096
    %12989 = vmatpush1.bf16.msra.mxu0 %v12095
    %12990 = vmatprep.subr.bf16.mxu0 %v12156
    %12991 = vmatpush2.bf16.msra.mxu0 %v12155
    %12992 = vmatprep.subr.bf16.mxu0 %v12152
    %12993 = vmatpush2.bf16.msra.mxu0 %v12151
    %12994 = vmatprep.subr.bf16.mxu0 %v12148
    %12995 = vmatpush2.bf16.msra.mxu0 %v12147
    %12996 = vmatprep.subr.bf16.mxu0 %v12144
    %12997 = vmatpush2.bf16.msra.mxu0 %v12143
    %12998 = vmatprep.subr.bf16.mxu0 %v12140
    %12999 = vmatpush2.bf16.msra.mxu0 %v12139
    %13000 = vmatprep.subr.bf16.mxu0 %v12136
    %13001 = vmatpush2.bf16.msra.mxu0 %v12135
    %13002 = vmatprep.subr.bf16.mxu0 %v12132
    %13003 = vmatpush2.bf16.msra.mxu0 %v12131
    %13004 = vmatprep.subr.bf16.mxu0 %v12128
    %13005 = vmatpush2.bf16.msra.mxu0 %v12127
    %13006 = vmatprep.mubr.bf16.mxu0 %v10830
    %13007 = vmatmul.mubr.bf16.gmra.mxu0 %v10829
    %v13008 = vpop.f32.mrf.mxu0
    %v13009 = vadd.f32 %v12968, %v13008
    %v13010 = vpop.f32.mrf.mxu0
    %v13011 = vadd.f32 %v12970, %v13010
    %v13012 = vpop.f32.mrf.mxu0
    %v13013 = vpop.f32.mrf.mxu0
    %13014 = vdwg.mxu0
    %13015 = vmatprep.subr.bf16.mxu0 %v12188
    %13016 = vmatpush1.bf16.msra.mxu0 %v12187
    %13017 = vmatprep.subr.bf16.mxu0 %v12184
    %13018 = vmatpush1.bf16.msra.mxu0 %v12183
    %13019 = vmatprep.subr.bf16.mxu0 %v12180
    %13020 = vmatpush1.bf16.msra.mxu0 %v12179
    %13021 = vmatprep.subr.bf16.mxu0 %v12176
    %13022 = vmatpush1.bf16.msra.mxu0 %v12175
    %13023 = vmatprep.subr.bf16.mxu0 %v12172
    %13024 = vmatpush1.bf16.msra.mxu0 %v12171
    %13025 = vmatprep.subr.bf16.mxu0 %v12168
    %13026 = vmatpush1.bf16.msra.mxu0 %v12167
    %13027 = vmatprep.subr.bf16.mxu0 %v12164
    %13028 = vmatpush1.bf16.msra.mxu0 %v12163
    %13029 = vmatprep.subr.bf16.mxu0 %v12160
    %13030 = vmatpush1.bf16.msra.mxu0 %v12159
    %13031 = vmatprep.subr.bf16.mxu0 %v12220
    %13032 = vmatpush2.bf16.msra.mxu0 %v12219
    %13033 = vmatprep.subr.bf16.mxu0 %v12216
    %13034 = vmatpush2.bf16.msra.mxu0 %v12215
    %13035 = vmatprep.subr.bf16.mxu0 %v12212
    %13036 = vmatpush2.bf16.msra.mxu0 %v12211
    %13037 = vmatprep.subr.bf16.mxu0 %v12208
    %13038 = vmatpush2.bf16.msra.mxu0 %v12207
    %13039 = vmatprep.subr.bf16.mxu0 %v12204
    %13040 = vmatpush2.bf16.msra.mxu0 %v12203
    %13041 = vmatprep.subr.bf16.mxu0 %v12200
    %13042 = vmatpush2.bf16.msra.mxu0 %v12199
    %13043 = vmatprep.subr.bf16.mxu0 %v12196
    %13044 = vmatpush2.bf16.msra.mxu0 %v12195
    %13045 = vmatprep.subr.bf16.mxu0 %v12192
    %13046 = vmatpush2.bf16.msra.mxu0 %v12191
    %13047 = vmatprep.mubr.bf16.mxu0 %v10832
    %13048 = vmatmul.mubr.bf16.gmra.mxu0 %v10831
    %v13049 = vpop.f32.mrf.mxu0
    %v13050 = vadd.f32 %v13009, %v13049
    %v13051 = vpop.f32.mrf.mxu0
    %v13052 = vadd.f32 %v13011, %v13051
    %v13053 = vpop.f32.mrf.mxu0
    %v13054 = vpop.f32.mrf.mxu0
    %13055 = vdwg.mxu0
    %13056 = vmatprep.subr.bf16.mxu0 %v12252
    %13057 = vmatpush1.bf16.msra.mxu0 %v12251
    %13058 = vmatprep.subr.bf16.mxu0 %v12248
    %13059 = vmatpush1.bf16.msra.mxu0 %v12247
    %13060 = vmatprep.subr.bf16.mxu0 %v12244
    %13061 = vmatpush1.bf16.msra.mxu0 %v12243
    %13062 = vmatprep.subr.bf16.mxu0 %v12240
    %13063 = vmatpush1.bf16.msra.mxu0 %v12239
    %13064 = vmatprep.subr.bf16.mxu0 %v12236
    %13065 = vmatpush1.bf16.msra.mxu0 %v12235
    %13066 = vmatprep.subr.bf16.mxu0 %v12232
    %13067 = vmatpush1.bf16.msra.mxu0 %v12231
    %13068 = vmatprep.subr.bf16.mxu0 %v12228
    %13069 = vmatpush1.bf16.msra.mxu0 %v12227
    %13070 = vmatprep.subr.bf16.mxu0 %v12224
    %13071 = vmatpush1.bf16.msra.mxu0 %v12223
    %13072 = vmatprep.subr.bf16.mxu0 0
    %13073 = vmatpush2.bf16.msra.mxu0 0
    %13074 = vmatprep.subr.bf16.mxu0 0
    %13075 = vmatpush2.bf16.msra.mxu0 0
    %13076 = vmatprep.subr.bf16.mxu0 0
    %13077 = vmatpush2.bf16.msra.mxu0 0
    %13078 = vmatprep.subr.bf16.mxu0 0
    %13079 = vmatpush2.bf16.msra.mxu0 0
    %13080 = vmatprep.subr.bf16.mxu0 0
    %13081 = vmatpush2.bf16.msra.mxu0 0
    %13082 = vmatprep.subr.bf16.mxu0 0
    %13083 = vmatpush2.bf16.msra.mxu0 0
    %13084 = vmatprep.subr.bf16.mxu0 0
    %13085 = vmatpush2.bf16.msra.mxu0 0
    %13086 = vmatprep.subr.bf16.mxu0 0
    %13087 = vmatpush2.bf16.msra.mxu0 0
    %13088 = vmatprep.mubr.bf16.mxu0 0
    %13089 = vmatmul.mubr.bf16.gmra.mxu0 %v10833
    %v13090 = vpop.f32.mrf.mxu0
    %v13091 = vadd.f32 %v13050, %v13090
    %v13092 = vpop.f32.mrf.mxu0
    %v13093 = vadd.f32 %v13052, %v13092
    %v13094 = vpop.f32.mrf.mxu0
    %v13095 = vpop.f32.mrf.mxu0
    %13096 = vdwg.mxu0
    %v13101 = vcombine.low %v12845, %v12847
    %v13102 = vcombine.low %v13091, %v13093
    %v13104 = vunpack.c.l.s4 1983009808
    %v13105 = vunpack.c.0.s8 %v13104
    %v13106 = vlaneseq
    %v13107 = vshrl.u32 %v13106, 7
    %v13108 = vsub.s32 %v13105, %v13107
    %v13109 = vrot.slane %v13101, %v13108
    %v13111 = vunpack.c.l.s4 1983009808
    %v13112 = vunpack.c.0.s8 %v13111
    %v13113 = vlaneseq
    %v13114 = vshrl.u32 %v13113, 7
    %v13115 = vsub.s32 %v13112, %v13114
    %v13116 = vrot.slane %v13102, %v13115
    %v13117 = vcombine.low %v13109, %v13116
    %13119 = vst [vmem:[#allocation4] sm:$0xff] %v13117
    // Predicated region
    $region18: #{siamese_forward.1} parent=1 // pred_check
      _
    $region19: #{siamese_forward.1} parent=1 // pred_check_branch
      %13121 = sbr.rel (0) target = $region21
    $region20: #{siamese_forward.1} parent=1 // pred_region
      %s13123 = ssub.s32 128, 128
      %13124 = vsyncadd [#allocation3], %s13123
      %s13126 = sshll.u32 [#allocation2], 4
      %s13127 = int_to_ptr.vmem [resolvable:$true] %s13126
      %13129 = dma.vmem_to_hbm [thread:$0]  %s13127, 128, %s4, [#allocation3]
    $region21: #{siamese_forward.1} parent=1 // pred_fallthru
      _
    // Predicated region
    $region22: #{siamese_forward.1} parent=1 // pred_check
      _
    $region23: #{siamese_forward.1} parent=1 // pred_check_branch
      %13131 = sbr.rel (0) target = $region25
    $region24: #{siamese_forward.1} parent=1 // pred_region
      %s13133 = ssub.s32 128, 128
      %13134 = vsyncadd [#allocation5], %s13133
      %s13136 = sshll.u32 [#allocation4], 4
      %s13137 = int_to_ptr.vmem [resolvable:$true] %s13136
      %13139 = dma.vmem_to_hbm [thread:$0]  %s13137, 128, %s5, [#allocation5]
    $region25: #{siamese_forward.1} parent=1 // pred_fallthru
      _
    // Predicated region
    $region26: #{siamese_forward.1} parent=1 // pred_check
      _
    $region27: #{siamese_forward.1} parent=1 // pred_check_branch
      %13141 = sbr.rel (0) target = $region29
    $region28: #{siamese_forward.1} parent=1 // pred_region
      %13142 = dma.done [#allocation3], 128
    $region29: #{siamese_forward.1} parent=1 // pred_fallthru
      _
    // Predicated region
    $region30: #{siamese_forward.1} parent=1 // pred_check
      _
    $region31: #{siamese_forward.1} parent=1 // pred_check_branch
      %13144 = sbr.rel (0) target = $region33
    $region32: #{siamese_forward.1} parent=1 // pred_region
      %13145 = dma.done [#allocation5], 128
    $region33: #{siamese_forward.1} parent=1 // pred_fallthru
      _
    %13146 = vsyncpa [#allocation3], 1
    %13147 = vsyncpa [#allocation5], 1

</llo_original>
